<compile_context>
chip_gen: v7x
topology: tpu7x:2x2x1
jax: 0.10.0
libtpu: 0.0.40
codegen_flags: <defaults>
</compile_context>

<pallas_src>
import functools

import numpy as np
import jax
import jax.numpy as jnp
from jax.experimental import pallas as pl
from jax.experimental.pallas import tpu as pltpu

NEG_SLOPE = 0.01  # nn.LeakyReLU default negative_slope


def _lrelu(x):
    return jnp.where(x >= 0, x, NEG_SLOPE * x)


# ------------------------------------------------------------- kernel --------

def _conv_block(a, w_ref, b_ref, h_per_sample, k, pad):
    """LeakyReLU(conv2d(a) + b) on a batched (rows, Win*Cin) f32 slab.

    Vertical taps = pltpu.roll + row-validity mask (rows that would cross a
    sample boundary / the zero padding are masked to 0); horizontal taps and
    their zero padding are folded into the block-Toeplitz matrices w_ref[i]
    (bf16).  MXU accumulates in f32; bias/activation stay f32.
    """
    rows = a.shape[0]
    mxu_dtype = w_ref.dtype
    hidx = jax.lax.broadcasted_iota(jnp.int32, (rows, 1), 0) % h_per_sample
    acc = b_ref[...]                                   # (1, Wout*Cout) f32
    for i in range(k):
        dy = i - pad
        if dy == 0:
            src = a
        else:
            src = pltpu.roll(a, shift=(-dy) % rows, axis=0)
            valid = jnp.logical_and(hidx + dy >= 0, hidx + dy < h_per_sample)
            src = jnp.where(valid, src, 0.0)
        acc = acc + jnp.dot(src.astype(mxu_dtype), w_ref[i],
                            preferred_element_type=jnp.float32)
    return _lrelu(acc)


def _pool_cols(a, c_ref):
    """Horizontal half of MaxPool2d(2,2): exact 0/1 column-selection matmuls."""
    a_mx = a.astype(c_ref.dtype)
    return jnp.maximum(
        jnp.dot(a_mx, c_ref[0], preferred_element_type=jnp.float32),
        jnp.dot(a_mx, c_ref[1], preferred_element_type=jnp.float32))


def fused_cnn_kernel(x_ref,
                     wc1_ref, bc1_ref, wc11_ref, bc11_ref, c1_ref,
                     wc2_ref, bc2_ref, wc22_ref, bc22_ref, c2_ref,
                     w1_ref, b1_ref, w2_ref, b2_ref,
                     o_ref, p1_scr, p2_scr,
                     *, h1, h2, k, pad, tb):
    a = x_ref[...]                                     # (tb*h1, W*Cin) f32

    # conv1 / conv1_1 (+ LeakyReLU)
    a = _conv_block(a, wc1_ref, bc1_ref, h1, k, pad)
    a = _conv_block(a, wc11_ref, bc11_ref, h1, k, pad)

    # pool1: rows via roll+max and a stride-2 sublane read (h1 is even, so the
    # global stride-2 pattern never crosses a sample boundary); columns via the
    # exact 0/1 selection matmuls.
    p1_scr[...] = jnp.maximum(a, pltpu.roll(a, shift=a.shape[0] - 1, axis=0))
    a = p1_scr[pl.ds(0, p1_scr.shape[0] // 2, stride=2), :]
    a = _pool_cols(a, c1_ref)                          # (tb*h2, W2*C1)

    # conv2 / conv2_2 (+ LeakyReLU)
    a = _conv_block(a, wc2_ref, bc2_ref, h2, k, pad)
    a = _conv_block(a, wc22_ref, bc22_ref, h2, k, pad)

    # pool2 (h2 may be odd -> floor mode drops the last row): roll+max pairs
    # row g with row g+1; column-pool, then per-sample rows 0, 2, ... are
    # picked with stride-h2 sublane reads — already split per pooled output
    # row, exactly how fc1 consumes them.
    m2 = jnp.maximum(a, pltpu.roll(a, shift=a.shape[0] - 1, axis=0))
    p2_scr[...] = _pool_cols(m2, c2_ref)               # (tb*h2, Wf*Cf)

    # fc1 (+ LeakyReLU): one (tb, Wf*Cf) @ (Wf*Cf, 16) dot per pooled row.
    h = b1_ref[...]                                    # (1, 16) f32
    for j in range(w1_ref.shape[0]):                   # hf = h2 // 2 rows
        pj = p2_scr[pl.ds(2 * j, tb, stride=h2), :]    # (tb, Wf*Cf)
        h = h + jnp.dot(pj.astype(w1_ref.dtype), w1_ref[j],
                        preferred_element_type=jnp.float32)
    h = _lrelu(h)                                      # (tb, 16)
    # TODO(synk): Dropout(p=0.25) implemented as identity (eval-mode semantics).

    # fc2, emitted lane-dense: (1, 16) x (tb, 16)^T -> (1, tb).
    y = jax.lax.dot_general(w2_ref[...], h, (((1,), (1,)), ((), ())),
                            preferred_element_type=jnp.float32)
    o_ref[0] = y + b2_ref[...]


# ----------------------------------------------- host-side weight prep -------

def _conv_weight_mats(w_oihw, w_in, k, pad):
    """Block-Toeplitz per-vertical-tap matrices with the horizontal zero
    padding folded in: (k, Win*Cin, Wout*Cout)."""
    w_np = np.asarray(w_oihw, np.float32)              # (Cout, Cin, kh, kw)
    cout, cin = w_np.shape[0], w_np.shape[1]
    w_out = w_in + 2 * pad - k + 1
    mats = np.zeros((k, w_in * cin, w_out * cout), np.float32)
    for i in range(k):
        for j in range(k):
            blk = w_np[:, :, i, j].T                   # (Cin, Cout)
            for wo in range(w_out):
                wi = wo + j - pad
                if 0 <= wi < w_in:
                    mats[i, wi * cin:(wi + 1) * cin,
                         wo * cout:(wo + 1) * cout] = blk
    return mats


def _bias_row(b, w_out):
    return np.tile(np.asarray(b, np.float32), w_out)[None, :]


def _pool_col_sel(w_in, c):
    """Exact 0/1 even/odd column-selection matrices: (2, Win*C, Wout*C)."""
    w_out = w_in // 2
    s = np.zeros((2, w_in * c, w_out * c), np.float32)
    for wo in range(w_out):
        for cc in range(c):
            s[0, (2 * wo) * c + cc, wo * c + cc] = 1.0
            s[1, (2 * wo + 1) * c + cc, wo * c + cc] = 1.0
    return s


def prepare_params(params, k, height, width, pad=1, mxu_dtype=jnp.bfloat16):
    """One-time host-side transform of PyTorch-layout params into the matmul
    operands consumed by the fused kernel.  MXU operands are bf16 (the kernel
    accumulates in f32); biases stay f32."""
    # TODO(synk): the batched roll/mask conv assumes 'same' convolutions
    # (k == 2*pad + 1) and an even input height, which holds for this module
    # (padding=1, k=3, 10x10 probe in _compute_fc1_size).
    assert k == 2 * pad + 1, "fused kernel requires 'same' convolutions"
    assert height % 2 == 0, "fused kernel requires an even input height"
    h, w = height, width
    cin = int(np.asarray(params['conv1_w']).shape[1])

    wc1 = _conv_weight_mats(params['conv1_w'], w, k, pad)
    bc1 = _bias_row(params['conv1_b'], w)
    wc11 = _conv_weight_mats(params['conv1_1_w'], w, k, pad)
    bc11 = _bias_row(params['conv1_1_b'], w)
    c1ch = int(np.asarray(params['conv1_1_w']).shape[0])
    c1 = _pool_col_sel(w, c1ch)
    h2, w2 = h // 2, w // 2

    wc2 = _conv_weight_mats(params['conv2_w'], w2, k, pad)
    bc2 = _bias_row(params['conv2_b'], w2)
    wc22 = _conv_weight_mats(params['conv2_2_w'], w2, k, pad)
    bc22 = _bias_row(params['conv2_2_b'], w2)
    c2ch = int(np.asarray(params['conv2_2_w']).shape[0])
    c2 = _pool_col_sel(w2, c2ch)
    hf, wf = h2 // 2, w2 // 2

    fc1_w = np.asarray(params['fc1_w'], np.float32)    # (Cf*Hf*Wf, 16), (in,out)
    n_hid = fc1_w.shape[1]
    assert fc1_w.shape[0] == c2ch * hf * wf
    # fold PyTorch NCHW flatten (c, h, w) into fc1 rows -> per-h (w, c) blocks
    w1p = (fc1_w.reshape(c2ch, hf, wf, n_hid)
                .transpose(1, 2, 0, 3)
                .reshape(hf, wf * c2ch, n_hid))
    b1 = np.asarray(params['fc1_b'], np.float32)[None, :]
    w2fc = np.asarray(params['fc2_w'], np.float32).T   # (1, 16)
    b2 = np.asarray(params['fc2_b'], np.float32)[None, :]

    mx = lambda a: jnp.asarray(a, mxu_dtype)
    f32 = lambda a: jnp.asarray(a, jnp.float32)
    arrs = (mx(wc1), f32(bc1), mx(wc11), f32(bc11), mx(c1),
            mx(wc2), f32(bc2), mx(wc22), f32(bc22), mx(c2),
            mx(w1p), f32(b1), f32(w2fc), f32(b2))
    meta = dict(h_in=h, w_in=width, c_in=cin, k=k, pad=pad, h2=h2,
                pool1_cols=w * c1ch, pool2_cols=wf * c2ch)
    return arrs, meta


# -------------------------------------------------------------- forward ------

def _pick_tile_batch(b, h, max_rows):
    """Samples per grid step: as many as fit ~max_rows sublanes with TB*h a
    multiple of 8 (keeps row blocks 8-sublane aligned).  max_rows=256 targets
    the v6e/v7x MXU; 128 also works well on v5e."""
    cap = max(1, max_rows // h)
    cands = [t for t in range(1, cap + 1) if (t * h) % 8 == 0]
    if not cands:
        return b                       # single full-array block (always legal)
    for t in cands:
        if t >= b:
            return t                   # small batches: one (padded) block
    return cands[-1]                   # large batches: biggest aligned tile


def _cost_estimate(arrs, tb, h1, h2, num_blocks, in_bytes, out_bytes):
    (wc1, _, wc11, _, c1, wc2, _, wc22, _, c2, w1p, _, w2, _) = arrs
    r1, r2 = tb * h1, tb * h2
    fl = 0
    for wm, rows in ((wc1, r1), (wc11, r1), (wc2, r2), (wc22, r2)):
        fl += 2 * wm.shape[0] * rows * wm.shape[1] * wm.shape[2]
    fl += 2 * 2 * r2 * c1.shape[1] * c1.shape[2]       # pool1 column matmuls
    fl += 2 * 2 * r2 * c2.shape[1] * c2.shape[2]       # pool2 column matmuls
    fl += 2 * w1p.shape[0] * tb * w1p.shape[1] * w1p.shape[2]
    fl += 2 * tb * w2.shape[1]
    w_bytes = sum(int(np.prod(a.shape)) * a.dtype.itemsize for a in arrs)
    return pl.CostEstimate(flops=int(fl) * num_blocks, transcendentals=0,
                           bytes_accessed=int(in_bytes + out_bytes + w_bytes))


def fused_forward(arrs, x_nchw, *, meta, max_rows=256):
    """Run the fused kernel on an NCHW batch; mirrors np.squeeze(output)."""
    b, cin, h, w = x_nchw.shape
    assert (cin, h, w) == (meta['c_in'], meta['h_in'], meta['w_in']), (
        "input must match the shapes the params were prepared for")
    tb = _pick_tile_batch(b, h, max_rows)
    nblk = -(-b // tb)
    b_pad = nblk * tb

    xp = x_nchw.astype(jnp.float32)
    if b_pad != b:
        xp = jnp.pad(xp, ((0, b_pad - b), (0, 0), (0, 0), (0, 0)))
    # NCHW -> (B*H, W*C) channels-last slab (cheap one-time XLA op)
    a0 = jnp.transpose(xp, (0, 2, 3, 1)).reshape(b_pad * h, w * cin)

    in_specs = [pl.BlockSpec((tb * h, w * cin), lambda i: (i, 0))]
    for arr in arrs:
        # Weight operands: constant index_map -> fetched once, kept resident.
        in_specs.append(pl.BlockSpec(arr.shape, lambda i, n=arr.ndim: (0,) * n))

    kernel = functools.partial(fused_cnn_kernel, h1=h, h2=meta['h2'],
                               k=meta['k'], pad=meta['pad'], tb=tb)
    out = pl.pallas_call(
        kernel,
        out_shape=jax.ShapeDtypeStruct((nblk, 1, tb), jnp.float32),
        grid=(nblk,),
        in_specs=in_specs,
        out_specs=pl.BlockSpec((1, 1, tb), lambda i: (i, 0, 0)),
        scratch_shapes=[
            pltpu.VMEM((tb * h, meta['pool1_cols']), jnp.float32),
            pltpu.VMEM((tb * meta['h2'], meta['pool2_cols']), jnp.float32),
        ],
        compiler_params=pltpu.CompilerParams(
            dimension_semantics=("parallel",)),
        cost_estimate=_cost_estimate(arrs, tb, h, meta['h2'], nblk,
                                     a0.size * 4, b_pad * 4),
    )(a0, *arrs)
    return jnp.squeeze(out.reshape(-1)[:b])            # mirrors np.squeeze


# ------------------------------------------------------------ param setup ----

def compute_fc1_size(hidden_size, k):
    # mirrors ParameterizedCNN._compute_fc1_size (dummy 10x10 spatial probe)
    def conv(s):
        return s + 2 * 1 - k + 1
    h = w = 10
    h, w = conv(h), conv(w)          # conv1
    h, w = conv(h), conv(w)          # conv1_1
    h, w = h // 2, w // 2            # pool1
    h, w = conv(h), conv(w)          # conv2
    h, w = conv(h), conv(w)          # conv2_2
    h, w = h // 2, w // 2            # pool2
    return hidden_size * 2 * h * w


def init_params(key, input_channels, hidden_size, k):
    """PyTorch-default-style init (U(+-1/sqrt(fan_in)) weights and biases)."""
    fc1_in = compute_fc1_size(hidden_size, k)
    ks = jax.random.split(key, 12)

    def unif(kk, shape, fan_in):
        bound = 1.0 / float(fan_in) ** 0.5
        return jax.random.uniform(kk, shape, jnp.float32, -bound, bound)

    def conv_w(kk, cout, cin):
        return unif(kk, (cout, cin, k, k), cin * k * k)

    return {
        'conv1_w':   conv_w(ks[0], hidden_size, input_channels),
        'conv1_b':   unif(ks[1], (hidden_size,), input_channels * k * k),
        'conv1_1_w': conv_w(ks[2], hidden_size, hidden_size),
        'conv1_1_b': unif(ks[3], (hidden_size,), hidden_size * k * k),
        'conv2_w':   conv_w(ks[4], hidden_size * 2, hidden_size),
        'conv2_b':   unif(ks[5], (hidden_size * 2,), hidden_size * k * k),
        'conv2_2_w': conv_w(ks[6], hidden_size * 2, hidden_size * 2),
        'conv2_2_b': unif(ks[7], (hidden_size * 2,), hidden_size * 2 * k * k),
        'fc1_w':     unif(ks[8], (fc1_in, 16), fc1_in),   # stored as (in, out)
        'fc1_b':     unif(ks[9], (16,), fc1_in),
        'fc2_w':     unif(ks[10], (16, 1), 16),
        'fc2_b':     unif(ks[11], (1,), 16),
    }


def reference_forward(params, x):
    """Pure-JAX f32 reference of ParameterizedCNN.forward (eval mode)."""
    hi = jax.lax.Precision.HIGHEST

    def conv(a, wk, bk):
        y = jax.lax.conv_general_dilated(
            a, params[wk], window_strides=(1, 1), padding=((1, 1), (1, 1)),
            dimension_numbers=('NCHW', 'OIHW', 'NCHW'), precision=hi)
        return _lrelu(y + params[bk][None, :, None, None])

    def pool(a):
        return jax.lax.reduce_window(a, -jnp.inf, jax.lax.max,
                                     (1, 1, 2, 2), (1, 1, 2, 2), 'VALID')

    a = conv(x, 'conv1_w', 'conv1_b')
    a = conv(a, 'conv1_1_w', 'conv1_1_b')
    a = pool(a)
    a = conv(a, 'conv2_w', 'conv2_b')
    a = conv(a, 'conv2_2_w', 'conv2_2_b')
    a = pool(a)
    a = a.reshape(a.shape[0], -1)
    h = _lrelu(jnp.dot(a, params['fc1_w'], precision=hi) + params['fc1_b'])
    y = jnp.dot(h, params['fc2_w'], precision=hi) + params['fc2_b']
    return jnp.squeeze(y)


if __name__ == "__main__":
    # The module's _compute_fc1_size probes with (3, 57, 10, 10), so the
    # forward is only shape-consistent for 57-channel 10x10 inputs.
    input_channels, hidden_size, kernel_size = 57, 8, 3
    batch = 48        # two grid steps of 24 samples (240 rows) -> both v7x TCs busy

    key = jax.random.PRNGKey(0)
    kx, kp = jax.random.split(key)
    x = jax.random.normal(kx, (batch, input_channels, 10, 10), jnp.float32)
    params = init_params(kp, input_channels, hidden_size, kernel_size)

    arrs, meta = prepare_params(params, kernel_size, 10, 10)  # one-time host prep
    fwd = jax.jit(functools.partial(fused_forward, meta=meta))
    out = fwd(arrs, x)
    out = jax.block_until_ready(out)
    assert out.shape == (batch,), out.shape
    assert out.dtype == jnp.float32

    # Tolerance-gate the bf16-MXU drift against a pure-JAX f32 reference.
    ref = np.asarray(jax.block_until_ready(reference_forward(params, x)))
    assert np.allclose(np.asarray(out), ref, rtol=5e-2, atol=5e-2), \
        float(np.max(np.abs(np.asarray(out) - ref)))
    print("KERNEL_OK")
</pallas_src>

<mosaic_0001>
module attributes {stable_mosaic.version = 11 : i64} {
  func.func @fused_cnn_kernel(%arg0: i32, %arg1: memref<240x570xf32, #tpu.memory_space<vmem>>, %arg2: memref<3x570x80xbf16, #tpu.memory_space<vmem>>, %arg3: memref<1x80xf32, #tpu.memory_space<vmem>>, %arg4: memref<3x80x80xbf16, #tpu.memory_space<vmem>>, %arg5: memref<1x80xf32, #tpu.memory_space<vmem>>, %arg6: memref<2x80x40xbf16, #tpu.memory_space<vmem>>, %arg7: memref<3x40x80xbf16, #tpu.memory_space<vmem>>, %arg8: memref<1x80xf32, #tpu.memory_space<vmem>>, %arg9: memref<3x80x80xbf16, #tpu.memory_space<vmem>>, %arg10: memref<1x80xf32, #tpu.memory_space<vmem>>, %arg11: memref<2x80x32xbf16, #tpu.memory_space<vmem>>, %arg12: memref<2x32x16xbf16, #tpu.memory_space<vmem>>, %arg13: memref<1x16xf32, #tpu.memory_space<vmem>>, %arg14: memref<1x16xf32, #tpu.memory_space<vmem>>, %arg15: memref<1x1xf32, #tpu.memory_space<vmem>>, %arg16: memref<1x1x24xf32, #tpu.memory_space<vmem>>, %arg17: memref<240x80xf32, #tpu.memory_space<vmem>>, %arg18: memref<120x32xf32, #tpu.memory_space<vmem>>) attributes {dimension_semantics = [#tpu.dimension_semantics<parallel>], iteration_bounds = array<i64: 2>, scalar_prefetch = 0 : i64, scratch_operands = 2 : i64, tpu.core_type = #tpu.core_type<tc>, window_params = [{transform_indices = @transform_0, window_bounds = array<i64: 240, 570>}, {pipeline_mode = #tpu.pipeline_mode<synchronous>, transform_indices = @transform_1, window_bounds = array<i64: 3, 570, 80>}, {pipeline_mode = #tpu.pipeline_mode<synchronous>, transform_indices = @transform_2, window_bounds = array<i64: 1, 80>}, {pipeline_mode = #tpu.pipeline_mode<synchronous>, transform_indices = @transform_3, window_bounds = array<i64: 3, 80, 80>}, {pipeline_mode = #tpu.pipeline_mode<synchronous>, transform_indices = @transform_4, window_bounds = array<i64: 1, 80>}, {pipeline_mode = #tpu.pipeline_mode<synchronous>, transform_indices = @transform_5, window_bounds = array<i64: 2, 80, 40>}, {pipeline_mode = #tpu.pipeline_mode<synchronous>, transform_indices = @transform_6, window_bounds = array<i64: 3, 40, 80>}, {pipeline_mode = #tpu.pipeline_mode<synchronous>, transform_indices = @transform_7, window_bounds = array<i64: 1, 80>}, {pipeline_mode = #tpu.pipeline_mode<synchronous>, transform_indices = @transform_8, window_bounds = array<i64: 3, 80, 80>}, {pipeline_mode = #tpu.pipeline_mode<synchronous>, transform_indices = @transform_9, window_bounds = array<i64: 1, 80>}, {pipeline_mode = #tpu.pipeline_mode<synchronous>, transform_indices = @transform_10, window_bounds = array<i64: 2, 80, 32>}, {pipeline_mode = #tpu.pipeline_mode<synchronous>, transform_indices = @transform_11, window_bounds = array<i64: 2, 32, 16>}, {pipeline_mode = #tpu.pipeline_mode<synchronous>, transform_indices = @transform_12, window_bounds = array<i64: 1, 16>}, {pipeline_mode = #tpu.pipeline_mode<synchronous>, transform_indices = @transform_13, window_bounds = array<i64: 1, 16>}, {pipeline_mode = #tpu.pipeline_mode<synchronous>, transform_indices = @transform_14, window_bounds = array<i64: 1, 1>}, {transform_indices = @transform_15, window_bounds = array<i64: 1, 1, 24>}]} {
    %c0 = arith.constant 0 : index
    %c0_0 = arith.constant 0 : index
    %0 = vector.load %arg1[%c0, %c0_0] : memref<240x570xf32, #tpu.memory_space<vmem>>, vector<240x570xf32>
    %1 = tpu.iota {dimensions = array<i32: 0>} : vector<240x1xi32>
    %c10_i32 = arith.constant 10 : i32
    %c0_i32 = arith.constant 0 : i32
    %2 = arith.cmpi eq, %c10_i32, %c0_i32 : i32
    %c1_i32 = arith.constant 1 : i32
    %3 = arith.select %2, %c1_i32, %c10_i32 : i32
    %4 = vector.broadcast %3 : i32 to vector<240x1xi32>
    %5 = arith.remsi %1, %4 : vector<240x1xi32>
    %c0_i32_1 = arith.constant 0 : i32
    %6 = vector.broadcast %c0_i32_1 : i32 to vector<240x1xi32>
    %7 = arith.cmpi ne, %5, %6 : vector<240x1xi32>
    %c0_i32_2 = arith.constant 0 : i32
    %8 = vector.broadcast %c0_i32_2 : i32 to vector<240x1xi32>
    %9 = arith.cmpi slt, %5, %8 : vector<240x1xi32>
    %c0_i32_3 = arith.constant 0 : i32
    %10 = arith.cmpi slt, %3, %c0_i32_3 : i32
    %11 = vector.broadcast %10 : i1 to vector<240x1xi1>
    %12 = vector.broadcast %11 : vector<240x1xi1> to vector<240x1xi1>
    %13 = arith.xori %9, %12 : vector<240x1xi1>
    %14 = arith.andi %13, %7 : vector<240x1xi1>
    %15 = vector.broadcast %3 : i32 to vector<240x1xi32>
    %16 = arith.addi %5, %15 : vector<240x1xi32>
    %17 = arith.select %14, %16, %5 : vector<240x1xi1>, vector<240x1xi32>
    %c0_4 = arith.constant 0 : index
    %c0_5 = arith.constant 0 : index
    %18 = vector.load %arg3[%c0_4, %c0_5] : memref<1x80xf32, #tpu.memory_space<vmem>>, vector<1x80xf32>
    %c1_i32_6 = arith.constant 1 : i32
    %19 = tpu.dynamic_rotate %0 by %c1_i32_6 dim 0 : vector<240x570xf32>, i32 -> vector<240x570xf32>
    %c-1_i32 = arith.constant -1 : i32
    %20 = vector.broadcast %c-1_i32 : i32 to vector<240x1xi32>
    %21 = arith.addi %17, %20 : vector<240x1xi32>
    %c0_i32_7 = arith.constant 0 : i32
    %22 = vector.broadcast %c0_i32_7 : i32 to vector<240x1xi32>
    %23 = arith.cmpi sge, %21, %22 : vector<240x1xi32>
    %c-1_i32_8 = arith.constant -1 : i32
    %24 = vector.broadcast %c-1_i32_8 : i32 to vector<240x1xi32>
    %25 = arith.addi %17, %24 : vector<240x1xi32>
    %c10_i32_9 = arith.constant 10 : i32
    %26 = vector.broadcast %c10_i32_9 : i32 to vector<240x1xi32>
    %27 = arith.cmpi slt, %25, %26 : vector<240x1xi32>
    %28 = arith.andi %23, %27 : vector<240x1xi1>
    %cst = arith.constant 0.000000e+00 : f32
    %29 = vector.shape_cast %28 : vector<240x1xi1> to vector<240x1xi1>
    %30 = vector.broadcast %29 : vector<240x1xi1> to vector<240x570xi1>
    %31 = vector.broadcast %cst : f32 to vector<240x570xf32>
    %32 = arith.select %30, %19, %31 : vector<240x570xi1>, vector<240x570xf32>
    %33 = arith.truncf %32 : vector<240x570xf32> to vector<240x570xbf16>
    %c0_10 = arith.constant 0 : index
    %c0_11 = arith.constant 0 : index
    %c0_12 = arith.constant 0 : index
    %34 = vector.load %arg2[%c0_10, %c0_11, %c0_12] : memref<3x570x80xbf16, #tpu.memory_space<vmem>>, vector<1x570x80xbf16>
    %35 = vector.shape_cast %34 : vector<1x570x80xbf16> to vector<570x80xbf16>
    %cst_13 = arith.constant dense<0.000000e+00> : vector<240x80xf32>
    %36 = tpu.matmul %33, %35, %cst_13 {dimension_numbers = #tpu.dot_dimension_numbers<[1], [0], [0], [1], [0, 0, 1, 1], [], []>} : vector<240x570xbf16>, vector<570x80xbf16>, vector<240x80xf32> -> vector<240x80xf32>
    %37 = vector.broadcast %18 : vector<1x80xf32> to vector<240x80xf32>
    %38 = arith.addf %37, %36 : vector<240x80xf32>
    %39 = arith.truncf %0 : vector<240x570xf32> to vector<240x570xbf16>
    %c1 = arith.constant 1 : index
    %c0_14 = arith.constant 0 : index
    %c0_15 = arith.constant 0 : index
    %40 = vector.load %arg2[%c1, %c0_14, %c0_15] : memref<3x570x80xbf16, #tpu.memory_space<vmem>>, vector<1x570x80xbf16>
    %41 = vector.shape_cast %40 : vector<1x570x80xbf16> to vector<570x80xbf16>
    %cst_16 = arith.constant dense<0.000000e+00> : vector<240x80xf32>
    %42 = tpu.matmul %39, %41, %cst_16 {dimension_numbers = #tpu.dot_dimension_numbers<[1], [0], [0], [1], [0, 0, 1, 1], [], []>} : vector<240x570xbf16>, vector<570x80xbf16>, vector<240x80xf32> -> vector<240x80xf32>
    %43 = arith.addf %38, %42 : vector<240x80xf32>
    %c239_i32 = arith.constant 239 : i32
    %44 = tpu.dynamic_rotate %0 by %c239_i32 dim 0 : vector<240x570xf32>, i32 -> vector<240x570xf32>
    %c1_i32_17 = arith.constant 1 : i32
    %45 = vector.broadcast %c1_i32_17 : i32 to vector<240x1xi32>
    %46 = arith.addi %17, %45 : vector<240x1xi32>
    %c0_i32_18 = arith.constant 0 : i32
    %47 = vector.broadcast %c0_i32_18 : i32 to vector<240x1xi32>
    %48 = arith.cmpi sge, %46, %47 : vector<240x1xi32>
    %c1_i32_19 = arith.constant 1 : i32
    %49 = vector.broadcast %c1_i32_19 : i32 to vector<240x1xi32>
    %50 = arith.addi %17, %49 : vector<240x1xi32>
    %c10_i32_20 = arith.constant 10 : i32
    %51 = vector.broadcast %c10_i32_20 : i32 to vector<240x1xi32>
    %52 = arith.cmpi slt, %50, %51 : vector<240x1xi32>
    %53 = arith.andi %48, %52 : vector<240x1xi1>
    %cst_21 = arith.constant 0.000000e+00 : f32
    %54 = vector.shape_cast %53 : vector<240x1xi1> to vector<240x1xi1>
    %55 = vector.broadcast %54 : vector<240x1xi1> to vector<240x570xi1>
    %56 = vector.broadcast %cst_21 : f32 to vector<240x570xf32>
    %57 = arith.select %55, %44, %56 : vector<240x570xi1>, vector<240x570xf32>
    %58 = arith.truncf %57 : vector<240x570xf32> to vector<240x570xbf16>
    %c2 = arith.constant 2 : index
    %c0_22 = arith.constant 0 : index
    %c0_23 = arith.constant 0 : index
    %59 = vector.load %arg2[%c2, %c0_22, %c0_23] : memref<3x570x80xbf16, #tpu.memory_space<vmem>>, vector<1x570x80xbf16>
    %60 = vector.shape_cast %59 : vector<1x570x80xbf16> to vector<570x80xbf16>
    %cst_24 = arith.constant dense<0.000000e+00> : vector<240x80xf32>
    %61 = tpu.matmul %58, %60, %cst_24 {dimension_numbers = #tpu.dot_dimension_numbers<[1], [0], [0], [1], [0, 0, 1, 1], [], []>} : vector<240x570xbf16>, vector<570x80xbf16>, vector<240x80xf32> -> vector<240x80xf32>
    %62 = arith.addf %43, %61 : vector<240x80xf32>
    %cst_25 = arith.constant 0.000000e+00 : f32
    %63 = vector.broadcast %cst_25 : f32 to vector<240x80xf32>
    %64 = arith.cmpf oge, %62, %63 : vector<240x80xf32>
    %cst_26 = arith.constant 0.00999999977 : f32
    %65 = vector.broadcast %cst_26 : f32 to vector<240x80xf32>
    %66 = arith.mulf %65, %62 : vector<240x80xf32>
    %67 = arith.select %64, %62, %66 : vector<240x80xi1>, vector<240x80xf32>
    %68 = tpu.iota {dimensions = array<i32: 0>} : vector<240x1xi32>
    %c10_i32_27 = arith.constant 10 : i32
    %c0_i32_28 = arith.constant 0 : i32
    %69 = arith.cmpi eq, %c10_i32_27, %c0_i32_28 : i32
    %c1_i32_29 = arith.constant 1 : i32
    %70 = arith.select %69, %c1_i32_29, %c10_i32_27 : i32
    %71 = vector.broadcast %70 : i32 to vector<240x1xi32>
    %72 = arith.remsi %68, %71 : vector<240x1xi32>
    %c0_i32_30 = arith.constant 0 : i32
    %73 = vector.broadcast %c0_i32_30 : i32 to vector<240x1xi32>
    %74 = arith.cmpi ne, %72, %73 : vector<240x1xi32>
    %c0_i32_31 = arith.constant 0 : i32
    %75 = vector.broadcast %c0_i32_31 : i32 to vector<240x1xi32>
    %76 = arith.cmpi slt, %72, %75 : vector<240x1xi32>
    %c0_i32_32 = arith.constant 0 : i32
    %77 = arith.cmpi slt, %70, %c0_i32_32 : i32
    %78 = vector.broadcast %77 : i1 to vector<240x1xi1>
    %79 = vector.broadcast %78 : vector<240x1xi1> to vector<240x1xi1>
    %80 = arith.xori %76, %79 : vector<240x1xi1>
    %81 = arith.andi %80, %74 : vector<240x1xi1>
    %82 = vector.broadcast %70 : i32 to vector<240x1xi32>
    %83 = arith.addi %72, %82 : vector<240x1xi32>
    %84 = arith.select %81, %83, %72 : vector<240x1xi1>, vector<240x1xi32>
    %c0_33 = arith.constant 0 : index
    %c0_34 = arith.constant 0 : index
    %85 = vector.load %arg5[%c0_33, %c0_34] : memref<1x80xf32, #tpu.memory_space<vmem>>, vector<1x80xf32>
    %c1_i32_35 = arith.constant 1 : i32
    %86 = tpu.dynamic_rotate %67 by %c1_i32_35 dim 0 : vector<240x80xf32>, i32 -> vector<240x80xf32>
    %c-1_i32_36 = arith.constant -1 : i32
    %87 = vector.broadcast %c-1_i32_36 : i32 to vector<240x1xi32>
    %88 = arith.addi %84, %87 : vector<240x1xi32>
    %c0_i32_37 = arith.constant 0 : i32
    %89 = vector.broadcast %c0_i32_37 : i32 to vector<240x1xi32>
    %90 = arith.cmpi sge, %88, %89 : vector<240x1xi32>
    %c-1_i32_38 = arith.constant -1 : i32
    %91 = vector.broadcast %c-1_i32_38 : i32 to vector<240x1xi32>
    %92 = arith.addi %84, %91 : vector<240x1xi32>
    %c10_i32_39 = arith.constant 10 : i32
    %93 = vector.broadcast %c10_i32_39 : i32 to vector<240x1xi32>
    %94 = arith.cmpi slt, %92, %93 : vector<240x1xi32>
    %95 = arith.andi %90, %94 : vector<240x1xi1>
    %cst_40 = arith.constant 0.000000e+00 : f32
    %96 = vector.shape_cast %95 : vector<240x1xi1> to vector<240x1xi1>
    %97 = vector.broadcast %96 : vector<240x1xi1> to vector<240x80xi1>
    %98 = vector.broadcast %cst_40 : f32 to vector<240x80xf32>
    %99 = arith.select %97, %86, %98 : vector<240x80xi1>, vector<240x80xf32>
    %100 = arith.truncf %99 : vector<240x80xf32> to vector<240x80xbf16>
    %c0_41 = arith.constant 0 : index
    %c0_42 = arith.constant 0 : index
    %c0_43 = arith.constant 0 : index
    %101 = vector.load %arg4[%c0_41, %c0_42, %c0_43] : memref<3x80x80xbf16, #tpu.memory_space<vmem>>, vector<1x80x80xbf16>
    %102 = vector.shape_cast %101 : vector<1x80x80xbf16> to vector<80x80xbf16>
    %cst_44 = arith.constant dense<0.000000e+00> : vector<240x80xf32>
    %103 = tpu.matmul %100, %102, %cst_44 {dimension_numbers = #tpu.dot_dimension_numbers<[1], [0], [0], [1], [0, 0, 1, 1], [], []>} : vector<240x80xbf16>, vector<80x80xbf16>, vector<240x80xf32> -> vector<240x80xf32>
    %104 = vector.broadcast %85 : vector<1x80xf32> to vector<240x80xf32>
    %105 = arith.addf %104, %103 : vector<240x80xf32>
    %106 = arith.truncf %67 : vector<240x80xf32> to vector<240x80xbf16>
    %c1_45 = arith.constant 1 : index
    %c0_46 = arith.constant 0 : index
    %c0_47 = arith.constant 0 : index
    %107 = vector.load %arg4[%c1_45, %c0_46, %c0_47] : memref<3x80x80xbf16, #tpu.memory_space<vmem>>, vector<1x80x80xbf16>
    %108 = vector.shape_cast %107 : vector<1x80x80xbf16> to vector<80x80xbf16>
    %cst_48 = arith.constant dense<0.000000e+00> : vector<240x80xf32>
    %109 = tpu.matmul %106, %108, %cst_48 {dimension_numbers = #tpu.dot_dimension_numbers<[1], [0], [0], [1], [0, 0, 1, 1], [], []>} : vector<240x80xbf16>, vector<80x80xbf16>, vector<240x80xf32> -> vector<240x80xf32>
    %110 = arith.addf %105, %109 : vector<240x80xf32>
    %c239_i32_49 = arith.constant 239 : i32
    %111 = tpu.dynamic_rotate %67 by %c239_i32_49 dim 0 : vector<240x80xf32>, i32 -> vector<240x80xf32>
    %c1_i32_50 = arith.constant 1 : i32
    %112 = vector.broadcast %c1_i32_50 : i32 to vector<240x1xi32>
    %113 = arith.addi %84, %112 : vector<240x1xi32>
    %c0_i32_51 = arith.constant 0 : i32
    %114 = vector.broadcast %c0_i32_51 : i32 to vector<240x1xi32>
    %115 = arith.cmpi sge, %113, %114 : vector<240x1xi32>
    %c1_i32_52 = arith.constant 1 : i32
    %116 = vector.broadcast %c1_i32_52 : i32 to vector<240x1xi32>
    %117 = arith.addi %84, %116 : vector<240x1xi32>
    %c10_i32_53 = arith.constant 10 : i32
    %118 = vector.broadcast %c10_i32_53 : i32 to vector<240x1xi32>
    %119 = arith.cmpi slt, %117, %118 : vector<240x1xi32>
    %120 = arith.andi %115, %119 : vector<240x1xi1>
    %cst_54 = arith.constant 0.000000e+00 : f32
    %121 = vector.shape_cast %120 : vector<240x1xi1> to vector<240x1xi1>
    %122 = vector.broadcast %121 : vector<240x1xi1> to vector<240x80xi1>
    %123 = vector.broadcast %cst_54 : f32 to vector<240x80xf32>
    %124 = arith.select %122, %111, %123 : vector<240x80xi1>, vector<240x80xf32>
    %125 = arith.truncf %124 : vector<240x80xf32> to vector<240x80xbf16>
    %c2_55 = arith.constant 2 : index
    %c0_56 = arith.constant 0 : index
    %c0_57 = arith.constant 0 : index
    %126 = vector.load %arg4[%c2_55, %c0_56, %c0_57] : memref<3x80x80xbf16, #tpu.memory_space<vmem>>, vector<1x80x80xbf16>
    %127 = vector.shape_cast %126 : vector<1x80x80xbf16> to vector<80x80xbf16>
    %cst_58 = arith.constant dense<0.000000e+00> : vector<240x80xf32>
    %128 = tpu.matmul %125, %127, %cst_58 {dimension_numbers = #tpu.dot_dimension_numbers<[1], [0], [0], [1], [0, 0, 1, 1], [], []>} : vector<240x80xbf16>, vector<80x80xbf16>, vector<240x80xf32> -> vector<240x80xf32>
    %129 = arith.addf %110, %128 : vector<240x80xf32>
    %cst_59 = arith.constant 0.000000e+00 : f32
    %130 = vector.broadcast %cst_59 : f32 to vector<240x80xf32>
    %131 = arith.cmpf oge, %129, %130 : vector<240x80xf32>
    %cst_60 = arith.constant 0.00999999977 : f32
    %132 = vector.broadcast %cst_60 : f32 to vector<240x80xf32>
    %133 = arith.mulf %132, %129 : vector<240x80xf32>
    %134 = arith.select %131, %129, %133 : vector<240x80xi1>, vector<240x80xf32>
    %c239_i32_61 = arith.constant 239 : i32
    %135 = tpu.dynamic_rotate %134 by %c239_i32_61 dim 0 : vector<240x80xf32>, i32 -> vector<240x80xf32>
    %136 = arith.maximumf %134, %135 : vector<240x80xf32>
    %c0_62 = arith.constant 0 : index
    %c0_63 = arith.constant 0 : index
    %137 = vector.load %arg17[%c0_62, %c0_63] : memref<240x80xf32, #tpu.memory_space<vmem>>, vector<240x80xf32>
    tpu.vector_store %arg17[%c0_62, %c0_63], %136 {strides = array<i32>} : memref<240x80xf32, #tpu.memory_space<vmem>>, vector<240x80xf32>,
    %c0_64 = arith.constant 0 : index
    %c0_65 = arith.constant 0 : index
    %138 = tpu.strided_load %arg17[%c0_64, %c0_65] {strides = array<i32: 2, 1>} : memref<240x80xf32, #tpu.memory_space<vmem>>, vector<120x80xf32>
    %139 = arith.truncf %138 : vector<120x80xf32> to vector<120x80xbf16>
    %c0_66 = arith.constant 0 : index
    %c0_67 = arith.constant 0 : index
    %c0_68 = arith.constant 0 : index
    %140 = vector.load %arg6[%c0_66, %c0_67, %c0_68] : memref<2x80x40xbf16, #tpu.memory_space<vmem>>, vector<1x80x40xbf16>
    %141 = vector.shape_cast %140 : vector<1x80x40xbf16> to vector<80x40xbf16>
    %cst_69 = arith.constant dense<0.000000e+00> : vector<120x40xf32>
    %142 = tpu.matmul %139, %141, %cst_69 {dimension_numbers = #tpu.dot_dimension_numbers<[1], [0], [0], [1], [0, 0, 1, 1], [], []>} : vector<120x80xbf16>, vector<80x40xbf16>, vector<120x40xf32> -> vector<120x40xf32>
    %c1_70 = arith.constant 1 : index
    %c0_71 = arith.constant 0 : index
    %c0_72 = arith.constant 0 : index
    %143 = vector.load %arg6[%c1_70, %c0_71, %c0_72] : memref<2x80x40xbf16, #tpu.memory_space<vmem>>, vector<1x80x40xbf16>
    %144 = vector.shape_cast %143 : vector<1x80x40xbf16> to vector<80x40xbf16>
    %cst_73 = arith.constant dense<0.000000e+00> : vector<120x40xf32>
    %145 = tpu.matmul %139, %144, %cst_73 {dimension_numbers = #tpu.dot_dimension_numbers<[1], [0], [0], [1], [0, 0, 1, 1], [], []>} : vector<120x80xbf16>, vector<80x40xbf16>, vector<120x40xf32> -> vector<120x40xf32>
    %146 = arith.maximumf %142, %145 : vector<120x40xf32>
    %147 = tpu.iota {dimensions = array<i32: 0>} : vector<120x1xi32>
    %c5_i32 = arith.constant 5 : i32
    %c0_i32_74 = arith.constant 0 : i32
    %148 = arith.cmpi eq, %c5_i32, %c0_i32_74 : i32
    %c1_i32_75 = arith.constant 1 : i32
    %149 = arith.select %148, %c1_i32_75, %c5_i32 : i32
    %150 = vector.broadcast %149 : i32 to vector<120x1xi32>
    %151 = arith.remsi %147, %150 : vector<120x1xi32>
    %c0_i32_76 = arith.constant 0 : i32
    %152 = vector.broadcast %c0_i32_76 : i32 to vector<120x1xi32>
    %153 = arith.cmpi ne, %151, %152 : vector<120x1xi32>
    %c0_i32_77 = arith.constant 0 : i32
    %154 = vector.broadcast %c0_i32_77 : i32 to vector<120x1xi32>
    %155 = arith.cmpi slt, %151, %154 : vector<120x1xi32>
    %c0_i32_78 = arith.constant 0 : i32
    %156 = arith.cmpi slt, %149, %c0_i32_78 : i32
    %157 = vector.broadcast %156 : i1 to vector<120x1xi1>
    %158 = vector.broadcast %157 : vector<120x1xi1> to vector<120x1xi1>
    %159 = arith.xori %155, %158 : vector<120x1xi1>
    %160 = arith.andi %159, %153 : vector<120x1xi1>
    %161 = vector.broadcast %149 : i32 to vector<120x1xi32>
    %162 = arith.addi %151, %161 : vector<120x1xi32>
    %163 = arith.select %160, %162, %151 : vector<120x1xi1>, vector<120x1xi32>
    %c0_79 = arith.constant 0 : index
    %c0_80 = arith.constant 0 : index
    %164 = vector.load %arg8[%c0_79, %c0_80] : memref<1x80xf32, #tpu.memory_space<vmem>>, vector<1x80xf32>
    %c1_i32_81 = arith.constant 1 : i32
    %165 = tpu.dynamic_rotate %146 by %c1_i32_81 dim 0 : vector<120x40xf32>, i32 -> vector<120x40xf32>
    %c-1_i32_82 = arith.constant -1 : i32
    %166 = vector.broadcast %c-1_i32_82 : i32 to vector<120x1xi32>
    %167 = arith.addi %163, %166 : vector<120x1xi32>
    %c0_i32_83 = arith.constant 0 : i32
    %168 = vector.broadcast %c0_i32_83 : i32 to vector<120x1xi32>
    %169 = arith.cmpi sge, %167, %168 : vector<120x1xi32>
    %c-1_i32_84 = arith.constant -1 : i32
    %170 = vector.broadcast %c-1_i32_84 : i32 to vector<120x1xi32>
    %171 = arith.addi %163, %170 : vector<120x1xi32>
    %c5_i32_85 = arith.constant 5 : i32
    %172 = vector.broadcast %c5_i32_85 : i32 to vector<120x1xi32>
    %173 = arith.cmpi slt, %171, %172 : vector<120x1xi32>
    %174 = arith.andi %169, %173 : vector<120x1xi1>
    %cst_86 = arith.constant 0.000000e+00 : f32
    %175 = vector.shape_cast %174 : vector<120x1xi1> to vector<120x1xi1>
    %176 = vector.broadcast %175 : vector<120x1xi1> to vector<120x40xi1>
    %177 = vector.broadcast %cst_86 : f32 to vector<120x40xf32>
    %178 = arith.select %176, %165, %177 : vector<120x40xi1>, vector<120x40xf32>
    %179 = arith.truncf %178 : vector<120x40xf32> to vector<120x40xbf16>
    %c0_87 = arith.constant 0 : index
    %c0_88 = arith.constant 0 : index
    %c0_89 = arith.constant 0 : index
    %180 = vector.load %arg7[%c0_87, %c0_88, %c0_89] : memref<3x40x80xbf16, #tpu.memory_space<vmem>>, vector<1x40x80xbf16>
    %181 = vector.shape_cast %180 : vector<1x40x80xbf16> to vector<40x80xbf16>
    %cst_90 = arith.constant dense<0.000000e+00> : vector<120x80xf32>
    %182 = tpu.matmul %179, %181, %cst_90 {dimension_numbers = #tpu.dot_dimension_numbers<[1], [0], [0], [1], [0, 0, 1, 1], [], []>} : vector<120x40xbf16>, vector<40x80xbf16>, vector<120x80xf32> -> vector<120x80xf32>
    %183 = vector.broadcast %164 : vector<1x80xf32> to vector<120x80xf32>
    %184 = arith.addf %183, %182 : vector<120x80xf32>
    %185 = arith.truncf %146 : vector<120x40xf32> to vector<120x40xbf16>
    %c1_91 = arith.constant 1 : index
    %c0_92 = arith.constant 0 : index
    %c0_93 = arith.constant 0 : index
    %186 = vector.load %arg7[%c1_91, %c0_92, %c0_93] : memref<3x40x80xbf16, #tpu.memory_space<vmem>>, vector<1x40x80xbf16>
    %187 = vector.shape_cast %186 : vector<1x40x80xbf16> to vector<40x80xbf16>
    %cst_94 = arith.constant dense<0.000000e+00> : vector<120x80xf32>
    %188 = tpu.matmul %185, %187, %cst_94 {dimension_numbers = #tpu.dot_dimension_numbers<[1], [0], [0], [1], [0, 0, 1, 1], [], []>} : vector<120x40xbf16>, vector<40x80xbf16>, vector<120x80xf32> -> vector<120x80xf32>
    %189 = arith.addf %184, %188 : vector<120x80xf32>
    %c119_i32 = arith.constant 119 : i32
    %190 = tpu.dynamic_rotate %146 by %c119_i32 dim 0 : vector<120x40xf32>, i32 -> vector<120x40xf32>
    %c1_i32_95 = arith.constant 1 : i32
    %191 = vector.broadcast %c1_i32_95 : i32 to vector<120x1xi32>
    %192 = arith.addi %163, %191 : vector<120x1xi32>
    %c0_i32_96 = arith.constant 0 : i32
    %193 = vector.broadcast %c0_i32_96 : i32 to vector<120x1xi32>
    %194 = arith.cmpi sge, %192, %193 : vector<120x1xi32>
    %c1_i32_97 = arith.constant 1 : i32
    %195 = vector.broadcast %c1_i32_97 : i32 to vector<120x1xi32>
    %196 = arith.addi %163, %195 : vector<120x1xi32>
    %c5_i32_98 = arith.constant 5 : i32
    %197 = vector.broadcast %c5_i32_98 : i32 to vector<120x1xi32>
    %198 = arith.cmpi slt, %196, %197 : vector<120x1xi32>
    %199 = arith.andi %194, %198 : vector<120x1xi1>
    %cst_99 = arith.constant 0.000000e+00 : f32
    %200 = vector.shape_cast %199 : vector<120x1xi1> to vector<120x1xi1>
    %201 = vector.broadcast %200 : vector<120x1xi1> to vector<120x40xi1>
    %202 = vector.broadcast %cst_99 : f32 to vector<120x40xf32>
    %203 = arith.select %201, %190, %202 : vector<120x40xi1>, vector<120x40xf32>
    %204 = arith.truncf %203 : vector<120x40xf32> to vector<120x40xbf16>
    %c2_100 = arith.constant 2 : index
    %c0_101 = arith.constant 0 : index
    %c0_102 = arith.constant 0 : index
    %205 = vector.load %arg7[%c2_100, %c0_101, %c0_102] : memref<3x40x80xbf16, #tpu.memory_space<vmem>>, vector<1x40x80xbf16>
    %206 = vector.shape_cast %205 : vector<1x40x80xbf16> to vector<40x80xbf16>
    %cst_103 = arith.constant dense<0.000000e+00> : vector<120x80xf32>
    %207 = tpu.matmul %204, %206, %cst_103 {dimension_numbers = #tpu.dot_dimension_numbers<[1], [0], [0], [1], [0, 0, 1, 1], [], []>} : vector<120x40xbf16>, vector<40x80xbf16>, vector<120x80xf32> -> vector<120x80xf32>
    %208 = arith.addf %189, %207 : vector<120x80xf32>
    %cst_104 = arith.constant 0.000000e+00 : f32
    %209 = vector.broadcast %cst_104 : f32 to vector<120x80xf32>
    %210 = arith.cmpf oge, %208, %209 : vector<120x80xf32>
    %cst_105 = arith.constant 0.00999999977 : f32
    %211 = vector.broadcast %cst_105 : f32 to vector<120x80xf32>
    %212 = arith.mulf %211, %208 : vector<120x80xf32>
    %213 = arith.select %210, %208, %212 : vector<120x80xi1>, vector<120x80xf32>
    %214 = tpu.iota {dimensions = array<i32: 0>} : vector<120x1xi32>
    %c5_i32_106 = arith.constant 5 : i32
    %c0_i32_107 = arith.constant 0 : i32
    %215 = arith.cmpi eq, %c5_i32_106, %c0_i32_107 : i32
    %c1_i32_108 = arith.constant 1 : i32
    %216 = arith.select %215, %c1_i32_108, %c5_i32_106 : i32
    %217 = vector.broadcast %216 : i32 to vector<120x1xi32>
    %218 = arith.remsi %214, %217 : vector<120x1xi32>
    %c0_i32_109 = arith.constant 0 : i32
    %219 = vector.broadcast %c0_i32_109 : i32 to vector<120x1xi32>
    %220 = arith.cmpi ne, %218, %219 : vector<120x1xi32>
    %c0_i32_110 = arith.constant 0 : i32
    %221 = vector.broadcast %c0_i32_110 : i32 to vector<120x1xi32>
    %222 = arith.cmpi slt, %218, %221 : vector<120x1xi32>
    %c0_i32_111 = arith.constant 0 : i32
    %223 = arith.cmpi slt, %216, %c0_i32_111 : i32
    %224 = vector.broadcast %223 : i1 to vector<120x1xi1>
    %225 = vector.broadcast %224 : vector<120x1xi1> to vector<120x1xi1>
    %226 = arith.xori %222, %225 : vector<120x1xi1>
    %227 = arith.andi %226, %220 : vector<120x1xi1>
    %228 = vector.broadcast %216 : i32 to vector<120x1xi32>
    %229 = arith.addi %218, %228 : vector<120x1xi32>
    %230 = arith.select %227, %229, %218 : vector<120x1xi1>, vector<120x1xi32>
    %c0_112 = arith.constant 0 : index
    %c0_113 = arith.constant 0 : index
    %231 = vector.load %arg10[%c0_112, %c0_113] : memref<1x80xf32, #tpu.memory_space<vmem>>, vector<1x80xf32>
    %c1_i32_114 = arith.constant 1 : i32
    %232 = tpu.dynamic_rotate %213 by %c1_i32_114 dim 0 : vector<120x80xf32>, i32 -> vector<120x80xf32>
    %c-1_i32_115 = arith.constant -1 : i32
    %233 = vector.broadcast %c-1_i32_115 : i32 to vector<120x1xi32>
    %234 = arith.addi %230, %233 : vector<120x1xi32>
    %c0_i32_116 = arith.constant 0 : i32
    %235 = vector.broadcast %c0_i32_116 : i32 to vector<120x1xi32>
    %236 = arith.cmpi sge, %234, %235 : vector<120x1xi32>
    %c-1_i32_117 = arith.constant -1 : i32
    %237 = vector.broadcast %c-1_i32_117 : i32 to vector<120x1xi32>
    %238 = arith.addi %230, %237 : vector<120x1xi32>
    %c5_i32_118 = arith.constant 5 : i32
    %239 = vector.broadcast %c5_i32_118 : i32 to vector<120x1xi32>
    %240 = arith.cmpi slt, %238, %239 : vector<120x1xi32>
    %241 = arith.andi %236, %240 : vector<120x1xi1>
    %cst_119 = arith.constant 0.000000e+00 : f32
    %242 = vector.shape_cast %241 : vector<120x1xi1> to vector<120x1xi1>
    %243 = vector.broadcast %242 : vector<120x1xi1> to vector<120x80xi1>
    %244 = vector.broadcast %cst_119 : f32 to vector<120x80xf32>
    %245 = arith.select %243, %232, %244 : vector<120x80xi1>, vector<120x80xf32>
    %246 = arith.truncf %245 : vector<120x80xf32> to vector<120x80xbf16>
    %c0_120 = arith.constant 0 : index
    %c0_121 = arith.constant 0 : index
    %c0_122 = arith.constant 0 : index
    %247 = vector.load %arg9[%c0_120, %c0_121, %c0_122] : memref<3x80x80xbf16, #tpu.memory_space<vmem>>, vector<1x80x80xbf16>
    %248 = vector.shape_cast %247 : vector<1x80x80xbf16> to vector<80x80xbf16>
    %cst_123 = arith.constant dense<0.000000e+00> : vector<120x80xf32>
    %249 = tpu.matmul %246, %248, %cst_123 {dimension_numbers = #tpu.dot_dimension_numbers<[1], [0], [0], [1], [0, 0, 1, 1], [], []>} : vector<120x80xbf16>, vector<80x80xbf16>, vector<120x80xf32> -> vector<120x80xf32>
    %250 = vector.broadcast %231 : vector<1x80xf32> to vector<120x80xf32>
    %251 = arith.addf %250, %249 : vector<120x80xf32>
    %252 = arith.truncf %213 : vector<120x80xf32> to vector<120x80xbf16>
    %c1_124 = arith.constant 1 : index
    %c0_125 = arith.constant 0 : index
    %c0_126 = arith.constant 0 : index
    %253 = vector.load %arg9[%c1_124, %c0_125, %c0_126] : memref<3x80x80xbf16, #tpu.memory_space<vmem>>, vector<1x80x80xbf16>
    %254 = vector.shape_cast %253 : vector<1x80x80xbf16> to vector<80x80xbf16>
    %cst_127 = arith.constant dense<0.000000e+00> : vector<120x80xf32>
    %255 = tpu.matmul %252, %254, %cst_127 {dimension_numbers = #tpu.dot_dimension_numbers<[1], [0], [0], [1], [0, 0, 1, 1], [], []>} : vector<120x80xbf16>, vector<80x80xbf16>, vector<120x80xf32> -> vector<120x80xf32>
    %256 = arith.addf %251, %255 : vector<120x80xf32>
    %c119_i32_128 = arith.constant 119 : i32
    %257 = tpu.dynamic_rotate %213 by %c119_i32_128 dim 0 : vector<120x80xf32>, i32 -> vector<120x80xf32>
    %c1_i32_129 = arith.constant 1 : i32
    %258 = vector.broadcast %c1_i32_129 : i32 to vector<120x1xi32>
    %259 = arith.addi %230, %258 : vector<120x1xi32>
    %c0_i32_130 = arith.constant 0 : i32
    %260 = vector.broadcast %c0_i32_130 : i32 to vector<120x1xi32>
    %261 = arith.cmpi sge, %259, %260 : vector<120x1xi32>
    %c1_i32_131 = arith.constant 1 : i32
    %262 = vector.broadcast %c1_i32_131 : i32 to vector<120x1xi32>
    %263 = arith.addi %230, %262 : vector<120x1xi32>
    %c5_i32_132 = arith.constant 5 : i32
    %264 = vector.broadcast %c5_i32_132 : i32 to vector<120x1xi32>
    %265 = arith.cmpi slt, %263, %264 : vector<120x1xi32>
    %266 = arith.andi %261, %265 : vector<120x1xi1>
    %cst_133 = arith.constant 0.000000e+00 : f32
    %267 = vector.shape_cast %266 : vector<120x1xi1> to vector<120x1xi1>
    %268 = vector.broadcast %267 : vector<120x1xi1> to vector<120x80xi1>
    %269 = vector.broadcast %cst_133 : f32 to vector<120x80xf32>
    %270 = arith.select %268, %257, %269 : vector<120x80xi1>, vector<120x80xf32>
    %271 = arith.truncf %270 : vector<120x80xf32> to vector<120x80xbf16>
    %c2_134 = arith.constant 2 : index
    %c0_135 = arith.constant 0 : index
    %c0_136 = arith.constant 0 : index
    %272 = vector.load %arg9[%c2_134, %c0_135, %c0_136] : memref<3x80x80xbf16, #tpu.memory_space<vmem>>, vector<1x80x80xbf16>
    %273 = vector.shape_cast %272 : vector<1x80x80xbf16> to vector<80x80xbf16>
    %cst_137 = arith.constant dense<0.000000e+00> : vector<120x80xf32>
    %274 = tpu.matmul %271, %273, %cst_137 {dimension_numbers = #tpu.dot_dimension_numbers<[1], [0], [0], [1], [0, 0, 1, 1], [], []>} : vector<120x80xbf16>, vector<80x80xbf16>, vector<120x80xf32> -> vector<120x80xf32>
    %275 = arith.addf %256, %274 : vector<120x80xf32>
    %cst_138 = arith.constant 0.000000e+00 : f32
    %276 = vector.broadcast %cst_138 : f32 to vector<120x80xf32>
    %277 = arith.cmpf oge, %275, %276 : vector<120x80xf32>
    %cst_139 = arith.constant 0.00999999977 : f32
    %278 = vector.broadcast %cst_139 : f32 to vector<120x80xf32>
    %279 = arith.mulf %278, %275 : vector<120x80xf32>
    %280 = arith.select %277, %275, %279 : vector<120x80xi1>, vector<120x80xf32>
    %c119_i32_140 = arith.constant 119 : i32
    %281 = tpu.dynamic_rotate %280 by %c119_i32_140 dim 0 : vector<120x80xf32>, i32 -> vector<120x80xf32>
    %282 = arith.maximumf %280, %281 : vector<120x80xf32>
    %283 = arith.truncf %282 : vector<120x80xf32> to vector<120x80xbf16>
    %c0_141 = arith.constant 0 : index
    %c0_142 = arith.constant 0 : index
    %c0_143 = arith.constant 0 : index
    %284 = vector.load %arg11[%c0_141, %c0_142, %c0_143] : memref<2x80x32xbf16, #tpu.memory_space<vmem>>, vector<1x80x32xbf16>
    %285 = vector.shape_cast %284 : vector<1x80x32xbf16> to vector<80x32xbf16>
    %cst_144 = arith.constant dense<0.000000e+00> : vector<120x32xf32>
    %286 = tpu.matmul %283, %285, %cst_144 {dimension_numbers = #tpu.dot_dimension_numbers<[1], [0], [0], [1], [0, 0, 1, 1], [], []>} : vector<120x80xbf16>, vector<80x32xbf16>, vector<120x32xf32> -> vector<120x32xf32>
    %c1_145 = arith.constant 1 : index
    %c0_146 = arith.constant 0 : index
    %c0_147 = arith.constant 0 : index
    %287 = vector.load %arg11[%c1_145, %c0_146, %c0_147] : memref<2x80x32xbf16, #tpu.memory_space<vmem>>, vector<1x80x32xbf16>
    %288 = vector.shape_cast %287 : vector<1x80x32xbf16> to vector<80x32xbf16>
    %cst_148 = arith.constant dense<0.000000e+00> : vector<120x32xf32>
    %289 = tpu.matmul %283, %288, %cst_148 {dimension_numbers = #tpu.dot_dimension_numbers<[1], [0], [0], [1], [0, 0, 1, 1], [], []>} : vector<120x80xbf16>, vector<80x32xbf16>, vector<120x32xf32> -> vector<120x32xf32>
    %290 = arith.maximumf %286, %289 : vector<120x32xf32>
    %c0_149 = arith.constant 0 : index
    %c0_150 = arith.constant 0 : index
    %291 = vector.load %arg18[%c0_149, %c0_150] : memref<120x32xf32, #tpu.memory_space<vmem>>, vector<120x32xf32>
    tpu.vector_store %arg18[%c0_149, %c0_150], %290 {strides = array<i32>} : memref<120x32xf32, #tpu.memory_space<vmem>>, vector<120x32xf32>,
    %c0_151 = arith.constant 0 : index
    %c0_152 = arith.constant 0 : index
    %292 = vector.load %arg13[%c0_151, %c0_152] : memref<1x16xf32, #tpu.memory_space<vmem>>, vector<1x16xf32>
    %c0_153 = arith.constant 0 : index
    %c0_154 = arith.constant 0 : index
    %293 = tpu.strided_load %arg18[%c0_153, %c0_154] {strides = array<i32: 5, 1>} : memref<120x32xf32, #tpu.memory_space<vmem>>, vector<24x32xf32>
    %294 = arith.truncf %293 : vector<24x32xf32> to vector<24x32xbf16>
    %c0_155 = arith.constant 0 : index
    %c0_156 = arith.constant 0 : index
    %c0_157 = arith.constant 0 : index
    %295 = vector.load %arg12[%c0_155, %c0_156, %c0_157] : memref<2x32x16xbf16, #tpu.memory_space<vmem>>, vector<1x32x16xbf16>
    %296 = vector.shape_cast %295 : vector<1x32x16xbf16> to vector<32x16xbf16>
    %cst_158 = arith.constant dense<0.000000e+00> : vector<24x16xf32>
    %297 = tpu.matmul %294, %296, %cst_158 {dimension_numbers = #tpu.dot_dimension_numbers<[1], [0], [0], [1], [0, 0, 1, 1], [], []>} : vector<24x32xbf16>, vector<32x16xbf16>, vector<24x16xf32> -> vector<24x16xf32>
    %298 = vector.broadcast %292 : vector<1x16xf32> to vector<24x16xf32>
    %299 = arith.addf %298, %297 : vector<24x16xf32>
    %c2_159 = arith.constant 2 : index
    %c0_160 = arith.constant 0 : index
    %300 = tpu.strided_load %arg18[%c2_159, %c0_160] {strides = array<i32: 5, 1>} : memref<120x32xf32, #tpu.memory_space<vmem>>, vector<24x32xf32>
    %301 = arith.truncf %300 : vector<24x32xf32> to vector<24x32xbf16>
    %c1_161 = arith.constant 1 : index
    %c0_162 = arith.constant 0 : index
    %c0_163 = arith.constant 0 : index
    %302 = vector.load %arg12[%c1_161, %c0_162, %c0_163] : memref<2x32x16xbf16, #tpu.memory_space<vmem>>, vector<1x32x16xbf16>
    %303 = vector.shape_cast %302 : vector<1x32x16xbf16> to vector<32x16xbf16>
    %cst_164 = arith.constant dense<0.000000e+00> : vector<24x16xf32>
    %304 = tpu.matmul %301, %303, %cst_164 {dimension_numbers = #tpu.dot_dimension_numbers<[1], [0], [0], [1], [0, 0, 1, 1], [], []>} : vector<24x32xbf16>, vector<32x16xbf16>, vector<24x16xf32> -> vector<24x16xf32>
    %305 = arith.addf %299, %304 : vector<24x16xf32>
    %cst_165 = arith.constant 0.000000e+00 : f32
    %306 = vector.broadcast %cst_165 : f32 to vector<24x16xf32>
    %307 = arith.cmpf oge, %305, %306 : vector<24x16xf32>
    %cst_166 = arith.constant 0.00999999977 : f32
    %308 = vector.broadcast %cst_166 : f32 to vector<24x16xf32>
    %309 = arith.mulf %308, %305 : vector<24x16xf32>
    %310 = arith.select %307, %305, %309 : vector<24x16xi1>, vector<24x16xf32>
    %c0_167 = arith.constant 0 : index
    %c0_168 = arith.constant 0 : index
    %311 = vector.load %arg14[%c0_167, %c0_168] : memref<1x16xf32, #tpu.memory_space<vmem>>, vector<1x16xf32>
    %cst_169 = arith.constant dense<0.000000e+00> : vector<1x24xf32>
    %312 = tpu.matmul %311, %310, %cst_169 {dimension_numbers = #tpu.dot_dimension_numbers<[1], [1], [0], [0], [0, 0, 1, 0], [], []>} : vector<1x16xf32>, vector<24x16xf32>, vector<1x24xf32> -> vector<1x24xf32>
    %c0_170 = arith.constant 0 : index
    %c0_171 = arith.constant 0 : index
    %313 = vector.load %arg15[%c0_170, %c0_171] : memref<1x1xf32, #tpu.memory_space<vmem>>, vector<1x1xf32>
    %314 = vector.broadcast %313 : vector<1x1xf32> to vector<1x24xf32>
    %315 = arith.addf %312, %314 : vector<1x24xf32>
    %c0_172 = arith.constant 0 : index
    %c0_173 = arith.constant 0 : index
    %c0_174 = arith.constant 0 : index
    %316 = vector.load %arg16[%c0_172, %c0_173, %c0_174] : memref<1x1x24xf32, #tpu.memory_space<vmem>>, vector<1x1x24xf32>
    %317 = vector.shape_cast %316 : vector<1x1x24xf32> to vector<1x24xf32>
    %318 = vector.shape_cast %315 : vector<1x24xf32> to vector<1x1x24xf32>
    tpu.vector_store %arg16[%c0_172, %c0_173, %c0_174], %318 {strides = array<i32>} : memref<1x1x24xf32, #tpu.memory_space<vmem>>, vector<1x1x24xf32>,
    return
  }
  func.func @transform_0(%arg0: i32) -> (i32, i32) {
    %c0_i32 = arith.constant 0 : i32
    %c0_i32_0 = arith.constant 0 : i32
    return %arg0, %c0_i32 : i32, i32
  }
  func.func @transform_1(%arg0: i32) -> (i32, i32, i32) {
    %c0_i32 = arith.constant 0 : i32
    %c0_i32_0 = arith.constant 0 : i32
    %c0_i32_1 = arith.constant 0 : i32
    %c0_i32_2 = arith.constant 0 : i32
    return %c0_i32, %c0_i32_0, %c0_i32_1 : i32, i32, i32
  }
  func.func @transform_2(%arg0: i32) -> (i32, i32) {
    %c0_i32 = arith.constant 0 : i32
    %c0_i32_0 = arith.constant 0 : i32
    %c0_i32_1 = arith.constant 0 : i32
    return %c0_i32, %c0_i32_0 : i32, i32
  }
  func.func @transform_3(%arg0: i32) -> (i32, i32, i32) {
    %c0_i32 = arith.constant 0 : i32
    %c0_i32_0 = arith.constant 0 : i32
    %c0_i32_1 = arith.constant 0 : i32
    %c0_i32_2 = arith.constant 0 : i32
    return %c0_i32, %c0_i32_0, %c0_i32_1 : i32, i32, i32
  }
  func.func @transform_4(%arg0: i32) -> (i32, i32) {
    %c0_i32 = arith.constant 0 : i32
    %c0_i32_0 = arith.constant 0 : i32
    %c0_i32_1 = arith.constant 0 : i32
    return %c0_i32, %c0_i32_0 : i32, i32
  }
  func.func @transform_5(%arg0: i32) -> (i32, i32, i32) {
    %c0_i32 = arith.constant 0 : i32
    %c0_i32_0 = arith.constant 0 : i32
    %c0_i32_1 = arith.constant 0 : i32
    %c0_i32_2 = arith.constant 0 : i32
    return %c0_i32, %c0_i32_0, %c0_i32_1 : i32, i32, i32
  }
  func.func @transform_6(%arg0: i32) -> (i32, i32, i32) {
    %c0_i32 = arith.constant 0 : i32
    %c0_i32_0 = arith.constant 0 : i32
    %c0_i32_1 = arith.constant 0 : i32
    %c0_i32_2 = arith.constant 0 : i32
    return %c0_i32, %c0_i32_0, %c0_i32_1 : i32, i32, i32
  }
  func.func @transform_7(%arg0: i32) -> (i32, i32) {
    %c0_i32 = arith.constant 0 : i32
    %c0_i32_0 = arith.constant 0 : i32
    %c0_i32_1 = arith.constant 0 : i32
    return %c0_i32, %c0_i32_0 : i32, i32
  }
  func.func @transform_8(%arg0: i32) -> (i32, i32, i32) {
    %c0_i32 = arith.constant 0 : i32
    %c0_i32_0 = arith.constant 0 : i32
    %c0_i32_1 = arith.constant 0 : i32
    %c0_i32_2 = arith.constant 0 : i32
    return %c0_i32, %c0_i32_0, %c0_i32_1 : i32, i32, i32
  }
  func.func @transform_9(%arg0: i32) -> (i32, i32) {
    %c0_i32 = arith.constant 0 : i32
    %c0_i32_0 = arith.constant 0 : i32
    %c0_i32_1 = arith.constant 0 : i32
    return %c0_i32, %c0_i32_0 : i32, i32
  }
  func.func @transform_10(%arg0: i32) -> (i32, i32, i32) {
    %c0_i32 = arith.constant 0 : i32
    %c0_i32_0 = arith.constant 0 : i32
    %c0_i32_1 = arith.constant 0 : i32
    %c0_i32_2 = arith.constant 0 : i32
    return %c0_i32, %c0_i32_0, %c0_i32_1 : i32, i32, i32
  }
  func.func @transform_11(%arg0: i32) -> (i32, i32, i32) {
    %c0_i32 = arith.constant 0 : i32
    %c0_i32_0 = arith.constant 0 : i32
    %c0_i32_1 = arith.constant 0 : i32
    %c0_i32_2 = arith.constant 0 : i32
    return %c0_i32, %c0_i32_0, %c0_i32_1 : i32, i32, i32
  }
  func.func @transform_12(%arg0: i32) -> (i32, i32) {
    %c0_i32 = arith.constant 0 : i32
    %c0_i32_0 = arith.constant 0 : i32
    %c0_i32_1 = arith.constant 0 : i32
    return %c0_i32, %c0_i32_0 : i32, i32
  }
  func.func @transform_13(%arg0: i32) -> (i32, i32) {
    %c0_i32 = arith.constant 0 : i32
    %c0_i32_0 = arith.constant 0 : i32
    %c0_i32_1 = arith.constant 0 : i32
    return %c0_i32, %c0_i32_0 : i32, i32
  }
  func.func @transform_14(%arg0: i32) -> (i32, i32) {
    %c0_i32 = arith.constant 0 : i32
    %c0_i32_0 = arith.constant 0 : i32
    %c0_i32_1 = arith.constant 0 : i32
    return %c0_i32, %c0_i32_0 : i32, i32
  }
  func.func @transform_15(%arg0: i32) -> (i32, i32, i32) {
    %c0_i32 = arith.constant 0 : i32
    %c0_i32_0 = arith.constant 0 : i32
    %c0_i32_1 = arith.constant 0 : i32
    return %arg0, %c0_i32, %c0_i32_0 : i32, i32, i32
  }
}

</mosaic_0001>

<llo_original>
// kernel: fused_forward.1
$region0: #{fused_forward.1}
  #allocation0 [shape = 'u32[]', space=smem, size = 0x4, offset = 0x4, fixed_abs, tag = 'smem constant byte address 0x4 - core index']
  #allocation1 [shape = 'u32[144,128]{1,0:T(1,128)}', space=vmem, size = 0x12000, scoped, tag = 'internal scratch']
  #allocation2 [shape = 'f32[240,80]{1,0:T(8,128)}', space=vmem, size = 0x1e000, scoped, tag = 'scratch operand']
  #allocation3 [shape = 'f32[120,32]{1,0:T(8,128)}', space=vmem, size = 0xf000, scoped, tag = 'scratch operand']
  #allocation4 [shape = 'f32[1,1]{1,0:T(1,128)S(1)}', space=vmem, size = 0x200, scoped, tag = 'scoped memory for fused_forward.1']
  %s0 = inlined_call_operand.vmem [shape: f32[480,570], index: 0, kind: input, shape index: {}]
  %s1 = inlined_call_operand.vmem [shape: bf16[3,570,80], index: 1, kind: input, shape index: {}]
  %s2 = inlined_call_operand.vmem [shape: f32[1,80], index: 2, kind: input, shape index: {}]
  %s3 = inlined_call_operand.vmem [shape: bf16[3,80,80], index: 3, kind: input, shape index: {}]
  %s4 = inlined_call_operand.vmem [shape: f32[1,80], index: 4, kind: input, shape index: {}]
  %s5 = inlined_call_operand.vmem [shape: bf16[2,80,40], index: 5, kind: input, shape index: {}]
  %s6 = inlined_call_operand.vmem [shape: bf16[3,40,80], index: 6, kind: input, shape index: {}]
  %s7 = inlined_call_operand.vmem [shape: f32[1,80], index: 7, kind: input, shape index: {}]
  %s8 = inlined_call_operand.vmem [shape: bf16[3,80,80], index: 8, kind: input, shape index: {}]
  %s9 = inlined_call_operand.vmem [shape: f32[1,80], index: 9, kind: input, shape index: {}]
  %s10 = inlined_call_operand.vmem [shape: bf16[2,80,32], index: 10, kind: input, shape index: {}]
  %s11 = inlined_call_operand.vmem [shape: bf16[2,32,16], index: 11, kind: input, shape index: {}]
  %s12 = inlined_call_operand.vmem [shape: f32[1,16], index: 12, kind: input, shape index: {}]
  %s13 = inlined_call_operand.vmem [shape: f32[1,16], index: 13, kind: input, shape index: {}]
  %s14 = inlined_call_operand.<no memory space> [shape: f32[1,1], index: 14, kind: input, shape index: {}]
  %s15 = inlined_call_operand.vmem [shape: f32[2,1,24], index: 15, kind: output, shape index: {}]
  %s16 = sld [smem:[#allocation0]]
  $region93: #{fused_forward.1} parent=0
    _
  %s18 = ssub.s32 1, %s16
  %s19 = scalar_select 0, %s18, %s16
  %v20 = vstv %s14
  %21 = vst [vmem:[#allocation4] sm:$0x1] %v20
  loop: start=0, step=1, limit=4
  $region2: #{fused_forward.1} parent=0 // loop_pre_header
    _
  $region3: #{fused_forward.1} parent=0 // loop_header
    %s23 = sphi 0, %s27
    %p24 = scmp.ge.s32.totalorder %s23, 4
    %s33 = sphi 0, %s35
    %s36 = sphi 0, %s33
    %s37 = sphi 0, %s36
    %s53 = sphi 0, %s37
    %s57 = sphi 0, %s57
    %s59 = sphi 0, %s57
    %s60 = sphi 0, %s59
    %s74 = sphi 0, %s60
    %s78 = sphi 0, %s78
    %s80 = sphi 0, %s78
    %s81 = sphi 0, %s80
    %s95 = sphi 0, %s81
    %s99 = sphi 0, %s99
    %s101 = sphi 0, %s99
    %s102 = sphi 0, %s101
    %s116 = sphi 0, %s102
    %s120 = sphi 0, %s120
    %s122 = sphi 0, %s120
    %s123 = sphi 0, %s122
    %s137 = sphi 0, %s123
    %s141 = sphi 0, %s141
    %s143 = sphi 0, %s141
    %s144 = sphi 0, %s143
    %s158 = sphi 0, %s144
    %s162 = sphi 0, %s162
    %s164 = sphi 0, %s162
    %s165 = sphi 0, %s164
    %s179 = sphi 0, %s165
    %s183 = sphi 0, %s183
    %s185 = sphi 0, %s183
    %s186 = sphi 0, %s185
    %s200 = sphi 0, %s186
    %s204 = sphi 0, %s204
    %s206 = sphi 0, %s204
    %s207 = sphi 0, %s206
    %s221 = sphi 0, %s207
    %s225 = sphi 0, %s225
    %s227 = sphi 0, %s225
    %s228 = sphi 0, %s227
    %s242 = sphi 0, %s228
    %s246 = sphi 0, %s246
    %s248 = sphi 0, %s246
    %s249 = sphi 0, %s248
    %s263 = sphi 0, %s249
    %s267 = sphi 0, %s267
    %s269 = sphi 0, %s267
    %s270 = sphi 0, %s269
    %s284 = sphi 0, %s270
    %s288 = sphi 0, %s288
    %s290 = sphi 0, %s288
    %s291 = sphi 0, %s290
    %s305 = sphi 0, %s291
    %s309 = sphi 0, %s309
    %s311 = sphi 0, %s309
    %s312 = sphi 0, %s311
    %s326 = sphi 0, %s312
    %s330 = sphi 0, %s330
    %s332 = sphi 0, %s330
    %s333 = sphi 0, %s332
    %s347 = sphi 0, %s333
    %s353 = sphi 0, %s355
    %s356 = sphi 0, %s353
    %s357 = sphi 0, %s356
    %s373 = sphi 0, %s357
  $region4: #{fused_forward.1} parent=0 // loop_header_branch
    %26 = sbr.rel (%p24) target = $region8
  $region5: #{fused_forward.1} parent=0 // loop_body
    %s28 = ssub.s32 %s23, 1
    %s29 = ssub.s32 %s23, 2
    %s30 = sadd.s32 %s23, 1
    %s31 = ssub.s32 %s23, %s30
    %p32 = scmp.eq.s32.totalorder %s31, 0
    %s34 = sadd.s32 %s33, 1
    %s35 = scalar_select %p32, %s33, %s34
    %p38 = pneg %p32
    %p39 = scmp.eq.s32.totalorder %s23, 1
    %p40 = por %p38, %p39
    %p41 = scmp.ne.s32.totalorder %s33, %s36
    %p42 = scmp.eq.s32.totalorder %s23, 0
    %p43 = por %p41, %p42
    %p44 = scmp.ne.s32.totalorder %s33, %s36
    %p45 = scmp.eq.s32.totalorder %s28, 1
    %p46 = por %p44, %p45
    %p47 = scmp.ne.s32.totalorder %s36, %s37
    %p48 = scmp.eq.s32.totalorder %s28, 0
    %p49 = por %p47, %p48
    %p50 = scmp.ne.s32.totalorder %s36, %s37
    %p51 = scmp.eq.s32.totalorder %s29, 1
    %p52 = por %p50, %p51
    %p54 = scmp.ne.s32.totalorder %s37, %s53
    %p55 = scmp.eq.s32.totalorder %s29, 0
    %p56 = por %p54, %p55
    %s58 = sadd.s32 %s57, 1
    %p61 = scmp.eq.s32.totalorder %s23, 1
    %p62 = scmp.ne.s32.totalorder %s57, %s59
    %p63 = scmp.eq.s32.totalorder %s23, 0
    %p64 = por %p62, %p63
    %p65 = scmp.ne.s32.totalorder %s57, %s59
    %p66 = scmp.eq.s32.totalorder %s28, 1
    %p67 = por %p65, %p66
    %p68 = scmp.ne.s32.totalorder %s59, %s60
    %p69 = scmp.eq.s32.totalorder %s28, 0
    %p70 = por %p68, %p69
    %p71 = scmp.ne.s32.totalorder %s59, %s60
    %p72 = scmp.eq.s32.totalorder %s29, 1
    %p73 = por %p71, %p72
    %p75 = scmp.ne.s32.totalorder %s60, %s74
    %p76 = scmp.eq.s32.totalorder %s29, 0
    %p77 = por %p75, %p76
    %s79 = sadd.s32 %s78, 1
    %p82 = scmp.eq.s32.totalorder %s23, 1
    %p83 = scmp.ne.s32.totalorder %s78, %s80
    %p84 = scmp.eq.s32.totalorder %s23, 0
    %p85 = por %p83, %p84
    %p86 = scmp.ne.s32.totalorder %s78, %s80
    %p87 = scmp.eq.s32.totalorder %s28, 1
    %p88 = por %p86, %p87
    %p89 = scmp.ne.s32.totalorder %s80, %s81
    %p90 = scmp.eq.s32.totalorder %s28, 0
    %p91 = por %p89, %p90
    %p92 = scmp.ne.s32.totalorder %s80, %s81
    %p93 = scmp.eq.s32.totalorder %s29, 1
    %p94 = por %p92, %p93
    %p96 = scmp.ne.s32.totalorder %s81, %s95
    %p97 = scmp.eq.s32.totalorder %s29, 0
    %p98 = por %p96, %p97
    %s100 = sadd.s32 %s99, 1
    %p103 = scmp.eq.s32.totalorder %s23, 1
    %p104 = scmp.ne.s32.totalorder %s99, %s101
    %p105 = scmp.eq.s32.totalorder %s23, 0
    %p106 = por %p104, %p105
    %p107 = scmp.ne.s32.totalorder %s99, %s101
    %p108 = scmp.eq.s32.totalorder %s28, 1
    %p109 = por %p107, %p108
    %p110 = scmp.ne.s32.totalorder %s101, %s102
    %p111 = scmp.eq.s32.totalorder %s28, 0
    %p112 = por %p110, %p111
    %p113 = scmp.ne.s32.totalorder %s101, %s102
    %p114 = scmp.eq.s32.totalorder %s29, 1
    %p115 = por %p113, %p114
    %p117 = scmp.ne.s32.totalorder %s102, %s116
    %p118 = scmp.eq.s32.totalorder %s29, 0
    %p119 = por %p117, %p118
    %s121 = sadd.s32 %s120, 1
    %p124 = scmp.eq.s32.totalorder %s23, 1
    %p125 = scmp.ne.s32.totalorder %s120, %s122
    %p126 = scmp.eq.s32.totalorder %s23, 0
    %p127 = por %p125, %p126
    %p128 = scmp.ne.s32.totalorder %s120, %s122
    %p129 = scmp.eq.s32.totalorder %s28, 1
    %p130 = por %p128, %p129
    %p131 = scmp.ne.s32.totalorder %s122, %s123
    %p132 = scmp.eq.s32.totalorder %s28, 0
    %p133 = por %p131, %p132
    %p134 = scmp.ne.s32.totalorder %s122, %s123
    %p135 = scmp.eq.s32.totalorder %s29, 1
    %p136 = por %p134, %p135
    %p138 = scmp.ne.s32.totalorder %s123, %s137
    %p139 = scmp.eq.s32.totalorder %s29, 0
    %p140 = por %p138, %p139
    %s142 = sadd.s32 %s141, 1
    %p145 = scmp.eq.s32.totalorder %s23, 1
    %p146 = scmp.ne.s32.totalorder %s141, %s143
    %p147 = scmp.eq.s32.totalorder %s23, 0
    %p148 = por %p146, %p147
    %p149 = scmp.ne.s32.totalorder %s141, %s143
    %p150 = scmp.eq.s32.totalorder %s28, 1
    %p151 = por %p149, %p150
    %p152 = scmp.ne.s32.totalorder %s143, %s144
    %p153 = scmp.eq.s32.totalorder %s28, 0
    %p154 = por %p152, %p153
    %p155 = scmp.ne.s32.totalorder %s143, %s144
    %p156 = scmp.eq.s32.totalorder %s29, 1
    %p157 = por %p155, %p156
    %p159 = scmp.ne.s32.totalorder %s144, %s158
    %p160 = scmp.eq.s32.totalorder %s29, 0
    %p161 = por %p159, %p160
    %s163 = sadd.s32 %s162, 1
    %p166 = scmp.eq.s32.totalorder %s23, 1
    %p167 = scmp.ne.s32.totalorder %s162, %s164
    %p168 = scmp.eq.s32.totalorder %s23, 0
    %p169 = por %p167, %p168
    %p170 = scmp.ne.s32.totalorder %s162, %s164
    %p171 = scmp.eq.s32.totalorder %s28, 1
    %p172 = por %p170, %p171
    %p173 = scmp.ne.s32.totalorder %s164, %s165
    %p174 = scmp.eq.s32.totalorder %s28, 0
    %p175 = por %p173, %p174
    %p176 = scmp.ne.s32.totalorder %s164, %s165
    %p177 = scmp.eq.s32.totalorder %s29, 1
    %p178 = por %p176, %p177
    %p180 = scmp.ne.s32.totalorder %s165, %s179
    %p181 = scmp.eq.s32.totalorder %s29, 0
    %p182 = por %p180, %p181
    %s184 = sadd.s32 %s183, 1
    %p187 = scmp.eq.s32.totalorder %s23, 1
    %p188 = scmp.ne.s32.totalorder %s183, %s185
    %p189 = scmp.eq.s32.totalorder %s23, 0
    %p190 = por %p188, %p189
    %p191 = scmp.ne.s32.totalorder %s183, %s185
    %p192 = scmp.eq.s32.totalorder %s28, 1
    %p193 = por %p191, %p192
    %p194 = scmp.ne.s32.totalorder %s185, %s186
    %p195 = scmp.eq.s32.totalorder %s28, 0
    %p196 = por %p194, %p195
    %p197 = scmp.ne.s32.totalorder %s185, %s186
    %p198 = scmp.eq.s32.totalorder %s29, 1
    %p199 = por %p197, %p198
    %p201 = scmp.ne.s32.totalorder %s186, %s200
    %p202 = scmp.eq.s32.totalorder %s29, 0
    %p203 = por %p201, %p202
    %s205 = sadd.s32 %s204, 1
    %p208 = scmp.eq.s32.totalorder %s23, 1
    %p209 = scmp.ne.s32.totalorder %s204, %s206
    %p210 = scmp.eq.s32.totalorder %s23, 0
    %p211 = por %p209, %p210
    %p212 = scmp.ne.s32.totalorder %s204, %s206
    %p213 = scmp.eq.s32.totalorder %s28, 1
    %p214 = por %p212, %p213
    %p215 = scmp.ne.s32.totalorder %s206, %s207
    %p216 = scmp.eq.s32.totalorder %s28, 0
    %p217 = por %p215, %p216
    %p218 = scmp.ne.s32.totalorder %s206, %s207
    %p219 = scmp.eq.s32.totalorder %s29, 1
    %p220 = por %p218, %p219
    %p222 = scmp.ne.s32.totalorder %s207, %s221
    %p223 = scmp.eq.s32.totalorder %s29, 0
    %p224 = por %p222, %p223
    %s226 = sadd.s32 %s225, 1
    %p229 = scmp.eq.s32.totalorder %s23, 1
    %p230 = scmp.ne.s32.totalorder %s225, %s227
    %p231 = scmp.eq.s32.totalorder %s23, 0
    %p232 = por %p230, %p231
    %p233 = scmp.ne.s32.totalorder %s225, %s227
    %p234 = scmp.eq.s32.totalorder %s28, 1
    %p235 = por %p233, %p234
    %p236 = scmp.ne.s32.totalorder %s227, %s228
    %p237 = scmp.eq.s32.totalorder %s28, 0
    %p238 = por %p236, %p237
    %p239 = scmp.ne.s32.totalorder %s227, %s228
    %p240 = scmp.eq.s32.totalorder %s29, 1
    %p241 = por %p239, %p240
    %p243 = scmp.ne.s32.totalorder %s228, %s242
    %p244 = scmp.eq.s32.totalorder %s29, 0
    %p245 = por %p243, %p244
    %s247 = sadd.s32 %s246, 1
    %p250 = scmp.eq.s32.totalorder %s23, 1
    %p251 = scmp.ne.s32.totalorder %s246, %s248
    %p252 = scmp.eq.s32.totalorder %s23, 0
    %p253 = por %p251, %p252
    %p254 = scmp.ne.s32.totalorder %s246, %s248
    %p255 = scmp.eq.s32.totalorder %s28, 1
    %p256 = por %p254, %p255
    %p257 = scmp.ne.s32.totalorder %s248, %s249
    %p258 = scmp.eq.s32.totalorder %s28, 0
    %p259 = por %p257, %p258
    %p260 = scmp.ne.s32.totalorder %s248, %s249
    %p261 = scmp.eq.s32.totalorder %s29, 1
    %p262 = por %p260, %p261
    %p264 = scmp.ne.s32.totalorder %s249, %s263
    %p265 = scmp.eq.s32.totalorder %s29, 0
    %p266 = por %p264, %p265
    %s268 = sadd.s32 %s267, 1
    %p271 = scmp.eq.s32.totalorder %s23, 1
    %p272 = scmp.ne.s32.totalorder %s267, %s269
    %p273 = scmp.eq.s32.totalorder %s23, 0
    %p274 = por %p272, %p273
    %p275 = scmp.ne.s32.totalorder %s267, %s269
    %p276 = scmp.eq.s32.totalorder %s28, 1
    %p277 = por %p275, %p276
    %p278 = scmp.ne.s32.totalorder %s269, %s270
    %p279 = scmp.eq.s32.totalorder %s28, 0
    %p280 = por %p278, %p279
    %p281 = scmp.ne.s32.totalorder %s269, %s270
    %p282 = scmp.eq.s32.totalorder %s29, 1
    %p283 = por %p281, %p282
    %p285 = scmp.ne.s32.totalorder %s270, %s284
    %p286 = scmp.eq.s32.totalorder %s29, 0
    %p287 = por %p285, %p286
    %s289 = sadd.s32 %s288, 1
    %p292 = scmp.eq.s32.totalorder %s23, 1
    %p293 = scmp.ne.s32.totalorder %s288, %s290
    %p294 = scmp.eq.s32.totalorder %s23, 0
    %p295 = por %p293, %p294
    %p296 = scmp.ne.s32.totalorder %s288, %s290
    %p297 = scmp.eq.s32.totalorder %s28, 1
    %p298 = por %p296, %p297
    %p299 = scmp.ne.s32.totalorder %s290, %s291
    %p300 = scmp.eq.s32.totalorder %s28, 0
    %p301 = por %p299, %p300
    %p302 = scmp.ne.s32.totalorder %s290, %s291
    %p303 = scmp.eq.s32.totalorder %s29, 1
    %p304 = por %p302, %p303
    %p306 = scmp.ne.s32.totalorder %s291, %s305
    %p307 = scmp.eq.s32.totalorder %s29, 0
    %p308 = por %p306, %p307
    %s310 = sadd.s32 %s309, 1
    %p313 = scmp.eq.s32.totalorder %s23, 1
    %p314 = scmp.ne.s32.totalorder %s309, %s311
    %p315 = scmp.eq.s32.totalorder %s23, 0
    %p316 = por %p314, %p315
    %p317 = scmp.ne.s32.totalorder %s309, %s311
    %p318 = scmp.eq.s32.totalorder %s28, 1
    %p319 = por %p317, %p318
    %p320 = scmp.ne.s32.totalorder %s311, %s312
    %p321 = scmp.eq.s32.totalorder %s28, 0
    %p322 = por %p320, %p321
    %p323 = scmp.ne.s32.totalorder %s311, %s312
    %p324 = scmp.eq.s32.totalorder %s29, 1
    %p325 = por %p323, %p324
    %p327 = scmp.ne.s32.totalorder %s312, %s326
    %p328 = scmp.eq.s32.totalorder %s29, 0
    %p329 = por %p327, %p328
    %s331 = sadd.s32 %s330, 1
    %p334 = scmp.eq.s32.totalorder %s23, 1
    %p335 = scmp.ne.s32.totalorder %s330, %s332
    %p336 = scmp.eq.s32.totalorder %s23, 0
    %p337 = por %p335, %p336
    %p338 = scmp.ne.s32.totalorder %s330, %s332
    %p339 = scmp.eq.s32.totalorder %s28, 1
    %p340 = por %p338, %p339
    %p341 = scmp.ne.s32.totalorder %s332, %s333
    %p342 = scmp.eq.s32.totalorder %s28, 0
    %p343 = por %p341, %p342
    %p344 = scmp.ne.s32.totalorder %s332, %s333
    %p345 = scmp.eq.s32.totalorder %s29, 1
    %p346 = por %p344, %p345
    %p348 = scmp.ne.s32.totalorder %s333, %s347
    %p349 = scmp.eq.s32.totalorder %s29, 0
    %p350 = por %p348, %p349
    %s351 = ssub.s32 %s23, %s30
    %p352 = scmp.eq.s32.totalorder %s351, 0
    %s354 = sadd.s32 %s353, 1
    %s355 = scalar_select %p352, %s353, %s354
    %p358 = pneg %p352
    %p359 = scmp.eq.s32.totalorder %s23, 1
    %p360 = por %p358, %p359
    %p361 = scmp.ne.s32.totalorder %s353, %s356
    %p362 = scmp.eq.s32.totalorder %s23, 0
    %p363 = por %p361, %p362
    %p364 = scmp.ne.s32.totalorder %s353, %s356
    %p365 = scmp.eq.s32.totalorder %s28, 1
    %p366 = por %p364, %p365
    %p367 = scmp.ne.s32.totalorder %s356, %s357
    %p368 = scmp.eq.s32.totalorder %s28, 0
    %p369 = por %p367, %p368
    %p370 = scmp.ne.s32.totalorder %s356, %s357
    %p371 = scmp.eq.s32.totalorder %s29, 1
    %p372 = por %p370, %p371
    %p374 = scmp.ne.s32.totalorder %s357, %s373
    %p375 = scmp.eq.s32.totalorder %s29, 0
    %p376 = por %p374, %p375
    %p377 = scmp.le.s32.totalorder 1, %s23
    %p378 = scmp.lt.s32.totalorder %s23, 3
    %p379 = pnand %p377, %p378
    %p380 = pneg %p379
    // Predicated region
    $region9: #{fused_forward.1} parent=5 // pred_check
      _
    $region10: #{fused_forward.1} parent=5 // pred_check_branch
      %382 = sbr.rel (%p379) target = $region12
    $region11: #{fused_forward.1} parent=5 // pred_region
      %s383 = ssub.s32 %s23, 1
      // Predicated region
      $region13: #{fused_forward.1} parent=11 // pred_check
        %p384 = pneg %p70
      $region14: #{fused_forward.1} parent=11 // pred_check_branch
        %386 = sbr.rel (%p384) target = $region16
      $region15: #{fused_forward.1} parent=11 // pred_region
        _
      $region16: #{fused_forward.1} parent=11 // pred_fallthru
        _
      // Predicated region
      $region17: #{fused_forward.1} parent=11 // pred_check
        %p387 = pneg %p91
      $region18: #{fused_forward.1} parent=11 // pred_check_branch
        %389 = sbr.rel (%p387) target = $region20
      $region19: #{fused_forward.1} parent=11 // pred_region
        _
      $region20: #{fused_forward.1} parent=11 // pred_fallthru
        _
      // Predicated region
      $region21: #{fused_forward.1} parent=11 // pred_check
        %p390 = pneg %p112
      $region22: #{fused_forward.1} parent=11 // pred_check_branch
        %392 = sbr.rel (%p390) target = $region24
      $region23: #{fused_forward.1} parent=11 // pred_region
        _
      $region24: #{fused_forward.1} parent=11 // pred_fallthru
        _
      // Predicated region
      $region25: #{fused_forward.1} parent=11 // pred_check
        %p393 = pneg %p133
      $region26: #{fused_forward.1} parent=11 // pred_check_branch
        %395 = sbr.rel (%p393) target = $region28
      $region27: #{fused_forward.1} parent=11 // pred_region
        _
      $region28: #{fused_forward.1} parent=11 // pred_fallthru
        _
      // Predicated region
      $region29: #{fused_forward.1} parent=11 // pred_check
        %p396 = pneg %p154
      $region30: #{fused_forward.1} parent=11 // pred_check_branch
        %398 = sbr.rel (%p396) target = $region32
      $region31: #{fused_forward.1} parent=11 // pred_region
        _
      $region32: #{fused_forward.1} parent=11 // pred_fallthru
        _
      // Predicated region
      $region33: #{fused_forward.1} parent=11 // pred_check
        %p399 = pneg %p175
      $region34: #{fused_forward.1} parent=11 // pred_check_branch
        %401 = sbr.rel (%p399) target = $region36
      $region35: #{fused_forward.1} parent=11 // pred_region
        _
      $region36: #{fused_forward.1} parent=11 // pred_fallthru
        _
      // Predicated region
      $region37: #{fused_forward.1} parent=11 // pred_check
        %p402 = pneg %p196
      $region38: #{fused_forward.1} parent=11 // pred_check_branch
        %404 = sbr.rel (%p402) target = $region40
      $region39: #{fused_forward.1} parent=11 // pred_region
        _
      $region40: #{fused_forward.1} parent=11 // pred_fallthru
        _
      // Predicated region
      $region41: #{fused_forward.1} parent=11 // pred_check
        %p405 = pneg %p217
      $region42: #{fused_forward.1} parent=11 // pred_check_branch
        %407 = sbr.rel (%p405) target = $region44
      $region43: #{fused_forward.1} parent=11 // pred_region
        _
      $region44: #{fused_forward.1} parent=11 // pred_fallthru
        _
      // Predicated region
      $region45: #{fused_forward.1} parent=11 // pred_check
        %p408 = pneg %p238
      $region46: #{fused_forward.1} parent=11 // pred_check_branch
        %410 = sbr.rel (%p408) target = $region48
      $region47: #{fused_forward.1} parent=11 // pred_region
        _
      $region48: #{fused_forward.1} parent=11 // pred_fallthru
        _
      // Predicated region
      $region49: #{fused_forward.1} parent=11 // pred_check
        %p411 = pneg %p259
      $region50: #{fused_forward.1} parent=11 // pred_check_branch
        %413 = sbr.rel (%p411) target = $region52
      $region51: #{fused_forward.1} parent=11 // pred_region
        _
      $region52: #{fused_forward.1} parent=11 // pred_fallthru
        _
      // Predicated region
      $region53: #{fused_forward.1} parent=11 // pred_check
        %p414 = pneg %p280
      $region54: #{fused_forward.1} parent=11 // pred_check_branch
        %416 = sbr.rel (%p414) target = $region56
      $region55: #{fused_forward.1} parent=11 // pred_region
        _
      $region56: #{fused_forward.1} parent=11 // pred_fallthru
        _
      // Predicated region
      $region57: #{fused_forward.1} parent=11 // pred_check
        %p417 = pneg %p301
      $region58: #{fused_forward.1} parent=11 // pred_check_branch
        %419 = sbr.rel (%p417) target = $region60
      $region59: #{fused_forward.1} parent=11 // pred_region
        _
      $region60: #{fused_forward.1} parent=11 // pred_fallthru
        _
      // Predicated region
      $region61: #{fused_forward.1} parent=11 // pred_check
        %p420 = pneg %p322
      $region62: #{fused_forward.1} parent=11 // pred_check_branch
        %422 = sbr.rel (%p420) target = $region64
      $region63: #{fused_forward.1} parent=11 // pred_region
        _
      $region64: #{fused_forward.1} parent=11 // pred_fallthru
        _
      // Predicated region
      $region65: #{fused_forward.1} parent=11 // pred_check
        %p423 = pneg %p343
      $region66: #{fused_forward.1} parent=11 // pred_check_branch
        %425 = sbr.rel (%p423) target = $region68
      $region67: #{fused_forward.1} parent=11 // pred_region
        _
      $region68: #{fused_forward.1} parent=11 // pred_fallthru
        _
    $region12: #{fused_forward.1} parent=5 // pred_fallthru
      _
    %p426 = scmp.lt.s32.totalorder %s23, 2
    // Predicated region
    $region69: #{fused_forward.1} parent=5 // pred_check
      %p427 = pneg %p426
    $region70: #{fused_forward.1} parent=5 // pred_check_branch
      %429 = sbr.rel (%p427) target = $region72
    $region71: #{fused_forward.1} parent=5 // pred_region
      // Predicated region
      $region73: #{fused_forward.1} parent=71 // pred_check
        %p430 = pneg %p43
      $region74: #{fused_forward.1} parent=71 // pred_check_branch
        %432 = sbr.rel (%p430) target = $region76
      $region75: #{fused_forward.1} parent=71 // pred_region
        %s433 = smul.u32 30, %s23
        %p434 = scmp.lt.s32.totalorder %s433, 59
        %s435 = scalar_select %p434, %s433, 59
        %s436 = smul.addr %s435, 5
        %s437 = smul.addr %s436, 8
        %s438 = scalar_lea.vmem %s0, %s437
        %s439 = smul.u32 30, %s23
      $region76: #{fused_forward.1} parent=71 // pred_fallthru
        _
    $region72: #{fused_forward.1} parent=5 // pred_fallthru
      _
    %p440 = scmp.le.s32.totalorder 1, %s23
    %p441 = scmp.lt.s32.totalorder %s23, 3
    %p442 = pnand %p440, %p441
    %p443 = pneg %p442
    // Predicated region
    $region77: #{fused_forward.1} parent=5 // pred_check
      _
    $region78: #{fused_forward.1} parent=5 // pred_check_branch
      %445 = sbr.rel (%p442) target = $region80
    $region79: #{fused_forward.1} parent=5 // pred_region
      %s446 = ssub.s32 %s23, 1
      %s447 = smul.u32 30, %s28
      %p448 = scmp.lt.s32.totalorder %s447, 59
      %s449 = scalar_select %p448, %s447, 59
      %s450 = smul.addr %s449, 5
      %s451 = smul.addr %s450, 8
      %s452 = scalar_lea.vmem %s0, %s451
      %p453 = pneg %p49
      %p454 = pneg %p46
      %p455 = pneg %p70
      %p456 = pneg %p67
      %p457 = pneg %p91
      %p458 = pneg %p88
      %p459 = pneg %p112
      %p460 = pneg %p109
      %p461 = pneg %p133
      %p462 = pneg %p130
      %p463 = pneg %p154
      %p464 = pneg %p151
      %p465 = pneg %p175
      %p466 = pneg %p172
      %p467 = pneg %p196
      %p468 = pneg %p193
      %p469 = pneg %p217
      %p470 = pneg %p214
      %p471 = pneg %p238
      %p472 = pneg %p235
      %p473 = pneg %p259
      %p474 = pneg %p256
      %p475 = pneg %p280
      %p476 = pneg %p277
      %p477 = pneg %p301
      %p478 = pneg %p298
      %p479 = pneg %p322
      %p480 = pneg %p319
      %p481 = pneg %p343
      %p482 = pneg %p340
      %p483 = pneg %p369
      %p484 = pneg %p366
      %p485 = scmp.lt.s32.totalorder %s28, 1
      %s486 = scalar_select %p485, %s28, 1
      %s487 = scalar_lea.vmem %s15, %s486
      %s488 = smul.u32 30, %s28
      %p489 = scmp.lt.s32.totalorder %s488, 59
      %s490 = scalar_select %p489, %s488, 59
      %s491 = smul.addr %s490, 5
      %s492 = smul.addr %s491, 8
      %s493 = scalar_lea.vmem %s0, %s492
      %s494 = smul.u32 30, %s28
      %p495 = scmp.lt.s32.totalorder %s28, 1
      %s496 = scalar_select %p495, %s28, 1
      %s497 = scalar_lea.vmem %s15, %s496
      %v499 = vld [vmem:[%s493] sm:$0xff]
      %v500 = vld [vmem:[%s493 + $0x8] sm:$0xff]
      %v501 = vld [vmem:[%s493 + $0x10] sm:$0xff]
      %v502 = vld [vmem:[%s493 + $0x18] sm:$0xff]
      %v503 = vld [vmem:[%s493 + $0x20] sm:$0xff]
      %v504 = vld [vmem:[%s493 + $0x28] sm:$0xff]
      %v505 = vld [vmem:[%s493 + $0x30] sm:$0xff]
      %v506 = vld [vmem:[%s493 + $0x38] sm:$0xff]
      %v507 = vld [vmem:[%s493 + $0x40] sm:$0xff]
      %v508 = vld [vmem:[%s493 + $0x48] sm:$0xff]
      %v509 = vld [vmem:[%s493 + $0x50] sm:$0xff]
      %v510 = vld [vmem:[%s493 + $0x58] sm:$0xff]
      %v511 = vld [vmem:[%s493 + $0x60] sm:$0xff]
      %v512 = vld [vmem:[%s493 + $0x68] sm:$0xff]
      %v513 = vld [vmem:[%s493 + $0x70] sm:$0xff]
      %v514 = vld [vmem:[%s493 + $0x78] sm:$0xff]
      %v515 = vld [vmem:[%s493 + $0x80] sm:$0xff]
      %v516 = vld [vmem:[%s493 + $0x88] sm:$0xff]
      %v517 = vld [vmem:[%s493 + $0x90] sm:$0xff]
      %v518 = vld [vmem:[%s493 + $0x98] sm:$0xff]
      %v519 = vld [vmem:[%s493 + $0xa0] sm:$0xff]
      %v520 = vld [vmem:[%s493 + $0xa8] sm:$0xff]
      %v521 = vld [vmem:[%s493 + $0xb0] sm:$0xff]
      %v522 = vld [vmem:[%s493 + $0xb8] sm:$0xff]
      %v523 = vld [vmem:[%s493 + $0xc0] sm:$0xff]
      %v524 = vld [vmem:[%s493 + $0xc8] sm:$0xff]
      %v525 = vld [vmem:[%s493 + $0xd0] sm:$0xff]
      %v526 = vld [vmem:[%s493 + $0xd8] sm:$0xff]
      %v527 = vld [vmem:[%s493 + $0xe0] sm:$0xff]
      %v528 = vld [vmem:[%s493 + $0xe8] sm:$0xff]
      %v529 = vld [vmem:[%s493 + $0xf0] sm:$0xff]
      %v530 = vld [vmem:[%s493 + $0xf8] sm:$0xff]
      %v531 = vld [vmem:[%s493 + $0x100] sm:$0xff]
      %v532 = vld [vmem:[%s493 + $0x108] sm:$0xff]
      %v533 = vld [vmem:[%s493 + $0x110] sm:$0xff]
      %v534 = vld [vmem:[%s493 + $0x118] sm:$0xff]
      %v535 = vld [vmem:[%s493 + $0x120] sm:$0xff]
      %v536 = vld [vmem:[%s493 + $0x128] sm:$0xff]
      %v537 = vld [vmem:[%s493 + $0x130] sm:$0xff]
      %v538 = vld [vmem:[%s493 + $0x138] sm:$0xff]
      %v539 = vld [vmem:[%s493 + $0x140] sm:$0xff]
      %v540 = vld [vmem:[%s493 + $0x148] sm:$0xff]
      %v541 = vld [vmem:[%s493 + $0x150] sm:$0xff]
      %v542 = vld [vmem:[%s493 + $0x158] sm:$0xff]
      %v543 = vld [vmem:[%s493 + $0x160] sm:$0xff]
      %v544 = vld [vmem:[%s493 + $0x168] sm:$0xff]
      %v545 = vld [vmem:[%s493 + $0x170] sm:$0xff]
      %v546 = vld [vmem:[%s493 + $0x178] sm:$0xff]
      %v547 = vld [vmem:[%s493 + $0x180] sm:$0xff]
      %v548 = vld [vmem:[%s493 + $0x188] sm:$0xff]
      %v549 = vld [vmem:[%s493 + $0x190] sm:$0xff]
      %v550 = vld [vmem:[%s493 + $0x198] sm:$0xff]
      %v551 = vld [vmem:[%s493 + $0x1a0] sm:$0xff]
      %v552 = vld [vmem:[%s493 + $0x1a8] sm:$0xff]
      %v553 = vld [vmem:[%s493 + $0x1b0] sm:$0xff]
      %v554 = vld [vmem:[%s493 + $0x1b8] sm:$0xff]
      %v555 = vld [vmem:[%s493 + $0x1c0] sm:$0xff]
      %v556 = vld [vmem:[%s493 + $0x1c8] sm:$0xff]
      %v557 = vld [vmem:[%s493 + $0x1d0] sm:$0xff]
      %v558 = vld [vmem:[%s493 + $0x1d8] sm:$0xff]
      %v559 = vld [vmem:[%s493 + $0x1e0] sm:$0xff]
      %v560 = vld [vmem:[%s493 + $0x1e8] sm:$0xff]
      %v561 = vld [vmem:[%s493 + $0x1f0] sm:$0xff]
      %v562 = vld [vmem:[%s493 + $0x1f8] sm:$0xff]
      %v563 = vld [vmem:[%s493 + $0x200] sm:$0xff]
      %v564 = vld [vmem:[%s493 + $0x208] sm:$0xff]
      %v565 = vld [vmem:[%s493 + $0x210] sm:$0xff]
      %v566 = vld [vmem:[%s493 + $0x218] sm:$0xff]
      %v567 = vld [vmem:[%s493 + $0x220] sm:$0xff]
      %v568 = vld [vmem:[%s493 + $0x228] sm:$0xff]
      %v569 = vld [vmem:[%s493 + $0x230] sm:$0xff]
      %v570 = vld [vmem:[%s493 + $0x238] sm:$0xff]
      %v571 = vld [vmem:[%s493 + $0x240] sm:$0xff]
      %v572 = vld [vmem:[%s493 + $0x248] sm:$0xff]
      %v573 = vld [vmem:[%s493 + $0x250] sm:$0xff]
      %v574 = vld [vmem:[%s493 + $0x258] sm:$0xff]
      %v575 = vld [vmem:[%s493 + $0x260] sm:$0xff]
      %v576 = vld [vmem:[%s493 + $0x268] sm:$0xff]
      %v577 = vld [vmem:[%s493 + $0x270] sm:$0xff]
      %v578 = vld [vmem:[%s493 + $0x278] sm:$0xff]
      %v579 = vld [vmem:[%s493 + $0x280] sm:$0xff]
      %v580 = vld [vmem:[%s493 + $0x288] sm:$0xff]
      %v581 = vld [vmem:[%s493 + $0x290] sm:$0xff]
      %v582 = vld [vmem:[%s493 + $0x298] sm:$0xff]
      %v583 = vld [vmem:[%s493 + $0x2a0] sm:$0xff]
      %v584 = vld [vmem:[%s493 + $0x2a8] sm:$0xff]
      %v585 = vld [vmem:[%s493 + $0x2b0] sm:$0xff]
      %v586 = vld [vmem:[%s493 + $0x2b8] sm:$0xff]
      %v587 = vld [vmem:[%s493 + $0x2c0] sm:$0xff]
      %v588 = vld [vmem:[%s493 + $0x2c8] sm:$0xff]
      %v589 = vld [vmem:[%s493 + $0x2d0] sm:$0xff]
      %v590 = vld [vmem:[%s493 + $0x2d8] sm:$0xff]
      %v591 = vld [vmem:[%s493 + $0x2e0] sm:$0xff]
      %v592 = vld [vmem:[%s493 + $0x2e8] sm:$0xff]
      %v593 = vld [vmem:[%s493 + $0x2f0] sm:$0xff]
      %v594 = vld [vmem:[%s493 + $0x2f8] sm:$0xff]
      %v595 = vld [vmem:[%s493 + $0x300] sm:$0xff]
      %v596 = vld [vmem:[%s493 + $0x308] sm:$0xff]
      %v597 = vld [vmem:[%s493 + $0x310] sm:$0xff]
      %v598 = vld [vmem:[%s493 + $0x318] sm:$0xff]
      %v599 = vld [vmem:[%s493 + $0x320] sm:$0xff]
      %v600 = vld [vmem:[%s493 + $0x328] sm:$0xff]
      %v601 = vld [vmem:[%s493 + $0x330] sm:$0xff]
      %v602 = vld [vmem:[%s493 + $0x338] sm:$0xff]
      %v603 = vld [vmem:[%s493 + $0x340] sm:$0xff]
      %v604 = vld [vmem:[%s493 + $0x348] sm:$0xff]
      %v605 = vld [vmem:[%s493 + $0x350] sm:$0xff]
      %v606 = vld [vmem:[%s493 + $0x358] sm:$0xff]
      %v607 = vld [vmem:[%s493 + $0x360] sm:$0xff]
      %v608 = vld [vmem:[%s493 + $0x368] sm:$0xff]
      %v609 = vld [vmem:[%s493 + $0x370] sm:$0xff]
      %v610 = vld [vmem:[%s493 + $0x378] sm:$0xff]
      %v611 = vld [vmem:[%s493 + $0x380] sm:$0xff]
      %v612 = vld [vmem:[%s493 + $0x388] sm:$0xff]
      %v613 = vld [vmem:[%s493 + $0x390] sm:$0xff]
      %v614 = vld [vmem:[%s493 + $0x398] sm:$0xff]
      %v615 = vld [vmem:[%s493 + $0x3a0] sm:$0xff]
      %v616 = vld [vmem:[%s493 + $0x3a8] sm:$0xff]
      %v617 = vld [vmem:[%s493 + $0x3b0] sm:$0xff]
      %v618 = vld [vmem:[%s493 + $0x3b8] sm:$0xff]
      %v619 = vld [vmem:[%s493 + $0x3c0] sm:$0xff]
      %v620 = vld [vmem:[%s493 + $0x3c8] sm:$0xff]
      %v621 = vld [vmem:[%s493 + $0x3d0] sm:$0xff]
      %v622 = vld [vmem:[%s493 + $0x3d8] sm:$0xff]
      %v623 = vld [vmem:[%s493 + $0x3e0] sm:$0xff]
      %v624 = vld [vmem:[%s493 + $0x3e8] sm:$0xff]
      %v625 = vld [vmem:[%s493 + $0x3f0] sm:$0xff]
      %v626 = vld [vmem:[%s493 + $0x3f8] sm:$0xff]
      %v627 = vld [vmem:[%s493 + $0x400] sm:$0xff]
      %v628 = vld [vmem:[%s493 + $0x408] sm:$0xff]
      %v629 = vld [vmem:[%s493 + $0x410] sm:$0xff]
      %v630 = vld [vmem:[%s493 + $0x418] sm:$0xff]
      %v631 = vld [vmem:[%s493 + $0x420] sm:$0xff]
      %v632 = vld [vmem:[%s493 + $0x428] sm:$0xff]
      %v633 = vld [vmem:[%s493 + $0x430] sm:$0xff]
      %v634 = vld [vmem:[%s493 + $0x438] sm:$0xff]
      %v635 = vld [vmem:[%s493 + $0x440] sm:$0xff]
      %v636 = vld [vmem:[%s493 + $0x448] sm:$0xff]
      %v637 = vld [vmem:[%s493 + $0x450] sm:$0xff]
      %v638 = vld [vmem:[%s493 + $0x458] sm:$0xff]
      %v639 = vld [vmem:[%s493 + $0x460] sm:$0xff]
      %v640 = vld [vmem:[%s493 + $0x468] sm:$0xff]
      %v641 = vld [vmem:[%s493 + $0x470] sm:$0xff]
      %v642 = vld [vmem:[%s493 + $0x478] sm:$0xff]
      %v643 = vld [vmem:[%s493 + $0x480] sm:$0xff]
      %v644 = vld [vmem:[%s493 + $0x488] sm:$0xff]
      %v645 = vld [vmem:[%s493 + $0x490] sm:$0xff]
      %v646 = vld [vmem:[%s493 + $0x498] sm:$0xff]
      %v647 = vld [vmem:[%s493 + $0x4a0] sm:$0xff]
      %v648 = vld [vmem:[%s493 + $0x4a8] sm:$0xff]
      %v649 = vlaneseq
      %v650 = vshrl.u32 %v649, 7
      %v651 = vadd.s32 %v650, 8
      %v652 = vadd.s32 %v650, 16
      %v653 = vadd.s32 %v650, 24
      %v654 = vadd.s32 %v650, 32
      %v655 = vadd.s32 %v650, 40
      %v656 = vadd.s32 %v650, 48
      %v657 = vadd.s32 %v650, 56
      %v658 = vadd.s32 %v650, 64
      %v659 = vadd.s32 %v650, 72
      %v660 = vadd.s32 %v650, 80
      %v661 = vadd.s32 %v650, 88
      %v662 = vadd.s32 %v650, 96
      %v663 = vadd.s32 %v650, 104
      %v664 = vadd.s32 %v650, 112
      %v665 = vadd.s32 %v650, 120
      %v666 = vadd.s32 %v650, 128
      %v667 = vadd.s32 %v650, 136
      %v668 = vadd.s32 %v650, 144
      %v669 = vadd.s32 %v650, 152
      %v670 = vadd.s32 %v650, 160
      %v671 = vadd.s32 %v650, 168
      %v672 = vadd.s32 %v650, 176
      %v673 = vadd.s32 %v650, 184
      %v674 = vadd.s32 %v650, 192
      %v675 = vadd.s32 %v650, 200
      %v676 = vadd.s32 %v650, 208
      %v677 = vadd.s32 %v650, 216
      %v678 = vadd.s32 %v650, 224
      %v679 = vadd.s32 %v650, 232
      %vm680 = vcmp.lt.s32.totalorder %v650, 0
      %v681 = vsub.s32 0, %v650
      %v682 = vsel %vm680, %v681, %v650
      %v683 = vmul.u32.u64.compose %v682, 3435973837
      %v684 = vextract.low.u32 %v683
      %v685 = vextract.high.u32 %v683
      %v686 = vshrl.u32 %v685, 3
      %v687 = vmul.u32 %v686, 10
      %v688 = vsub.s32 %v682, %v687
      %v689 = vsub.s32 0, %v688
      %v690 = vsel %vm680, %v689, %v688
      %vm691 = vcmp.lt.s32.totalorder %v651, 0
      %v692 = vsub.s32 0, %v651
      %v693 = vsel %vm691, %v692, %v651
      %v694 = vmul.u32.u64.compose %v693, 3435973837
      %v695 = vextract.low.u32 %v694
      %v696 = vextract.high.u32 %v694
      %v697 = vshrl.u32 %v696, 3
      %v698 = vmul.u32 %v697, 10
      %v699 = vsub.s32 %v693, %v698
      %v700 = vsub.s32 0, %v699
      %v701 = vsel %vm691, %v700, %v699
      %vm702 = vcmp.lt.s32.totalorder %v652, 0
      %v703 = vsub.s32 0, %v652
      %v704 = vsel %vm702, %v703, %v652
      %v705 = vmul.u32.u64.compose %v704, 3435973837
      %v706 = vextract.low.u32 %v705
      %v707 = vextract.high.u32 %v705
      %v708 = vshrl.u32 %v707, 3
      %v709 = vmul.u32 %v708, 10
      %v710 = vsub.s32 %v704, %v709
      %v711 = vsub.s32 0, %v710
      %v712 = vsel %vm702, %v711, %v710
      %vm713 = vcmp.lt.s32.totalorder %v653, 0
      %v714 = vsub.s32 0, %v653
      %v715 = vsel %vm713, %v714, %v653
      %v716 = vmul.u32.u64.compose %v715, 3435973837
      %v717 = vextract.low.u32 %v716
      %v718 = vextract.high.u32 %v716
      %v719 = vshrl.u32 %v718, 3
      %v720 = vmul.u32 %v719, 10
      %v721 = vsub.s32 %v715, %v720
      %v722 = vsub.s32 0, %v721
      %v723 = vsel %vm713, %v722, %v721
      %vm724 = vcmp.lt.s32.totalorder %v654, 0
      %v725 = vsub.s32 0, %v654
      %v726 = vsel %vm724, %v725, %v654
      %v727 = vmul.u32.u64.compose %v726, 3435973837
      %v728 = vextract.low.u32 %v727
      %v729 = vextract.high.u32 %v727
      %v730 = vshrl.u32 %v729, 3
      %v731 = vmul.u32 %v730, 10
      %v732 = vsub.s32 %v726, %v731
      %v733 = vsub.s32 0, %v732
      %v734 = vsel %vm724, %v733, %v732
      %vm735 = vcmp.lt.s32.totalorder %v655, 0
      %v736 = vsub.s32 0, %v655
      %v737 = vsel %vm735, %v736, %v655
      %v738 = vmul.u32.u64.compose %v737, 3435973837
      %v739 = vextract.low.u32 %v738
      %v740 = vextract.high.u32 %v738
      %v741 = vshrl.u32 %v740, 3
      %v742 = vmul.u32 %v741, 10
      %v743 = vsub.s32 %v737, %v742
      %v744 = vsub.s32 0, %v743
      %v745 = vsel %vm735, %v744, %v743
      %vm746 = vcmp.lt.s32.totalorder %v656, 0
      %v747 = vsub.s32 0, %v656
      %v748 = vsel %vm746, %v747, %v656
      %v749 = vmul.u32.u64.compose %v748, 3435973837
      %v750 = vextract.low.u32 %v749
      %v751 = vextract.high.u32 %v749
      %v752 = vshrl.u32 %v751, 3
      %v753 = vmul.u32 %v752, 10
      %v754 = vsub.s32 %v748, %v753
      %v755 = vsub.s32 0, %v754
      %v756 = vsel %vm746, %v755, %v754
      %vm757 = vcmp.lt.s32.totalorder %v657, 0
      %v758 = vsub.s32 0, %v657
      %v759 = vsel %vm757, %v758, %v657
      %v760 = vmul.u32.u64.compose %v759, 3435973837
      %v761 = vextract.low.u32 %v760
      %v762 = vextract.high.u32 %v760
      %v763 = vshrl.u32 %v762, 3
      %v764 = vmul.u32 %v763, 10
      %v765 = vsub.s32 %v759, %v764
      %v766 = vsub.s32 0, %v765
      %v767 = vsel %vm757, %v766, %v765
      %vm768 = vcmp.lt.s32.totalorder %v658, 0
      %v769 = vsub.s32 0, %v658
      %v770 = vsel %vm768, %v769, %v658
      %v771 = vmul.u32.u64.compose %v770, 3435973837
      %v772 = vextract.low.u32 %v771
      %v773 = vextract.high.u32 %v771
      %v774 = vshrl.u32 %v773, 3
      %v775 = vmul.u32 %v774, 10
      %v776 = vsub.s32 %v770, %v775
      %v777 = vsub.s32 0, %v776
      %v778 = vsel %vm768, %v777, %v776
      %vm779 = vcmp.lt.s32.totalorder %v659, 0
      %v780 = vsub.s32 0, %v659
      %v781 = vsel %vm779, %v780, %v659
      %v782 = vmul.u32.u64.compose %v781, 3435973837
      %v783 = vextract.low.u32 %v782
      %v784 = vextract.high.u32 %v782
      %v785 = vshrl.u32 %v784, 3
      %v786 = vmul.u32 %v785, 10
      %v787 = vsub.s32 %v781, %v786
      %v788 = vsub.s32 0, %v787
      %v789 = vsel %vm779, %v788, %v787
      %vm790 = vcmp.lt.s32.totalorder %v660, 0
      %v791 = vsub.s32 0, %v660
      %v792 = vsel %vm790, %v791, %v660
      %v793 = vmul.u32.u64.compose %v792, 3435973837
      %v794 = vextract.low.u32 %v793
      %v795 = vextract.high.u32 %v793
      %v796 = vshrl.u32 %v795, 3
      %v797 = vmul.u32 %v796, 10
      %v798 = vsub.s32 %v792, %v797
      %v799 = vsub.s32 0, %v798
      %v800 = vsel %vm790, %v799, %v798
      %vm801 = vcmp.lt.s32.totalorder %v661, 0
      %v802 = vsub.s32 0, %v661
      %v803 = vsel %vm801, %v802, %v661
      %v804 = vmul.u32.u64.compose %v803, 3435973837
      %v805 = vextract.low.u32 %v804
      %v806 = vextract.high.u32 %v804
      %v807 = vshrl.u32 %v806, 3
      %v808 = vmul.u32 %v807, 10
      %v809 = vsub.s32 %v803, %v808
      %v810 = vsub.s32 0, %v809
      %v811 = vsel %vm801, %v810, %v809
      %vm812 = vcmp.lt.s32.totalorder %v662, 0
      %v813 = vsub.s32 0, %v662
      %v814 = vsel %vm812, %v813, %v662
      %v815 = vmul.u32.u64.compose %v814, 3435973837
      %v816 = vextract.low.u32 %v815
      %v817 = vextract.high.u32 %v815
      %v818 = vshrl.u32 %v817, 3
      %v819 = vmul.u32 %v818, 10
      %v820 = vsub.s32 %v814, %v819
      %v821 = vsub.s32 0, %v820
      %v822 = vsel %vm812, %v821, %v820
      %vm823 = vcmp.lt.s32.totalorder %v663, 0
      %v824 = vsub.s32 0, %v663
      %v825 = vsel %vm823, %v824, %v663
      %v826 = vmul.u32.u64.compose %v825, 3435973837
      %v827 = vextract.low.u32 %v826
      %v828 = vextract.high.u32 %v826
      %v829 = vshrl.u32 %v828, 3
      %v830 = vmul.u32 %v829, 10
      %v831 = vsub.s32 %v825, %v830
      %v832 = vsub.s32 0, %v831
      %v833 = vsel %vm823, %v832, %v831
      %vm834 = vcmp.lt.s32.totalorder %v664, 0
      %v835 = vsub.s32 0, %v664
      %v836 = vsel %vm834, %v835, %v664
      %v837 = vmul.u32.u64.compose %v836, 3435973837
      %v838 = vextract.low.u32 %v837
      %v839 = vextract.high.u32 %v837
      %v840 = vshrl.u32 %v839, 3
      %v841 = vmul.u32 %v840, 10
      %v842 = vsub.s32 %v836, %v841
      %v843 = vsub.s32 0, %v842
      %v844 = vsel %vm834, %v843, %v842
      %vm845 = vcmp.lt.s32.totalorder %v665, 0
      %v846 = vsub.s32 0, %v665
      %v847 = vsel %vm845, %v846, %v665
      %v848 = vmul.u32.u64.compose %v847, 3435973837
      %v849 = vextract.low.u32 %v848
      %v850 = vextract.high.u32 %v848
      %v851 = vshrl.u32 %v850, 3
      %v852 = vmul.u32 %v851, 10
      %v853 = vsub.s32 %v847, %v852
      %v854 = vsub.s32 0, %v853
      %v855 = vsel %vm845, %v854, %v853
      %vm856 = vcmp.lt.s32.totalorder %v666, 0
      %v857 = vsub.s32 0, %v666
      %v858 = vsel %vm856, %v857, %v666
      %v859 = vmul.u32.u64.compose %v858, 3435973837
      %v860 = vextract.low.u32 %v859
      %v861 = vextract.high.u32 %v859
      %v862 = vshrl.u32 %v861, 3
      %v863 = vmul.u32 %v862, 10
      %v864 = vsub.s32 %v858, %v863
      %v865 = vsub.s32 0, %v864
      %v866 = vsel %vm856, %v865, %v864
      %vm867 = vcmp.lt.s32.totalorder %v667, 0
      %v868 = vsub.s32 0, %v667
      %v869 = vsel %vm867, %v868, %v667
      %v870 = vmul.u32.u64.compose %v869, 3435973837
      %v871 = vextract.low.u32 %v870
      %v872 = vextract.high.u32 %v870
      %v873 = vshrl.u32 %v872, 3
      %v874 = vmul.u32 %v873, 10
      %v875 = vsub.s32 %v869, %v874
      %v876 = vsub.s32 0, %v875
      %v877 = vsel %vm867, %v876, %v875
      %vm878 = vcmp.lt.s32.totalorder %v668, 0
      %v879 = vsub.s32 0, %v668
      %v880 = vsel %vm878, %v879, %v668
      %v881 = vmul.u32.u64.compose %v880, 3435973837
      %v882 = vextract.low.u32 %v881
      %v883 = vextract.high.u32 %v881
      %v884 = vshrl.u32 %v883, 3
      %v885 = vmul.u32 %v884, 10
      %v886 = vsub.s32 %v880, %v885
      %v887 = vsub.s32 0, %v886
      %v888 = vsel %vm878, %v887, %v886
      %vm889 = vcmp.lt.s32.totalorder %v669, 0
      %v890 = vsub.s32 0, %v669
      %v891 = vsel %vm889, %v890, %v669
      %v892 = vmul.u32.u64.compose %v891, 3435973837
      %v893 = vextract.low.u32 %v892
      %v894 = vextract.high.u32 %v892
      %v895 = vshrl.u32 %v894, 3
      %v896 = vmul.u32 %v895, 10
      %v897 = vsub.s32 %v891, %v896
      %v898 = vsub.s32 0, %v897
      %v899 = vsel %vm889, %v898, %v897
      %vm900 = vcmp.lt.s32.totalorder %v670, 0
      %v901 = vsub.s32 0, %v670
      %v902 = vsel %vm900, %v901, %v670
      %v903 = vmul.u32.u64.compose %v902, 3435973837
      %v904 = vextract.low.u32 %v903
      %v905 = vextract.high.u32 %v903
      %v906 = vshrl.u32 %v905, 3
      %v907 = vmul.u32 %v906, 10
      %v908 = vsub.s32 %v902, %v907
      %v909 = vsub.s32 0, %v908
      %v910 = vsel %vm900, %v909, %v908
      %vm911 = vcmp.lt.s32.totalorder %v671, 0
      %v912 = vsub.s32 0, %v671
      %v913 = vsel %vm911, %v912, %v671
      %v914 = vmul.u32.u64.compose %v913, 3435973837
      %v915 = vextract.low.u32 %v914
      %v916 = vextract.high.u32 %v914
      %v917 = vshrl.u32 %v916, 3
      %v918 = vmul.u32 %v917, 10
      %v919 = vsub.s32 %v913, %v918
      %v920 = vsub.s32 0, %v919
      %v921 = vsel %vm911, %v920, %v919
      %vm922 = vcmp.lt.s32.totalorder %v672, 0
      %v923 = vsub.s32 0, %v672
      %v924 = vsel %vm922, %v923, %v672
      %v925 = vmul.u32.u64.compose %v924, 3435973837
      %v926 = vextract.low.u32 %v925
      %v927 = vextract.high.u32 %v925
      %v928 = vshrl.u32 %v927, 3
      %v929 = vmul.u32 %v928, 10
      %v930 = vsub.s32 %v924, %v929
      %v931 = vsub.s32 0, %v930
      %v932 = vsel %vm922, %v931, %v930
      %vm933 = vcmp.lt.s32.totalorder %v673, 0
      %v934 = vsub.s32 0, %v673
      %v935 = vsel %vm933, %v934, %v673
      %v936 = vmul.u32.u64.compose %v935, 3435973837
      %v937 = vextract.low.u32 %v936
      %v938 = vextract.high.u32 %v936
      %v939 = vshrl.u32 %v938, 3
      %v940 = vmul.u32 %v939, 10
      %v941 = vsub.s32 %v935, %v940
      %v942 = vsub.s32 0, %v941
      %v943 = vsel %vm933, %v942, %v941
      %vm944 = vcmp.lt.s32.totalorder %v674, 0
      %v945 = vsub.s32 0, %v674
      %v946 = vsel %vm944, %v945, %v674
      %v947 = vmul.u32.u64.compose %v946, 3435973837
      %v948 = vextract.low.u32 %v947
      %v949 = vextract.high.u32 %v947
      %v950 = vshrl.u32 %v949, 3
      %v951 = vmul.u32 %v950, 10
      %v952 = vsub.s32 %v946, %v951
      %v953 = vsub.s32 0, %v952
      %v954 = vsel %vm944, %v953, %v952
      %vm955 = vcmp.lt.s32.totalorder %v675, 0
      %v956 = vsub.s32 0, %v675
      %v957 = vsel %vm955, %v956, %v675
      %v958 = vmul.u32.u64.compose %v957, 3435973837
      %v959 = vextract.low.u32 %v958
      %v960 = vextract.high.u32 %v958
      %v961 = vshrl.u32 %v960, 3
      %v962 = vmul.u32 %v961, 10
      %v963 = vsub.s32 %v957, %v962
      %v964 = vsub.s32 0, %v963
      %v965 = vsel %vm955, %v964, %v963
      %vm966 = vcmp.lt.s32.totalorder %v676, 0
      %v967 = vsub.s32 0, %v676
      %v968 = vsel %vm966, %v967, %v676
      %v969 = vmul.u32.u64.compose %v968, 3435973837
      %v970 = vextract.low.u32 %v969
      %v971 = vextract.high.u32 %v969
      %v972 = vshrl.u32 %v971, 3
      %v973 = vmul.u32 %v972, 10
      %v974 = vsub.s32 %v968, %v973
      %v975 = vsub.s32 0, %v974
      %v976 = vsel %vm966, %v975, %v974
      %vm977 = vcmp.lt.s32.totalorder %v677, 0
      %v978 = vsub.s32 0, %v677
      %v979 = vsel %vm977, %v978, %v677
      %v980 = vmul.u32.u64.compose %v979, 3435973837
      %v981 = vextract.low.u32 %v980
      %v982 = vextract.high.u32 %v980
      %v983 = vshrl.u32 %v982, 3
      %v984 = vmul.u32 %v983, 10
      %v985 = vsub.s32 %v979, %v984
      %v986 = vsub.s32 0, %v985
      %v987 = vsel %vm977, %v986, %v985
      %vm988 = vcmp.lt.s32.totalorder %v678, 0
      %v989 = vsub.s32 0, %v678
      %v990 = vsel %vm988, %v989, %v678
      %v991 = vmul.u32.u64.compose %v990, 3435973837
      %v992 = vextract.low.u32 %v991
      %v993 = vextract.high.u32 %v991
      %v994 = vshrl.u32 %v993, 3
      %v995 = vmul.u32 %v994, 10
      %v996 = vsub.s32 %v990, %v995
      %v997 = vsub.s32 0, %v996
      %v998 = vsel %vm988, %v997, %v996
      %vm999 = vcmp.lt.s32.totalorder %v679, 0
      %v1000 = vsub.s32 0, %v679
      %v1001 = vsel %vm999, %v1000, %v679
      %v1002 = vmul.u32.u64.compose %v1001, 3435973837
      %v1003 = vextract.low.u32 %v1002
      %v1004 = vextract.high.u32 %v1002
      %v1005 = vshrl.u32 %v1004, 3
      %v1006 = vmul.u32 %v1005, 10
      %v1007 = vsub.s32 %v1001, %v1006
      %v1008 = vsub.s32 0, %v1007
      %v1009 = vsel %vm999, %v1008, %v1007
      %vm1010 = vcmp.ne.s32.totalorder %v690, 0
      %vm1011 = vcmp.ne.s32.totalorder %v701, 0
      %vm1012 = vcmp.ne.s32.totalorder %v712, 0
      %vm1013 = vcmp.ne.s32.totalorder %v723, 0
      %vm1014 = vcmp.ne.s32.totalorder %v734, 0
      %vm1015 = vcmp.ne.s32.totalorder %v745, 0
      %vm1016 = vcmp.ne.s32.totalorder %v756, 0
      %vm1017 = vcmp.ne.s32.totalorder %v767, 0
      %vm1018 = vcmp.ne.s32.totalorder %v778, 0
      %vm1019 = vcmp.ne.s32.totalorder %v789, 0
      %vm1020 = vcmp.ne.s32.totalorder %v800, 0
      %vm1021 = vcmp.ne.s32.totalorder %v811, 0
      %vm1022 = vcmp.ne.s32.totalorder %v822, 0
      %vm1023 = vcmp.ne.s32.totalorder %v833, 0
      %vm1024 = vcmp.ne.s32.totalorder %v844, 0
      %vm1025 = vcmp.ne.s32.totalorder %v855, 0
      %vm1026 = vcmp.ne.s32.totalorder %v866, 0
      %vm1027 = vcmp.ne.s32.totalorder %v877, 0
      %vm1028 = vcmp.ne.s32.totalorder %v888, 0
      %vm1029 = vcmp.ne.s32.totalorder %v899, 0
      %vm1030 = vcmp.ne.s32.totalorder %v910, 0
      %vm1031 = vcmp.ne.s32.totalorder %v921, 0
      %vm1032 = vcmp.ne.s32.totalorder %v932, 0
      %vm1033 = vcmp.ne.s32.totalorder %v943, 0
      %vm1034 = vcmp.ne.s32.totalorder %v954, 0
      %vm1035 = vcmp.ne.s32.totalorder %v965, 0
      %vm1036 = vcmp.ne.s32.totalorder %v976, 0
      %vm1037 = vcmp.ne.s32.totalorder %v987, 0
      %vm1038 = vcmp.ne.s32.totalorder %v998, 0
      %vm1039 = vcmp.ne.s32.totalorder %v1009, 0
      %vm1040 = vcmp.lt.s32.totalorder %v690, 0
      %vm1041 = vcmp.lt.s32.totalorder %v701, 0
      %vm1042 = vcmp.lt.s32.totalorder %v712, 0
      %vm1043 = vcmp.lt.s32.totalorder %v723, 0
      %vm1044 = vcmp.lt.s32.totalorder %v734, 0
      %vm1045 = vcmp.lt.s32.totalorder %v745, 0
      %vm1046 = vcmp.lt.s32.totalorder %v756, 0
      %vm1047 = vcmp.lt.s32.totalorder %v767, 0
      %vm1048 = vcmp.lt.s32.totalorder %v778, 0
      %vm1049 = vcmp.lt.s32.totalorder %v789, 0
      %vm1050 = vcmp.lt.s32.totalorder %v800, 0
      %vm1051 = vcmp.lt.s32.totalorder %v811, 0
      %vm1052 = vcmp.lt.s32.totalorder %v822, 0
      %vm1053 = vcmp.lt.s32.totalorder %v833, 0
      %vm1054 = vcmp.lt.s32.totalorder %v844, 0
      %vm1055 = vcmp.lt.s32.totalorder %v855, 0
      %vm1056 = vcmp.lt.s32.totalorder %v866, 0
      %vm1057 = vcmp.lt.s32.totalorder %v877, 0
      %vm1058 = vcmp.lt.s32.totalorder %v888, 0
      %vm1059 = vcmp.lt.s32.totalorder %v899, 0
      %vm1060 = vcmp.lt.s32.totalorder %v910, 0
      %vm1061 = vcmp.lt.s32.totalorder %v921, 0
      %vm1062 = vcmp.lt.s32.totalorder %v932, 0
      %vm1063 = vcmp.lt.s32.totalorder %v943, 0
      %vm1064 = vcmp.lt.s32.totalorder %v954, 0
      %vm1065 = vcmp.lt.s32.totalorder %v965, 0
      %vm1066 = vcmp.lt.s32.totalorder %v976, 0
      %vm1067 = vcmp.lt.s32.totalorder %v987, 0
      %vm1068 = vcmp.lt.s32.totalorder %v998, 0
      %vm1069 = vcmp.lt.s32.totalorder %v1009, 0
      %vm1070 = vmand %vm1040, %vm1010
      %vm1071 = vmand %vm1041, %vm1011
      %vm1072 = vmand %vm1042, %vm1012
      %vm1073 = vmand %vm1043, %vm1013
      %vm1074 = vmand %vm1044, %vm1014
      %vm1075 = vmand %vm1045, %vm1015
      %vm1076 = vmand %vm1046, %vm1016
      %vm1077 = vmand %vm1047, %vm1017
      %vm1078 = vmand %vm1048, %vm1018
      %vm1079 = vmand %vm1049, %vm1019
      %vm1080 = vmand %vm1050, %vm1020
      %vm1081 = vmand %vm1051, %vm1021
      %vm1082 = vmand %vm1052, %vm1022
      %vm1083 = vmand %vm1053, %vm1023
      %vm1084 = vmand %vm1054, %vm1024
      %vm1085 = vmand %vm1055, %vm1025
      %vm1086 = vmand %vm1056, %vm1026
      %vm1087 = vmand %vm1057, %vm1027
      %vm1088 = vmand %vm1058, %vm1028
      %vm1089 = vmand %vm1059, %vm1029
      %vm1090 = vmand %vm1060, %vm1030
      %vm1091 = vmand %vm1061, %vm1031
      %vm1092 = vmand %vm1062, %vm1032
      %vm1093 = vmand %vm1063, %vm1033
      %vm1094 = vmand %vm1064, %vm1034
      %vm1095 = vmand %vm1065, %vm1035
      %vm1096 = vmand %vm1066, %vm1036
      %vm1097 = vmand %vm1067, %vm1037
      %vm1098 = vmand %vm1068, %vm1038
      %vm1099 = vmand %vm1069, %vm1039
      %v1100 = vadd.s32 %v690, 10
      %v1101 = vadd.s32 %v701, 10
      %v1102 = vadd.s32 %v712, 10
      %v1103 = vadd.s32 %v723, 10
      %v1104 = vadd.s32 %v734, 10
      %v1105 = vadd.s32 %v745, 10
      %v1106 = vadd.s32 %v756, 10
      %v1107 = vadd.s32 %v767, 10
      %v1108 = vadd.s32 %v778, 10
      %v1109 = vadd.s32 %v789, 10
      %v1110 = vadd.s32 %v800, 10
      %v1111 = vadd.s32 %v811, 10
      %v1112 = vadd.s32 %v822, 10
      %v1113 = vadd.s32 %v833, 10
      %v1114 = vadd.s32 %v844, 10
      %v1115 = vadd.s32 %v855, 10
      %v1116 = vadd.s32 %v866, 10
      %v1117 = vadd.s32 %v877, 10
      %v1118 = vadd.s32 %v888, 10
      %v1119 = vadd.s32 %v899, 10
      %v1120 = vadd.s32 %v910, 10
      %v1121 = vadd.s32 %v921, 10
      %v1122 = vadd.s32 %v932, 10
      %v1123 = vadd.s32 %v943, 10
      %v1124 = vadd.s32 %v954, 10
      %v1125 = vadd.s32 %v965, 10
      %v1126 = vadd.s32 %v976, 10
      %v1127 = vadd.s32 %v987, 10
      %v1128 = vadd.s32 %v998, 10
      %v1129 = vadd.s32 %v1009, 10
      %v1130 = vsel %vm1070, %v1100, %v690
      %v1131 = vsel %vm1071, %v1101, %v701
      %v1132 = vsel %vm1072, %v1102, %v712
      %v1133 = vsel %vm1073, %v1103, %v723
      %v1134 = vsel %vm1074, %v1104, %v734
      %v1135 = vsel %vm1075, %v1105, %v745
      %v1136 = vsel %vm1076, %v1106, %v756
      %v1137 = vsel %vm1077, %v1107, %v767
      %v1138 = vsel %vm1078, %v1108, %v778
      %v1139 = vsel %vm1079, %v1109, %v789
      %v1140 = vsel %vm1080, %v1110, %v800
      %v1141 = vsel %vm1081, %v1111, %v811
      %v1142 = vsel %vm1082, %v1112, %v822
      %v1143 = vsel %vm1083, %v1113, %v833
      %v1144 = vsel %vm1084, %v1114, %v844
      %v1145 = vsel %vm1085, %v1115, %v855
      %v1146 = vsel %vm1086, %v1116, %v866
      %v1147 = vsel %vm1087, %v1117, %v877
      %v1148 = vsel %vm1088, %v1118, %v888
      %v1149 = vsel %vm1089, %v1119, %v899
      %v1150 = vsel %vm1090, %v1120, %v910
      %v1151 = vsel %vm1091, %v1121, %v921
      %v1152 = vsel %vm1092, %v1122, %v932
      %v1153 = vsel %vm1093, %v1123, %v943
      %v1154 = vsel %vm1094, %v1124, %v954
      %v1155 = vsel %vm1095, %v1125, %v965
      %v1156 = vsel %vm1096, %v1126, %v976
      %v1157 = vsel %vm1097, %v1127, %v987
      %v1158 = vsel %vm1098, %v1128, %v998
      %v1159 = vsel %vm1099, %v1129, %v1009
      %v1160 = vld [vmem:[%s2] sm:$0x1]
      %v1161 = vrot.slane %v499, 7
      %v1162 = vrot.slane %v500, 7
      %v1163 = vrot.slane %v501, 7
      %v1164 = vrot.slane %v502, 7
      %v1165 = vrot.slane %v503, 7
      %v1166 = vrot.slane %v504, 7
      %v1167 = vrot.slane %v505, 7
      %v1168 = vrot.slane %v506, 7
      %v1169 = vrot.slane %v507, 7
      %v1170 = vrot.slane %v508, 7
      %v1171 = vrot.slane %v509, 7
      %v1172 = vrot.slane %v510, 7
      %v1173 = vrot.slane %v511, 7
      %v1174 = vrot.slane %v512, 7
      %v1175 = vrot.slane %v513, 7
      %v1176 = vrot.slane %v514, 7
      %v1177 = vrot.slane %v515, 7
      %v1178 = vrot.slane %v516, 7
      %v1179 = vrot.slane %v517, 7
      %v1180 = vrot.slane %v518, 7
      %v1181 = vrot.slane %v519, 7
      %v1182 = vrot.slane %v520, 7
      %v1183 = vrot.slane %v521, 7
      %v1184 = vrot.slane %v522, 7
      %v1185 = vrot.slane %v523, 7
      %v1186 = vrot.slane %v524, 7
      %v1187 = vrot.slane %v525, 7
      %v1188 = vrot.slane %v526, 7
      %v1189 = vrot.slane %v527, 7
      %v1190 = vrot.slane %v528, 7
      %v1191 = vrot.slane %v529, 7
      %v1192 = vrot.slane %v530, 7
      %v1193 = vrot.slane %v531, 7
      %v1194 = vrot.slane %v532, 7
      %v1195 = vrot.slane %v533, 7
      %v1196 = vrot.slane %v534, 7
      %v1197 = vrot.slane %v535, 7
      %v1198 = vrot.slane %v536, 7
      %v1199 = vrot.slane %v537, 7
      %v1200 = vrot.slane %v538, 7
      %v1201 = vrot.slane %v539, 7
      %v1202 = vrot.slane %v540, 7
      %v1203 = vrot.slane %v541, 7
      %v1204 = vrot.slane %v542, 7
      %v1205 = vrot.slane %v543, 7
      %v1206 = vrot.slane %v544, 7
      %v1207 = vrot.slane %v545, 7
      %v1208 = vrot.slane %v546, 7
      %v1209 = vrot.slane %v547, 7
      %v1210 = vrot.slane %v548, 7
      %v1211 = vrot.slane %v549, 7
      %v1212 = vrot.slane %v550, 7
      %v1213 = vrot.slane %v551, 7
      %v1214 = vrot.slane %v552, 7
      %v1215 = vrot.slane %v553, 7
      %v1216 = vrot.slane %v554, 7
      %v1217 = vrot.slane %v555, 7
      %v1218 = vrot.slane %v556, 7
      %v1219 = vrot.slane %v557, 7
      %v1220 = vrot.slane %v558, 7
      %v1221 = vrot.slane %v559, 7
      %v1222 = vrot.slane %v560, 7
      %v1223 = vrot.slane %v561, 7
      %v1224 = vrot.slane %v562, 7
      %v1225 = vrot.slane %v563, 7
      %v1226 = vrot.slane %v564, 7
      %v1227 = vrot.slane %v565, 7
      %v1228 = vrot.slane %v566, 7
      %v1229 = vrot.slane %v567, 7
      %v1230 = vrot.slane %v568, 7
      %v1231 = vrot.slane %v569, 7
      %v1232 = vrot.slane %v570, 7
      %v1233 = vrot.slane %v571, 7
      %v1234 = vrot.slane %v572, 7
      %v1235 = vrot.slane %v573, 7
      %v1236 = vrot.slane %v574, 7
      %v1237 = vrot.slane %v575, 7
      %v1238 = vrot.slane %v576, 7
      %v1239 = vrot.slane %v577, 7
      %v1240 = vrot.slane %v578, 7
      %v1241 = vrot.slane %v579, 7
      %v1242 = vrot.slane %v580, 7
      %v1243 = vrot.slane %v581, 7
      %v1244 = vrot.slane %v582, 7
      %v1245 = vrot.slane %v583, 7
      %v1246 = vrot.slane %v584, 7
      %v1247 = vrot.slane %v585, 7
      %v1248 = vrot.slane %v586, 7
      %v1249 = vrot.slane %v587, 7
      %v1250 = vrot.slane %v588, 7
      %v1251 = vrot.slane %v589, 7
      %v1252 = vrot.slane %v590, 7
      %v1253 = vrot.slane %v591, 7
      %v1254 = vrot.slane %v592, 7
      %v1255 = vrot.slane %v593, 7
      %v1256 = vrot.slane %v594, 7
      %v1257 = vrot.slane %v595, 7
      %v1258 = vrot.slane %v596, 7
      %v1259 = vrot.slane %v597, 7
      %v1260 = vrot.slane %v598, 7
      %v1261 = vrot.slane %v599, 7
      %v1262 = vrot.slane %v600, 7
      %v1263 = vrot.slane %v601, 7
      %v1264 = vrot.slane %v602, 7
      %v1265 = vrot.slane %v603, 7
      %v1266 = vrot.slane %v604, 7
      %v1267 = vrot.slane %v605, 7
      %v1268 = vrot.slane %v606, 7
      %v1269 = vrot.slane %v607, 7
      %v1270 = vrot.slane %v608, 7
      %v1271 = vrot.slane %v609, 7
      %v1272 = vrot.slane %v610, 7
      %v1273 = vrot.slane %v611, 7
      %v1274 = vrot.slane %v612, 7
      %v1275 = vrot.slane %v613, 7
      %v1276 = vrot.slane %v614, 7
      %v1277 = vrot.slane %v615, 7
      %v1278 = vrot.slane %v616, 7
      %v1279 = vrot.slane %v617, 7
      %v1280 = vrot.slane %v618, 7
      %v1281 = vrot.slane %v619, 7
      %v1282 = vrot.slane %v620, 7
      %v1283 = vrot.slane %v621, 7
      %v1284 = vrot.slane %v622, 7
      %v1285 = vrot.slane %v623, 7
      %v1286 = vrot.slane %v624, 7
      %v1287 = vrot.slane %v625, 7
      %v1288 = vrot.slane %v626, 7
      %v1289 = vrot.slane %v627, 7
      %v1290 = vrot.slane %v628, 7
      %v1291 = vrot.slane %v629, 7
      %v1292 = vrot.slane %v630, 7
      %v1293 = vrot.slane %v631, 7
      %v1294 = vrot.slane %v632, 7
      %v1295 = vrot.slane %v633, 7
      %v1296 = vrot.slane %v634, 7
      %v1297 = vrot.slane %v635, 7
      %v1298 = vrot.slane %v636, 7
      %v1299 = vrot.slane %v637, 7
      %v1300 = vrot.slane %v638, 7
      %v1301 = vrot.slane %v639, 7
      %v1302 = vrot.slane %v640, 7
      %v1303 = vrot.slane %v641, 7
      %v1304 = vrot.slane %v642, 7
      %v1305 = vrot.slane %v643, 7
      %v1306 = vrot.slane %v644, 7
      %v1307 = vrot.slane %v645, 7
      %v1308 = vrot.slane %v646, 7
      %v1309 = vrot.slane %v647, 7
      %v1310 = vrot.slane %v648, 7
      %vm1311 = vcmp.lt.s32.totalorder %v650, 1
      %v1312 = vsel %vm1311, %v1301, %v1306
      %v1313 = vsel %vm1311, %v1302, %v1307
      %v1314 = vsel %vm1311, %v1303, %v1308
      %v1315 = vsel %vm1311, %v1304, %v1309
      %v1316 = vsel %vm1311, %v1305, %v1310
      %v1317 = vsel %vm1311, %v1296, %v1301
      %v1318 = vsel %vm1311, %v1297, %v1302
      %v1319 = vsel %vm1311, %v1298, %v1303
      %v1320 = vsel %vm1311, %v1299, %v1304
      %v1321 = vsel %vm1311, %v1300, %v1305
      %v1322 = vsel %vm1311, %v1291, %v1296
      %v1323 = vsel %vm1311, %v1292, %v1297
      %v1324 = vsel %vm1311, %v1293, %v1298
      %v1325 = vsel %vm1311, %v1294, %v1299
      %v1326 = vsel %vm1311, %v1295, %v1300
      %v1327 = vsel %vm1311, %v1286, %v1291
      %v1328 = vsel %vm1311, %v1287, %v1292
      %v1329 = vsel %vm1311, %v1288, %v1293
      %v1330 = vsel %vm1311, %v1289, %v1294
      %v1331 = vsel %vm1311, %v1290, %v1295
      %v1332 = vsel %vm1311, %v1281, %v1286
      %v1333 = vsel %vm1311, %v1282, %v1287
      %v1334 = vsel %vm1311, %v1283, %v1288
      %v1335 = vsel %vm1311, %v1284, %v1289
      %v1336 = vsel %vm1311, %v1285, %v1290
      %v1337 = vsel %vm1311, %v1276, %v1281
      %v1338 = vsel %vm1311, %v1277, %v1282
      %v1339 = vsel %vm1311, %v1278, %v1283
      %v1340 = vsel %vm1311, %v1279, %v1284
      %v1341 = vsel %vm1311, %v1280, %v1285
      %v1342 = vsel %vm1311, %v1271, %v1276
      %v1343 = vsel %vm1311, %v1272, %v1277
      %v1344 = vsel %vm1311, %v1273, %v1278
      %v1345 = vsel %vm1311, %v1274, %v1279
      %v1346 = vsel %vm1311, %v1275, %v1280
      %v1347 = vsel %vm1311, %v1266, %v1271
      %v1348 = vsel %vm1311, %v1267, %v1272
      %v1349 = vsel %vm1311, %v1268, %v1273
      %v1350 = vsel %vm1311, %v1269, %v1274
      %v1351 = vsel %vm1311, %v1270, %v1275
      %v1352 = vsel %vm1311, %v1261, %v1266
      %v1353 = vsel %vm1311, %v1262, %v1267
      %v1354 = vsel %vm1311, %v1263, %v1268
      %v1355 = vsel %vm1311, %v1264, %v1269
      %v1356 = vsel %vm1311, %v1265, %v1270
      %v1357 = vsel %vm1311, %v1256, %v1261
      %v1358 = vsel %vm1311, %v1257, %v1262
      %v1359 = vsel %vm1311, %v1258, %v1263
      %v1360 = vsel %vm1311, %v1259, %v1264
      %v1361 = vsel %vm1311, %v1260, %v1265
      %v1362 = vsel %vm1311, %v1251, %v1256
      %v1363 = vsel %vm1311, %v1252, %v1257
      %v1364 = vsel %vm1311, %v1253, %v1258
      %v1365 = vsel %vm1311, %v1254, %v1259
      %v1366 = vsel %vm1311, %v1255, %v1260
      %v1367 = vsel %vm1311, %v1246, %v1251
      %v1368 = vsel %vm1311, %v1247, %v1252
      %v1369 = vsel %vm1311, %v1248, %v1253
      %v1370 = vsel %vm1311, %v1249, %v1254
      %v1371 = vsel %vm1311, %v1250, %v1255
      %v1372 = vsel %vm1311, %v1241, %v1246
      %v1373 = vsel %vm1311, %v1242, %v1247
      %v1374 = vsel %vm1311, %v1243, %v1248
      %v1375 = vsel %vm1311, %v1244, %v1249
      %v1376 = vsel %vm1311, %v1245, %v1250
      %v1377 = vsel %vm1311, %v1236, %v1241
      %v1378 = vsel %vm1311, %v1237, %v1242
      %v1379 = vsel %vm1311, %v1238, %v1243
      %v1380 = vsel %vm1311, %v1239, %v1244
      %v1381 = vsel %vm1311, %v1240, %v1245
      %v1382 = vsel %vm1311, %v1231, %v1236
      %v1383 = vsel %vm1311, %v1232, %v1237
      %v1384 = vsel %vm1311, %v1233, %v1238
      %v1385 = vsel %vm1311, %v1234, %v1239
      %v1386 = vsel %vm1311, %v1235, %v1240
      %v1387 = vsel %vm1311, %v1226, %v1231
      %v1388 = vsel %vm1311, %v1227, %v1232
      %v1389 = vsel %vm1311, %v1228, %v1233
      %v1390 = vsel %vm1311, %v1229, %v1234
      %v1391 = vsel %vm1311, %v1230, %v1235
      %v1392 = vsel %vm1311, %v1221, %v1226
      %v1393 = vsel %vm1311, %v1222, %v1227
      %v1394 = vsel %vm1311, %v1223, %v1228
      %v1395 = vsel %vm1311, %v1224, %v1229
      %v1396 = vsel %vm1311, %v1225, %v1230
      %v1397 = vsel %vm1311, %v1216, %v1221
      %v1398 = vsel %vm1311, %v1217, %v1222
      %v1399 = vsel %vm1311, %v1218, %v1223
      %v1400 = vsel %vm1311, %v1219, %v1224
      %v1401 = vsel %vm1311, %v1220, %v1225
      %v1402 = vsel %vm1311, %v1211, %v1216
      %v1403 = vsel %vm1311, %v1212, %v1217
      %v1404 = vsel %vm1311, %v1213, %v1218
      %v1405 = vsel %vm1311, %v1214, %v1219
      %v1406 = vsel %vm1311, %v1215, %v1220
      %v1407 = vsel %vm1311, %v1206, %v1211
      %v1408 = vsel %vm1311, %v1207, %v1212
      %v1409 = vsel %vm1311, %v1208, %v1213
      %v1410 = vsel %vm1311, %v1209, %v1214
      %v1411 = vsel %vm1311, %v1210, %v1215
      %v1412 = vsel %vm1311, %v1201, %v1206
      %v1413 = vsel %vm1311, %v1202, %v1207
      %v1414 = vsel %vm1311, %v1203, %v1208
      %v1415 = vsel %vm1311, %v1204, %v1209
      %v1416 = vsel %vm1311, %v1205, %v1210
      %v1417 = vsel %vm1311, %v1196, %v1201
      %v1418 = vsel %vm1311, %v1197, %v1202
      %v1419 = vsel %vm1311, %v1198, %v1203
      %v1420 = vsel %vm1311, %v1199, %v1204
      %v1421 = vsel %vm1311, %v1200, %v1205
      %v1422 = vsel %vm1311, %v1191, %v1196
      %v1423 = vsel %vm1311, %v1192, %v1197
      %v1424 = vsel %vm1311, %v1193, %v1198
      %v1425 = vsel %vm1311, %v1194, %v1199
      %v1426 = vsel %vm1311, %v1195, %v1200
      %v1427 = vsel %vm1311, %v1186, %v1191
      %v1428 = vsel %vm1311, %v1187, %v1192
      %v1429 = vsel %vm1311, %v1188, %v1193
      %v1430 = vsel %vm1311, %v1189, %v1194
      %v1431 = vsel %vm1311, %v1190, %v1195
      %v1432 = vsel %vm1311, %v1181, %v1186
      %v1433 = vsel %vm1311, %v1182, %v1187
      %v1434 = vsel %vm1311, %v1183, %v1188
      %v1435 = vsel %vm1311, %v1184, %v1189
      %v1436 = vsel %vm1311, %v1185, %v1190
      %v1437 = vsel %vm1311, %v1176, %v1181
      %v1438 = vsel %vm1311, %v1177, %v1182
      %v1439 = vsel %vm1311, %v1178, %v1183
      %v1440 = vsel %vm1311, %v1179, %v1184
      %v1441 = vsel %vm1311, %v1180, %v1185
      %v1442 = vsel %vm1311, %v1171, %v1176
      %v1443 = vsel %vm1311, %v1172, %v1177
      %v1444 = vsel %vm1311, %v1173, %v1178
      %v1445 = vsel %vm1311, %v1174, %v1179
      %v1446 = vsel %vm1311, %v1175, %v1180
      %v1447 = vsel %vm1311, %v1166, %v1171
      %v1448 = vsel %vm1311, %v1167, %v1172
      %v1449 = vsel %vm1311, %v1168, %v1173
      %v1450 = vsel %vm1311, %v1169, %v1174
      %v1451 = vsel %vm1311, %v1170, %v1175
      %v1452 = vsel %vm1311, %v1161, %v1166
      %v1453 = vsel %vm1311, %v1162, %v1167
      %v1454 = vsel %vm1311, %v1163, %v1168
      %v1455 = vsel %vm1311, %v1164, %v1169
      %v1456 = vsel %vm1311, %v1165, %v1170
      %v1457 = vsel %vm1311, %v1306, %v1161
      %v1458 = vsel %vm1311, %v1307, %v1162
      %v1459 = vsel %vm1311, %v1308, %v1163
      %v1460 = vsel %vm1311, %v1309, %v1164
      %v1461 = vsel %vm1311, %v1310, %v1165
      %v1462 = vadd.s32 %v1130, 4294967295
      %v1463 = vadd.s32 %v1131, 4294967295
      %v1464 = vadd.s32 %v1132, 4294967295
      %v1465 = vadd.s32 %v1133, 4294967295
      %v1466 = vadd.s32 %v1134, 4294967295
      %v1467 = vadd.s32 %v1135, 4294967295
      %v1468 = vadd.s32 %v1136, 4294967295
      %v1469 = vadd.s32 %v1137, 4294967295
      %v1470 = vadd.s32 %v1138, 4294967295
      %v1471 = vadd.s32 %v1139, 4294967295
      %v1472 = vadd.s32 %v1140, 4294967295
      %v1473 = vadd.s32 %v1141, 4294967295
      %v1474 = vadd.s32 %v1142, 4294967295
      %v1475 = vadd.s32 %v1143, 4294967295
      %v1476 = vadd.s32 %v1144, 4294967295
      %v1477 = vadd.s32 %v1145, 4294967295
      %v1478 = vadd.s32 %v1146, 4294967295
      %v1479 = vadd.s32 %v1147, 4294967295
      %v1480 = vadd.s32 %v1148, 4294967295
      %v1481 = vadd.s32 %v1149, 4294967295
      %v1482 = vadd.s32 %v1150, 4294967295
      %v1483 = vadd.s32 %v1151, 4294967295
      %v1484 = vadd.s32 %v1152, 4294967295
      %v1485 = vadd.s32 %v1153, 4294967295
      %v1486 = vadd.s32 %v1154, 4294967295
      %v1487 = vadd.s32 %v1155, 4294967295
      %v1488 = vadd.s32 %v1156, 4294967295
      %v1489 = vadd.s32 %v1157, 4294967295
      %v1490 = vadd.s32 %v1158, 4294967295
      %v1491 = vadd.s32 %v1159, 4294967295
      %vm1492 = vcmp.ge.s32.totalorder %v1462, 0
      %vm1493 = vcmp.ge.s32.totalorder %v1463, 0
      %vm1494 = vcmp.ge.s32.totalorder %v1464, 0
      %vm1495 = vcmp.ge.s32.totalorder %v1465, 0
      %vm1496 = vcmp.ge.s32.totalorder %v1466, 0
      %vm1497 = vcmp.ge.s32.totalorder %v1467, 0
      %vm1498 = vcmp.ge.s32.totalorder %v1468, 0
      %vm1499 = vcmp.ge.s32.totalorder %v1469, 0
      %vm1500 = vcmp.ge.s32.totalorder %v1470, 0
      %vm1501 = vcmp.ge.s32.totalorder %v1471, 0
      %vm1502 = vcmp.ge.s32.totalorder %v1472, 0
      %vm1503 = vcmp.ge.s32.totalorder %v1473, 0
      %vm1504 = vcmp.ge.s32.totalorder %v1474, 0
      %vm1505 = vcmp.ge.s32.totalorder %v1475, 0
      %vm1506 = vcmp.ge.s32.totalorder %v1476, 0
      %vm1507 = vcmp.ge.s32.totalorder %v1477, 0
      %vm1508 = vcmp.ge.s32.totalorder %v1478, 0
      %vm1509 = vcmp.ge.s32.totalorder %v1479, 0
      %vm1510 = vcmp.ge.s32.totalorder %v1480, 0
      %vm1511 = vcmp.ge.s32.totalorder %v1481, 0
      %vm1512 = vcmp.ge.s32.totalorder %v1482, 0
      %vm1513 = vcmp.ge.s32.totalorder %v1483, 0
      %vm1514 = vcmp.ge.s32.totalorder %v1484, 0
      %vm1515 = vcmp.ge.s32.totalorder %v1485, 0
      %vm1516 = vcmp.ge.s32.totalorder %v1486, 0
      %vm1517 = vcmp.ge.s32.totalorder %v1487, 0
      %vm1518 = vcmp.ge.s32.totalorder %v1488, 0
      %vm1519 = vcmp.ge.s32.totalorder %v1489, 0
      %vm1520 = vcmp.ge.s32.totalorder %v1490, 0
      %vm1521 = vcmp.ge.s32.totalorder %v1491, 0
      %vm1522 = vcmp.lt.s32.totalorder %v1462, 10
      %vm1523 = vcmp.lt.s32.totalorder %v1463, 10
      %vm1524 = vcmp.lt.s32.totalorder %v1464, 10
      %vm1525 = vcmp.lt.s32.totalorder %v1465, 10
      %vm1526 = vcmp.lt.s32.totalorder %v1466, 10
      %vm1527 = vcmp.lt.s32.totalorder %v1467, 10
      %vm1528 = vcmp.lt.s32.totalorder %v1468, 10
      %vm1529 = vcmp.lt.s32.totalorder %v1469, 10
      %vm1530 = vcmp.lt.s32.totalorder %v1470, 10
      %vm1531 = vcmp.lt.s32.totalorder %v1471, 10
      %vm1532 = vcmp.lt.s32.totalorder %v1472, 10
      %vm1533 = vcmp.lt.s32.totalorder %v1473, 10
      %vm1534 = vcmp.lt.s32.totalorder %v1474, 10
      %vm1535 = vcmp.lt.s32.totalorder %v1475, 10
      %vm1536 = vcmp.lt.s32.totalorder %v1476, 10
      %vm1537 = vcmp.lt.s32.totalorder %v1477, 10
      %vm1538 = vcmp.lt.s32.totalorder %v1478, 10
      %vm1539 = vcmp.lt.s32.totalorder %v1479, 10
      %vm1540 = vcmp.lt.s32.totalorder %v1480, 10
      %vm1541 = vcmp.lt.s32.totalorder %v1481, 10
      %vm1542 = vcmp.lt.s32.totalorder %v1482, 10
      %vm1543 = vcmp.lt.s32.totalorder %v1483, 10
      %vm1544 = vcmp.lt.s32.totalorder %v1484, 10
      %vm1545 = vcmp.lt.s32.totalorder %v1485, 10
      %vm1546 = vcmp.lt.s32.totalorder %v1486, 10
      %vm1547 = vcmp.lt.s32.totalorder %v1487, 10
      %vm1548 = vcmp.lt.s32.totalorder %v1488, 10
      %vm1549 = vcmp.lt.s32.totalorder %v1489, 10
      %vm1550 = vcmp.lt.s32.totalorder %v1490, 10
      %vm1551 = vcmp.lt.s32.totalorder %v1491, 10
      %vm1552 = vmand %vm1492, %vm1522
      %vm1553 = vmand %vm1493, %vm1523
      %vm1554 = vmand %vm1494, %vm1524
      %vm1555 = vmand %vm1495, %vm1525
      %vm1556 = vmand %vm1496, %vm1526
      %vm1557 = vmand %vm1497, %vm1527
      %vm1558 = vmand %vm1498, %vm1528
      %vm1559 = vmand %vm1499, %vm1529
      %vm1560 = vmand %vm1500, %vm1530
      %vm1561 = vmand %vm1501, %vm1531
      %vm1562 = vmand %vm1502, %vm1532
      %vm1563 = vmand %vm1503, %vm1533
      %vm1564 = vmand %vm1504, %vm1534
      %vm1565 = vmand %vm1505, %vm1535
      %vm1566 = vmand %vm1506, %vm1536
      %vm1567 = vmand %vm1507, %vm1537
      %vm1568 = vmand %vm1508, %vm1538
      %vm1569 = vmand %vm1509, %vm1539
      %vm1570 = vmand %vm1510, %vm1540
      %vm1571 = vmand %vm1511, %vm1541
      %vm1572 = vmand %vm1512, %vm1542
      %vm1573 = vmand %vm1513, %vm1543
      %vm1574 = vmand %vm1514, %vm1544
      %vm1575 = vmand %vm1515, %vm1545
      %vm1576 = vmand %vm1516, %vm1546
      %vm1577 = vmand %vm1517, %vm1547
      %vm1578 = vmand %vm1518, %vm1548
      %vm1579 = vmand %vm1519, %vm1549
      %vm1580 = vmand %vm1520, %vm1550
      %vm1581 = vmand %vm1521, %vm1551
      %v1582 = vsel %vm1552, 1, 0
      %v1583 = vsel %vm1553, 1, 0
      %v1584 = vsel %vm1554, 1, 0
      %v1585 = vsel %vm1555, 1, 0
      %v1586 = vsel %vm1556, 1, 0
      %v1587 = vsel %vm1557, 1, 0
      %v1588 = vsel %vm1558, 1, 0
      %v1589 = vsel %vm1559, 1, 0
      %v1590 = vsel %vm1560, 1, 0
      %v1591 = vsel %vm1561, 1, 0
      %v1592 = vsel %vm1562, 1, 0
      %v1593 = vsel %vm1563, 1, 0
      %v1594 = vsel %vm1564, 1, 0
      %v1595 = vsel %vm1565, 1, 0
      %v1596 = vsel %vm1566, 1, 0
      %v1597 = vsel %vm1567, 1, 0
      %v1598 = vsel %vm1568, 1, 0
      %v1599 = vsel %vm1569, 1, 0
      %v1600 = vsel %vm1570, 1, 0
      %v1601 = vsel %vm1571, 1, 0
      %v1602 = vsel %vm1572, 1, 0
      %v1603 = vsel %vm1573, 1, 0
      %v1604 = vsel %vm1574, 1, 0
      %v1605 = vsel %vm1575, 1, 0
      %v1606 = vsel %vm1576, 1, 0
      %v1607 = vsel %vm1577, 1, 0
      %v1608 = vsel %vm1578, 1, 0
      %v1609 = vsel %vm1579, 1, 0
      %v1610 = vsel %vm1580, 1, 0
      %v1611 = vsel %vm1581, 1, 0
      %vm1612 = vcmp.eq.s32.totalorder %v1582, 1
      %vm1613 = vcmp.eq.s32.totalorder %v1583, 1
      %vm1614 = vcmp.eq.s32.totalorder %v1584, 1
      %vm1615 = vcmp.eq.s32.totalorder %v1585, 1
      %vm1616 = vcmp.eq.s32.totalorder %v1586, 1
      %vm1617 = vcmp.eq.s32.totalorder %v1587, 1
      %vm1618 = vcmp.eq.s32.totalorder %v1588, 1
      %vm1619 = vcmp.eq.s32.totalorder %v1589, 1
      %vm1620 = vcmp.eq.s32.totalorder %v1590, 1
      %vm1621 = vcmp.eq.s32.totalorder %v1591, 1
      %vm1622 = vcmp.eq.s32.totalorder %v1592, 1
      %vm1623 = vcmp.eq.s32.totalorder %v1593, 1
      %vm1624 = vcmp.eq.s32.totalorder %v1594, 1
      %vm1625 = vcmp.eq.s32.totalorder %v1595, 1
      %vm1626 = vcmp.eq.s32.totalorder %v1596, 1
      %vm1627 = vcmp.eq.s32.totalorder %v1597, 1
      %vm1628 = vcmp.eq.s32.totalorder %v1598, 1
      %vm1629 = vcmp.eq.s32.totalorder %v1599, 1
      %vm1630 = vcmp.eq.s32.totalorder %v1600, 1
      %vm1631 = vcmp.eq.s32.totalorder %v1601, 1
      %vm1632 = vcmp.eq.s32.totalorder %v1602, 1
      %vm1633 = vcmp.eq.s32.totalorder %v1603, 1
      %vm1634 = vcmp.eq.s32.totalorder %v1604, 1
      %vm1635 = vcmp.eq.s32.totalorder %v1605, 1
      %vm1636 = vcmp.eq.s32.totalorder %v1606, 1
      %vm1637 = vcmp.eq.s32.totalorder %v1607, 1
      %vm1638 = vcmp.eq.s32.totalorder %v1608, 1
      %vm1639 = vcmp.eq.s32.totalorder %v1609, 1
      %vm1640 = vcmp.eq.s32.totalorder %v1610, 1
      %vm1641 = vcmp.eq.s32.totalorder %v1611, 1
      %v1642 = vsel %vm1612, %v1457, 0.0
      %v1643 = vsel %vm1612, %v1458, 0.0
      %v1644 = vsel %vm1612, %v1459, 0.0
      %v1645 = vsel %vm1612, %v1460, 0.0
      %v1646 = vsel %vm1612, %v1461, 0.0
      %v1647 = vsel %vm1613, %v1452, 0.0
      %v1648 = vsel %vm1613, %v1453, 0.0
      %v1649 = vsel %vm1613, %v1454, 0.0
      %v1650 = vsel %vm1613, %v1455, 0.0
      %v1651 = vsel %vm1613, %v1456, 0.0
      %v1652 = vsel %vm1614, %v1447, 0.0
      %v1653 = vsel %vm1614, %v1448, 0.0
      %v1654 = vsel %vm1614, %v1449, 0.0
      %v1655 = vsel %vm1614, %v1450, 0.0
      %v1656 = vsel %vm1614, %v1451, 0.0
      %v1657 = vsel %vm1615, %v1442, 0.0
      %v1658 = vsel %vm1615, %v1443, 0.0
      %v1659 = vsel %vm1615, %v1444, 0.0
      %v1660 = vsel %vm1615, %v1445, 0.0
      %v1661 = vsel %vm1615, %v1446, 0.0
      %v1662 = vsel %vm1616, %v1437, 0.0
      %v1663 = vsel %vm1616, %v1438, 0.0
      %v1664 = vsel %vm1616, %v1439, 0.0
      %v1665 = vsel %vm1616, %v1440, 0.0
      %v1666 = vsel %vm1616, %v1441, 0.0
      %v1667 = vsel %vm1617, %v1432, 0.0
      %v1668 = vsel %vm1617, %v1433, 0.0
      %v1669 = vsel %vm1617, %v1434, 0.0
      %v1670 = vsel %vm1617, %v1435, 0.0
      %v1671 = vsel %vm1617, %v1436, 0.0
      %v1672 = vsel %vm1618, %v1427, 0.0
      %v1673 = vsel %vm1618, %v1428, 0.0
      %v1674 = vsel %vm1618, %v1429, 0.0
      %v1675 = vsel %vm1618, %v1430, 0.0
      %v1676 = vsel %vm1618, %v1431, 0.0
      %v1677 = vsel %vm1619, %v1422, 0.0
      %v1678 = vsel %vm1619, %v1423, 0.0
      %v1679 = vsel %vm1619, %v1424, 0.0
      %v1680 = vsel %vm1619, %v1425, 0.0
      %v1681 = vsel %vm1619, %v1426, 0.0
      %v1682 = vsel %vm1620, %v1417, 0.0
      %v1683 = vsel %vm1620, %v1418, 0.0
      %v1684 = vsel %vm1620, %v1419, 0.0
      %v1685 = vsel %vm1620, %v1420, 0.0
      %v1686 = vsel %vm1620, %v1421, 0.0
      %v1687 = vsel %vm1621, %v1412, 0.0
      %v1688 = vsel %vm1621, %v1413, 0.0
      %v1689 = vsel %vm1621, %v1414, 0.0
      %v1690 = vsel %vm1621, %v1415, 0.0
      %v1691 = vsel %vm1621, %v1416, 0.0
      %v1692 = vsel %vm1622, %v1407, 0.0
      %v1693 = vsel %vm1622, %v1408, 0.0
      %v1694 = vsel %vm1622, %v1409, 0.0
      %v1695 = vsel %vm1622, %v1410, 0.0
      %v1696 = vsel %vm1622, %v1411, 0.0
      %v1697 = vsel %vm1623, %v1402, 0.0
      %v1698 = vsel %vm1623, %v1403, 0.0
      %v1699 = vsel %vm1623, %v1404, 0.0
      %v1700 = vsel %vm1623, %v1405, 0.0
      %v1701 = vsel %vm1623, %v1406, 0.0
      %v1702 = vsel %vm1624, %v1397, 0.0
      %v1703 = vsel %vm1624, %v1398, 0.0
      %v1704 = vsel %vm1624, %v1399, 0.0
      %v1705 = vsel %vm1624, %v1400, 0.0
      %v1706 = vsel %vm1624, %v1401, 0.0
      %v1707 = vsel %vm1625, %v1392, 0.0
      %v1708 = vsel %vm1625, %v1393, 0.0
      %v1709 = vsel %vm1625, %v1394, 0.0
      %v1710 = vsel %vm1625, %v1395, 0.0
      %v1711 = vsel %vm1625, %v1396, 0.0
      %v1712 = vsel %vm1626, %v1387, 0.0
      %v1713 = vsel %vm1626, %v1388, 0.0
      %v1714 = vsel %vm1626, %v1389, 0.0
      %v1715 = vsel %vm1626, %v1390, 0.0
      %v1716 = vsel %vm1626, %v1391, 0.0
      %v1717 = vsel %vm1627, %v1382, 0.0
      %v1718 = vsel %vm1627, %v1383, 0.0
      %v1719 = vsel %vm1627, %v1384, 0.0
      %v1720 = vsel %vm1627, %v1385, 0.0
      %v1721 = vsel %vm1627, %v1386, 0.0
      %v1722 = vsel %vm1628, %v1377, 0.0
      %v1723 = vsel %vm1628, %v1378, 0.0
      %v1724 = vsel %vm1628, %v1379, 0.0
      %v1725 = vsel %vm1628, %v1380, 0.0
      %v1726 = vsel %vm1628, %v1381, 0.0
      %v1727 = vsel %vm1629, %v1372, 0.0
      %v1728 = vsel %vm1629, %v1373, 0.0
      %v1729 = vsel %vm1629, %v1374, 0.0
      %v1730 = vsel %vm1629, %v1375, 0.0
      %v1731 = vsel %vm1629, %v1376, 0.0
      %v1732 = vsel %vm1630, %v1367, 0.0
      %v1733 = vsel %vm1630, %v1368, 0.0
      %v1734 = vsel %vm1630, %v1369, 0.0
      %v1735 = vsel %vm1630, %v1370, 0.0
      %v1736 = vsel %vm1630, %v1371, 0.0
      %v1737 = vsel %vm1631, %v1362, 0.0
      %v1738 = vsel %vm1631, %v1363, 0.0
      %v1739 = vsel %vm1631, %v1364, 0.0
      %v1740 = vsel %vm1631, %v1365, 0.0
      %v1741 = vsel %vm1631, %v1366, 0.0
      %v1742 = vsel %vm1632, %v1357, 0.0
      %v1743 = vsel %vm1632, %v1358, 0.0
      %v1744 = vsel %vm1632, %v1359, 0.0
      %v1745 = vsel %vm1632, %v1360, 0.0
      %v1746 = vsel %vm1632, %v1361, 0.0
      %v1747 = vsel %vm1633, %v1352, 0.0
      %v1748 = vsel %vm1633, %v1353, 0.0
      %v1749 = vsel %vm1633, %v1354, 0.0
      %v1750 = vsel %vm1633, %v1355, 0.0
      %v1751 = vsel %vm1633, %v1356, 0.0
      %v1752 = vsel %vm1634, %v1347, 0.0
      %v1753 = vsel %vm1634, %v1348, 0.0
      %v1754 = vsel %vm1634, %v1349, 0.0
      %v1755 = vsel %vm1634, %v1350, 0.0
      %v1756 = vsel %vm1634, %v1351, 0.0
      %v1757 = vsel %vm1635, %v1342, 0.0
      %v1758 = vsel %vm1635, %v1343, 0.0
      %v1759 = vsel %vm1635, %v1344, 0.0
      %v1760 = vsel %vm1635, %v1345, 0.0
      %v1761 = vsel %vm1635, %v1346, 0.0
      %v1762 = vsel %vm1636, %v1337, 0.0
      %v1763 = vsel %vm1636, %v1338, 0.0
      %v1764 = vsel %vm1636, %v1339, 0.0
      %v1765 = vsel %vm1636, %v1340, 0.0
      %v1766 = vsel %vm1636, %v1341, 0.0
      %v1767 = vsel %vm1637, %v1332, 0.0
      %v1768 = vsel %vm1637, %v1333, 0.0
      %v1769 = vsel %vm1637, %v1334, 0.0
      %v1770 = vsel %vm1637, %v1335, 0.0
      %v1771 = vsel %vm1637, %v1336, 0.0
      %v1772 = vsel %vm1638, %v1327, 0.0
      %v1773 = vsel %vm1638, %v1328, 0.0
      %v1774 = vsel %vm1638, %v1329, 0.0
      %v1775 = vsel %vm1638, %v1330, 0.0
      %v1776 = vsel %vm1638, %v1331, 0.0
      %v1777 = vsel %vm1639, %v1322, 0.0
      %v1778 = vsel %vm1639, %v1323, 0.0
      %v1779 = vsel %vm1639, %v1324, 0.0
      %v1780 = vsel %vm1639, %v1325, 0.0
      %v1781 = vsel %vm1639, %v1326, 0.0
      %v1782 = vsel %vm1640, %v1317, 0.0
      %v1783 = vsel %vm1640, %v1318, 0.0
      %v1784 = vsel %vm1640, %v1319, 0.0
      %v1785 = vsel %vm1640, %v1320, 0.0
      %v1786 = vsel %vm1640, %v1321, 0.0
      %v1787 = vsel %vm1641, %v1312, 0.0
      %v1788 = vsel %vm1641, %v1313, 0.0
      %v1789 = vsel %vm1641, %v1314, 0.0
      %v1790 = vsel %vm1641, %v1315, 0.0
      %v1791 = vsel %vm1641, %v1316, 0.0
      %v1792 = vpack.c.bf16 %v1647, %v1642
      %v1793 = vpack.c.bf16 %v1648, %v1643
      %v1794 = vpack.c.bf16 %v1649, %v1644
      %v1795 = vpack.c.bf16 %v1650, %v1645
      %v1796 = vpack.c.bf16 %v1651, %v1646
      %v1797 = vpack.c.bf16 %v1657, %v1652
      %v1798 = vpack.c.bf16 %v1658, %v1653
      %v1799 = vpack.c.bf16 %v1659, %v1654
      %v1800 = vpack.c.bf16 %v1660, %v1655
      %v1801 = vpack.c.bf16 %v1661, %v1656
      %v1802 = vpack.c.bf16 %v1667, %v1662
      %v1803 = vpack.c.bf16 %v1668, %v1663
      %v1804 = vpack.c.bf16 %v1669, %v1664
      %v1805 = vpack.c.bf16 %v1670, %v1665
      %v1806 = vpack.c.bf16 %v1671, %v1666
      %v1807 = vpack.c.bf16 %v1677, %v1672
      %v1808 = vpack.c.bf16 %v1678, %v1673
      %v1809 = vpack.c.bf16 %v1679, %v1674
      %v1810 = vpack.c.bf16 %v1680, %v1675
      %v1811 = vpack.c.bf16 %v1681, %v1676
      %v1812 = vpack.c.bf16 %v1687, %v1682
      %v1813 = vpack.c.bf16 %v1688, %v1683
      %v1814 = vpack.c.bf16 %v1689, %v1684
      %v1815 = vpack.c.bf16 %v1690, %v1685
      %v1816 = vpack.c.bf16 %v1691, %v1686
      %v1817 = vpack.c.bf16 %v1697, %v1692
      %v1818 = vpack.c.bf16 %v1698, %v1693
      %v1819 = vpack.c.bf16 %v1699, %v1694
      %v1820 = vpack.c.bf16 %v1700, %v1695
      %v1821 = vpack.c.bf16 %v1701, %v1696
      %v1822 = vpack.c.bf16 %v1707, %v1702
      %v1823 = vpack.c.bf16 %v1708, %v1703
      %v1824 = vpack.c.bf16 %v1709, %v1704
      %v1825 = vpack.c.bf16 %v1710, %v1705
      %v1826 = vpack.c.bf16 %v1711, %v1706
      %v1827 = vpack.c.bf16 %v1717, %v1712
      %v1828 = vpack.c.bf16 %v1718, %v1713
      %v1829 = vpack.c.bf16 %v1719, %v1714
      %v1830 = vpack.c.bf16 %v1720, %v1715
      %v1831 = vpack.c.bf16 %v1721, %v1716
      %v1832 = vpack.c.bf16 %v1727, %v1722
      %v1833 = vpack.c.bf16 %v1728, %v1723
      %v1834 = vpack.c.bf16 %v1729, %v1724
      %v1835 = vpack.c.bf16 %v1730, %v1725
      %v1836 = vpack.c.bf16 %v1731, %v1726
      %v1837 = vpack.c.bf16 %v1737, %v1732
      %v1838 = vpack.c.bf16 %v1738, %v1733
      %v1839 = vpack.c.bf16 %v1739, %v1734
      %v1840 = vpack.c.bf16 %v1740, %v1735
      %v1841 = vpack.c.bf16 %v1741, %v1736
      %v1842 = vpack.c.bf16 %v1747, %v1742
      %v1843 = vpack.c.bf16 %v1748, %v1743
      %v1844 = vpack.c.bf16 %v1749, %v1744
      %v1845 = vpack.c.bf16 %v1750, %v1745
      %v1846 = vpack.c.bf16 %v1751, %v1746
      %v1847 = vpack.c.bf16 %v1757, %v1752
      %v1848 = vpack.c.bf16 %v1758, %v1753
      %v1849 = vpack.c.bf16 %v1759, %v1754
      %v1850 = vpack.c.bf16 %v1760, %v1755
      %v1851 = vpack.c.bf16 %v1761, %v1756
      %v1852 = vpack.c.bf16 %v1767, %v1762
      %v1853 = vpack.c.bf16 %v1768, %v1763
      %v1854 = vpack.c.bf16 %v1769, %v1764
      %v1855 = vpack.c.bf16 %v1770, %v1765
      %v1856 = vpack.c.bf16 %v1771, %v1766
      %v1857 = vpack.c.bf16 %v1777, %v1772
      %v1858 = vpack.c.bf16 %v1778, %v1773
      %v1859 = vpack.c.bf16 %v1779, %v1774
      %v1860 = vpack.c.bf16 %v1780, %v1775
      %v1861 = vpack.c.bf16 %v1781, %v1776
      %v1862 = vpack.c.bf16 %v1787, %v1782
      %v1863 = vpack.c.bf16 %v1788, %v1783
      %v1864 = vpack.c.bf16 %v1789, %v1784
      %v1865 = vpack.c.bf16 %v1790, %v1785
      %v1866 = vpack.c.bf16 %v1791, %v1786
      %v1867 = vld [vmem:[%s1] sm:$0xf]
      %v1868 = vld [vmem:[%s1 + $0x4] sm:$0xf]
      %v1869 = vld [vmem:[%s1 + $0x8] sm:$0xf]
      %v1870 = vld [vmem:[%s1 + $0xc] sm:$0xf]
      %v1871 = vld [vmem:[%s1 + $0x10] sm:$0xf]
      %v1872 = vld [vmem:[%s1 + $0x14] sm:$0xf]
      %v1873 = vld [vmem:[%s1 + $0x18] sm:$0xf]
      %v1874 = vld [vmem:[%s1 + $0x1c] sm:$0xf]
      %v1875 = vld [vmem:[%s1 + $0x20] sm:$0xf]
      %v1876 = vld [vmem:[%s1 + $0x24] sm:$0xf]
      %v1877 = vld [vmem:[%s1 + $0x28] sm:$0xf]
      %v1878 = vld [vmem:[%s1 + $0x2c] sm:$0xf]
      %v1879 = vld [vmem:[%s1 + $0x30] sm:$0xf]
      %v1880 = vld [vmem:[%s1 + $0x34] sm:$0xf]
      %v1881 = vld [vmem:[%s1 + $0x38] sm:$0xf]
      %v1882 = vld [vmem:[%s1 + $0x3c] sm:$0xf]
      %v1883 = vld [vmem:[%s1 + $0x40] sm:$0xf]
      %v1884 = vld [vmem:[%s1 + $0x44] sm:$0xf]
      %v1885 = vld [vmem:[%s1 + $0x48] sm:$0xf]
      %v1886 = vld [vmem:[%s1 + $0x4c] sm:$0xf]
      %v1887 = vld [vmem:[%s1 + $0x50] sm:$0xf]
      %v1888 = vld [vmem:[%s1 + $0x54] sm:$0xf]
      %v1889 = vld [vmem:[%s1 + $0x58] sm:$0xf]
      %v1890 = vld [vmem:[%s1 + $0x5c] sm:$0xf]
      %v1891 = vld [vmem:[%s1 + $0x60] sm:$0xf]
      %v1892 = vld [vmem:[%s1 + $0x64] sm:$0xf]
      %v1893 = vld [vmem:[%s1 + $0x68] sm:$0xf]
      %v1894 = vld [vmem:[%s1 + $0x6c] sm:$0xf]
      %v1895 = vld [vmem:[%s1 + $0x70] sm:$0xf]
      %v1896 = vld [vmem:[%s1 + $0x74] sm:$0xf]
      %v1897 = vld [vmem:[%s1 + $0x78] sm:$0xf]
      %v1898 = vld [vmem:[%s1 + $0x7c] sm:$0xf]
      %v1899 = vld [vmem:[%s1 + $0x80] sm:$0xf]
      %v1900 = vld [vmem:[%s1 + $0x84] sm:$0xf]
      %v1901 = vld [vmem:[%s1 + $0x88] sm:$0xf]
      %v1902 = vld [vmem:[%s1 + $0x8c] sm:$0xf]
      %v1903 = vld [vmem:[%s1 + $0x90] sm:$0xf]
      %v1904 = vld [vmem:[%s1 + $0x94] sm:$0xf]
      %v1905 = vld [vmem:[%s1 + $0x98] sm:$0xf]
      %v1906 = vld [vmem:[%s1 + $0x9c] sm:$0xf]
      %v1907 = vld [vmem:[%s1 + $0xa0] sm:$0xf]
      %v1908 = vld [vmem:[%s1 + $0xa4] sm:$0xf]
      %v1909 = vld [vmem:[%s1 + $0xa8] sm:$0xf]
      %v1910 = vld [vmem:[%s1 + $0xac] sm:$0xf]
      %v1911 = vld [vmem:[%s1 + $0xb0] sm:$0xf]
      %v1912 = vld [vmem:[%s1 + $0xb4] sm:$0xf]
      %v1913 = vld [vmem:[%s1 + $0xb8] sm:$0xf]
      %v1914 = vld [vmem:[%s1 + $0xbc] sm:$0xf]
      %v1915 = vld [vmem:[%s1 + $0xc0] sm:$0xf]
      %v1916 = vld [vmem:[%s1 + $0xc4] sm:$0xf]
      %v1917 = vld [vmem:[%s1 + $0xc8] sm:$0xf]
      %v1918 = vld [vmem:[%s1 + $0xcc] sm:$0xf]
      %v1919 = vld [vmem:[%s1 + $0xd0] sm:$0xf]
      %v1920 = vld [vmem:[%s1 + $0xd4] sm:$0xf]
      %v1921 = vld [vmem:[%s1 + $0xd8] sm:$0xf]
      %v1922 = vld [vmem:[%s1 + $0xdc] sm:$0xf]
      %v1923 = vld [vmem:[%s1 + $0xe0] sm:$0xf]
      %v1924 = vld [vmem:[%s1 + $0xe4] sm:$0xf]
      %v1925 = vld [vmem:[%s1 + $0xe8] sm:$0xf]
      %v1926 = vld [vmem:[%s1 + $0xec] sm:$0xf]
      %v1927 = vld [vmem:[%s1 + $0xf0] sm:$0xf]
      %v1928 = vld [vmem:[%s1 + $0xf4] sm:$0xf]
      %v1929 = vld [vmem:[%s1 + $0xf8] sm:$0xf]
      %v1930 = vld [vmem:[%s1 + $0xfc] sm:$0xf]
      %v1931 = vld [vmem:[%s1 + $0x100] sm:$0xf]
      %v1932 = vld [vmem:[%s1 + $0x104] sm:$0xf]
      %v1933 = vld [vmem:[%s1 + $0x108] sm:$0xf]
      %v1934 = vld [vmem:[%s1 + $0x10c] sm:$0xf]
      %v1935 = vld [vmem:[%s1 + $0x110] sm:$0xf]
      %v1936 = vld [vmem:[%s1 + $0x114] sm:$0xf]
      %v1937 = vld [vmem:[%s1 + $0x118] sm:$0xf]
      %v1938 = vld [vmem:[%s1 + $0x11c] sm:$0x1]
      %v2011 = vunpack.c.l.b16 %v1867
      %v2012 = vunpack.c.l.b16 %v1868
      %v2013 = vunpack.c.l.b16 %v1869
      %v2014 = vunpack.c.l.b16 %v1870
      %v2015 = vunpack.c.l.b16 %v1871
      %v2016 = vunpack.c.l.b16 %v1872
      %v2017 = vunpack.c.l.b16 %v1873
      %v2018 = vunpack.c.l.b16 %v1874
      %v2019 = vunpack.c.l.b16 %v1875
      %v2020 = vunpack.c.l.b16 %v1876
      %v2021 = vunpack.c.l.b16 %v1877
      %v2022 = vunpack.c.l.b16 %v1878
      %v2023 = vunpack.c.l.b16 %v1879
      %v2024 = vunpack.c.l.b16 %v1880
      %v2025 = vunpack.c.l.b16 %v1881
      %v2026 = vunpack.c.l.b16 %v1882
      %v2027 = vunpack.c.l.b16 %v1883
      %v2028 = vunpack.c.l.b16 %v1884
      %v2029 = vunpack.c.l.b16 %v1885
      %v2030 = vunpack.c.l.b16 %v1886
      %v2031 = vunpack.c.l.b16 %v1887
      %v2032 = vunpack.c.l.b16 %v1888
      %v2033 = vunpack.c.l.b16 %v1889
      %v2034 = vunpack.c.l.b16 %v1890
      %v2035 = vunpack.c.l.b16 %v1891
      %v2036 = vunpack.c.l.b16 %v1892
      %v2037 = vunpack.c.l.b16 %v1893
      %v2038 = vunpack.c.l.b16 %v1894
      %v2039 = vunpack.c.l.b16 %v1895
      %v2040 = vunpack.c.l.b16 %v1896
      %v2041 = vunpack.c.l.b16 %v1897
      %v2042 = vunpack.c.l.b16 %v1898
      %v2043 = vunpack.c.l.b16 %v1899
      %v2044 = vunpack.c.l.b16 %v1900
      %v2045 = vunpack.c.l.b16 %v1901
      %v2046 = vunpack.c.l.b16 %v1902
      %v2047 = vunpack.c.l.b16 %v1903
      %v2048 = vunpack.c.l.b16 %v1904
      %v2049 = vunpack.c.l.b16 %v1905
      %v2050 = vunpack.c.l.b16 %v1906
      %v2051 = vunpack.c.l.b16 %v1907
      %v2052 = vunpack.c.l.b16 %v1908
      %v2053 = vunpack.c.l.b16 %v1909
      %v2054 = vunpack.c.l.b16 %v1910
      %v2055 = vunpack.c.l.b16 %v1911
      %v2056 = vunpack.c.l.b16 %v1912
      %v2057 = vunpack.c.l.b16 %v1913
      %v2058 = vunpack.c.l.b16 %v1914
      %v2059 = vunpack.c.l.b16 %v1915
      %v2060 = vunpack.c.l.b16 %v1916
      %v2061 = vunpack.c.l.b16 %v1917
      %v2062 = vunpack.c.l.b16 %v1918
      %v2063 = vunpack.c.l.b16 %v1919
      %v2064 = vunpack.c.l.b16 %v1920
      %v2065 = vunpack.c.l.b16 %v1921
      %v2066 = vunpack.c.l.b16 %v1922
      %v2067 = vunpack.c.l.b16 %v1923
      %v2068 = vunpack.c.l.b16 %v1924
      %v2069 = vunpack.c.l.b16 %v1925
      %v2070 = vunpack.c.l.b16 %v1926
      %v2071 = vunpack.c.l.b16 %v1927
      %v2072 = vunpack.c.l.b16 %v1928
      %v2073 = vunpack.c.l.b16 %v1929
      %v2074 = vunpack.c.l.b16 %v1930
      %v2075 = vunpack.c.l.b16 %v1931
      %v2076 = vunpack.c.l.b16 %v1932
      %v2077 = vunpack.c.l.b16 %v1933
      %v2078 = vunpack.c.l.b16 %v1934
      %v2079 = vunpack.c.l.b16 %v1935
      %v2080 = vunpack.c.l.b16 %v1936
      %v2081 = vunpack.c.l.b16 %v1937
      %v2082 = vunpack.c.l.b16 %v1938
      %v2083 = vpack.c.b16 %v2012, %v2011
      %v2084 = vpack.c.b16 %v2014, %v2013
      %v2085 = vpack.c.b16 %v2016, %v2015
      %v2086 = vpack.c.b16 %v2018, %v2017
      %v2087 = vpack.c.b16 %v2020, %v2019
      %v2088 = vpack.c.b16 %v2022, %v2021
      %v2089 = vpack.c.b16 %v2024, %v2023
      %v2090 = vpack.c.b16 %v2026, %v2025
      %v2091 = vpack.c.b16 %v2028, %v2027
      %v2092 = vpack.c.b16 %v2030, %v2029
      %v2093 = vpack.c.b16 %v2032, %v2031
      %v2094 = vpack.c.b16 %v2034, %v2033
      %v2095 = vpack.c.b16 %v2036, %v2035
      %v2096 = vpack.c.b16 %v2038, %v2037
      %v2097 = vpack.c.b16 %v2040, %v2039
      %v2098 = vpack.c.b16 %v2042, %v2041
      %v2099 = vpack.c.b16 %v2044, %v2043
      %v2100 = vpack.c.b16 %v2046, %v2045
      %v2101 = vpack.c.b16 %v2048, %v2047
      %v2102 = vpack.c.b16 %v2050, %v2049
      %v2103 = vpack.c.b16 %v2052, %v2051
      %v2104 = vpack.c.b16 %v2054, %v2053
      %v2105 = vpack.c.b16 %v2056, %v2055
      %v2106 = vpack.c.b16 %v2058, %v2057
      %v2107 = vpack.c.b16 %v2060, %v2059
      %v2108 = vpack.c.b16 %v2062, %v2061
      %v2109 = vpack.c.b16 %v2064, %v2063
      %v2110 = vpack.c.b16 %v2066, %v2065
      %v2111 = vpack.c.b16 %v2068, %v2067
      %v2112 = vpack.c.b16 %v2070, %v2069
      %v2113 = vpack.c.b16 %v2072, %v2071
      %v2114 = vpack.c.b16 %v2074, %v2073
      %v2115 = vpack.c.b16 %v2076, %v2075
      %v2116 = vpack.c.b16 %v2078, %v2077
      %v2117 = vpack.c.b16 %v2080, %v2079
      %v2118 = vpack.c.b16 %v2082, %v2081
      %vm2154 = vcmask 474112
      %v2156 = vsel %vm2154, %v1796, 0
      %v2159 = vsel %vm2154, %v1801, 0
      %v2162 = vsel %vm2154, %v1806, 0
      %v2165 = vsel %vm2154, %v1811, 0
      %v2168 = vsel %vm2154, %v1816, 0
      %v2171 = vsel %vm2154, %v1821, 0
      %v2174 = vsel %vm2154, %v1826, 0
      %v2177 = vsel %vm2154, %v1831, 0
      %v2180 = vsel %vm2154, %v1836, 0
      %v2183 = vsel %vm2154, %v1841, 0
      %v2186 = vsel %vm2154, %v1846, 0
      %v2189 = vsel %vm2154, %v1851, 0
      %v2192 = vsel %vm2154, %v1856, 0
      %v2195 = vsel %vm2154, %v1861, 0
      %v2198 = vsel %vm2154, %v1866, 0
      %vm2200 = vcmask 1044480
      %v2202 = vsel %vm2200, %v2118, 0
      %2204 = vmatprep.subr.bf16.mxu0 0
      %2205 = vmatpush1.bf16.msra.mxu0 %v2083
      %2206 = vmatprep.subr.bf16.mxu0 0
      %2207 = vmatpush1.bf16.msra.mxu0 %v2084
      %2208 = vmatprep.subr.bf16.mxu0 0
      %2209 = vmatpush1.bf16.msra.mxu0 %v2085
      %2210 = vmatprep.subr.bf16.mxu0 0
      %2211 = vmatpush1.bf16.msra.mxu0 %v2086
      %2212 = vmatprep.subr.bf16.mxu0 0
      %2213 = vmatpush1.bf16.msra.mxu0 %v2087
      %2214 = vmatprep.subr.bf16.mxu0 0
      %2215 = vmatpush1.bf16.msra.mxu0 %v2088
      %2216 = vmatprep.subr.bf16.mxu0 0
      %2217 = vmatpush1.bf16.msra.mxu0 %v2089
      %2218 = vmatprep.subr.bf16.mxu0 0
      %2219 = vmatpush1.bf16.msra.mxu0 %v2090
      %2220 = vmatprep.subr.bf16.mxu0 0
      %2221 = vmatpush1.bf16.msra.mxu0 %v2091
      %2222 = vmatprep.subr.bf16.mxu0 0
      %2223 = vmatpush1.bf16.msra.mxu0 %v2092
      %2224 = vmatprep.subr.bf16.mxu0 0
      %2225 = vmatpush1.bf16.msra.mxu0 %v2093
      %2226 = vmatprep.subr.bf16.mxu0 0
      %2227 = vmatpush1.bf16.msra.mxu0 %v2094
      %2228 = vmatprep.subr.bf16.mxu0 0
      %2229 = vmatpush1.bf16.msra.mxu0 %v2095
      %2230 = vmatprep.subr.bf16.mxu0 0
      %2231 = vmatpush1.bf16.msra.mxu0 %v2096
      %2232 = vmatprep.subr.bf16.mxu0 0
      %2233 = vmatpush1.bf16.msra.mxu0 %v2097
      %2234 = vmatprep.subr.bf16.mxu0 0
      %2235 = vmatpush1.bf16.msra.mxu0 %v2098
      %2236 = vmatprep.mubr.bf16.mxu0 %v1793
      %2237 = vmatmul.mubr.bf16.gmra.mrb[0].mxu0 %v1792
      %v2238 = vpop.f32.mrb[0].mxu0
      %v2239 = vadd.f32 0.0, %v2238
      %v2240 = vpop.f32.mrb[0].mxu0
      %v2241 = vpop.f32.mrb[0].mxu0
      %v2242 = vadd.f32 0.0, %v2241
      %v2243 = vpop.f32.mrb[0].mxu0
      %2244 = vmatprep.mubr.bf16.mxu0 %v1798
      %2245 = vmatmul.mubr.bf16.gmra.mrb[0].mxu0 %v1797
      %v2246 = vpop.f32.mrb[0].mxu0
      %v2247 = vadd.f32 0.0, %v2246
      %v2248 = vpop.f32.mrb[0].mxu0
      %v2249 = vpop.f32.mrb[0].mxu0
      %v2250 = vadd.f32 0.0, %v2249
      %v2251 = vpop.f32.mrb[0].mxu0
      %2252 = vmatprep.mubr.bf16.mxu0 %v1803
      %2253 = vmatmul.mubr.bf16.gmra.mrb[0].mxu0 %v1802
      %v2254 = vpop.f32.mrb[0].mxu0
      %v2255 = vadd.f32 0.0, %v2254
      %v2256 = vpop.f32.mrb[0].mxu0
      %v2257 = vpop.f32.mrb[0].mxu0
      %v2258 = vadd.f32 0.0, %v2257
      %v2259 = vpop.f32.mrb[0].mxu0
      %2260 = vmatprep.mubr.bf16.mxu0 %v1808
      %2261 = vmatmul.mubr.bf16.gmra.mrb[0].mxu0 %v1807
      %v2262 = vpop.f32.mrb[0].mxu0
      %v2263 = vadd.f32 0.0, %v2262
      %v2264 = vpop.f32.mrb[0].mxu0
      %v2265 = vpop.f32.mrb[0].mxu0
      %v2266 = vadd.f32 0.0, %v2265
      %v2267 = vpop.f32.mrb[0].mxu0
      %2268 = vmatprep.mubr.bf16.mxu0 %v1813
      %2269 = vmatmul.mubr.bf16.gmra.mrb[0].mxu0 %v1812
      %v2270 = vpop.f32.mrb[0].mxu0
      %v2271 = vadd.f32 0.0, %v2270
      %v2272 = vpop.f32.mrb[0].mxu0
      %v2273 = vpop.f32.mrb[0].mxu0
      %v2274 = vadd.f32 0.0, %v2273
      %v2275 = vpop.f32.mrb[0].mxu0
      %2276 = vmatprep.mubr.bf16.mxu0 %v1818
      %2277 = vmatmul.mubr.bf16.gmra.mrb[0].mxu0 %v1817
      %v2278 = vpop.f32.mrb[0].mxu0
      %v2279 = vadd.f32 0.0, %v2278
      %v2280 = vpop.f32.mrb[0].mxu0
      %v2281 = vpop.f32.mrb[0].mxu0
      %v2282 = vadd.f32 0.0, %v2281
      %v2283 = vpop.f32.mrb[0].mxu0
      %2284 = vmatprep.mubr.bf16.mxu0 %v1823
      %2285 = vmatmul.mubr.bf16.gmra.mrb[0].mxu0 %v1822
      %v2286 = vpop.f32.mrb[0].mxu0
      %v2287 = vadd.f32 0.0, %v2286
      %v2288 = vpop.f32.mrb[0].mxu0
      %v2289 = vpop.f32.mrb[0].mxu0
      %v2290 = vadd.f32 0.0, %v2289
      %v2291 = vpop.f32.mrb[0].mxu0
      %2292 = vmatprep.mubr.bf16.mxu0 %v1828
      %2293 = vmatmul.mubr.bf16.gmra.mrb[0].mxu0 %v1827
      %v2294 = vpop.f32.mrb[0].mxu0
      %v2295 = vadd.f32 0.0, %v2294
      %v2296 = vpop.f32.mrb[0].mxu0
      %v2297 = vpop.f32.mrb[0].mxu0
      %v2298 = vadd.f32 0.0, %v2297
      %v2299 = vpop.f32.mrb[0].mxu0
      %2300 = vmatprep.mubr.bf16.mxu0 %v1833
      %2301 = vmatmul.mubr.bf16.gmra.mrb[0].mxu0 %v1832
      %v2302 = vpop.f32.mrb[0].mxu0
      %v2303 = vadd.f32 0.0, %v2302
      %v2304 = vpop.f32.mrb[0].mxu0
      %v2305 = vpop.f32.mrb[0].mxu0
      %v2306 = vadd.f32 0.0, %v2305
      %v2307 = vpop.f32.mrb[0].mxu0
      %2308 = vmatprep.mubr.bf16.mxu0 %v1838
      %2309 = vmatmul.mubr.bf16.gmra.mrb[0].mxu0 %v1837
      %v2310 = vpop.f32.mrb[0].mxu0
      %v2311 = vadd.f32 0.0, %v2310
      %v2312 = vpop.f32.mrb[0].mxu0
      %v2313 = vpop.f32.mrb[0].mxu0
      %v2314 = vadd.f32 0.0, %v2313
      %v2315 = vpop.f32.mrb[0].mxu0
      %2316 = vmatprep.mubr.bf16.mxu0 %v1843
      %2317 = vmatmul.mubr.bf16.gmra.mrb[0].mxu0 %v1842
      %v2318 = vpop.f32.mrb[0].mxu0
      %v2319 = vadd.f32 0.0, %v2318
      %v2320 = vpop.f32.mrb[0].mxu0
      %v2321 = vpop.f32.mrb[0].mxu0
      %v2322 = vadd.f32 0.0, %v2321
      %v2323 = vpop.f32.mrb[0].mxu0
      %2324 = vmatprep.mubr.bf16.mxu0 %v1848
      %2325 = vmatmul.mubr.bf16.gmra.mrb[0].mxu0 %v1847
      %v2326 = vpop.f32.mrb[0].mxu0
      %v2327 = vadd.f32 0.0, %v2326
      %v2328 = vpop.f32.mrb[0].mxu0
      %v2329 = vpop.f32.mrb[0].mxu0
      %v2330 = vadd.f32 0.0, %v2329
      %v2331 = vpop.f32.mrb[0].mxu0
      %2332 = vmatprep.mubr.bf16.mxu0 %v1853
      %2333 = vmatmul.mubr.bf16.gmra.mrb[0].mxu0 %v1852
      %v2334 = vpop.f32.mrb[0].mxu0
      %v2335 = vadd.f32 0.0, %v2334
      %v2336 = vpop.f32.mrb[0].mxu0
      %v2337 = vpop.f32.mrb[0].mxu0
      %v2338 = vadd.f32 0.0, %v2337
      %v2339 = vpop.f32.mrb[0].mxu0
      %2340 = vmatprep.mubr.bf16.mxu0 %v1858
      %2341 = vmatmul.mubr.bf16.gmra.mrb[0].mxu0 %v1857
      %v2342 = vpop.f32.mrb[0].mxu0
      %v2343 = vadd.f32 0.0, %v2342
      %v2344 = vpop.f32.mrb[0].mxu0
      %v2345 = vpop.f32.mrb[0].mxu0
      %v2346 = vadd.f32 0.0, %v2345
      %v2347 = vpop.f32.mrb[0].mxu0
      %2348 = vmatprep.mubr.bf16.mxu0 %v1863
      %2349 = vmatmul.mubr.bf16.gmra.mrb[0].mxu0 %v1862
      %v2350 = vpop.f32.mrb[0].mxu0
      %v2351 = vadd.f32 0.0, %v2350
      %v2352 = vpop.f32.mrb[0].mxu0
      %v2353 = vpop.f32.mrb[0].mxu0
      %v2354 = vadd.f32 0.0, %v2353
      %v2355 = vpop.f32.mrb[0].mxu0
      %2356 = vdwg.mxu0
      %2357 = vmatprep.subr.bf16.mxu0 0
      %2358 = vmatpush1.bf16.msra.mxu0 %v2099
      %2359 = vmatprep.subr.bf16.mxu0 0
      %2360 = vmatpush1.bf16.msra.mxu0 %v2100
      %2361 = vmatprep.subr.bf16.mxu0 0
      %2362 = vmatpush1.bf16.msra.mxu0 %v2101
      %2363 = vmatprep.subr.bf16.mxu0 0
      %2364 = vmatpush1.bf16.msra.mxu0 %v2102
      %2365 = vmatprep.subr.bf16.mxu0 0
      %2366 = vmatpush1.bf16.msra.mxu0 %v2103
      %2367 = vmatprep.subr.bf16.mxu0 0
      %2368 = vmatpush1.bf16.msra.mxu0 %v2104
      %2369 = vmatprep.subr.bf16.mxu0 0
      %2370 = vmatpush1.bf16.msra.mxu0 %v2105
      %2371 = vmatprep.subr.bf16.mxu0 0
      %2372 = vmatpush1.bf16.msra.mxu0 %v2106
      %2373 = vmatprep.subr.bf16.mxu0 0
      %2374 = vmatpush1.bf16.msra.mxu0 %v2107
      %2375 = vmatprep.subr.bf16.mxu0 0
      %2376 = vmatpush1.bf16.msra.mxu0 %v2108
      %2377 = vmatprep.subr.bf16.mxu0 0
      %2378 = vmatpush1.bf16.msra.mxu0 %v2109
      %2379 = vmatprep.subr.bf16.mxu0 0
      %2380 = vmatpush1.bf16.msra.mxu0 %v2110
      %2381 = vmatprep.subr.bf16.mxu0 0
      %2382 = vmatpush1.bf16.msra.mxu0 %v2111
      %2383 = vmatprep.subr.bf16.mxu0 0
      %2384 = vmatpush1.bf16.msra.mxu0 %v2112
      %2385 = vmatprep.subr.bf16.mxu0 0
      %2386 = vmatpush1.bf16.msra.mxu0 %v2113
      %2387 = vmatprep.subr.bf16.mxu0 0
      %2388 = vmatpush1.bf16.msra.mxu0 %v2114
      %2389 = vmatprep.mubr.bf16.mxu0 %v1795
      %2390 = vmatmul.mubr.bf16.gmra.mrb[0].mxu0 %v1794
      %v2391 = vpop.f32.mrb[0].mxu0
      %v2392 = vadd.f32 %v2239, %v2391
      %v2393 = vpop.f32.mrb[0].mxu0
      %v2394 = vpop.f32.mrb[0].mxu0
      %v2395 = vadd.f32 %v2242, %v2394
      %v2396 = vpop.f32.mrb[0].mxu0
      %2397 = vmatprep.mubr.bf16.mxu0 %v1800
      %2398 = vmatmul.mubr.bf16.gmra.mrb[0].mxu0 %v1799
      %v2399 = vpop.f32.mrb[0].mxu0
      %v2400 = vadd.f32 %v2247, %v2399
      %v2401 = vpop.f32.mrb[0].mxu0
      %v2402 = vpop.f32.mrb[0].mxu0
      %v2403 = vadd.f32 %v2250, %v2402
      %v2404 = vpop.f32.mrb[0].mxu0
      %2405 = vmatprep.mubr.bf16.mxu0 %v1805
      %2406 = vmatmul.mubr.bf16.gmra.mrb[0].mxu0 %v1804
      %v2407 = vpop.f32.mrb[0].mxu0
      %v2408 = vadd.f32 %v2255, %v2407
      %v2409 = vpop.f32.mrb[0].mxu0
      %v2410 = vpop.f32.mrb[0].mxu0
      %v2411 = vadd.f32 %v2258, %v2410
      %v2412 = vpop.f32.mrb[0].mxu0
      %2413 = vmatprep.mubr.bf16.mxu0 %v1810
      %2414 = vmatmul.mubr.bf16.gmra.mrb[0].mxu0 %v1809
      %v2415 = vpop.f32.mrb[0].mxu0
      %v2416 = vadd.f32 %v2263, %v2415
      %v2417 = vpop.f32.mrb[0].mxu0
      %v2418 = vpop.f32.mrb[0].mxu0
      %v2419 = vadd.f32 %v2266, %v2418
      %v2420 = vpop.f32.mrb[0].mxu0
      %2421 = vmatprep.mubr.bf16.mxu0 %v1815
      %2422 = vmatmul.mubr.bf16.gmra.mrb[0].mxu0 %v1814
      %v2423 = vpop.f32.mrb[0].mxu0
      %v2424 = vadd.f32 %v2271, %v2423
      %v2425 = vpop.f32.mrb[0].mxu0
      %v2426 = vpop.f32.mrb[0].mxu0
      %v2427 = vadd.f32 %v2274, %v2426
      %v2428 = vpop.f32.mrb[0].mxu0
      %2429 = vmatprep.mubr.bf16.mxu0 %v1820
      %2430 = vmatmul.mubr.bf16.gmra.mrb[0].mxu0 %v1819
      %v2431 = vpop.f32.mrb[0].mxu0
      %v2432 = vadd.f32 %v2279, %v2431
      %v2433 = vpop.f32.mrb[0].mxu0
      %v2434 = vpop.f32.mrb[0].mxu0
      %v2435 = vadd.f32 %v2282, %v2434
      %v2436 = vpop.f32.mrb[0].mxu0
      %2437 = vmatprep.mubr.bf16.mxu0 %v1825
      %2438 = vmatmul.mubr.bf16.gmra.mrb[0].mxu0 %v1824
      %v2439 = vpop.f32.mrb[0].mxu0
      %v2440 = vadd.f32 %v2287, %v2439
      %v2441 = vpop.f32.mrb[0].mxu0
      %v2442 = vpop.f32.mrb[0].mxu0
      %v2443 = vadd.f32 %v2290, %v2442
      %v2444 = vpop.f32.mrb[0].mxu0
      %2445 = vmatprep.mubr.bf16.mxu0 %v1830
      %2446 = vmatmul.mubr.bf16.gmra.mrb[0].mxu0 %v1829
      %v2447 = vpop.f32.mrb[0].mxu0
      %v2448 = vadd.f32 %v2295, %v2447
      %v2449 = vpop.f32.mrb[0].mxu0
      %v2450 = vpop.f32.mrb[0].mxu0
      %v2451 = vadd.f32 %v2298, %v2450
      %v2452 = vpop.f32.mrb[0].mxu0
      %2453 = vmatprep.mubr.bf16.mxu0 %v1835
      %2454 = vmatmul.mubr.bf16.gmra.mrb[0].mxu0 %v1834
      %v2455 = vpop.f32.mrb[0].mxu0
      %v2456 = vadd.f32 %v2303, %v2455
      %v2457 = vpop.f32.mrb[0].mxu0
      %v2458 = vpop.f32.mrb[0].mxu0
      %v2459 = vadd.f32 %v2306, %v2458
      %v2460 = vpop.f32.mrb[0].mxu0
      %2461 = vmatprep.mubr.bf16.mxu0 %v1840
      %2462 = vmatmul.mubr.bf16.gmra.mrb[0].mxu0 %v1839
      %v2463 = vpop.f32.mrb[0].mxu0
      %v2464 = vadd.f32 %v2311, %v2463
      %v2465 = vpop.f32.mrb[0].mxu0
      %v2466 = vpop.f32.mrb[0].mxu0
      %v2467 = vadd.f32 %v2314, %v2466
      %v2468 = vpop.f32.mrb[0].mxu0
      %2469 = vmatprep.mubr.bf16.mxu0 %v1845
      %2470 = vmatmul.mubr.bf16.gmra.mrb[0].mxu0 %v1844
      %v2471 = vpop.f32.mrb[0].mxu0
      %v2472 = vadd.f32 %v2319, %v2471
      %v2473 = vpop.f32.mrb[0].mxu0
      %v2474 = vpop.f32.mrb[0].mxu0
      %v2475 = vadd.f32 %v2322, %v2474
      %v2476 = vpop.f32.mrb[0].mxu0
      %2477 = vmatprep.mubr.bf16.mxu0 %v1850
      %2478 = vmatmul.mubr.bf16.gmra.mrb[0].mxu0 %v1849
      %v2479 = vpop.f32.mrb[0].mxu0
      %v2480 = vadd.f32 %v2327, %v2479
      %v2481 = vpop.f32.mrb[0].mxu0
      %v2482 = vpop.f32.mrb[0].mxu0
      %v2483 = vadd.f32 %v2330, %v2482
      %v2484 = vpop.f32.mrb[0].mxu0
      %2485 = vmatprep.mubr.bf16.mxu0 %v1855
      %2486 = vmatmul.mubr.bf16.gmra.mrb[0].mxu0 %v1854
      %v2487 = vpop.f32.mrb[0].mxu0
      %v2488 = vadd.f32 %v2335, %v2487
      %v2489 = vpop.f32.mrb[0].mxu0
      %v2490 = vpop.f32.mrb[0].mxu0
      %v2491 = vadd.f32 %v2338, %v2490
      %v2492 = vpop.f32.mrb[0].mxu0
      %2493 = vmatprep.mubr.bf16.mxu0 %v1860
      %2494 = vmatmul.mubr.bf16.gmra.mrb[0].mxu0 %v1859
      %v2495 = vpop.f32.mrb[0].mxu0
      %v2496 = vadd.f32 %v2343, %v2495
      %v2497 = vpop.f32.mrb[0].mxu0
      %v2498 = vpop.f32.mrb[0].mxu0
      %v2499 = vadd.f32 %v2346, %v2498
      %v2500 = vpop.f32.mrb[0].mxu0
      %2501 = vmatprep.mubr.bf16.mxu0 %v1865
      %2502 = vmatmul.mubr.bf16.gmra.mrb[0].mxu0 %v1864
      %v2503 = vpop.f32.mrb[0].mxu0
      %v2504 = vadd.f32 %v2351, %v2503
      %v2505 = vpop.f32.mrb[0].mxu0
      %v2506 = vpop.f32.mrb[0].mxu0
      %v2507 = vadd.f32 %v2354, %v2506
      %v2508 = vpop.f32.mrb[0].mxu0
      %2509 = vdwg.mxu0
      %2510 = vmatprep.subr.bf16.mxu0 0
      %2511 = vmatpush1.bf16.msra.mxu0 %v2115
      %2512 = vmatprep.subr.bf16.mxu0 0
      %2513 = vmatpush1.bf16.msra.mxu0 %v2116
      %2514 = vmatprep.subr.bf16.mxu0 0
      %2515 = vmatpush1.bf16.msra.mxu0 %v2117
      %2516 = vmatprep.subr.bf16.mxu0 0
      %2517 = vmatpush1.bf16.msra.mxu0 %v2202
      %2518 = vmatprep.subr.bf16.mxu0 0
      %2519 = vmatpush1.bf16.msra.mxu0 0
      %2520 = vmatprep.subr.bf16.mxu0 0
      %2521 = vmatpush1.bf16.msra.mxu0 0
      %2522 = vmatprep.subr.bf16.mxu0 0
      %2523 = vmatpush1.bf16.msra.mxu0 0
      %2524 = vmatprep.subr.bf16.mxu0 0
      %2525 = vmatpush1.bf16.msra.mxu0 0
      %2526 = vmatprep.subr.bf16.mxu0 0
      %2527 = vmatpush1.bf16.msra.mxu0 0
      %2528 = vmatprep.subr.bf16.mxu0 0
      %2529 = vmatpush1.bf16.msra.mxu0 0
      %2530 = vmatprep.subr.bf16.mxu0 0
      %2531 = vmatpush1.bf16.msra.mxu0 0
      %2532 = vmatprep.subr.bf16.mxu0 0
      %2533 = vmatpush1.bf16.msra.mxu0 0
      %2534 = vmatprep.subr.bf16.mxu0 0
      %2535 = vmatpush1.bf16.msra.mxu0 0
      %2536 = vmatprep.subr.bf16.mxu0 0
      %2537 = vmatpush1.bf16.msra.mxu0 0
      %2538 = vmatprep.subr.bf16.mxu0 0
      %2539 = vmatpush1.bf16.msra.mxu0 0
      %2540 = vmatprep.subr.bf16.mxu0 0
      %2541 = vmatpush1.bf16.msra.mxu0 0
      %2542 = vmatprep.mubr.bf16.mxu0 0
      %2543 = vmatmul.mubr.bf16.gmra.mrb[0].mxu0 %v2156
      %v2544 = vpop.f32.mrb[0].mxu0
      %v2545 = vadd.f32 %v2392, %v2544
      %v2546 = vpop.f32.mrb[0].mxu0
      %v2547 = vpop.f32.mrb[0].mxu0
      %v2548 = vadd.f32 %v2395, %v2547
      %v2549 = vpop.f32.mrb[0].mxu0
      %2550 = vmatprep.mubr.bf16.mxu0 0
      %2551 = vmatmul.mubr.bf16.gmra.mrb[0].mxu0 %v2159
      %v2552 = vpop.f32.mrb[0].mxu0
      %v2553 = vadd.f32 %v2400, %v2552
      %v2554 = vpop.f32.mrb[0].mxu0
      %v2555 = vpop.f32.mrb[0].mxu0
      %v2556 = vadd.f32 %v2403, %v2555
      %v2557 = vpop.f32.mrb[0].mxu0
      %2558 = vmatprep.mubr.bf16.mxu0 0
      %2559 = vmatmul.mubr.bf16.gmra.mrb[0].mxu0 %v2162
      %v2560 = vpop.f32.mrb[0].mxu0
      %v2561 = vadd.f32 %v2408, %v2560
      %v2562 = vpop.f32.mrb[0].mxu0
      %v2563 = vpop.f32.mrb[0].mxu0
      %v2564 = vadd.f32 %v2411, %v2563
      %v2565 = vpop.f32.mrb[0].mxu0
      %2566 = vmatprep.mubr.bf16.mxu0 0
      %2567 = vmatmul.mubr.bf16.gmra.mrb[0].mxu0 %v2165
      %v2568 = vpop.f32.mrb[0].mxu0
      %v2569 = vadd.f32 %v2416, %v2568
      %v2570 = vpop.f32.mrb[0].mxu0
      %v2571 = vpop.f32.mrb[0].mxu0
      %v2572 = vadd.f32 %v2419, %v2571
      %v2573 = vpop.f32.mrb[0].mxu0
      %2574 = vmatprep.mubr.bf16.mxu0 0
      %2575 = vmatmul.mubr.bf16.gmra.mrb[0].mxu0 %v2168
      %v2576 = vpop.f32.mrb[0].mxu0
      %v2577 = vadd.f32 %v2424, %v2576
      %v2578 = vpop.f32.mrb[0].mxu0
      %v2579 = vpop.f32.mrb[0].mxu0
      %v2580 = vadd.f32 %v2427, %v2579
      %v2581 = vpop.f32.mrb[0].mxu0
      %2582 = vmatprep.mubr.bf16.mxu0 0
      %2583 = vmatmul.mubr.bf16.gmra.mrb[0].mxu0 %v2171
      %v2584 = vpop.f32.mrb[0].mxu0
      %v2585 = vadd.f32 %v2432, %v2584
      %v2586 = vpop.f32.mrb[0].mxu0
      %v2587 = vpop.f32.mrb[0].mxu0
      %v2588 = vadd.f32 %v2435, %v2587
      %v2589 = vpop.f32.mrb[0].mxu0
      %2590 = vmatprep.mubr.bf16.mxu0 0
      %2591 = vmatmul.mubr.bf16.gmra.mrb[0].mxu0 %v2174
      %v2592 = vpop.f32.mrb[0].mxu0
      %v2593 = vadd.f32 %v2440, %v2592
      %v2594 = vpop.f32.mrb[0].mxu0
      %v2595 = vpop.f32.mrb[0].mxu0
      %v2596 = vadd.f32 %v2443, %v2595
      %v2597 = vpop.f32.mrb[0].mxu0
      %2598 = vmatprep.mubr.bf16.mxu0 0
      %2599 = vmatmul.mubr.bf16.gmra.mrb[0].mxu0 %v2177
      %v2600 = vpop.f32.mrb[0].mxu0
      %v2601 = vadd.f32 %v2448, %v2600
      %v2602 = vpop.f32.mrb[0].mxu0
      %v2603 = vpop.f32.mrb[0].mxu0
      %v2604 = vadd.f32 %v2451, %v2603
      %v2605 = vpop.f32.mrb[0].mxu0
      %2606 = vmatprep.mubr.bf16.mxu0 0
      %2607 = vmatmul.mubr.bf16.gmra.mrb[0].mxu0 %v2180
      %v2608 = vpop.f32.mrb[0].mxu0
      %v2609 = vadd.f32 %v2456, %v2608
      %v2610 = vpop.f32.mrb[0].mxu0
      %v2611 = vpop.f32.mrb[0].mxu0
      %v2612 = vadd.f32 %v2459, %v2611
      %v2613 = vpop.f32.mrb[0].mxu0
      %2614 = vmatprep.mubr.bf16.mxu0 0
      %2615 = vmatmul.mubr.bf16.gmra.mrb[0].mxu0 %v2183
      %v2616 = vpop.f32.mrb[0].mxu0
      %v2617 = vadd.f32 %v2464, %v2616
      %v2618 = vpop.f32.mrb[0].mxu0
      %v2619 = vpop.f32.mrb[0].mxu0
      %v2620 = vadd.f32 %v2467, %v2619
      %v2621 = vpop.f32.mrb[0].mxu0
      %2622 = vmatprep.mubr.bf16.mxu0 0
      %2623 = vmatmul.mubr.bf16.gmra.mrb[0].mxu0 %v2186
      %v2624 = vpop.f32.mrb[0].mxu0
      %v2625 = vadd.f32 %v2472, %v2624
      %v2626 = vpop.f32.mrb[0].mxu0
      %v2627 = vpop.f32.mrb[0].mxu0
      %v2628 = vadd.f32 %v2475, %v2627
      %v2629 = vpop.f32.mrb[0].mxu0
      %2630 = vmatprep.mubr.bf16.mxu0 0
      %2631 = vmatmul.mubr.bf16.gmra.mrb[0].mxu0 %v2189
      %v2632 = vpop.f32.mrb[0].mxu0
      %v2633 = vadd.f32 %v2480, %v2632
      %v2634 = vpop.f32.mrb[0].mxu0
      %v2635 = vpop.f32.mrb[0].mxu0
      %v2636 = vadd.f32 %v2483, %v2635
      %v2637 = vpop.f32.mrb[0].mxu0
      %2638 = vmatprep.mubr.bf16.mxu0 0
      %2639 = vmatmul.mubr.bf16.gmra.mrb[0].mxu0 %v2192
      %v2640 = vpop.f32.mrb[0].mxu0
      %v2641 = vadd.f32 %v2488, %v2640
      %v2642 = vpop.f32.mrb[0].mxu0
      %v2643 = vpop.f32.mrb[0].mxu0
      %v2644 = vadd.f32 %v2491, %v2643
      %v2645 = vpop.f32.mrb[0].mxu0
      %2646 = vmatprep.mubr.bf16.mxu0 0
      %2647 = vmatmul.mubr.bf16.gmra.mrb[0].mxu0 %v2195
      %v2648 = vpop.f32.mrb[0].mxu0
      %v2649 = vadd.f32 %v2496, %v2648
      %v2650 = vpop.f32.mrb[0].mxu0
      %v2651 = vpop.f32.mrb[0].mxu0
      %v2652 = vadd.f32 %v2499, %v2651
      %v2653 = vpop.f32.mrb[0].mxu0
      %2654 = vmatprep.mubr.bf16.mxu0 0
      %2655 = vmatmul.mubr.bf16.gmra.mrb[0].mxu0 %v2198
      %v2656 = vpop.f32.mrb[0].mxu0
      %v2657 = vadd.f32 %v2504, %v2656
      %v2658 = vpop.f32.mrb[0].mxu0
      %v2659 = vpop.f32.mrb[0].mxu0
      %v2660 = vadd.f32 %v2507, %v2659
      %v2661 = vpop.f32.mrb[0].mxu0
      %2662 = vdwg.mxu0
      %v2664 = vlaneseq
      %v2665 = vshrl.u32 %v2664, 7
      %v2666 = vsub.s32 0, %v2665
      %v2667 = vrot.slane %v1160, %v2666
      %v2669 = vadd.f32 %v2667, %v2545
      %v2670 = vadd.f32 %v2667, %v2548
      %v2671 = vadd.f32 %v2667, %v2553
      %v2672 = vadd.f32 %v2667, %v2556
      %v2673 = vadd.f32 %v2667, %v2561
      %v2674 = vadd.f32 %v2667, %v2564
      %v2675 = vadd.f32 %v2667, %v2569
      %v2676 = vadd.f32 %v2667, %v2572
      %v2677 = vadd.f32 %v2667, %v2577
      %v2678 = vadd.f32 %v2667, %v2580
      %v2679 = vadd.f32 %v2667, %v2585
      %v2680 = vadd.f32 %v2667, %v2588
      %v2681 = vadd.f32 %v2667, %v2593
      %v2682 = vadd.f32 %v2667, %v2596
      %v2683 = vadd.f32 %v2667, %v2601
      %v2684 = vadd.f32 %v2667, %v2604
      %v2685 = vadd.f32 %v2667, %v2609
      %v2686 = vadd.f32 %v2667, %v2612
      %v2687 = vadd.f32 %v2667, %v2617
      %v2688 = vadd.f32 %v2667, %v2620
      %v2689 = vadd.f32 %v2667, %v2625
      %v2690 = vadd.f32 %v2667, %v2628
      %v2691 = vadd.f32 %v2667, %v2633
      %v2692 = vadd.f32 %v2667, %v2636
      %v2693 = vadd.f32 %v2667, %v2641
      %v2694 = vadd.f32 %v2667, %v2644
      %v2695 = vadd.f32 %v2667, %v2649
      %v2696 = vadd.f32 %v2667, %v2652
      %v2697 = vadd.f32 %v2667, %v2657
      %v2698 = vadd.f32 %v2667, %v2660
      %v2699 = vpack.c.bf16 %v504, %v499
      %v2700 = vpack.c.bf16 %v505, %v500
      %v2701 = vpack.c.bf16 %v506, %v501
      %v2702 = vpack.c.bf16 %v507, %v502
      %v2703 = vpack.c.bf16 %v508, %v503
      %v2704 = vpack.c.bf16 %v514, %v509
      %v2705 = vpack.c.bf16 %v515, %v510
      %v2706 = vpack.c.bf16 %v516, %v511
      %v2707 = vpack.c.bf16 %v517, %v512
      %v2708 = vpack.c.bf16 %v518, %v513
      %v2709 = vpack.c.bf16 %v524, %v519
      %v2710 = vpack.c.bf16 %v525, %v520
      %v2711 = vpack.c.bf16 %v526, %v521
      %v2712 = vpack.c.bf16 %v527, %v522
      %v2713 = vpack.c.bf16 %v528, %v523
      %v2714 = vpack.c.bf16 %v534, %v529
      %v2715 = vpack.c.bf16 %v535, %v530
      %v2716 = vpack.c.bf16 %v536, %v531
      %v2717 = vpack.c.bf16 %v537, %v532
      %v2718 = vpack.c.bf16 %v538, %v533
      %v2719 = vpack.c.bf16 %v544, %v539
      %v2720 = vpack.c.bf16 %v545, %v540
      %v2721 = vpack.c.bf16 %v546, %v541
      %v2722 = vpack.c.bf16 %v547, %v542
      %v2723 = vpack.c.bf16 %v548, %v543
      %v2724 = vpack.c.bf16 %v554, %v549
      %v2725 = vpack.c.bf16 %v555, %v550
      %v2726 = vpack.c.bf16 %v556, %v551
      %v2727 = vpack.c.bf16 %v557, %v552
      %v2728 = vpack.c.bf16 %v558, %v553
      %v2729 = vpack.c.bf16 %v564, %v559
      %v2730 = vpack.c.bf16 %v565, %v560
      %v2731 = vpack.c.bf16 %v566, %v561
      %v2732 = vpack.c.bf16 %v567, %v562
      %v2733 = vpack.c.bf16 %v568, %v563
      %v2734 = vpack.c.bf16 %v574, %v569
      %v2735 = vpack.c.bf16 %v575, %v570
      %v2736 = vpack.c.bf16 %v576, %v571
      %v2737 = vpack.c.bf16 %v577, %v572
      %v2738 = vpack.c.bf16 %v578, %v573
      %v2739 = vpack.c.bf16 %v584, %v579
      %v2740 = vpack.c.bf16 %v585, %v580
      %v2741 = vpack.c.bf16 %v586, %v581
      %v2742 = vpack.c.bf16 %v587, %v582
      %v2743 = vpack.c.bf16 %v588, %v583
      %v2744 = vpack.c.bf16 %v594, %v589
      %v2745 = vpack.c.bf16 %v595, %v590
      %v2746 = vpack.c.bf16 %v596, %v591
      %v2747 = vpack.c.bf16 %v597, %v592
      %v2748 = vpack.c.bf16 %v598, %v593
      %v2749 = vpack.c.bf16 %v604, %v599
      %v2750 = vpack.c.bf16 %v605, %v600
      %v2751 = vpack.c.bf16 %v606, %v601
      %v2752 = vpack.c.bf16 %v607, %v602
      %v2753 = vpack.c.bf16 %v608, %v603
      %v2754 = vpack.c.bf16 %v614, %v609
      %v2755 = vpack.c.bf16 %v615, %v610
      %v2756 = vpack.c.bf16 %v616, %v611
      %v2757 = vpack.c.bf16 %v617, %v612
      %v2758 = vpack.c.bf16 %v618, %v613
      %v2759 = vpack.c.bf16 %v624, %v619
      %v2760 = vpack.c.bf16 %v625, %v620
      %v2761 = vpack.c.bf16 %v626, %v621
      %v2762 = vpack.c.bf16 %v627, %v622
      %v2763 = vpack.c.bf16 %v628, %v623
      %v2764 = vpack.c.bf16 %v634, %v629
      %v2765 = vpack.c.bf16 %v635, %v630
      %v2766 = vpack.c.bf16 %v636, %v631
      %v2767 = vpack.c.bf16 %v637, %v632
      %v2768 = vpack.c.bf16 %v638, %v633
      %v2769 = vpack.c.bf16 %v644, %v639
      %v2770 = vpack.c.bf16 %v645, %v640
      %v2771 = vpack.c.bf16 %v646, %v641
      %v2772 = vpack.c.bf16 %v647, %v642
      %v2773 = vpack.c.bf16 %v648, %v643
      %s2774 = scalar_lea.vmem %s1, 288
      %v2775 = vld [vmem:[%s2774] sm:$0xf]
      %v2776 = vld [vmem:[%s2774 + $0x4] sm:$0xf]
      %v2777 = vld [vmem:[%s2774 + $0x8] sm:$0xf]
      %v2778 = vld [vmem:[%s2774 + $0xc] sm:$0xf]
      %v2779 = vld [vmem:[%s2774 + $0x10] sm:$0xf]
      %v2780 = vld [vmem:[%s2774 + $0x14] sm:$0xf]
      %v2781 = vld [vmem:[%s2774 + $0x18] sm:$0xf]
      %v2782 = vld [vmem:[%s2774 + $0x1c] sm:$0xf]
      %v2783 = vld [vmem:[%s2774 + $0x20] sm:$0xf]
      %v2784 = vld [vmem:[%s2774 + $0x24] sm:$0xf]
      %v2785 = vld [vmem:[%s2774 + $0x28] sm:$0xf]
      %v2786 = vld [vmem:[%s2774 + $0x2c] sm:$0xf]
      %v2787 = vld [vmem:[%s2774 + $0x30] sm:$0xf]
      %v2788 = vld [vmem:[%s2774 + $0x34] sm:$0xf]
      %v2789 = vld [vmem:[%s2774 + $0x38] sm:$0xf]
      %v2790 = vld [vmem:[%s2774 + $0x3c] sm:$0xf]
      %v2791 = vld [vmem:[%s2774 + $0x40] sm:$0xf]
      %v2792 = vld [vmem:[%s2774 + $0x44] sm:$0xf]
      %v2793 = vld [vmem:[%s2774 + $0x48] sm:$0xf]
      %v2794 = vld [vmem:[%s2774 + $0x4c] sm:$0xf]
      %v2795 = vld [vmem:[%s2774 + $0x50] sm:$0xf]
      %v2796 = vld [vmem:[%s2774 + $0x54] sm:$0xf]
      %v2797 = vld [vmem:[%s2774 + $0x58] sm:$0xf]
      %v2798 = vld [vmem:[%s2774 + $0x5c] sm:$0xf]
      %v2799 = vld [vmem:[%s2774 + $0x60] sm:$0xf]
      %v2800 = vld [vmem:[%s2774 + $0x64] sm:$0xf]
      %v2801 = vld [vmem:[%s2774 + $0x68] sm:$0xf]
      %v2802 = vld [vmem:[%s2774 + $0x6c] sm:$0xf]
      %v2803 = vld [vmem:[%s2774 + $0x70] sm:$0xf]
      %v2804 = vld [vmem:[%s2774 + $0x74] sm:$0xf]
      %v2805 = vld [vmem:[%s2774 + $0x78] sm:$0xf]
      %v2806 = vld [vmem:[%s2774 + $0x7c] sm:$0xf]
      %v2807 = vld [vmem:[%s2774 + $0x80] sm:$0xf]
      %v2808 = vld [vmem:[%s2774 + $0x84] sm:$0xf]
      %v2809 = vld [vmem:[%s2774 + $0x88] sm:$0xf]
      %v2810 = vld [vmem:[%s2774 + $0x8c] sm:$0xf]
      %v2811 = vld [vmem:[%s2774 + $0x90] sm:$0xf]
      %v2812 = vld [vmem:[%s2774 + $0x94] sm:$0xf]
      %v2813 = vld [vmem:[%s2774 + $0x98] sm:$0xf]
      %v2814 = vld [vmem:[%s2774 + $0x9c] sm:$0xf]
      %v2815 = vld [vmem:[%s2774 + $0xa0] sm:$0xf]
      %v2816 = vld [vmem:[%s2774 + $0xa4] sm:$0xf]
      %v2817 = vld [vmem:[%s2774 + $0xa8] sm:$0xf]
      %v2818 = vld [vmem:[%s2774 + $0xac] sm:$0xf]
      %v2819 = vld [vmem:[%s2774 + $0xb0] sm:$0xf]
      %v2820 = vld [vmem:[%s2774 + $0xb4] sm:$0xf]
      %v2821 = vld [vmem:[%s2774 + $0xb8] sm:$0xf]
      %v2822 = vld [vmem:[%s2774 + $0xbc] sm:$0xf]
      %v2823 = vld [vmem:[%s2774 + $0xc0] sm:$0xf]
      %v2824 = vld [vmem:[%s2774 + $0xc4] sm:$0xf]
      %v2825 = vld [vmem:[%s2774 + $0xc8] sm:$0xf]
      %v2826 = vld [vmem:[%s2774 + $0xcc] sm:$0xf]
      %v2827 = vld [vmem:[%s2774 + $0xd0] sm:$0xf]
      %v2828 = vld [vmem:[%s2774 + $0xd4] sm:$0xf]
      %v2829 = vld [vmem:[%s2774 + $0xd8] sm:$0xf]
      %v2830 = vld [vmem:[%s2774 + $0xdc] sm:$0xf]
      %v2831 = vld [vmem:[%s2774 + $0xe0] sm:$0xf]
      %v2832 = vld [vmem:[%s2774 + $0xe4] sm:$0xf]
      %v2833 = vld [vmem:[%s2774 + $0xe8] sm:$0xf]
      %v2834 = vld [vmem:[%s2774 + $0xec] sm:$0xf]
      %v2835 = vld [vmem:[%s2774 + $0xf0] sm:$0xf]
      %v2836 = vld [vmem:[%s2774 + $0xf4] sm:$0xf]
      %v2837 = vld [vmem:[%s2774 + $0xf8] sm:$0xf]
      %v2838 = vld [vmem:[%s2774 + $0xfc] sm:$0xf]
      %v2839 = vld [vmem:[%s2774 + $0x100] sm:$0xf]
      %v2840 = vld [vmem:[%s2774 + $0x104] sm:$0xf]
      %v2841 = vld [vmem:[%s2774 + $0x108] sm:$0xf]
      %v2842 = vld [vmem:[%s2774 + $0x10c] sm:$0xf]
      %v2843 = vld [vmem:[%s2774 + $0x110] sm:$0xf]
      %v2844 = vld [vmem:[%s2774 + $0x114] sm:$0xf]
      %v2845 = vld [vmem:[%s2774 + $0x118] sm:$0xf]
      %v2846 = vld [vmem:[%s2774 + $0x11c] sm:$0x1]
      %v2919 = vunpack.c.l.b16 %v2775
      %v2920 = vunpack.c.l.b16 %v2776
      %v2921 = vunpack.c.l.b16 %v2777
      %v2922 = vunpack.c.l.b16 %v2778
      %v2923 = vunpack.c.l.b16 %v2779
      %v2924 = vunpack.c.l.b16 %v2780
      %v2925 = vunpack.c.l.b16 %v2781
      %v2926 = vunpack.c.l.b16 %v2782
      %v2927 = vunpack.c.l.b16 %v2783
      %v2928 = vunpack.c.l.b16 %v2784
      %v2929 = vunpack.c.l.b16 %v2785
      %v2930 = vunpack.c.l.b16 %v2786
      %v2931 = vunpack.c.l.b16 %v2787
      %v2932 = vunpack.c.l.b16 %v2788
      %v2933 = vunpack.c.l.b16 %v2789
      %v2934 = vunpack.c.l.b16 %v2790
      %v2935 = vunpack.c.l.b16 %v2791
      %v2936 = vunpack.c.l.b16 %v2792
      %v2937 = vunpack.c.l.b16 %v2793
      %v2938 = vunpack.c.l.b16 %v2794
      %v2939 = vunpack.c.l.b16 %v2795
      %v2940 = vunpack.c.l.b16 %v2796
      %v2941 = vunpack.c.l.b16 %v2797
      %v2942 = vunpack.c.l.b16 %v2798
      %v2943 = vunpack.c.l.b16 %v2799
      %v2944 = vunpack.c.l.b16 %v2800
      %v2945 = vunpack.c.l.b16 %v2801
      %v2946 = vunpack.c.l.b16 %v2802
      %v2947 = vunpack.c.l.b16 %v2803
      %v2948 = vunpack.c.l.b16 %v2804
      %v2949 = vunpack.c.l.b16 %v2805
      %v2950 = vunpack.c.l.b16 %v2806
      %v2951 = vunpack.c.l.b16 %v2807
      %v2952 = vunpack.c.l.b16 %v2808
      %v2953 = vunpack.c.l.b16 %v2809
      %v2954 = vunpack.c.l.b16 %v2810
      %v2955 = vunpack.c.l.b16 %v2811
      %v2956 = vunpack.c.l.b16 %v2812
      %v2957 = vunpack.c.l.b16 %v2813
      %v2958 = vunpack.c.l.b16 %v2814
      %v2959 = vunpack.c.l.b16 %v2815
      %v2960 = vunpack.c.l.b16 %v2816
      %v2961 = vunpack.c.l.b16 %v2817
      %v2962 = vunpack.c.l.b16 %v2818
      %v2963 = vunpack.c.l.b16 %v2819
      %v2964 = vunpack.c.l.b16 %v2820
      %v2965 = vunpack.c.l.b16 %v2821
      %v2966 = vunpack.c.l.b16 %v2822
      %v2967 = vunpack.c.l.b16 %v2823
      %v2968 = vunpack.c.l.b16 %v2824
      %v2969 = vunpack.c.l.b16 %v2825
      %v2970 = vunpack.c.l.b16 %v2826
      %v2971 = vunpack.c.l.b16 %v2827
      %v2972 = vunpack.c.l.b16 %v2828
      %v2973 = vunpack.c.l.b16 %v2829
      %v2974 = vunpack.c.l.b16 %v2830
      %v2975 = vunpack.c.l.b16 %v2831
      %v2976 = vunpack.c.l.b16 %v2832
      %v2977 = vunpack.c.l.b16 %v2833
      %v2978 = vunpack.c.l.b16 %v2834
      %v2979 = vunpack.c.l.b16 %v2835
      %v2980 = vunpack.c.l.b16 %v2836
      %v2981 = vunpack.c.l.b16 %v2837
      %v2982 = vunpack.c.l.b16 %v2838
      %v2983 = vunpack.c.l.b16 %v2839
      %v2984 = vunpack.c.l.b16 %v2840
      %v2985 = vunpack.c.l.b16 %v2841
      %v2986 = vunpack.c.l.b16 %v2842
      %v2987 = vunpack.c.l.b16 %v2843
      %v2988 = vunpack.c.l.b16 %v2844
      %v2989 = vunpack.c.l.b16 %v2845
      %v2990 = vunpack.c.l.b16 %v2846
      %v2991 = vpack.c.b16 %v2920, %v2919
      %v2992 = vpack.c.b16 %v2922, %v2921
      %v2993 = vpack.c.b16 %v2924, %v2923
      %v2994 = vpack.c.b16 %v2926, %v2925
      %v2995 = vpack.c.b16 %v2928, %v2927
      %v2996 = vpack.c.b16 %v2930, %v2929
      %v2997 = vpack.c.b16 %v2932, %v2931
      %v2998 = vpack.c.b16 %v2934, %v2933
      %v2999 = vpack.c.b16 %v2936, %v2935
      %v3000 = vpack.c.b16 %v2938, %v2937
      %v3001 = vpack.c.b16 %v2940, %v2939
      %v3002 = vpack.c.b16 %v2942, %v2941
      %v3003 = vpack.c.b16 %v2944, %v2943
      %v3004 = vpack.c.b16 %v2946, %v2945
      %v3005 = vpack.c.b16 %v2948, %v2947
      %v3006 = vpack.c.b16 %v2950, %v2949
      %v3007 = vpack.c.b16 %v2952, %v2951
      %v3008 = vpack.c.b16 %v2954, %v2953
      %v3009 = vpack.c.b16 %v2956, %v2955
      %v3010 = vpack.c.b16 %v2958, %v2957
      %v3011 = vpack.c.b16 %v2960, %v2959
      %v3012 = vpack.c.b16 %v2962, %v2961
      %v3013 = vpack.c.b16 %v2964, %v2963
      %v3014 = vpack.c.b16 %v2966, %v2965
      %v3015 = vpack.c.b16 %v2968, %v2967
      %v3016 = vpack.c.b16 %v2970, %v2969
      %v3017 = vpack.c.b16 %v2972, %v2971
      %v3018 = vpack.c.b16 %v2974, %v2973
      %v3019 = vpack.c.b16 %v2976, %v2975
      %v3020 = vpack.c.b16 %v2978, %v2977
      %v3021 = vpack.c.b16 %v2980, %v2979
      %v3022 = vpack.c.b16 %v2982, %v2981
      %v3023 = vpack.c.b16 %v2984, %v2983
      %v3024 = vpack.c.b16 %v2986, %v2985
      %v3025 = vpack.c.b16 %v2988, %v2987
      %v3026 = vpack.c.b16 %v2990, %v2989
      %v3063 = vsel %vm2154, %v2703, 0
      %v3066 = vsel %vm2154, %v2708, 0
      %v3069 = vsel %vm2154, %v2713, 0
      %v3072 = vsel %vm2154, %v2718, 0
      %v3075 = vsel %vm2154, %v2723, 0
      %v3078 = vsel %vm2154, %v2728, 0
      %v3081 = vsel %vm2154, %v2733, 0
      %v3084 = vsel %vm2154, %v2738, 0
      %v3087 = vsel %vm2154, %v2743, 0
      %v3090 = vsel %vm2154, %v2748, 0
      %v3093 = vsel %vm2154, %v2753, 0
      %v3096 = vsel %vm2154, %v2758, 0
      %v3099 = vsel %vm2154, %v2763, 0
      %v3102 = vsel %vm2154, %v2768, 0
      %v3105 = vsel %vm2154, %v2773, 0
      %v3108 = vsel %vm2200, %v3026, 0
      %3110 = vmatprep.subr.bf16.mxu0 0
      %3111 = vmatpush1.bf16.msra.mxu0 %v2991
      %3112 = vmatprep.subr.bf16.mxu0 0
      %3113 = vmatpush1.bf16.msra.mxu0 %v2992
      %3114 = vmatprep.subr.bf16.mxu0 0
      %3115 = vmatpush1.bf16.msra.mxu0 %v2993
      %3116 = vmatprep.subr.bf16.mxu0 0
      %3117 = vmatpush1.bf16.msra.mxu0 %v2994
      %3118 = vmatprep.subr.bf16.mxu0 0
      %3119 = vmatpush1.bf16.msra.mxu0 %v2995
      %3120 = vmatprep.subr.bf16.mxu0 0
      %3121 = vmatpush1.bf16.msra.mxu0 %v2996
      %3122 = vmatprep.subr.bf16.mxu0 0
      %3123 = vmatpush1.bf16.msra.mxu0 %v2997
      %3124 = vmatprep.subr.bf16.mxu0 0
      %3125 = vmatpush1.bf16.msra.mxu0 %v2998
      %3126 = vmatprep.subr.bf16.mxu0 0
      %3127 = vmatpush1.bf16.msra.mxu0 %v2999
      %3128 = vmatprep.subr.bf16.mxu0 0
      %3129 = vmatpush1.bf16.msra.mxu0 %v3000
      %3130 = vmatprep.subr.bf16.mxu0 0
      %3131 = vmatpush1.bf16.msra.mxu0 %v3001
      %3132 = vmatprep.subr.bf16.mxu0 0
      %3133 = vmatpush1.bf16.msra.mxu0 %v3002
      %3134 = vmatprep.subr.bf16.mxu0 0
      %3135 = vmatpush1.bf16.msra.mxu0 %v3003
      %3136 = vmatprep.subr.bf16.mxu0 0
      %3137 = vmatpush1.bf16.msra.mxu0 %v3004
      %3138 = vmatprep.subr.bf16.mxu0 0
      %3139 = vmatpush1.bf16.msra.mxu0 %v3005
      %3140 = vmatprep.subr.bf16.mxu0 0
      %3141 = vmatpush1.bf16.msra.mxu0 %v3006
      %3142 = vmatprep.mubr.bf16.mxu0 %v2700
      %3143 = vmatmul.mubr.bf16.gmra.mrb[0].mxu0 %v2699
      %v3144 = vpop.f32.mrb[0].mxu0
      %v3145 = vadd.f32 0.0, %v3144
      %v3146 = vpop.f32.mrb[0].mxu0
      %v3147 = vpop.f32.mrb[0].mxu0
      %v3148 = vadd.f32 0.0, %v3147
      %v3149 = vpop.f32.mrb[0].mxu0
      %3150 = vmatprep.mubr.bf16.mxu0 %v2705
      %3151 = vmatmul.mubr.bf16.gmra.mrb[0].mxu0 %v2704
      %v3152 = vpop.f32.mrb[0].mxu0
      %v3153 = vadd.f32 0.0, %v3152
      %v3154 = vpop.f32.mrb[0].mxu0
      %v3155 = vpop.f32.mrb[0].mxu0
      %v3156 = vadd.f32 0.0, %v3155
      %v3157 = vpop.f32.mrb[0].mxu0
      %3158 = vmatprep.mubr.bf16.mxu0 %v2710
      %3159 = vmatmul.mubr.bf16.gmra.mrb[0].mxu0 %v2709
      %v3160 = vpop.f32.mrb[0].mxu0
      %v3161 = vadd.f32 0.0, %v3160
      %v3162 = vpop.f32.mrb[0].mxu0
      %v3163 = vpop.f32.mrb[0].mxu0
      %v3164 = vadd.f32 0.0, %v3163
      %v3165 = vpop.f32.mrb[0].mxu0
      %3166 = vmatprep.mubr.bf16.mxu0 %v2715
      %3167 = vmatmul.mubr.bf16.gmra.mrb[0].mxu0 %v2714
      %v3168 = vpop.f32.mrb[0].mxu0
      %v3169 = vadd.f32 0.0, %v3168
      %v3170 = vpop.f32.mrb[0].mxu0
      %v3171 = vpop.f32.mrb[0].mxu0
      %v3172 = vadd.f32 0.0, %v3171
      %v3173 = vpop.f32.mrb[0].mxu0
      %3174 = vmatprep.mubr.bf16.mxu0 %v2720
      %3175 = vmatmul.mubr.bf16.gmra.mrb[0].mxu0 %v2719
      %v3176 = vpop.f32.mrb[0].mxu0
      %v3177 = vadd.f32 0.0, %v3176
      %v3178 = vpop.f32.mrb[0].mxu0
      %v3179 = vpop.f32.mrb[0].mxu0
      %v3180 = vadd.f32 0.0, %v3179
      %v3181 = vpop.f32.mrb[0].mxu0
      %3182 = vmatprep.mubr.bf16.mxu0 %v2725
      %3183 = vmatmul.mubr.bf16.gmra.mrb[0].mxu0 %v2724
      %v3184 = vpop.f32.mrb[0].mxu0
      %v3185 = vadd.f32 0.0, %v3184
      %v3186 = vpop.f32.mrb[0].mxu0
      %v3187 = vpop.f32.mrb[0].mxu0
      %v3188 = vadd.f32 0.0, %v3187
      %v3189 = vpop.f32.mrb[0].mxu0
      %3190 = vmatprep.mubr.bf16.mxu0 %v2730
      %3191 = vmatmul.mubr.bf16.gmra.mrb[0].mxu0 %v2729
      %v3192 = vpop.f32.mrb[0].mxu0
      %v3193 = vadd.f32 0.0, %v3192
      %v3194 = vpop.f32.mrb[0].mxu0
      %v3195 = vpop.f32.mrb[0].mxu0
      %v3196 = vadd.f32 0.0, %v3195
      %v3197 = vpop.f32.mrb[0].mxu0
      %3198 = vmatprep.mubr.bf16.mxu0 %v2735
      %3199 = vmatmul.mubr.bf16.gmra.mrb[0].mxu0 %v2734
      %v3200 = vpop.f32.mrb[0].mxu0
      %v3201 = vadd.f32 0.0, %v3200
      %v3202 = vpop.f32.mrb[0].mxu0
      %v3203 = vpop.f32.mrb[0].mxu0
      %v3204 = vadd.f32 0.0, %v3203
      %v3205 = vpop.f32.mrb[0].mxu0
      %3206 = vmatprep.mubr.bf16.mxu0 %v2740
      %3207 = vmatmul.mubr.bf16.gmra.mrb[0].mxu0 %v2739
      %v3208 = vpop.f32.mrb[0].mxu0
      %v3209 = vadd.f32 0.0, %v3208
      %v3210 = vpop.f32.mrb[0].mxu0
      %v3211 = vpop.f32.mrb[0].mxu0
      %v3212 = vadd.f32 0.0, %v3211
      %v3213 = vpop.f32.mrb[0].mxu0
      %3214 = vmatprep.mubr.bf16.mxu0 %v2745
      %3215 = vmatmul.mubr.bf16.gmra.mrb[0].mxu0 %v2744
      %v3216 = vpop.f32.mrb[0].mxu0
      %v3217 = vadd.f32 0.0, %v3216
      %v3218 = vpop.f32.mrb[0].mxu0
      %v3219 = vpop.f32.mrb[0].mxu0
      %v3220 = vadd.f32 0.0, %v3219
      %v3221 = vpop.f32.mrb[0].mxu0
      %3222 = vmatprep.mubr.bf16.mxu0 %v2750
      %3223 = vmatmul.mubr.bf16.gmra.mrb[0].mxu0 %v2749
      %v3224 = vpop.f32.mrb[0].mxu0
      %v3225 = vadd.f32 0.0, %v3224
      %v3226 = vpop.f32.mrb[0].mxu0
      %v3227 = vpop.f32.mrb[0].mxu0
      %v3228 = vadd.f32 0.0, %v3227
      %v3229 = vpop.f32.mrb[0].mxu0
      %3230 = vmatprep.mubr.bf16.mxu0 %v2755
      %3231 = vmatmul.mubr.bf16.gmra.mrb[0].mxu0 %v2754
      %v3232 = vpop.f32.mrb[0].mxu0
      %v3233 = vadd.f32 0.0, %v3232
      %v3234 = vpop.f32.mrb[0].mxu0
      %v3235 = vpop.f32.mrb[0].mxu0
      %v3236 = vadd.f32 0.0, %v3235
      %v3237 = vpop.f32.mrb[0].mxu0
      %3238 = vmatprep.mubr.bf16.mxu0 %v2760
      %3239 = vmatmul.mubr.bf16.gmra.mrb[0].mxu0 %v2759
      %v3240 = vpop.f32.mrb[0].mxu0
      %v3241 = vadd.f32 0.0, %v3240
      %v3242 = vpop.f32.mrb[0].mxu0
      %v3243 = vpop.f32.mrb[0].mxu0
      %v3244 = vadd.f32 0.0, %v3243
      %v3245 = vpop.f32.mrb[0].mxu0
      %3246 = vmatprep.mubr.bf16.mxu0 %v2765
      %3247 = vmatmul.mubr.bf16.gmra.mrb[0].mxu0 %v2764
      %v3248 = vpop.f32.mrb[0].mxu0
      %v3249 = vadd.f32 0.0, %v3248
      %v3250 = vpop.f32.mrb[0].mxu0
      %v3251 = vpop.f32.mrb[0].mxu0
      %v3252 = vadd.f32 0.0, %v3251
      %v3253 = vpop.f32.mrb[0].mxu0
      %3254 = vmatprep.mubr.bf16.mxu0 %v2770
      %3255 = vmatmul.mubr.bf16.gmra.mrb[0].mxu0 %v2769
      %v3256 = vpop.f32.mrb[0].mxu0
      %v3257 = vadd.f32 0.0, %v3256
      %v3258 = vpop.f32.mrb[0].mxu0
      %v3259 = vpop.f32.mrb[0].mxu0
      %v3260 = vadd.f32 0.0, %v3259
      %v3261 = vpop.f32.mrb[0].mxu0
      %3262 = vdwg.mxu0
      %3263 = vmatprep.subr.bf16.mxu0 0
      %3264 = vmatpush1.bf16.msra.mxu0 %v3007
      %3265 = vmatprep.subr.bf16.mxu0 0
      %3266 = vmatpush1.bf16.msra.mxu0 %v3008
      %3267 = vmatprep.subr.bf16.mxu0 0
      %3268 = vmatpush1.bf16.msra.mxu0 %v3009
      %3269 = vmatprep.subr.bf16.mxu0 0
      %3270 = vmatpush1.bf16.msra.mxu0 %v3010
      %3271 = vmatprep.subr.bf16.mxu0 0
      %3272 = vmatpush1.bf16.msra.mxu0 %v3011
      %3273 = vmatprep.subr.bf16.mxu0 0
      %3274 = vmatpush1.bf16.msra.mxu0 %v3012
      %3275 = vmatprep.subr.bf16.mxu0 0
      %3276 = vmatpush1.bf16.msra.mxu0 %v3013
      %3277 = vmatprep.subr.bf16.mxu0 0
      %3278 = vmatpush1.bf16.msra.mxu0 %v3014
      %3279 = vmatprep.subr.bf16.mxu0 0
      %3280 = vmatpush1.bf16.msra.mxu0 %v3015
      %3281 = vmatprep.subr.bf16.mxu0 0
      %3282 = vmatpush1.bf16.msra.mxu0 %v3016
      %3283 = vmatprep.subr.bf16.mxu0 0
      %3284 = vmatpush1.bf16.msra.mxu0 %v3017
      %3285 = vmatprep.subr.bf16.mxu0 0
      %3286 = vmatpush1.bf16.msra.mxu0 %v3018
      %3287 = vmatprep.subr.bf16.mxu0 0
      %3288 = vmatpush1.bf16.msra.mxu0 %v3019
      %3289 = vmatprep.subr.bf16.mxu0 0
      %3290 = vmatpush1.bf16.msra.mxu0 %v3020
      %3291 = vmatprep.subr.bf16.mxu0 0
      %3292 = vmatpush1.bf16.msra.mxu0 %v3021
      %3293 = vmatprep.subr.bf16.mxu0 0
      %3294 = vmatpush1.bf16.msra.mxu0 %v3022
      %3295 = vmatprep.mubr.bf16.mxu0 %v2702
      %3296 = vmatmul.mubr.bf16.gmra.mrb[0].mxu0 %v2701
      %v3297 = vpop.f32.mrb[0].mxu0
      %v3298 = vadd.f32 %v3145, %v3297
      %v3299 = vpop.f32.mrb[0].mxu0
      %v3300 = vpop.f32.mrb[0].mxu0
      %v3301 = vadd.f32 %v3148, %v3300
      %v3302 = vpop.f32.mrb[0].mxu0
      %3303 = vmatprep.mubr.bf16.mxu0 %v2707
      %3304 = vmatmul.mubr.bf16.gmra.mrb[0].mxu0 %v2706
      %v3305 = vpop.f32.mrb[0].mxu0
      %v3306 = vadd.f32 %v3153, %v3305
      %v3307 = vpop.f32.mrb[0].mxu0
      %v3308 = vpop.f32.mrb[0].mxu0
      %v3309 = vadd.f32 %v3156, %v3308
      %v3310 = vpop.f32.mrb[0].mxu0
      %3311 = vmatprep.mubr.bf16.mxu0 %v2712
      %3312 = vmatmul.mubr.bf16.gmra.mrb[0].mxu0 %v2711
      %v3313 = vpop.f32.mrb[0].mxu0
      %v3314 = vadd.f32 %v3161, %v3313
      %v3315 = vpop.f32.mrb[0].mxu0
      %v3316 = vpop.f32.mrb[0].mxu0
      %v3317 = vadd.f32 %v3164, %v3316
      %v3318 = vpop.f32.mrb[0].mxu0
      %3319 = vmatprep.mubr.bf16.mxu0 %v2717
      %3320 = vmatmul.mubr.bf16.gmra.mrb[0].mxu0 %v2716
      %v3321 = vpop.f32.mrb[0].mxu0
      %v3322 = vadd.f32 %v3169, %v3321
      %v3323 = vpop.f32.mrb[0].mxu0
      %v3324 = vpop.f32.mrb[0].mxu0
      %v3325 = vadd.f32 %v3172, %v3324
      %v3326 = vpop.f32.mrb[0].mxu0
      %3327 = vmatprep.mubr.bf16.mxu0 %v2722
      %3328 = vmatmul.mubr.bf16.gmra.mrb[0].mxu0 %v2721
      %v3329 = vpop.f32.mrb[0].mxu0
      %v3330 = vadd.f32 %v3177, %v3329
      %v3331 = vpop.f32.mrb[0].mxu0
      %v3332 = vpop.f32.mrb[0].mxu0
      %v3333 = vadd.f32 %v3180, %v3332
      %v3334 = vpop.f32.mrb[0].mxu0
      %3335 = vmatprep.mubr.bf16.mxu0 %v2727
      %3336 = vmatmul.mubr.bf16.gmra.mrb[0].mxu0 %v2726
      %v3337 = vpop.f32.mrb[0].mxu0
      %v3338 = vadd.f32 %v3185, %v3337
      %v3339 = vpop.f32.mrb[0].mxu0
      %v3340 = vpop.f32.mrb[0].mxu0
      %v3341 = vadd.f32 %v3188, %v3340
      %v3342 = vpop.f32.mrb[0].mxu0
      %3343 = vmatprep.mubr.bf16.mxu0 %v2732
      %3344 = vmatmul.mubr.bf16.gmra.mrb[0].mxu0 %v2731
      %v3345 = vpop.f32.mrb[0].mxu0
      %v3346 = vadd.f32 %v3193, %v3345
      %v3347 = vpop.f32.mrb[0].mxu0
      %v3348 = vpop.f32.mrb[0].mxu0
      %v3349 = vadd.f32 %v3196, %v3348
      %v3350 = vpop.f32.mrb[0].mxu0
      %3351 = vmatprep.mubr.bf16.mxu0 %v2737
      %3352 = vmatmul.mubr.bf16.gmra.mrb[0].mxu0 %v2736
      %v3353 = vpop.f32.mrb[0].mxu0
      %v3354 = vadd.f32 %v3201, %v3353
      %v3355 = vpop.f32.mrb[0].mxu0
      %v3356 = vpop.f32.mrb[0].mxu0
      %v3357 = vadd.f32 %v3204, %v3356
      %v3358 = vpop.f32.mrb[0].mxu0
      %3359 = vmatprep.mubr.bf16.mxu0 %v2742
      %3360 = vmatmul.mubr.bf16.gmra.mrb[0].mxu0 %v2741
      %v3361 = vpop.f32.mrb[0].mxu0
      %v3362 = vadd.f32 %v3209, %v3361
      %v3363 = vpop.f32.mrb[0].mxu0
      %v3364 = vpop.f32.mrb[0].mxu0
      %v3365 = vadd.f32 %v3212, %v3364
      %v3366 = vpop.f32.mrb[0].mxu0
      %3367 = vmatprep.mubr.bf16.mxu0 %v2747
      %3368 = vmatmul.mubr.bf16.gmra.mrb[0].mxu0 %v2746
      %v3369 = vpop.f32.mrb[0].mxu0
      %v3370 = vadd.f32 %v3217, %v3369
      %v3371 = vpop.f32.mrb[0].mxu0
      %v3372 = vpop.f32.mrb[0].mxu0
      %v3373 = vadd.f32 %v3220, %v3372
      %v3374 = vpop.f32.mrb[0].mxu0
      %3375 = vmatprep.mubr.bf16.mxu0 %v2752
      %3376 = vmatmul.mubr.bf16.gmra.mrb[0].mxu0 %v2751
      %v3377 = vpop.f32.mrb[0].mxu0
      %v3378 = vadd.f32 %v3225, %v3377
      %v3379 = vpop.f32.mrb[0].mxu0
      %v3380 = vpop.f32.mrb[0].mxu0
      %v3381 = vadd.f32 %v3228, %v3380
      %v3382 = vpop.f32.mrb[0].mxu0
      %3383 = vmatprep.mubr.bf16.mxu0 %v2757
      %3384 = vmatmul.mubr.bf16.gmra.mrb[0].mxu0 %v2756
      %v3385 = vpop.f32.mrb[0].mxu0
      %v3386 = vadd.f32 %v3233, %v3385
      %v3387 = vpop.f32.mrb[0].mxu0
      %v3388 = vpop.f32.mrb[0].mxu0
      %v3389 = vadd.f32 %v3236, %v3388
      %v3390 = vpop.f32.mrb[0].mxu0
      %3391 = vmatprep.mubr.bf16.mxu0 %v2762
      %3392 = vmatmul.mubr.bf16.gmra.mrb[0].mxu0 %v2761
      %v3393 = vpop.f32.mrb[0].mxu0
      %v3394 = vadd.f32 %v3241, %v3393
      %v3395 = vpop.f32.mrb[0].mxu0
      %v3396 = vpop.f32.mrb[0].mxu0
      %v3397 = vadd.f32 %v3244, %v3396
      %v3398 = vpop.f32.mrb[0].mxu0
      %3399 = vmatprep.mubr.bf16.mxu0 %v2767
      %3400 = vmatmul.mubr.bf16.gmra.mrb[0].mxu0 %v2766
      %v3401 = vpop.f32.mrb[0].mxu0
      %v3402 = vadd.f32 %v3249, %v3401
      %v3403 = vpop.f32.mrb[0].mxu0
      %v3404 = vpop.f32.mrb[0].mxu0
      %v3405 = vadd.f32 %v3252, %v3404
      %v3406 = vpop.f32.mrb[0].mxu0
      %3407 = vmatprep.mubr.bf16.mxu0 %v2772
      %3408 = vmatmul.mubr.bf16.gmra.mrb[0].mxu0 %v2771
      %v3409 = vpop.f32.mrb[0].mxu0
      %v3410 = vadd.f32 %v3257, %v3409
      %v3411 = vpop.f32.mrb[0].mxu0
      %v3412 = vpop.f32.mrb[0].mxu0
      %v3413 = vadd.f32 %v3260, %v3412
      %v3414 = vpop.f32.mrb[0].mxu0
      %3415 = vdwg.mxu0
      %3416 = vmatprep.subr.bf16.mxu0 0
      %3417 = vmatpush1.bf16.msra.mxu0 %v3023
      %3418 = vmatprep.subr.bf16.mxu0 0
      %3419 = vmatpush1.bf16.msra.mxu0 %v3024
      %3420 = vmatprep.subr.bf16.mxu0 0
      %3421 = vmatpush1.bf16.msra.mxu0 %v3025
      %3422 = vmatprep.subr.bf16.mxu0 0
      %3423 = vmatpush1.bf16.msra.mxu0 %v3108
      %3424 = vmatprep.subr.bf16.mxu0 0
      %3425 = vmatpush1.bf16.msra.mxu0 0
      %3426 = vmatprep.subr.bf16.mxu0 0
      %3427 = vmatpush1.bf16.msra.mxu0 0
      %3428 = vmatprep.subr.bf16.mxu0 0
      %3429 = vmatpush1.bf16.msra.mxu0 0
      %3430 = vmatprep.subr.bf16.mxu0 0
      %3431 = vmatpush1.bf16.msra.mxu0 0
      %3432 = vmatprep.subr.bf16.mxu0 0
      %3433 = vmatpush1.bf16.msra.mxu0 0
      %3434 = vmatprep.subr.bf16.mxu0 0
      %3435 = vmatpush1.bf16.msra.mxu0 0
      %3436 = vmatprep.subr.bf16.mxu0 0
      %3437 = vmatpush1.bf16.msra.mxu0 0
      %3438 = vmatprep.subr.bf16.mxu0 0
      %3439 = vmatpush1.bf16.msra.mxu0 0
      %3440 = vmatprep.subr.bf16.mxu0 0
      %3441 = vmatpush1.bf16.msra.mxu0 0
      %3442 = vmatprep.subr.bf16.mxu0 0
      %3443 = vmatpush1.bf16.msra.mxu0 0
      %3444 = vmatprep.subr.bf16.mxu0 0
      %3445 = vmatpush1.bf16.msra.mxu0 0
      %3446 = vmatprep.subr.bf16.mxu0 0
      %3447 = vmatpush1.bf16.msra.mxu0 0
      %3448 = vmatprep.mubr.bf16.mxu0 0
      %3449 = vmatmul.mubr.bf16.gmra.mrb[0].mxu0 %v3063
      %v3450 = vpop.f32.mrb[0].mxu0
      %v3451 = vadd.f32 %v3298, %v3450
      %v3452 = vpop.f32.mrb[0].mxu0
      %v3453 = vpop.f32.mrb[0].mxu0
      %v3454 = vadd.f32 %v3301, %v3453
      %v3455 = vpop.f32.mrb[0].mxu0
      %3456 = vmatprep.mubr.bf16.mxu0 0
      %3457 = vmatmul.mubr.bf16.gmra.mrb[0].mxu0 %v3066
      %v3458 = vpop.f32.mrb[0].mxu0
      %v3459 = vadd.f32 %v3306, %v3458
      %v3460 = vpop.f32.mrb[0].mxu0
      %v3461 = vpop.f32.mrb[0].mxu0
      %v3462 = vadd.f32 %v3309, %v3461
      %v3463 = vpop.f32.mrb[0].mxu0
      %3464 = vmatprep.mubr.bf16.mxu0 0
      %3465 = vmatmul.mubr.bf16.gmra.mrb[0].mxu0 %v3069
      %v3466 = vpop.f32.mrb[0].mxu0
      %v3467 = vadd.f32 %v3314, %v3466
      %v3468 = vpop.f32.mrb[0].mxu0
      %v3469 = vpop.f32.mrb[0].mxu0
      %v3470 = vadd.f32 %v3317, %v3469
      %v3471 = vpop.f32.mrb[0].mxu0
      %3472 = vmatprep.mubr.bf16.mxu0 0
      %3473 = vmatmul.mubr.bf16.gmra.mrb[0].mxu0 %v3072
      %v3474 = vpop.f32.mrb[0].mxu0
      %v3475 = vadd.f32 %v3322, %v3474
      %v3476 = vpop.f32.mrb[0].mxu0
      %v3477 = vpop.f32.mrb[0].mxu0
      %v3478 = vadd.f32 %v3325, %v3477
      %v3479 = vpop.f32.mrb[0].mxu0
      %3480 = vmatprep.mubr.bf16.mxu0 0
      %3481 = vmatmul.mubr.bf16.gmra.mrb[0].mxu0 %v3075
      %v3482 = vpop.f32.mrb[0].mxu0
      %v3483 = vadd.f32 %v3330, %v3482
      %v3484 = vpop.f32.mrb[0].mxu0
      %v3485 = vpop.f32.mrb[0].mxu0
      %v3486 = vadd.f32 %v3333, %v3485
      %v3487 = vpop.f32.mrb[0].mxu0
      %3488 = vmatprep.mubr.bf16.mxu0 0
      %3489 = vmatmul.mubr.bf16.gmra.mrb[0].mxu0 %v3078
      %v3490 = vpop.f32.mrb[0].mxu0
      %v3491 = vadd.f32 %v3338, %v3490
      %v3492 = vpop.f32.mrb[0].mxu0
      %v3493 = vpop.f32.mrb[0].mxu0
      %v3494 = vadd.f32 %v3341, %v3493
      %v3495 = vpop.f32.mrb[0].mxu0
      %3496 = vmatprep.mubr.bf16.mxu0 0
      %3497 = vmatmul.mubr.bf16.gmra.mrb[0].mxu0 %v3081
      %v3498 = vpop.f32.mrb[0].mxu0
      %v3499 = vadd.f32 %v3346, %v3498
      %v3500 = vpop.f32.mrb[0].mxu0
      %v3501 = vpop.f32.mrb[0].mxu0
      %v3502 = vadd.f32 %v3349, %v3501
      %v3503 = vpop.f32.mrb[0].mxu0
      %3504 = vmatprep.mubr.bf16.mxu0 0
      %3505 = vmatmul.mubr.bf16.gmra.mrb[0].mxu0 %v3084
      %v3506 = vpop.f32.mrb[0].mxu0
      %v3507 = vadd.f32 %v3354, %v3506
      %v3508 = vpop.f32.mrb[0].mxu0
      %v3509 = vpop.f32.mrb[0].mxu0
      %v3510 = vadd.f32 %v3357, %v3509
      %v3511 = vpop.f32.mrb[0].mxu0
      %3512 = vmatprep.mubr.bf16.mxu0 0
      %3513 = vmatmul.mubr.bf16.gmra.mrb[0].mxu0 %v3087
      %v3514 = vpop.f32.mrb[0].mxu0
      %v3515 = vadd.f32 %v3362, %v3514
      %v3516 = vpop.f32.mrb[0].mxu0
      %v3517 = vpop.f32.mrb[0].mxu0
      %v3518 = vadd.f32 %v3365, %v3517
      %v3519 = vpop.f32.mrb[0].mxu0
      %3520 = vmatprep.mubr.bf16.mxu0 0
      %3521 = vmatmul.mubr.bf16.gmra.mrb[0].mxu0 %v3090
      %v3522 = vpop.f32.mrb[0].mxu0
      %v3523 = vadd.f32 %v3370, %v3522
      %v3524 = vpop.f32.mrb[0].mxu0
      %v3525 = vpop.f32.mrb[0].mxu0
      %v3526 = vadd.f32 %v3373, %v3525
      %v3527 = vpop.f32.mrb[0].mxu0
      %3528 = vmatprep.mubr.bf16.mxu0 0
      %3529 = vmatmul.mubr.bf16.gmra.mrb[0].mxu0 %v3093
      %v3530 = vpop.f32.mrb[0].mxu0
      %v3531 = vadd.f32 %v3378, %v3530
      %v3532 = vpop.f32.mrb[0].mxu0
      %v3533 = vpop.f32.mrb[0].mxu0
      %v3534 = vadd.f32 %v3381, %v3533
      %v3535 = vpop.f32.mrb[0].mxu0
      %3536 = vmatprep.mubr.bf16.mxu0 0
      %3537 = vmatmul.mubr.bf16.gmra.mrb[0].mxu0 %v3096
      %v3538 = vpop.f32.mrb[0].mxu0
      %v3539 = vadd.f32 %v3386, %v3538
      %v3540 = vpop.f32.mrb[0].mxu0
      %v3541 = vpop.f32.mrb[0].mxu0
      %v3542 = vadd.f32 %v3389, %v3541
      %v3543 = vpop.f32.mrb[0].mxu0
      %3544 = vmatprep.mubr.bf16.mxu0 0
      %3545 = vmatmul.mubr.bf16.gmra.mrb[0].mxu0 %v3099
      %v3546 = vpop.f32.mrb[0].mxu0
      %v3547 = vadd.f32 %v3394, %v3546
      %v3548 = vpop.f32.mrb[0].mxu0
      %v3549 = vpop.f32.mrb[0].mxu0
      %v3550 = vadd.f32 %v3397, %v3549
      %v3551 = vpop.f32.mrb[0].mxu0
      %3552 = vmatprep.mubr.bf16.mxu0 0
      %3553 = vmatmul.mubr.bf16.gmra.mrb[0].mxu0 %v3102
      %v3554 = vpop.f32.mrb[0].mxu0
      %v3555 = vadd.f32 %v3402, %v3554
      %v3556 = vpop.f32.mrb[0].mxu0
      %v3557 = vpop.f32.mrb[0].mxu0
      %v3558 = vadd.f32 %v3405, %v3557
      %v3559 = vpop.f32.mrb[0].mxu0
      %3560 = vmatprep.mubr.bf16.mxu0 0
      %3561 = vmatmul.mubr.bf16.gmra.mrb[0].mxu0 %v3105
      %v3562 = vpop.f32.mrb[0].mxu0
      %v3563 = vadd.f32 %v3410, %v3562
      %v3564 = vpop.f32.mrb[0].mxu0
      %v3565 = vpop.f32.mrb[0].mxu0
      %v3566 = vadd.f32 %v3413, %v3565
      %v3567 = vpop.f32.mrb[0].mxu0
      %3568 = vdwg.mxu0
      %v3569 = vadd.f32 %v2669, %v3451
      %v3570 = vadd.f32 %v2670, %v3454
      %v3571 = vadd.f32 %v2671, %v3459
      %v3572 = vadd.f32 %v2672, %v3462
      %v3573 = vadd.f32 %v2673, %v3467
      %v3574 = vadd.f32 %v2674, %v3470
      %v3575 = vadd.f32 %v2675, %v3475
      %v3576 = vadd.f32 %v2676, %v3478
      %v3577 = vadd.f32 %v2677, %v3483
      %v3578 = vadd.f32 %v2678, %v3486
      %v3579 = vadd.f32 %v2679, %v3491
      %v3580 = vadd.f32 %v2680, %v3494
      %v3581 = vadd.f32 %v2681, %v3499
      %v3582 = vadd.f32 %v2682, %v3502
      %v3583 = vadd.f32 %v2683, %v3507
      %v3584 = vadd.f32 %v2684, %v3510
      %v3585 = vadd.f32 %v2685, %v3515
      %v3586 = vadd.f32 %v2686, %v3518
      %v3587 = vadd.f32 %v2687, %v3523
      %v3588 = vadd.f32 %v2688, %v3526
      %v3589 = vadd.f32 %v2689, %v3531
      %v3590 = vadd.f32 %v2690, %v3534
      %v3591 = vadd.f32 %v2691, %v3539
      %v3592 = vadd.f32 %v2692, %v3542
      %v3593 = vadd.f32 %v2693, %v3547
      %v3594 = vadd.f32 %v2694, %v3550
      %v3595 = vadd.f32 %v2695, %v3555
      %v3596 = vadd.f32 %v2696, %v3558
      %v3597 = vadd.f32 %v2697, %v3563
      %v3598 = vadd.f32 %v2698, %v3566
      %v3599 = vrot.slane %v499, 1
      %v3600 = vrot.slane %v500, 1
      %v3601 = vrot.slane %v501, 1
      %v3602 = vrot.slane %v502, 1
      %v3603 = vrot.slane %v503, 1
      %v3604 = vrot.slane %v504, 1
      %v3605 = vrot.slane %v505, 1
      %v3606 = vrot.slane %v506, 1
      %v3607 = vrot.slane %v507, 1
      %v3608 = vrot.slane %v508, 1
      %v3609 = vrot.slane %v509, 1
      %v3610 = vrot.slane %v510, 1
      %v3611 = vrot.slane %v511, 1
      %v3612 = vrot.slane %v512, 1
      %v3613 = vrot.slane %v513, 1
      %v3614 = vrot.slane %v514, 1
      %v3615 = vrot.slane %v515, 1
      %v3616 = vrot.slane %v516, 1
      %v3617 = vrot.slane %v517, 1
      %v3618 = vrot.slane %v518, 1
      %v3619 = vrot.slane %v519, 1
      %v3620 = vrot.slane %v520, 1
      %v3621 = vrot.slane %v521, 1
      %v3622 = vrot.slane %v522, 1
      %v3623 = vrot.slane %v523, 1
      %v3624 = vrot.slane %v524, 1
      %v3625 = vrot.slane %v525, 1
      %v3626 = vrot.slane %v526, 1
      %v3627 = vrot.slane %v527, 1
      %v3628 = vrot.slane %v528, 1
      %v3629 = vrot.slane %v529, 1
      %v3630 = vrot.slane %v530, 1
      %v3631 = vrot.slane %v531, 1
      %v3632 = vrot.slane %v532, 1
      %v3633 = vrot.slane %v533, 1
      %v3634 = vrot.slane %v534, 1
      %v3635 = vrot.slane %v535, 1
      %v3636 = vrot.slane %v536, 1
      %v3637 = vrot.slane %v537, 1
      %v3638 = vrot.slane %v538, 1
      %v3639 = vrot.slane %v539, 1
      %v3640 = vrot.slane %v540, 1
      %v3641 = vrot.slane %v541, 1
      %v3642 = vrot.slane %v542, 1
      %v3643 = vrot.slane %v543, 1
      %v3644 = vrot.slane %v544, 1
      %v3645 = vrot.slane %v545, 1
      %v3646 = vrot.slane %v546, 1
      %v3647 = vrot.slane %v547, 1
      %v3648 = vrot.slane %v548, 1
      %v3649 = vrot.slane %v549, 1
      %v3650 = vrot.slane %v550, 1
      %v3651 = vrot.slane %v551, 1
      %v3652 = vrot.slane %v552, 1
      %v3653 = vrot.slane %v553, 1
      %v3654 = vrot.slane %v554, 1
      %v3655 = vrot.slane %v555, 1
      %v3656 = vrot.slane %v556, 1
      %v3657 = vrot.slane %v557, 1
      %v3658 = vrot.slane %v558, 1
      %v3659 = vrot.slane %v559, 1
      %v3660 = vrot.slane %v560, 1
      %v3661 = vrot.slane %v561, 1
      %v3662 = vrot.slane %v562, 1
      %v3663 = vrot.slane %v563, 1
      %v3664 = vrot.slane %v564, 1
      %v3665 = vrot.slane %v565, 1
      %v3666 = vrot.slane %v566, 1
      %v3667 = vrot.slane %v567, 1
      %v3668 = vrot.slane %v568, 1
      %v3669 = vrot.slane %v569, 1
      %v3670 = vrot.slane %v570, 1
      %v3671 = vrot.slane %v571, 1
      %v3672 = vrot.slane %v572, 1
      %v3673 = vrot.slane %v573, 1
      %v3674 = vrot.slane %v574, 1
      %v3675 = vrot.slane %v575, 1
      %v3676 = vrot.slane %v576, 1
      %v3677 = vrot.slane %v577, 1
      %v3678 = vrot.slane %v578, 1
      %v3679 = vrot.slane %v579, 1
      %v3680 = vrot.slane %v580, 1
      %v3681 = vrot.slane %v581, 1
      %v3682 = vrot.slane %v582, 1
      %v3683 = vrot.slane %v583, 1
      %v3684 = vrot.slane %v584, 1
      %v3685 = vrot.slane %v585, 1
      %v3686 = vrot.slane %v586, 1
      %v3687 = vrot.slane %v587, 1
      %v3688 = vrot.slane %v588, 1
      %v3689 = vrot.slane %v589, 1
      %v3690 = vrot.slane %v590, 1
      %v3691 = vrot.slane %v591, 1
      %v3692 = vrot.slane %v592, 1
      %v3693 = vrot.slane %v593, 1
      %v3694 = vrot.slane %v594, 1
      %v3695 = vrot.slane %v595, 1
      %v3696 = vrot.slane %v596, 1
      %v3697 = vrot.slane %v597, 1
      %v3698 = vrot.slane %v598, 1
      %v3699 = vrot.slane %v599, 1
      %v3700 = vrot.slane %v600, 1
      %v3701 = vrot.slane %v601, 1
      %v3702 = vrot.slane %v602, 1
      %v3703 = vrot.slane %v603, 1
      %v3704 = vrot.slane %v604, 1
      %v3705 = vrot.slane %v605, 1
      %v3706 = vrot.slane %v606, 1
      %v3707 = vrot.slane %v607, 1
      %v3708 = vrot.slane %v608, 1
      %v3709 = vrot.slane %v609, 1
      %v3710 = vrot.slane %v610, 1
      %v3711 = vrot.slane %v611, 1
      %v3712 = vrot.slane %v612, 1
      %v3713 = vrot.slane %v613, 1
      %v3714 = vrot.slane %v614, 1
      %v3715 = vrot.slane %v615, 1
      %v3716 = vrot.slane %v616, 1
      %v3717 = vrot.slane %v617, 1
      %v3718 = vrot.slane %v618, 1
      %v3719 = vrot.slane %v619, 1
      %v3720 = vrot.slane %v620, 1
      %v3721 = vrot.slane %v621, 1
      %v3722 = vrot.slane %v622, 1
      %v3723 = vrot.slane %v623, 1
      %v3724 = vrot.slane %v624, 1
      %v3725 = vrot.slane %v625, 1
      %v3726 = vrot.slane %v626, 1
      %v3727 = vrot.slane %v627, 1
      %v3728 = vrot.slane %v628, 1
      %v3729 = vrot.slane %v629, 1
      %v3730 = vrot.slane %v630, 1
      %v3731 = vrot.slane %v631, 1
      %v3732 = vrot.slane %v632, 1
      %v3733 = vrot.slane %v633, 1
      %v3734 = vrot.slane %v634, 1
      %v3735 = vrot.slane %v635, 1
      %v3736 = vrot.slane %v636, 1
      %v3737 = vrot.slane %v637, 1
      %v3738 = vrot.slane %v638, 1
      %v3739 = vrot.slane %v639, 1
      %v3740 = vrot.slane %v640, 1
      %v3741 = vrot.slane %v641, 1
      %v3742 = vrot.slane %v642, 1
      %v3743 = vrot.slane %v643, 1
      %v3744 = vrot.slane %v644, 1
      %v3745 = vrot.slane %v645, 1
      %v3746 = vrot.slane %v646, 1
      %v3747 = vrot.slane %v647, 1
      %v3748 = vrot.slane %v648, 1
      %vm3749 = vcmp.lt.s32.totalorder %v650, 7
      %v3750 = vsel %vm3749, %v3739, %v3744
      %v3751 = vsel %vm3749, %v3740, %v3745
      %v3752 = vsel %vm3749, %v3741, %v3746
      %v3753 = vsel %vm3749, %v3742, %v3747
      %v3754 = vsel %vm3749, %v3743, %v3748
      %v3755 = vsel %vm3749, %v3734, %v3739
      %v3756 = vsel %vm3749, %v3735, %v3740
      %v3757 = vsel %vm3749, %v3736, %v3741
      %v3758 = vsel %vm3749, %v3737, %v3742
      %v3759 = vsel %vm3749, %v3738, %v3743
      %v3760 = vsel %vm3749, %v3729, %v3734
      %v3761 = vsel %vm3749, %v3730, %v3735
      %v3762 = vsel %vm3749, %v3731, %v3736
      %v3763 = vsel %vm3749, %v3732, %v3737
      %v3764 = vsel %vm3749, %v3733, %v3738
      %v3765 = vsel %vm3749, %v3724, %v3729
      %v3766 = vsel %vm3749, %v3725, %v3730
      %v3767 = vsel %vm3749, %v3726, %v3731
      %v3768 = vsel %vm3749, %v3727, %v3732
      %v3769 = vsel %vm3749, %v3728, %v3733
      %v3770 = vsel %vm3749, %v3719, %v3724
      %v3771 = vsel %vm3749, %v3720, %v3725
      %v3772 = vsel %vm3749, %v3721, %v3726
      %v3773 = vsel %vm3749, %v3722, %v3727
      %v3774 = vsel %vm3749, %v3723, %v3728
      %v3775 = vsel %vm3749, %v3714, %v3719
      %v3776 = vsel %vm3749, %v3715, %v3720
      %v3777 = vsel %vm3749, %v3716, %v3721
      %v3778 = vsel %vm3749, %v3717, %v3722
      %v3779 = vsel %vm3749, %v3718, %v3723
      %v3780 = vsel %vm3749, %v3709, %v3714
      %v3781 = vsel %vm3749, %v3710, %v3715
      %v3782 = vsel %vm3749, %v3711, %v3716
      %v3783 = vsel %vm3749, %v3712, %v3717
      %v3784 = vsel %vm3749, %v3713, %v3718
      %v3785 = vsel %vm3749, %v3704, %v3709
      %v3786 = vsel %vm3749, %v3705, %v3710
      %v3787 = vsel %vm3749, %v3706, %v3711
      %v3788 = vsel %vm3749, %v3707, %v3712
      %v3789 = vsel %vm3749, %v3708, %v3713
      %v3790 = vsel %vm3749, %v3699, %v3704
      %v3791 = vsel %vm3749, %v3700, %v3705
      %v3792 = vsel %vm3749, %v3701, %v3706
      %v3793 = vsel %vm3749, %v3702, %v3707
      %v3794 = vsel %vm3749, %v3703, %v3708
      %v3795 = vsel %vm3749, %v3694, %v3699
      %v3796 = vsel %vm3749, %v3695, %v3700
      %v3797 = vsel %vm3749, %v3696, %v3701
      %v3798 = vsel %vm3749, %v3697, %v3702
      %v3799 = vsel %vm3749, %v3698, %v3703
      %v3800 = vsel %vm3749, %v3689, %v3694
      %v3801 = vsel %vm3749, %v3690, %v3695
      %v3802 = vsel %vm3749, %v3691, %v3696
      %v3803 = vsel %vm3749, %v3692, %v3697
      %v3804 = vsel %vm3749, %v3693, %v3698
      %v3805 = vsel %vm3749, %v3684, %v3689
      %v3806 = vsel %vm3749, %v3685, %v3690
      %v3807 = vsel %vm3749, %v3686, %v3691
      %v3808 = vsel %vm3749, %v3687, %v3692
      %v3809 = vsel %vm3749, %v3688, %v3693
      %v3810 = vsel %vm3749, %v3679, %v3684
      %v3811 = vsel %vm3749, %v3680, %v3685
      %v3812 = vsel %vm3749, %v3681, %v3686
      %v3813 = vsel %vm3749, %v3682, %v3687
      %v3814 = vsel %vm3749, %v3683, %v3688
      %v3815 = vsel %vm3749, %v3674, %v3679
      %v3816 = vsel %vm3749, %v3675, %v3680
      %v3817 = vsel %vm3749, %v3676, %v3681
      %v3818 = vsel %vm3749, %v3677, %v3682
      %v3819 = vsel %vm3749, %v3678, %v3683
      %v3820 = vsel %vm3749, %v3669, %v3674
      %v3821 = vsel %vm3749, %v3670, %v3675
      %v3822 = vsel %vm3749, %v3671, %v3676
      %v3823 = vsel %vm3749, %v3672, %v3677
      %v3824 = vsel %vm3749, %v3673, %v3678
      %v3825 = vsel %vm3749, %v3664, %v3669
      %v3826 = vsel %vm3749, %v3665, %v3670
      %v3827 = vsel %vm3749, %v3666, %v3671
      %v3828 = vsel %vm3749, %v3667, %v3672
      %v3829 = vsel %vm3749, %v3668, %v3673
      %v3830 = vsel %vm3749, %v3659, %v3664
      %v3831 = vsel %vm3749, %v3660, %v3665
      %v3832 = vsel %vm3749, %v3661, %v3666
      %v3833 = vsel %vm3749, %v3662, %v3667
      %v3834 = vsel %vm3749, %v3663, %v3668
      %v3835 = vsel %vm3749, %v3654, %v3659
      %v3836 = vsel %vm3749, %v3655, %v3660
      %v3837 = vsel %vm3749, %v3656, %v3661
      %v3838 = vsel %vm3749, %v3657, %v3662
      %v3839 = vsel %vm3749, %v3658, %v3663
      %v3840 = vsel %vm3749, %v3649, %v3654
      %v3841 = vsel %vm3749, %v3650, %v3655
      %v3842 = vsel %vm3749, %v3651, %v3656
      %v3843 = vsel %vm3749, %v3652, %v3657
      %v3844 = vsel %vm3749, %v3653, %v3658
      %v3845 = vsel %vm3749, %v3644, %v3649
      %v3846 = vsel %vm3749, %v3645, %v3650
      %v3847 = vsel %vm3749, %v3646, %v3651
      %v3848 = vsel %vm3749, %v3647, %v3652
      %v3849 = vsel %vm3749, %v3648, %v3653
      %v3850 = vsel %vm3749, %v3639, %v3644
      %v3851 = vsel %vm3749, %v3640, %v3645
      %v3852 = vsel %vm3749, %v3641, %v3646
      %v3853 = vsel %vm3749, %v3642, %v3647
      %v3854 = vsel %vm3749, %v3643, %v3648
      %v3855 = vsel %vm3749, %v3634, %v3639
      %v3856 = vsel %vm3749, %v3635, %v3640
      %v3857 = vsel %vm3749, %v3636, %v3641
      %v3858 = vsel %vm3749, %v3637, %v3642
      %v3859 = vsel %vm3749, %v3638, %v3643
      %v3860 = vsel %vm3749, %v3629, %v3634
      %v3861 = vsel %vm3749, %v3630, %v3635
      %v3862 = vsel %vm3749, %v3631, %v3636
      %v3863 = vsel %vm3749, %v3632, %v3637
      %v3864 = vsel %vm3749, %v3633, %v3638
      %v3865 = vsel %vm3749, %v3624, %v3629
      %v3866 = vsel %vm3749, %v3625, %v3630
      %v3867 = vsel %vm3749, %v3626, %v3631
      %v3868 = vsel %vm3749, %v3627, %v3632
      %v3869 = vsel %vm3749, %v3628, %v3633
      %v3870 = vsel %vm3749, %v3619, %v3624
      %v3871 = vsel %vm3749, %v3620, %v3625
      %v3872 = vsel %vm3749, %v3621, %v3626
      %v3873 = vsel %vm3749, %v3622, %v3627
      %v3874 = vsel %vm3749, %v3623, %v3628
      %v3875 = vsel %vm3749, %v3614, %v3619
      %v3876 = vsel %vm3749, %v3615, %v3620
      %v3877 = vsel %vm3749, %v3616, %v3621
      %v3878 = vsel %vm3749, %v3617, %v3622
      %v3879 = vsel %vm3749, %v3618, %v3623
      %v3880 = vsel %vm3749, %v3609, %v3614
      %v3881 = vsel %vm3749, %v3610, %v3615
      %v3882 = vsel %vm3749, %v3611, %v3616
      %v3883 = vsel %vm3749, %v3612, %v3617
      %v3884 = vsel %vm3749, %v3613, %v3618
      %v3885 = vsel %vm3749, %v3604, %v3609
      %v3886 = vsel %vm3749, %v3605, %v3610
      %v3887 = vsel %vm3749, %v3606, %v3611
      %v3888 = vsel %vm3749, %v3607, %v3612
      %v3889 = vsel %vm3749, %v3608, %v3613
      %v3890 = vsel %vm3749, %v3599, %v3604
      %v3891 = vsel %vm3749, %v3600, %v3605
      %v3892 = vsel %vm3749, %v3601, %v3606
      %v3893 = vsel %vm3749, %v3602, %v3607
      %v3894 = vsel %vm3749, %v3603, %v3608
      %v3895 = vsel %vm3749, %v3744, %v3599
      %v3896 = vsel %vm3749, %v3745, %v3600
      %v3897 = vsel %vm3749, %v3746, %v3601
      %v3898 = vsel %vm3749, %v3747, %v3602
      %v3899 = vsel %vm3749, %v3748, %v3603
      %v3900 = vadd.s32 %v1130, 1
      %v3901 = vadd.s32 %v1131, 1
      %v3902 = vadd.s32 %v1132, 1
      %v3903 = vadd.s32 %v1133, 1
      %v3904 = vadd.s32 %v1134, 1
      %v3905 = vadd.s32 %v1135, 1
      %v3906 = vadd.s32 %v1136, 1
      %v3907 = vadd.s32 %v1137, 1
      %v3908 = vadd.s32 %v1138, 1
      %v3909 = vadd.s32 %v1139, 1
      %v3910 = vadd.s32 %v1140, 1
      %v3911 = vadd.s32 %v1141, 1
      %v3912 = vadd.s32 %v1142, 1
      %v3913 = vadd.s32 %v1143, 1
      %v3914 = vadd.s32 %v1144, 1
      %v3915 = vadd.s32 %v1145, 1
      %v3916 = vadd.s32 %v1146, 1
      %v3917 = vadd.s32 %v1147, 1
      %v3918 = vadd.s32 %v1148, 1
      %v3919 = vadd.s32 %v1149, 1
      %v3920 = vadd.s32 %v1150, 1
      %v3921 = vadd.s32 %v1151, 1
      %v3922 = vadd.s32 %v1152, 1
      %v3923 = vadd.s32 %v1153, 1
      %v3924 = vadd.s32 %v1154, 1
      %v3925 = vadd.s32 %v1155, 1
      %v3926 = vadd.s32 %v1156, 1
      %v3927 = vadd.s32 %v1157, 1
      %v3928 = vadd.s32 %v1158, 1
      %v3929 = vadd.s32 %v1159, 1
      %vm3930 = vcmp.ge.s32.totalorder %v3900, 0
      %vm3931 = vcmp.ge.s32.totalorder %v3901, 0
      %vm3932 = vcmp.ge.s32.totalorder %v3902, 0
      %vm3933 = vcmp.ge.s32.totalorder %v3903, 0
      %vm3934 = vcmp.ge.s32.totalorder %v3904, 0
      %vm3935 = vcmp.ge.s32.totalorder %v3905, 0
      %vm3936 = vcmp.ge.s32.totalorder %v3906, 0
      %vm3937 = vcmp.ge.s32.totalorder %v3907, 0
      %vm3938 = vcmp.ge.s32.totalorder %v3908, 0
      %vm3939 = vcmp.ge.s32.totalorder %v3909, 0
      %vm3940 = vcmp.ge.s32.totalorder %v3910, 0
      %vm3941 = vcmp.ge.s32.totalorder %v3911, 0
      %vm3942 = vcmp.ge.s32.totalorder %v3912, 0
      %vm3943 = vcmp.ge.s32.totalorder %v3913, 0
      %vm3944 = vcmp.ge.s32.totalorder %v3914, 0
      %vm3945 = vcmp.ge.s32.totalorder %v3915, 0
      %vm3946 = vcmp.ge.s32.totalorder %v3916, 0
      %vm3947 = vcmp.ge.s32.totalorder %v3917, 0
      %vm3948 = vcmp.ge.s32.totalorder %v3918, 0
      %vm3949 = vcmp.ge.s32.totalorder %v3919, 0
      %vm3950 = vcmp.ge.s32.totalorder %v3920, 0
      %vm3951 = vcmp.ge.s32.totalorder %v3921, 0
      %vm3952 = vcmp.ge.s32.totalorder %v3922, 0
      %vm3953 = vcmp.ge.s32.totalorder %v3923, 0
      %vm3954 = vcmp.ge.s32.totalorder %v3924, 0
      %vm3955 = vcmp.ge.s32.totalorder %v3925, 0
      %vm3956 = vcmp.ge.s32.totalorder %v3926, 0
      %vm3957 = vcmp.ge.s32.totalorder %v3927, 0
      %vm3958 = vcmp.ge.s32.totalorder %v3928, 0
      %vm3959 = vcmp.ge.s32.totalorder %v3929, 0
      %vm3960 = vcmp.lt.s32.totalorder %v3900, 10
      %vm3961 = vcmp.lt.s32.totalorder %v3901, 10
      %vm3962 = vcmp.lt.s32.totalorder %v3902, 10
      %vm3963 = vcmp.lt.s32.totalorder %v3903, 10
      %vm3964 = vcmp.lt.s32.totalorder %v3904, 10
      %vm3965 = vcmp.lt.s32.totalorder %v3905, 10
      %vm3966 = vcmp.lt.s32.totalorder %v3906, 10
      %vm3967 = vcmp.lt.s32.totalorder %v3907, 10
      %vm3968 = vcmp.lt.s32.totalorder %v3908, 10
      %vm3969 = vcmp.lt.s32.totalorder %v3909, 10
      %vm3970 = vcmp.lt.s32.totalorder %v3910, 10
      %vm3971 = vcmp.lt.s32.totalorder %v3911, 10
      %vm3972 = vcmp.lt.s32.totalorder %v3912, 10
      %vm3973 = vcmp.lt.s32.totalorder %v3913, 10
      %vm3974 = vcmp.lt.s32.totalorder %v3914, 10
      %vm3975 = vcmp.lt.s32.totalorder %v3915, 10
      %vm3976 = vcmp.lt.s32.totalorder %v3916, 10
      %vm3977 = vcmp.lt.s32.totalorder %v3917, 10
      %vm3978 = vcmp.lt.s32.totalorder %v3918, 10
      %vm3979 = vcmp.lt.s32.totalorder %v3919, 10
      %vm3980 = vcmp.lt.s32.totalorder %v3920, 10
      %vm3981 = vcmp.lt.s32.totalorder %v3921, 10
      %vm3982 = vcmp.lt.s32.totalorder %v3922, 10
      %vm3983 = vcmp.lt.s32.totalorder %v3923, 10
      %vm3984 = vcmp.lt.s32.totalorder %v3924, 10
      %vm3985 = vcmp.lt.s32.totalorder %v3925, 10
      %vm3986 = vcmp.lt.s32.totalorder %v3926, 10
      %vm3987 = vcmp.lt.s32.totalorder %v3927, 10
      %vm3988 = vcmp.lt.s32.totalorder %v3928, 10
      %vm3989 = vcmp.lt.s32.totalorder %v3929, 10
      %vm3990 = vmand %vm3930, %vm3960
      %vm3991 = vmand %vm3931, %vm3961
      %vm3992 = vmand %vm3932, %vm3962
      %vm3993 = vmand %vm3933, %vm3963
      %vm3994 = vmand %vm3934, %vm3964
      %vm3995 = vmand %vm3935, %vm3965
      %vm3996 = vmand %vm3936, %vm3966
      %vm3997 = vmand %vm3937, %vm3967
      %vm3998 = vmand %vm3938, %vm3968
      %vm3999 = vmand %vm3939, %vm3969
      %vm4000 = vmand %vm3940, %vm3970
      %vm4001 = vmand %vm3941, %vm3971
      %vm4002 = vmand %vm3942, %vm3972
      %vm4003 = vmand %vm3943, %vm3973
      %vm4004 = vmand %vm3944, %vm3974
      %vm4005 = vmand %vm3945, %vm3975
      %vm4006 = vmand %vm3946, %vm3976
      %vm4007 = vmand %vm3947, %vm3977
      %vm4008 = vmand %vm3948, %vm3978
      %vm4009 = vmand %vm3949, %vm3979
      %vm4010 = vmand %vm3950, %vm3980
      %vm4011 = vmand %vm3951, %vm3981
      %vm4012 = vmand %vm3952, %vm3982
      %vm4013 = vmand %vm3953, %vm3983
      %vm4014 = vmand %vm3954, %vm3984
      %vm4015 = vmand %vm3955, %vm3985
      %vm4016 = vmand %vm3956, %vm3986
      %vm4017 = vmand %vm3957, %vm3987
      %vm4018 = vmand %vm3958, %vm3988
      %vm4019 = vmand %vm3959, %vm3989
      %v4020 = vsel %vm3990, 1, 0
      %v4021 = vsel %vm3991, 1, 0
      %v4022 = vsel %vm3992, 1, 0
      %v4023 = vsel %vm3993, 1, 0
      %v4024 = vsel %vm3994, 1, 0
      %v4025 = vsel %vm3995, 1, 0
      %v4026 = vsel %vm3996, 1, 0
      %v4027 = vsel %vm3997, 1, 0
      %v4028 = vsel %vm3998, 1, 0
      %v4029 = vsel %vm3999, 1, 0
      %v4030 = vsel %vm4000, 1, 0
      %v4031 = vsel %vm4001, 1, 0
      %v4032 = vsel %vm4002, 1, 0
      %v4033 = vsel %vm4003, 1, 0
      %v4034 = vsel %vm4004, 1, 0
      %v4035 = vsel %vm4005, 1, 0
      %v4036 = vsel %vm4006, 1, 0
      %v4037 = vsel %vm4007, 1, 0
      %v4038 = vsel %vm4008, 1, 0
      %v4039 = vsel %vm4009, 1, 0
      %v4040 = vsel %vm4010, 1, 0
      %v4041 = vsel %vm4011, 1, 0
      %v4042 = vsel %vm4012, 1, 0
      %v4043 = vsel %vm4013, 1, 0
      %v4044 = vsel %vm4014, 1, 0
      %v4045 = vsel %vm4015, 1, 0
      %v4046 = vsel %vm4016, 1, 0
      %v4047 = vsel %vm4017, 1, 0
      %v4048 = vsel %vm4018, 1, 0
      %v4049 = vsel %vm4019, 1, 0
      %vm4050 = vcmp.eq.s32.totalorder %v4020, 1
      %vm4051 = vcmp.eq.s32.totalorder %v4021, 1
      %vm4052 = vcmp.eq.s32.totalorder %v4022, 1
      %vm4053 = vcmp.eq.s32.totalorder %v4023, 1
      %vm4054 = vcmp.eq.s32.totalorder %v4024, 1
      %vm4055 = vcmp.eq.s32.totalorder %v4025, 1
      %vm4056 = vcmp.eq.s32.totalorder %v4026, 1
      %vm4057 = vcmp.eq.s32.totalorder %v4027, 1
      %vm4058 = vcmp.eq.s32.totalorder %v4028, 1
      %vm4059 = vcmp.eq.s32.totalorder %v4029, 1
      %vm4060 = vcmp.eq.s32.totalorder %v4030, 1
      %vm4061 = vcmp.eq.s32.totalorder %v4031, 1
      %vm4062 = vcmp.eq.s32.totalorder %v4032, 1
      %vm4063 = vcmp.eq.s32.totalorder %v4033, 1
      %vm4064 = vcmp.eq.s32.totalorder %v4034, 1
      %vm4065 = vcmp.eq.s32.totalorder %v4035, 1
      %vm4066 = vcmp.eq.s32.totalorder %v4036, 1
      %vm4067 = vcmp.eq.s32.totalorder %v4037, 1
      %vm4068 = vcmp.eq.s32.totalorder %v4038, 1
      %vm4069 = vcmp.eq.s32.totalorder %v4039, 1
      %vm4070 = vcmp.eq.s32.totalorder %v4040, 1
      %vm4071 = vcmp.eq.s32.totalorder %v4041, 1
      %vm4072 = vcmp.eq.s32.totalorder %v4042, 1
      %vm4073 = vcmp.eq.s32.totalorder %v4043, 1
      %vm4074 = vcmp.eq.s32.totalorder %v4044, 1
      %vm4075 = vcmp.eq.s32.totalorder %v4045, 1
      %vm4076 = vcmp.eq.s32.totalorder %v4046, 1
      %vm4077 = vcmp.eq.s32.totalorder %v4047, 1
      %vm4078 = vcmp.eq.s32.totalorder %v4048, 1
      %vm4079 = vcmp.eq.s32.totalorder %v4049, 1
      %v4080 = vsel %vm4050, %v3890, 0.0
      %v4081 = vsel %vm4050, %v3891, 0.0
      %v4082 = vsel %vm4050, %v3892, 0.0
      %v4083 = vsel %vm4050, %v3893, 0.0
      %v4084 = vsel %vm4050, %v3894, 0.0
      %v4085 = vsel %vm4051, %v3885, 0.0
      %v4086 = vsel %vm4051, %v3886, 0.0
      %v4087 = vsel %vm4051, %v3887, 0.0
      %v4088 = vsel %vm4051, %v3888, 0.0
      %v4089 = vsel %vm4051, %v3889, 0.0
      %v4090 = vsel %vm4052, %v3880, 0.0
      %v4091 = vsel %vm4052, %v3881, 0.0
      %v4092 = vsel %vm4052, %v3882, 0.0
      %v4093 = vsel %vm4052, %v3883, 0.0
      %v4094 = vsel %vm4052, %v3884, 0.0
      %v4095 = vsel %vm4053, %v3875, 0.0
      %v4096 = vsel %vm4053, %v3876, 0.0
      %v4097 = vsel %vm4053, %v3877, 0.0
      %v4098 = vsel %vm4053, %v3878, 0.0
      %v4099 = vsel %vm4053, %v3879, 0.0
      %v4100 = vsel %vm4054, %v3870, 0.0
      %v4101 = vsel %vm4054, %v3871, 0.0
      %v4102 = vsel %vm4054, %v3872, 0.0
      %v4103 = vsel %vm4054, %v3873, 0.0
      %v4104 = vsel %vm4054, %v3874, 0.0
      %v4105 = vsel %vm4055, %v3865, 0.0
      %v4106 = vsel %vm4055, %v3866, 0.0
      %v4107 = vsel %vm4055, %v3867, 0.0
      %v4108 = vsel %vm4055, %v3868, 0.0
      %v4109 = vsel %vm4055, %v3869, 0.0
      %v4110 = vsel %vm4056, %v3860, 0.0
      %v4111 = vsel %vm4056, %v3861, 0.0
      %v4112 = vsel %vm4056, %v3862, 0.0
      %v4113 = vsel %vm4056, %v3863, 0.0
      %v4114 = vsel %vm4056, %v3864, 0.0
      %v4115 = vsel %vm4057, %v3855, 0.0
      %v4116 = vsel %vm4057, %v3856, 0.0
      %v4117 = vsel %vm4057, %v3857, 0.0
      %v4118 = vsel %vm4057, %v3858, 0.0
      %v4119 = vsel %vm4057, %v3859, 0.0
      %v4120 = vsel %vm4058, %v3850, 0.0
      %v4121 = vsel %vm4058, %v3851, 0.0
      %v4122 = vsel %vm4058, %v3852, 0.0
      %v4123 = vsel %vm4058, %v3853, 0.0
      %v4124 = vsel %vm4058, %v3854, 0.0
      %v4125 = vsel %vm4059, %v3845, 0.0
      %v4126 = vsel %vm4059, %v3846, 0.0
      %v4127 = vsel %vm4059, %v3847, 0.0
      %v4128 = vsel %vm4059, %v3848, 0.0
      %v4129 = vsel %vm4059, %v3849, 0.0
      %v4130 = vsel %vm4060, %v3840, 0.0
      %v4131 = vsel %vm4060, %v3841, 0.0
      %v4132 = vsel %vm4060, %v3842, 0.0
      %v4133 = vsel %vm4060, %v3843, 0.0
      %v4134 = vsel %vm4060, %v3844, 0.0
      %v4135 = vsel %vm4061, %v3835, 0.0
      %v4136 = vsel %vm4061, %v3836, 0.0
      %v4137 = vsel %vm4061, %v3837, 0.0
      %v4138 = vsel %vm4061, %v3838, 0.0
      %v4139 = vsel %vm4061, %v3839, 0.0
      %v4140 = vsel %vm4062, %v3830, 0.0
      %v4141 = vsel %vm4062, %v3831, 0.0
      %v4142 = vsel %vm4062, %v3832, 0.0
      %v4143 = vsel %vm4062, %v3833, 0.0
      %v4144 = vsel %vm4062, %v3834, 0.0
      %v4145 = vsel %vm4063, %v3825, 0.0
      %v4146 = vsel %vm4063, %v3826, 0.0
      %v4147 = vsel %vm4063, %v3827, 0.0
      %v4148 = vsel %vm4063, %v3828, 0.0
      %v4149 = vsel %vm4063, %v3829, 0.0
      %v4150 = vsel %vm4064, %v3820, 0.0
      %v4151 = vsel %vm4064, %v3821, 0.0
      %v4152 = vsel %vm4064, %v3822, 0.0
      %v4153 = vsel %vm4064, %v3823, 0.0
      %v4154 = vsel %vm4064, %v3824, 0.0
      %v4155 = vsel %vm4065, %v3815, 0.0
      %v4156 = vsel %vm4065, %v3816, 0.0
      %v4157 = vsel %vm4065, %v3817, 0.0
      %v4158 = vsel %vm4065, %v3818, 0.0
      %v4159 = vsel %vm4065, %v3819, 0.0
      %v4160 = vsel %vm4066, %v3810, 0.0
      %v4161 = vsel %vm4066, %v3811, 0.0
      %v4162 = vsel %vm4066, %v3812, 0.0
      %v4163 = vsel %vm4066, %v3813, 0.0
      %v4164 = vsel %vm4066, %v3814, 0.0
      %v4165 = vsel %vm4067, %v3805, 0.0
      %v4166 = vsel %vm4067, %v3806, 0.0
      %v4167 = vsel %vm4067, %v3807, 0.0
      %v4168 = vsel %vm4067, %v3808, 0.0
      %v4169 = vsel %vm4067, %v3809, 0.0
      %v4170 = vsel %vm4068, %v3800, 0.0
      %v4171 = vsel %vm4068, %v3801, 0.0
      %v4172 = vsel %vm4068, %v3802, 0.0
      %v4173 = vsel %vm4068, %v3803, 0.0
      %v4174 = vsel %vm4068, %v3804, 0.0
      %v4175 = vsel %vm4069, %v3795, 0.0
      %v4176 = vsel %vm4069, %v3796, 0.0
      %v4177 = vsel %vm4069, %v3797, 0.0
      %v4178 = vsel %vm4069, %v3798, 0.0
      %v4179 = vsel %vm4069, %v3799, 0.0
      %v4180 = vsel %vm4070, %v3790, 0.0
      %v4181 = vsel %vm4070, %v3791, 0.0
      %v4182 = vsel %vm4070, %v3792, 0.0
      %v4183 = vsel %vm4070, %v3793, 0.0
      %v4184 = vsel %vm4070, %v3794, 0.0
      %v4185 = vsel %vm4071, %v3785, 0.0
      %v4186 = vsel %vm4071, %v3786, 0.0
      %v4187 = vsel %vm4071, %v3787, 0.0
      %v4188 = vsel %vm4071, %v3788, 0.0
      %v4189 = vsel %vm4071, %v3789, 0.0
      %v4190 = vsel %vm4072, %v3780, 0.0
      %v4191 = vsel %vm4072, %v3781, 0.0
      %v4192 = vsel %vm4072, %v3782, 0.0
      %v4193 = vsel %vm4072, %v3783, 0.0
      %v4194 = vsel %vm4072, %v3784, 0.0
      %v4195 = vsel %vm4073, %v3775, 0.0
      %v4196 = vsel %vm4073, %v3776, 0.0
      %v4197 = vsel %vm4073, %v3777, 0.0
      %v4198 = vsel %vm4073, %v3778, 0.0
      %v4199 = vsel %vm4073, %v3779, 0.0
      %v4200 = vsel %vm4074, %v3770, 0.0
      %v4201 = vsel %vm4074, %v3771, 0.0
      %v4202 = vsel %vm4074, %v3772, 0.0
      %v4203 = vsel %vm4074, %v3773, 0.0
      %v4204 = vsel %vm4074, %v3774, 0.0
      %v4205 = vsel %vm4075, %v3765, 0.0
      %v4206 = vsel %vm4075, %v3766, 0.0
      %v4207 = vsel %vm4075, %v3767, 0.0
      %v4208 = vsel %vm4075, %v3768, 0.0
      %v4209 = vsel %vm4075, %v3769, 0.0
      %v4210 = vsel %vm4076, %v3760, 0.0
      %v4211 = vsel %vm4076, %v3761, 0.0
      %v4212 = vsel %vm4076, %v3762, 0.0
      %v4213 = vsel %vm4076, %v3763, 0.0
      %v4214 = vsel %vm4076, %v3764, 0.0
      %v4215 = vsel %vm4077, %v3755, 0.0
      %v4216 = vsel %vm4077, %v3756, 0.0
      %v4217 = vsel %vm4077, %v3757, 0.0
      %v4218 = vsel %vm4077, %v3758, 0.0
      %v4219 = vsel %vm4077, %v3759, 0.0
      %v4220 = vsel %vm4078, %v3750, 0.0
      %v4221 = vsel %vm4078, %v3751, 0.0
      %v4222 = vsel %vm4078, %v3752, 0.0
      %v4223 = vsel %vm4078, %v3753, 0.0
      %v4224 = vsel %vm4078, %v3754, 0.0
      %v4225 = vsel %vm4079, %v3895, 0.0
      %v4226 = vsel %vm4079, %v3896, 0.0
      %v4227 = vsel %vm4079, %v3897, 0.0
      %v4228 = vsel %vm4079, %v3898, 0.0
      %v4229 = vsel %vm4079, %v3899, 0.0
      %v4230 = vpack.c.bf16 %v4085, %v4080
      %v4231 = vpack.c.bf16 %v4086, %v4081
      %v4232 = vpack.c.bf16 %v4087, %v4082
      %v4233 = vpack.c.bf16 %v4088, %v4083
      %v4234 = vpack.c.bf16 %v4089, %v4084
      %v4235 = vpack.c.bf16 %v4095, %v4090
      %v4236 = vpack.c.bf16 %v4096, %v4091
      %v4237 = vpack.c.bf16 %v4097, %v4092
      %v4238 = vpack.c.bf16 %v4098, %v4093
      %v4239 = vpack.c.bf16 %v4099, %v4094
      %v4240 = vpack.c.bf16 %v4105, %v4100
      %v4241 = vpack.c.bf16 %v4106, %v4101
      %v4242 = vpack.c.bf16 %v4107, %v4102
      %v4243 = vpack.c.bf16 %v4108, %v4103
      %v4244 = vpack.c.bf16 %v4109, %v4104
      %v4245 = vpack.c.bf16 %v4115, %v4110
      %v4246 = vpack.c.bf16 %v4116, %v4111
      %v4247 = vpack.c.bf16 %v4117, %v4112
      %v4248 = vpack.c.bf16 %v4118, %v4113
      %v4249 = vpack.c.bf16 %v4119, %v4114
      %v4250 = vpack.c.bf16 %v4125, %v4120
      %v4251 = vpack.c.bf16 %v4126, %v4121
      %v4252 = vpack.c.bf16 %v4127, %v4122
      %v4253 = vpack.c.bf16 %v4128, %v4123
      %v4254 = vpack.c.bf16 %v4129, %v4124
      %v4255 = vpack.c.bf16 %v4135, %v4130
      %v4256 = vpack.c.bf16 %v4136, %v4131
      %v4257 = vpack.c.bf16 %v4137, %v4132
      %v4258 = vpack.c.bf16 %v4138, %v4133
      %v4259 = vpack.c.bf16 %v4139, %v4134
      %v4260 = vpack.c.bf16 %v4145, %v4140
      %v4261 = vpack.c.bf16 %v4146, %v4141
      %v4262 = vpack.c.bf16 %v4147, %v4142
      %v4263 = vpack.c.bf16 %v4148, %v4143
      %v4264 = vpack.c.bf16 %v4149, %v4144
      %v4265 = vpack.c.bf16 %v4155, %v4150
      %v4266 = vpack.c.bf16 %v4156, %v4151
      %v4267 = vpack.c.bf16 %v4157, %v4152
      %v4268 = vpack.c.bf16 %v4158, %v4153
      %v4269 = vpack.c.bf16 %v4159, %v4154
      %v4270 = vpack.c.bf16 %v4165, %v4160
      %v4271 = vpack.c.bf16 %v4166, %v4161
      %v4272 = vpack.c.bf16 %v4167, %v4162
      %v4273 = vpack.c.bf16 %v4168, %v4163
      %v4274 = vpack.c.bf16 %v4169, %v4164
      %v4275 = vpack.c.bf16 %v4175, %v4170
      %v4276 = vpack.c.bf16 %v4176, %v4171
      %v4277 = vpack.c.bf16 %v4177, %v4172
      %v4278 = vpack.c.bf16 %v4178, %v4173
      %v4279 = vpack.c.bf16 %v4179, %v4174
      %v4280 = vpack.c.bf16 %v4185, %v4180
      %v4281 = vpack.c.bf16 %v4186, %v4181
      %v4282 = vpack.c.bf16 %v4187, %v4182
      %v4283 = vpack.c.bf16 %v4188, %v4183
      %v4284 = vpack.c.bf16 %v4189, %v4184
      %v4285 = vpack.c.bf16 %v4195, %v4190
      %v4286 = vpack.c.bf16 %v4196, %v4191
      %v4287 = vpack.c.bf16 %v4197, %v4192
      %v4288 = vpack.c.bf16 %v4198, %v4193
      %v4289 = vpack.c.bf16 %v4199, %v4194
      %v4290 = vpack.c.bf16 %v4205, %v4200
      %v4291 = vpack.c.bf16 %v4206, %v4201
      %v4292 = vpack.c.bf16 %v4207, %v4202
      %v4293 = vpack.c.bf16 %v4208, %v4203
      %v4294 = vpack.c.bf16 %v4209, %v4204
      %v4295 = vpack.c.bf16 %v4215, %v4210
      %v4296 = vpack.c.bf16 %v4216, %v4211
      %v4297 = vpack.c.bf16 %v4217, %v4212
      %v4298 = vpack.c.bf16 %v4218, %v4213
      %v4299 = vpack.c.bf16 %v4219, %v4214
      %v4300 = vpack.c.bf16 %v4225, %v4220
      %v4301 = vpack.c.bf16 %v4226, %v4221
      %v4302 = vpack.c.bf16 %v4227, %v4222
      %v4303 = vpack.c.bf16 %v4228, %v4223
      %v4304 = vpack.c.bf16 %v4229, %v4224
      %s4305 = scalar_lea.vmem %s1, 576
      %v4306 = vld [vmem:[%s4305] sm:$0xf]
      %v4307 = vld [vmem:[%s4305 + $0x4] sm:$0xf]
      %v4308 = vld [vmem:[%s4305 + $0x8] sm:$0xf]
      %v4309 = vld [vmem:[%s4305 + $0xc] sm:$0xf]
      %v4310 = vld [vmem:[%s4305 + $0x10] sm:$0xf]
      %v4311 = vld [vmem:[%s4305 + $0x14] sm:$0xf]
      %v4312 = vld [vmem:[%s4305 + $0x18] sm:$0xf]
      %v4313 = vld [vmem:[%s4305 + $0x1c] sm:$0xf]
      %v4314 = vld [vmem:[%s4305 + $0x20] sm:$0xf]
      %v4315 = vld [vmem:[%s4305 + $0x24] sm:$0xf]
      %v4316 = vld [vmem:[%s4305 + $0x28] sm:$0xf]
      %v4317 = vld [vmem:[%s4305 + $0x2c] sm:$0xf]
      %v4318 = vld [vmem:[%s4305 + $0x30] sm:$0xf]
      %v4319 = vld [vmem:[%s4305 + $0x34] sm:$0xf]
      %v4320 = vld [vmem:[%s4305 + $0x38] sm:$0xf]
      %v4321 = vld [vmem:[%s4305 + $0x3c] sm:$0xf]
      %v4322 = vld [vmem:[%s4305 + $0x40] sm:$0xf]
      %v4323 = vld [vmem:[%s4305 + $0x44] sm:$0xf]
      %v4324 = vld [vmem:[%s4305 + $0x48] sm:$0xf]
      %v4325 = vld [vmem:[%s4305 + $0x4c] sm:$0xf]
      %v4326 = vld [vmem:[%s4305 + $0x50] sm:$0xf]
      %v4327 = vld [vmem:[%s4305 + $0x54] sm:$0xf]
      %v4328 = vld [vmem:[%s4305 + $0x58] sm:$0xf]
      %v4329 = vld [vmem:[%s4305 + $0x5c] sm:$0xf]
      %v4330 = vld [vmem:[%s4305 + $0x60] sm:$0xf]
      %v4331 = vld [vmem:[%s4305 + $0x64] sm:$0xf]
      %v4332 = vld [vmem:[%s4305 + $0x68] sm:$0xf]
      %v4333 = vld [vmem:[%s4305 + $0x6c] sm:$0xf]
      %v4334 = vld [vmem:[%s4305 + $0x70] sm:$0xf]
      %v4335 = vld [vmem:[%s4305 + $0x74] sm:$0xf]
      %v4336 = vld [vmem:[%s4305 + $0x78] sm:$0xf]
      %v4337 = vld [vmem:[%s4305 + $0x7c] sm:$0xf]
      %v4338 = vld [vmem:[%s4305 + $0x80] sm:$0xf]
      %v4339 = vld [vmem:[%s4305 + $0x84] sm:$0xf]
      %v4340 = vld [vmem:[%s4305 + $0x88] sm:$0xf]
      %v4341 = vld [vmem:[%s4305 + $0x8c] sm:$0xf]
      %v4342 = vld [vmem:[%s4305 + $0x90] sm:$0xf]
      %v4343 = vld [vmem:[%s4305 + $0x94] sm:$0xf]
      %v4344 = vld [vmem:[%s4305 + $0x98] sm:$0xf]
      %v4345 = vld [vmem:[%s4305 + $0x9c] sm:$0xf]
      %v4346 = vld [vmem:[%s4305 + $0xa0] sm:$0xf]
      %v4347 = vld [vmem:[%s4305 + $0xa4] sm:$0xf]
      %v4348 = vld [vmem:[%s4305 + $0xa8] sm:$0xf]
      %v4349 = vld [vmem:[%s4305 + $0xac] sm:$0xf]
      %v4350 = vld [vmem:[%s4305 + $0xb0] sm:$0xf]
      %v4351 = vld [vmem:[%s4305 + $0xb4] sm:$0xf]
      %v4352 = vld [vmem:[%s4305 + $0xb8] sm:$0xf]
      %v4353 = vld [vmem:[%s4305 + $0xbc] sm:$0xf]
      %v4354 = vld [vmem:[%s4305 + $0xc0] sm:$0xf]
      %v4355 = vld [vmem:[%s4305 + $0xc4] sm:$0xf]
      %v4356 = vld [vmem:[%s4305 + $0xc8] sm:$0xf]
      %v4357 = vld [vmem:[%s4305 + $0xcc] sm:$0xf]
      %v4358 = vld [vmem:[%s4305 + $0xd0] sm:$0xf]
      %v4359 = vld [vmem:[%s4305 + $0xd4] sm:$0xf]
      %v4360 = vld [vmem:[%s4305 + $0xd8] sm:$0xf]
      %v4361 = vld [vmem:[%s4305 + $0xdc] sm:$0xf]
      %v4362 = vld [vmem:[%s4305 + $0xe0] sm:$0xf]
      %v4363 = vld [vmem:[%s4305 + $0xe4] sm:$0xf]
      %v4364 = vld [vmem:[%s4305 + $0xe8] sm:$0xf]
      %v4365 = vld [vmem:[%s4305 + $0xec] sm:$0xf]
      %v4366 = vld [vmem:[%s4305 + $0xf0] sm:$0xf]
      %v4367 = vld [vmem:[%s4305 + $0xf4] sm:$0xf]
      %v4368 = vld [vmem:[%s4305 + $0xf8] sm:$0xf]
      %v4369 = vld [vmem:[%s4305 + $0xfc] sm:$0xf]
      %v4370 = vld [vmem:[%s4305 + $0x100] sm:$0xf]
      %v4371 = vld [vmem:[%s4305 + $0x104] sm:$0xf]
      %v4372 = vld [vmem:[%s4305 + $0x108] sm:$0xf]
      %v4373 = vld [vmem:[%s4305 + $0x10c] sm:$0xf]
      %v4374 = vld [vmem:[%s4305 + $0x110] sm:$0xf]
      %v4375 = vld [vmem:[%s4305 + $0x114] sm:$0xf]
      %v4376 = vld [vmem:[%s4305 + $0x118] sm:$0xf]
      %v4377 = vld [vmem:[%s4305 + $0x11c] sm:$0x1]
      %v4450 = vunpack.c.l.b16 %v4306
      %v4451 = vunpack.c.l.b16 %v4307
      %v4452 = vunpack.c.l.b16 %v4308
      %v4453 = vunpack.c.l.b16 %v4309
      %v4454 = vunpack.c.l.b16 %v4310
      %v4455 = vunpack.c.l.b16 %v4311
      %v4456 = vunpack.c.l.b16 %v4312
      %v4457 = vunpack.c.l.b16 %v4313
      %v4458 = vunpack.c.l.b16 %v4314
      %v4459 = vunpack.c.l.b16 %v4315
      %v4460 = vunpack.c.l.b16 %v4316
      %v4461 = vunpack.c.l.b16 %v4317
      %v4462 = vunpack.c.l.b16 %v4318
      %v4463 = vunpack.c.l.b16 %v4319
      %v4464 = vunpack.c.l.b16 %v4320
      %v4465 = vunpack.c.l.b16 %v4321
      %v4466 = vunpack.c.l.b16 %v4322
      %v4467 = vunpack.c.l.b16 %v4323
      %v4468 = vunpack.c.l.b16 %v4324
      %v4469 = vunpack.c.l.b16 %v4325
      %v4470 = vunpack.c.l.b16 %v4326
      %v4471 = vunpack.c.l.b16 %v4327
      %v4472 = vunpack.c.l.b16 %v4328
      %v4473 = vunpack.c.l.b16 %v4329
      %v4474 = vunpack.c.l.b16 %v4330
      %v4475 = vunpack.c.l.b16 %v4331
      %v4476 = vunpack.c.l.b16 %v4332
      %v4477 = vunpack.c.l.b16 %v4333
      %v4478 = vunpack.c.l.b16 %v4334
      %v4479 = vunpack.c.l.b16 %v4335
      %v4480 = vunpack.c.l.b16 %v4336
      %v4481 = vunpack.c.l.b16 %v4337
      %v4482 = vunpack.c.l.b16 %v4338
      %v4483 = vunpack.c.l.b16 %v4339
      %v4484 = vunpack.c.l.b16 %v4340
      %v4485 = vunpack.c.l.b16 %v4341
      %v4486 = vunpack.c.l.b16 %v4342
      %v4487 = vunpack.c.l.b16 %v4343
      %v4488 = vunpack.c.l.b16 %v4344
      %v4489 = vunpack.c.l.b16 %v4345
      %v4490 = vunpack.c.l.b16 %v4346
      %v4491 = vunpack.c.l.b16 %v4347
      %v4492 = vunpack.c.l.b16 %v4348
      %v4493 = vunpack.c.l.b16 %v4349
      %v4494 = vunpack.c.l.b16 %v4350
      %v4495 = vunpack.c.l.b16 %v4351
      %v4496 = vunpack.c.l.b16 %v4352
      %v4497 = vunpack.c.l.b16 %v4353
      %v4498 = vunpack.c.l.b16 %v4354
      %v4499 = vunpack.c.l.b16 %v4355
      %v4500 = vunpack.c.l.b16 %v4356
      %v4501 = vunpack.c.l.b16 %v4357
      %v4502 = vunpack.c.l.b16 %v4358
      %v4503 = vunpack.c.l.b16 %v4359
      %v4504 = vunpack.c.l.b16 %v4360
      %v4505 = vunpack.c.l.b16 %v4361
      %v4506 = vunpack.c.l.b16 %v4362
      %v4507 = vunpack.c.l.b16 %v4363
      %v4508 = vunpack.c.l.b16 %v4364
      %v4509 = vunpack.c.l.b16 %v4365
      %v4510 = vunpack.c.l.b16 %v4366
      %v4511 = vunpack.c.l.b16 %v4367
      %v4512 = vunpack.c.l.b16 %v4368
      %v4513 = vunpack.c.l.b16 %v4369
      %v4514 = vunpack.c.l.b16 %v4370
      %v4515 = vunpack.c.l.b16 %v4371
      %v4516 = vunpack.c.l.b16 %v4372
      %v4517 = vunpack.c.l.b16 %v4373
      %v4518 = vunpack.c.l.b16 %v4374
      %v4519 = vunpack.c.l.b16 %v4375
      %v4520 = vunpack.c.l.b16 %v4376
      %v4521 = vunpack.c.l.b16 %v4377
      %v4522 = vpack.c.b16 %v4451, %v4450
      %v4523 = vpack.c.b16 %v4453, %v4452
      %v4524 = vpack.c.b16 %v4455, %v4454
      %v4525 = vpack.c.b16 %v4457, %v4456
      %v4526 = vpack.c.b16 %v4459, %v4458
      %v4527 = vpack.c.b16 %v4461, %v4460
      %v4528 = vpack.c.b16 %v4463, %v4462
      %v4529 = vpack.c.b16 %v4465, %v4464
      %v4530 = vpack.c.b16 %v4467, %v4466
      %v4531 = vpack.c.b16 %v4469, %v4468
      %v4532 = vpack.c.b16 %v4471, %v4470
      %v4533 = vpack.c.b16 %v4473, %v4472
      %v4534 = vpack.c.b16 %v4475, %v4474
      %v4535 = vpack.c.b16 %v4477, %v4476
      %v4536 = vpack.c.b16 %v4479, %v4478
      %v4537 = vpack.c.b16 %v4481, %v4480
      %v4538 = vpack.c.b16 %v4483, %v4482
      %v4539 = vpack.c.b16 %v4485, %v4484
      %v4540 = vpack.c.b16 %v4487, %v4486
      %v4541 = vpack.c.b16 %v4489, %v4488
      %v4542 = vpack.c.b16 %v4491, %v4490
      %v4543 = vpack.c.b16 %v4493, %v4492
      %v4544 = vpack.c.b16 %v4495, %v4494
      %v4545 = vpack.c.b16 %v4497, %v4496
      %v4546 = vpack.c.b16 %v4499, %v4498
      %v4547 = vpack.c.b16 %v4501, %v4500
      %v4548 = vpack.c.b16 %v4503, %v4502
      %v4549 = vpack.c.b16 %v4505, %v4504
      %v4550 = vpack.c.b16 %v4507, %v4506
      %v4551 = vpack.c.b16 %v4509, %v4508
      %v4552 = vpack.c.b16 %v4511, %v4510
      %v4553 = vpack.c.b16 %v4513, %v4512
      %v4554 = vpack.c.b16 %v4515, %v4514
      %v4555 = vpack.c.b16 %v4517, %v4516
      %v4556 = vpack.c.b16 %v4519, %v4518
      %v4557 = vpack.c.b16 %v4521, %v4520
      %v4594 = vsel %vm2154, %v4234, 0
      %v4597 = vsel %vm2154, %v4239, 0
      %v4600 = vsel %vm2154, %v4244, 0
      %v4603 = vsel %vm2154, %v4249, 0
      %v4606 = vsel %vm2154, %v4254, 0
      %v4609 = vsel %vm2154, %v4259, 0
      %v4612 = vsel %vm2154, %v4264, 0
      %v4615 = vsel %vm2154, %v4269, 0
      %v4618 = vsel %vm2154, %v4274, 0
      %v4621 = vsel %vm2154, %v4279, 0
      %v4624 = vsel %vm2154, %v4284, 0
      %v4627 = vsel %vm2154, %v4289, 0
      %v4630 = vsel %vm2154, %v4294, 0
      %v4633 = vsel %vm2154, %v4299, 0
      %v4636 = vsel %vm2154, %v4304, 0
      %v4639 = vsel %vm2200, %v4557, 0
      %4641 = vmatprep.subr.bf16.mxu0 0
      %4642 = vmatpush1.bf16.msra.mxu0 %v4522
      %4643 = vmatprep.subr.bf16.mxu0 0
      %4644 = vmatpush1.bf16.msra.mxu0 %v4523
      %4645 = vmatprep.subr.bf16.mxu0 0
      %4646 = vmatpush1.bf16.msra.mxu0 %v4524
      %4647 = vmatprep.subr.bf16.mxu0 0
      %4648 = vmatpush1.bf16.msra.mxu0 %v4525
      %4649 = vmatprep.subr.bf16.mxu0 0
      %4650 = vmatpush1.bf16.msra.mxu0 %v4526
      %4651 = vmatprep.subr.bf16.mxu0 0
      %4652 = vmatpush1.bf16.msra.mxu0 %v4527
      %4653 = vmatprep.subr.bf16.mxu0 0
      %4654 = vmatpush1.bf16.msra.mxu0 %v4528
      %4655 = vmatprep.subr.bf16.mxu0 0
      %4656 = vmatpush1.bf16.msra.mxu0 %v4529
      %4657 = vmatprep.subr.bf16.mxu0 0
      %4658 = vmatpush1.bf16.msra.mxu0 %v4530
      %4659 = vmatprep.subr.bf16.mxu0 0
      %4660 = vmatpush1.bf16.msra.mxu0 %v4531
      %4661 = vmatprep.subr.bf16.mxu0 0
      %4662 = vmatpush1.bf16.msra.mxu0 %v4532
      %4663 = vmatprep.subr.bf16.mxu0 0
      %4664 = vmatpush1.bf16.msra.mxu0 %v4533
      %4665 = vmatprep.subr.bf16.mxu0 0
      %4666 = vmatpush1.bf16.msra.mxu0 %v4534
      %4667 = vmatprep.subr.bf16.mxu0 0
      %4668 = vmatpush1.bf16.msra.mxu0 %v4535
      %4669 = vmatprep.subr.bf16.mxu0 0
      %4670 = vmatpush1.bf16.msra.mxu0 %v4536
      %4671 = vmatprep.subr.bf16.mxu0 0
      %4672 = vmatpush1.bf16.msra.mxu0 %v4537
      %4673 = vmatprep.mubr.bf16.mxu0 %v4231
      %4674 = vmatmul.mubr.bf16.gmra.mrb[0].mxu0 %v4230
      %v4675 = vpop.f32.mrb[0].mxu0
      %v4676 = vadd.f32 0.0, %v4675
      %v4677 = vpop.f32.mrb[0].mxu0
      %v4678 = vpop.f32.mrb[0].mxu0
      %v4679 = vadd.f32 0.0, %v4678
      %v4680 = vpop.f32.mrb[0].mxu0
      %4681 = vmatprep.mubr.bf16.mxu0 %v4236
      %4682 = vmatmul.mubr.bf16.gmra.mrb[0].mxu0 %v4235
      %v4683 = vpop.f32.mrb[0].mxu0
      %v4684 = vadd.f32 0.0, %v4683
      %v4685 = vpop.f32.mrb[0].mxu0
      %v4686 = vpop.f32.mrb[0].mxu0
      %v4687 = vadd.f32 0.0, %v4686
      %v4688 = vpop.f32.mrb[0].mxu0
      %4689 = vmatprep.mubr.bf16.mxu0 %v4241
      %4690 = vmatmul.mubr.bf16.gmra.mrb[0].mxu0 %v4240
      %v4691 = vpop.f32.mrb[0].mxu0
      %v4692 = vadd.f32 0.0, %v4691
      %v4693 = vpop.f32.mrb[0].mxu0
      %v4694 = vpop.f32.mrb[0].mxu0
      %v4695 = vadd.f32 0.0, %v4694
      %v4696 = vpop.f32.mrb[0].mxu0
      %4697 = vmatprep.mubr.bf16.mxu0 %v4246
      %4698 = vmatmul.mubr.bf16.gmra.mrb[0].mxu0 %v4245
      %v4699 = vpop.f32.mrb[0].mxu0
      %v4700 = vadd.f32 0.0, %v4699
      %v4701 = vpop.f32.mrb[0].mxu0
      %v4702 = vpop.f32.mrb[0].mxu0
      %v4703 = vadd.f32 0.0, %v4702
      %v4704 = vpop.f32.mrb[0].mxu0
      %4705 = vmatprep.mubr.bf16.mxu0 %v4251
      %4706 = vmatmul.mubr.bf16.gmra.mrb[0].mxu0 %v4250
      %v4707 = vpop.f32.mrb[0].mxu0
      %v4708 = vadd.f32 0.0, %v4707
      %v4709 = vpop.f32.mrb[0].mxu0
      %v4710 = vpop.f32.mrb[0].mxu0
      %v4711 = vadd.f32 0.0, %v4710
      %v4712 = vpop.f32.mrb[0].mxu0
      %4713 = vmatprep.mubr.bf16.mxu0 %v4256
      %4714 = vmatmul.mubr.bf16.gmra.mrb[0].mxu0 %v4255
      %v4715 = vpop.f32.mrb[0].mxu0
      %v4716 = vadd.f32 0.0, %v4715
      %v4717 = vpop.f32.mrb[0].mxu0
      %v4718 = vpop.f32.mrb[0].mxu0
      %v4719 = vadd.f32 0.0, %v4718
      %v4720 = vpop.f32.mrb[0].mxu0
      %4721 = vmatprep.mubr.bf16.mxu0 %v4261
      %4722 = vmatmul.mubr.bf16.gmra.mrb[0].mxu0 %v4260
      %v4723 = vpop.f32.mrb[0].mxu0
      %v4724 = vadd.f32 0.0, %v4723
      %v4725 = vpop.f32.mrb[0].mxu0
      %v4726 = vpop.f32.mrb[0].mxu0
      %v4727 = vadd.f32 0.0, %v4726
      %v4728 = vpop.f32.mrb[0].mxu0
      %4729 = vmatprep.mubr.bf16.mxu0 %v4266
      %4730 = vmatmul.mubr.bf16.gmra.mrb[0].mxu0 %v4265
      %v4731 = vpop.f32.mrb[0].mxu0
      %v4732 = vadd.f32 0.0, %v4731
      %v4733 = vpop.f32.mrb[0].mxu0
      %v4734 = vpop.f32.mrb[0].mxu0
      %v4735 = vadd.f32 0.0, %v4734
      %v4736 = vpop.f32.mrb[0].mxu0
      %4737 = vmatprep.mubr.bf16.mxu0 %v4271
      %4738 = vmatmul.mubr.bf16.gmra.mrb[0].mxu0 %v4270
      %v4739 = vpop.f32.mrb[0].mxu0
      %v4740 = vadd.f32 0.0, %v4739
      %v4741 = vpop.f32.mrb[0].mxu0
      %v4742 = vpop.f32.mrb[0].mxu0
      %v4743 = vadd.f32 0.0, %v4742
      %v4744 = vpop.f32.mrb[0].mxu0
      %4745 = vmatprep.mubr.bf16.mxu0 %v4276
      %4746 = vmatmul.mubr.bf16.gmra.mrb[0].mxu0 %v4275
      %v4747 = vpop.f32.mrb[0].mxu0
      %v4748 = vadd.f32 0.0, %v4747
      %v4749 = vpop.f32.mrb[0].mxu0
      %v4750 = vpop.f32.mrb[0].mxu0
      %v4751 = vadd.f32 0.0, %v4750
      %v4752 = vpop.f32.mrb[0].mxu0
      %4753 = vmatprep.mubr.bf16.mxu0 %v4281
      %4754 = vmatmul.mubr.bf16.gmra.mrb[0].mxu0 %v4280
      %v4755 = vpop.f32.mrb[0].mxu0
      %v4756 = vadd.f32 0.0, %v4755
      %v4757 = vpop.f32.mrb[0].mxu0
      %v4758 = vpop.f32.mrb[0].mxu0
      %v4759 = vadd.f32 0.0, %v4758
      %v4760 = vpop.f32.mrb[0].mxu0
      %4761 = vmatprep.mubr.bf16.mxu0 %v4286
      %4762 = vmatmul.mubr.bf16.gmra.mrb[0].mxu0 %v4285
      %v4763 = vpop.f32.mrb[0].mxu0
      %v4764 = vadd.f32 0.0, %v4763
      %v4765 = vpop.f32.mrb[0].mxu0
      %v4766 = vpop.f32.mrb[0].mxu0
      %v4767 = vadd.f32 0.0, %v4766
      %v4768 = vpop.f32.mrb[0].mxu0
      %4769 = vmatprep.mubr.bf16.mxu0 %v4291
      %4770 = vmatmul.mubr.bf16.gmra.mrb[0].mxu0 %v4290
      %v4771 = vpop.f32.mrb[0].mxu0
      %v4772 = vadd.f32 0.0, %v4771
      %v4773 = vpop.f32.mrb[0].mxu0
      %v4774 = vpop.f32.mrb[0].mxu0
      %v4775 = vadd.f32 0.0, %v4774
      %v4776 = vpop.f32.mrb[0].mxu0
      %4777 = vmatprep.mubr.bf16.mxu0 %v4296
      %4778 = vmatmul.mubr.bf16.gmra.mrb[0].mxu0 %v4295
      %v4779 = vpop.f32.mrb[0].mxu0
      %v4780 = vadd.f32 0.0, %v4779
      %v4781 = vpop.f32.mrb[0].mxu0
      %v4782 = vpop.f32.mrb[0].mxu0
      %v4783 = vadd.f32 0.0, %v4782
      %v4784 = vpop.f32.mrb[0].mxu0
      %4785 = vmatprep.mubr.bf16.mxu0 %v4301
      %4786 = vmatmul.mubr.bf16.gmra.mrb[0].mxu0 %v4300
      %v4787 = vpop.f32.mrb[0].mxu0
      %v4788 = vadd.f32 0.0, %v4787
      %v4789 = vpop.f32.mrb[0].mxu0
      %v4790 = vpop.f32.mrb[0].mxu0
      %v4791 = vadd.f32 0.0, %v4790
      %v4792 = vpop.f32.mrb[0].mxu0
      %4793 = vdwg.mxu0
      %4794 = vmatprep.subr.bf16.mxu0 0
      %4795 = vmatpush1.bf16.msra.mxu0 %v4538
      %4796 = vmatprep.subr.bf16.mxu0 0
      %4797 = vmatpush1.bf16.msra.mxu0 %v4539
      %4798 = vmatprep.subr.bf16.mxu0 0
      %4799 = vmatpush1.bf16.msra.mxu0 %v4540
      %4800 = vmatprep.subr.bf16.mxu0 0
      %4801 = vmatpush1.bf16.msra.mxu0 %v4541
      %4802 = vmatprep.subr.bf16.mxu0 0
      %4803 = vmatpush1.bf16.msra.mxu0 %v4542
      %4804 = vmatprep.subr.bf16.mxu0 0
      %4805 = vmatpush1.bf16.msra.mxu0 %v4543
      %4806 = vmatprep.subr.bf16.mxu0 0
      %4807 = vmatpush1.bf16.msra.mxu0 %v4544
      %4808 = vmatprep.subr.bf16.mxu0 0
      %4809 = vmatpush1.bf16.msra.mxu0 %v4545
      %4810 = vmatprep.subr.bf16.mxu0 0
      %4811 = vmatpush1.bf16.msra.mxu0 %v4546
      %4812 = vmatprep.subr.bf16.mxu0 0
      %4813 = vmatpush1.bf16.msra.mxu0 %v4547
      %4814 = vmatprep.subr.bf16.mxu0 0
      %4815 = vmatpush1.bf16.msra.mxu0 %v4548
      %4816 = vmatprep.subr.bf16.mxu0 0
      %4817 = vmatpush1.bf16.msra.mxu0 %v4549
      %4818 = vmatprep.subr.bf16.mxu0 0
      %4819 = vmatpush1.bf16.msra.mxu0 %v4550
      %4820 = vmatprep.subr.bf16.mxu0 0
      %4821 = vmatpush1.bf16.msra.mxu0 %v4551
      %4822 = vmatprep.subr.bf16.mxu0 0
      %4823 = vmatpush1.bf16.msra.mxu0 %v4552
      %4824 = vmatprep.subr.bf16.mxu0 0
      %4825 = vmatpush1.bf16.msra.mxu0 %v4553
      %4826 = vmatprep.mubr.bf16.mxu0 %v4233
      %4827 = vmatmul.mubr.bf16.gmra.mrb[0].mxu0 %v4232
      %v4828 = vpop.f32.mrb[0].mxu0
      %v4829 = vadd.f32 %v4676, %v4828
      %v4830 = vpop.f32.mrb[0].mxu0
      %v4831 = vpop.f32.mrb[0].mxu0
      %v4832 = vadd.f32 %v4679, %v4831
      %v4833 = vpop.f32.mrb[0].mxu0
      %4834 = vmatprep.mubr.bf16.mxu0 %v4238
      %4835 = vmatmul.mubr.bf16.gmra.mrb[0].mxu0 %v4237
      %v4836 = vpop.f32.mrb[0].mxu0
      %v4837 = vadd.f32 %v4684, %v4836
      %v4838 = vpop.f32.mrb[0].mxu0
      %v4839 = vpop.f32.mrb[0].mxu0
      %v4840 = vadd.f32 %v4687, %v4839
      %v4841 = vpop.f32.mrb[0].mxu0
      %4842 = vmatprep.mubr.bf16.mxu0 %v4243
      %4843 = vmatmul.mubr.bf16.gmra.mrb[0].mxu0 %v4242
      %v4844 = vpop.f32.mrb[0].mxu0
      %v4845 = vadd.f32 %v4692, %v4844
      %v4846 = vpop.f32.mrb[0].mxu0
      %v4847 = vpop.f32.mrb[0].mxu0
      %v4848 = vadd.f32 %v4695, %v4847
      %v4849 = vpop.f32.mrb[0].mxu0
      %4850 = vmatprep.mubr.bf16.mxu0 %v4248
      %4851 = vmatmul.mubr.bf16.gmra.mrb[0].mxu0 %v4247
      %v4852 = vpop.f32.mrb[0].mxu0
      %v4853 = vadd.f32 %v4700, %v4852
      %v4854 = vpop.f32.mrb[0].mxu0
      %v4855 = vpop.f32.mrb[0].mxu0
      %v4856 = vadd.f32 %v4703, %v4855
      %v4857 = vpop.f32.mrb[0].mxu0
      %4858 = vmatprep.mubr.bf16.mxu0 %v4253
      %4859 = vmatmul.mubr.bf16.gmra.mrb[0].mxu0 %v4252
      %v4860 = vpop.f32.mrb[0].mxu0
      %v4861 = vadd.f32 %v4708, %v4860
      %v4862 = vpop.f32.mrb[0].mxu0
      %v4863 = vpop.f32.mrb[0].mxu0
      %v4864 = vadd.f32 %v4711, %v4863
      %v4865 = vpop.f32.mrb[0].mxu0
      %4866 = vmatprep.mubr.bf16.mxu0 %v4258
      %4867 = vmatmul.mubr.bf16.gmra.mrb[0].mxu0 %v4257
      %v4868 = vpop.f32.mrb[0].mxu0
      %v4869 = vadd.f32 %v4716, %v4868
      %v4870 = vpop.f32.mrb[0].mxu0
      %v4871 = vpop.f32.mrb[0].mxu0
      %v4872 = vadd.f32 %v4719, %v4871
      %v4873 = vpop.f32.mrb[0].mxu0
      %4874 = vmatprep.mubr.bf16.mxu0 %v4263
      %4875 = vmatmul.mubr.bf16.gmra.mrb[0].mxu0 %v4262
      %v4876 = vpop.f32.mrb[0].mxu0
      %v4877 = vadd.f32 %v4724, %v4876
      %v4878 = vpop.f32.mrb[0].mxu0
      %v4879 = vpop.f32.mrb[0].mxu0
      %v4880 = vadd.f32 %v4727, %v4879
      %v4881 = vpop.f32.mrb[0].mxu0
      %4882 = vmatprep.mubr.bf16.mxu0 %v4268
      %4883 = vmatmul.mubr.bf16.gmra.mrb[0].mxu0 %v4267
      %v4884 = vpop.f32.mrb[0].mxu0
      %v4885 = vadd.f32 %v4732, %v4884
      %v4886 = vpop.f32.mrb[0].mxu0
      %v4887 = vpop.f32.mrb[0].mxu0
      %v4888 = vadd.f32 %v4735, %v4887
      %v4889 = vpop.f32.mrb[0].mxu0
      %4890 = vmatprep.mubr.bf16.mxu0 %v4273
      %4891 = vmatmul.mubr.bf16.gmra.mrb[0].mxu0 %v4272
      %v4892 = vpop.f32.mrb[0].mxu0
      %v4893 = vadd.f32 %v4740, %v4892
      %v4894 = vpop.f32.mrb[0].mxu0
      %v4895 = vpop.f32.mrb[0].mxu0
      %v4896 = vadd.f32 %v4743, %v4895
      %v4897 = vpop.f32.mrb[0].mxu0
      %4898 = vmatprep.mubr.bf16.mxu0 %v4278
      %4899 = vmatmul.mubr.bf16.gmra.mrb[0].mxu0 %v4277
      %v4900 = vpop.f32.mrb[0].mxu0
      %v4901 = vadd.f32 %v4748, %v4900
      %v4902 = vpop.f32.mrb[0].mxu0
      %v4903 = vpop.f32.mrb[0].mxu0
      %v4904 = vadd.f32 %v4751, %v4903
      %v4905 = vpop.f32.mrb[0].mxu0
      %4906 = vmatprep.mubr.bf16.mxu0 %v4283
      %4907 = vmatmul.mubr.bf16.gmra.mrb[0].mxu0 %v4282
      %v4908 = vpop.f32.mrb[0].mxu0
      %v4909 = vadd.f32 %v4756, %v4908
      %v4910 = vpop.f32.mrb[0].mxu0
      %v4911 = vpop.f32.mrb[0].mxu0
      %v4912 = vadd.f32 %v4759, %v4911
      %v4913 = vpop.f32.mrb[0].mxu0
      %4914 = vmatprep.mubr.bf16.mxu0 %v4288
      %4915 = vmatmul.mubr.bf16.gmra.mrb[0].mxu0 %v4287
      %v4916 = vpop.f32.mrb[0].mxu0
      %v4917 = vadd.f32 %v4764, %v4916
      %v4918 = vpop.f32.mrb[0].mxu0
      %v4919 = vpop.f32.mrb[0].mxu0
      %v4920 = vadd.f32 %v4767, %v4919
      %v4921 = vpop.f32.mrb[0].mxu0
      %4922 = vmatprep.mubr.bf16.mxu0 %v4293
      %4923 = vmatmul.mubr.bf16.gmra.mrb[0].mxu0 %v4292
      %v4924 = vpop.f32.mrb[0].mxu0
      %v4925 = vadd.f32 %v4772, %v4924
      %v4926 = vpop.f32.mrb[0].mxu0
      %v4927 = vpop.f32.mrb[0].mxu0
      %v4928 = vadd.f32 %v4775, %v4927
      %v4929 = vpop.f32.mrb[0].mxu0
      %4930 = vmatprep.mubr.bf16.mxu0 %v4298
      %4931 = vmatmul.mubr.bf16.gmra.mrb[0].mxu0 %v4297
      %v4932 = vpop.f32.mrb[0].mxu0
      %v4933 = vadd.f32 %v4780, %v4932
      %v4934 = vpop.f32.mrb[0].mxu0
      %v4935 = vpop.f32.mrb[0].mxu0
      %v4936 = vadd.f32 %v4783, %v4935
      %v4937 = vpop.f32.mrb[0].mxu0
      %4938 = vmatprep.mubr.bf16.mxu0 %v4303
      %4939 = vmatmul.mubr.bf16.gmra.mrb[0].mxu0 %v4302
      %v4940 = vpop.f32.mrb[0].mxu0
      %v4941 = vadd.f32 %v4788, %v4940
      %v4942 = vpop.f32.mrb[0].mxu0
      %v4943 = vpop.f32.mrb[0].mxu0
      %v4944 = vadd.f32 %v4791, %v4943
      %v4945 = vpop.f32.mrb[0].mxu0
      %4946 = vdwg.mxu0
      %4947 = vmatprep.subr.bf16.mxu0 0
      %4948 = vmatpush1.bf16.msra.mxu0 %v4554
      %4949 = vmatprep.subr.bf16.mxu0 0
      %4950 = vmatpush1.bf16.msra.mxu0 %v4555
      %4951 = vmatprep.subr.bf16.mxu0 0
      %4952 = vmatpush1.bf16.msra.mxu0 %v4556
      %4953 = vmatprep.subr.bf16.mxu0 0
      %4954 = vmatpush1.bf16.msra.mxu0 %v4639
      %4955 = vmatprep.subr.bf16.mxu0 0
      %4956 = vmatpush1.bf16.msra.mxu0 0
      %4957 = vmatprep.subr.bf16.mxu0 0
      %4958 = vmatpush1.bf16.msra.mxu0 0
      %4959 = vmatprep.subr.bf16.mxu0 0
      %4960 = vmatpush1.bf16.msra.mxu0 0
      %4961 = vmatprep.subr.bf16.mxu0 0
      %4962 = vmatpush1.bf16.msra.mxu0 0
      %4963 = vmatprep.subr.bf16.mxu0 0
      %4964 = vmatpush1.bf16.msra.mxu0 0
      %4965 = vmatprep.subr.bf16.mxu0 0
      %4966 = vmatpush1.bf16.msra.mxu0 0
      %4967 = vmatprep.subr.bf16.mxu0 0
      %4968 = vmatpush1.bf16.msra.mxu0 0
      %4969 = vmatprep.subr.bf16.mxu0 0
      %4970 = vmatpush1.bf16.msra.mxu0 0
      %4971 = vmatprep.subr.bf16.mxu0 0
      %4972 = vmatpush1.bf16.msra.mxu0 0
      %4973 = vmatprep.subr.bf16.mxu0 0
      %4974 = vmatpush1.bf16.msra.mxu0 0
      %4975 = vmatprep.subr.bf16.mxu0 0
      %4976 = vmatpush1.bf16.msra.mxu0 0
      %4977 = vmatprep.subr.bf16.mxu0 0
      %4978 = vmatpush1.bf16.msra.mxu0 0
      %4979 = vmatprep.mubr.bf16.mxu0 0
      %4980 = vmatmul.mubr.bf16.gmra.mrb[0].mxu0 %v4594
      %v4981 = vpop.f32.mrb[0].mxu0
      %v4982 = vadd.f32 %v4829, %v4981
      %v4983 = vpop.f32.mrb[0].mxu0
      %v4984 = vpop.f32.mrb[0].mxu0
      %v4985 = vadd.f32 %v4832, %v4984
      %v4986 = vpop.f32.mrb[0].mxu0
      %4987 = vmatprep.mubr.bf16.mxu0 0
      %4988 = vmatmul.mubr.bf16.gmra.mrb[0].mxu0 %v4597
      %v4989 = vpop.f32.mrb[0].mxu0
      %v4990 = vadd.f32 %v4837, %v4989
      %v4991 = vpop.f32.mrb[0].mxu0
      %v4992 = vpop.f32.mrb[0].mxu0
      %v4993 = vadd.f32 %v4840, %v4992
      %v4994 = vpop.f32.mrb[0].mxu0
      %4995 = vmatprep.mubr.bf16.mxu0 0
      %4996 = vmatmul.mubr.bf16.gmra.mrb[0].mxu0 %v4600
      %v4997 = vpop.f32.mrb[0].mxu0
      %v4998 = vadd.f32 %v4845, %v4997
      %v4999 = vpop.f32.mrb[0].mxu0
      %v5000 = vpop.f32.mrb[0].mxu0
      %v5001 = vadd.f32 %v4848, %v5000
      %v5002 = vpop.f32.mrb[0].mxu0
      %5003 = vmatprep.mubr.bf16.mxu0 0
      %5004 = vmatmul.mubr.bf16.gmra.mrb[0].mxu0 %v4603
      %v5005 = vpop.f32.mrb[0].mxu0
      %v5006 = vadd.f32 %v4853, %v5005
      %v5007 = vpop.f32.mrb[0].mxu0
      %v5008 = vpop.f32.mrb[0].mxu0
      %v5009 = vadd.f32 %v4856, %v5008
      %v5010 = vpop.f32.mrb[0].mxu0
      %5011 = vmatprep.mubr.bf16.mxu0 0
      %5012 = vmatmul.mubr.bf16.gmra.mrb[0].mxu0 %v4606
      %v5013 = vpop.f32.mrb[0].mxu0
      %v5014 = vadd.f32 %v4861, %v5013
      %v5015 = vpop.f32.mrb[0].mxu0
      %v5016 = vpop.f32.mrb[0].mxu0
      %v5017 = vadd.f32 %v4864, %v5016
      %v5018 = vpop.f32.mrb[0].mxu0
      %5019 = vmatprep.mubr.bf16.mxu0 0
      %5020 = vmatmul.mubr.bf16.gmra.mrb[0].mxu0 %v4609
      %v5021 = vpop.f32.mrb[0].mxu0
      %v5022 = vadd.f32 %v4869, %v5021
      %v5023 = vpop.f32.mrb[0].mxu0
      %v5024 = vpop.f32.mrb[0].mxu0
      %v5025 = vadd.f32 %v4872, %v5024
      %v5026 = vpop.f32.mrb[0].mxu0
      %5027 = vmatprep.mubr.bf16.mxu0 0
      %5028 = vmatmul.mubr.bf16.gmra.mrb[0].mxu0 %v4612
      %v5029 = vpop.f32.mrb[0].mxu0
      %v5030 = vadd.f32 %v4877, %v5029
      %v5031 = vpop.f32.mrb[0].mxu0
      %v5032 = vpop.f32.mrb[0].mxu0
      %v5033 = vadd.f32 %v4880, %v5032
      %v5034 = vpop.f32.mrb[0].mxu0
      %5035 = vmatprep.mubr.bf16.mxu0 0
      %5036 = vmatmul.mubr.bf16.gmra.mrb[0].mxu0 %v4615
      %v5037 = vpop.f32.mrb[0].mxu0
      %v5038 = vadd.f32 %v4885, %v5037
      %v5039 = vpop.f32.mrb[0].mxu0
      %v5040 = vpop.f32.mrb[0].mxu0
      %v5041 = vadd.f32 %v4888, %v5040
      %v5042 = vpop.f32.mrb[0].mxu0
      %5043 = vmatprep.mubr.bf16.mxu0 0
      %5044 = vmatmul.mubr.bf16.gmra.mrb[0].mxu0 %v4618
      %v5045 = vpop.f32.mrb[0].mxu0
      %v5046 = vadd.f32 %v4893, %v5045
      %v5047 = vpop.f32.mrb[0].mxu0
      %v5048 = vpop.f32.mrb[0].mxu0
      %v5049 = vadd.f32 %v4896, %v5048
      %v5050 = vpop.f32.mrb[0].mxu0
      %5051 = vmatprep.mubr.bf16.mxu0 0
      %5052 = vmatmul.mubr.bf16.gmra.mrb[0].mxu0 %v4621
      %v5053 = vpop.f32.mrb[0].mxu0
      %v5054 = vadd.f32 %v4901, %v5053
      %v5055 = vpop.f32.mrb[0].mxu0
      %v5056 = vpop.f32.mrb[0].mxu0
      %v5057 = vadd.f32 %v4904, %v5056
      %v5058 = vpop.f32.mrb[0].mxu0
      %5059 = vmatprep.mubr.bf16.mxu0 0
      %5060 = vmatmul.mubr.bf16.gmra.mrb[0].mxu0 %v4624
      %v5061 = vpop.f32.mrb[0].mxu0
      %v5062 = vadd.f32 %v4909, %v5061
      %v5063 = vpop.f32.mrb[0].mxu0
      %v5064 = vpop.f32.mrb[0].mxu0
      %v5065 = vadd.f32 %v4912, %v5064
      %v5066 = vpop.f32.mrb[0].mxu0
      %5067 = vmatprep.mubr.bf16.mxu0 0
      %5068 = vmatmul.mubr.bf16.gmra.mrb[0].mxu0 %v4627
      %v5069 = vpop.f32.mrb[0].mxu0
      %v5070 = vadd.f32 %v4917, %v5069
      %v5071 = vpop.f32.mrb[0].mxu0
      %v5072 = vpop.f32.mrb[0].mxu0
      %v5073 = vadd.f32 %v4920, %v5072
      %v5074 = vpop.f32.mrb[0].mxu0
      %5075 = vmatprep.mubr.bf16.mxu0 0
      %5076 = vmatmul.mubr.bf16.gmra.mrb[0].mxu0 %v4630
      %v5077 = vpop.f32.mrb[0].mxu0
      %v5078 = vadd.f32 %v4925, %v5077
      %v5079 = vpop.f32.mrb[0].mxu0
      %v5080 = vpop.f32.mrb[0].mxu0
      %v5081 = vadd.f32 %v4928, %v5080
      %v5082 = vpop.f32.mrb[0].mxu0
      %5083 = vmatprep.mubr.bf16.mxu0 0
      %5084 = vmatmul.mubr.bf16.gmra.mrb[0].mxu0 %v4633
      %v5085 = vpop.f32.mrb[0].mxu0
      %v5086 = vadd.f32 %v4933, %v5085
      %v5087 = vpop.f32.mrb[0].mxu0
      %v5088 = vpop.f32.mrb[0].mxu0
      %v5089 = vadd.f32 %v4936, %v5088
      %v5090 = vpop.f32.mrb[0].mxu0
      %5091 = vmatprep.mubr.bf16.mxu0 0
      %5092 = vmatmul.mubr.bf16.gmra.mrb[0].mxu0 %v4636
      %v5093 = vpop.f32.mrb[0].mxu0
      %v5094 = vadd.f32 %v4941, %v5093
      %v5095 = vpop.f32.mrb[0].mxu0
      %v5096 = vpop.f32.mrb[0].mxu0
      %v5097 = vadd.f32 %v4944, %v5096
      %v5098 = vpop.f32.mrb[0].mxu0
      %5099 = vdwg.mxu0
      %v5100 = vadd.f32 %v3569, %v4982
      %v5101 = vadd.f32 %v3570, %v4985
      %v5102 = vadd.f32 %v3571, %v4990
      %v5103 = vadd.f32 %v3572, %v4993
      %v5104 = vadd.f32 %v3573, %v4998
      %v5105 = vadd.f32 %v3574, %v5001
      %v5106 = vadd.f32 %v3575, %v5006
      %v5107 = vadd.f32 %v3576, %v5009
      %v5108 = vadd.f32 %v3577, %v5014
      %v5109 = vadd.f32 %v3578, %v5017
      %v5110 = vadd.f32 %v3579, %v5022
      %v5111 = vadd.f32 %v3580, %v5025
      %v5112 = vadd.f32 %v3581, %v5030
      %v5113 = vadd.f32 %v3582, %v5033
      %v5114 = vadd.f32 %v3583, %v5038
      %v5115 = vadd.f32 %v3584, %v5041
      %v5116 = vadd.f32 %v3585, %v5046
      %v5117 = vadd.f32 %v3586, %v5049
      %v5118 = vadd.f32 %v3587, %v5054
      %v5119 = vadd.f32 %v3588, %v5057
      %v5120 = vadd.f32 %v3589, %v5062
      %v5121 = vadd.f32 %v3590, %v5065
      %v5122 = vadd.f32 %v3591, %v5070
      %v5123 = vadd.f32 %v3592, %v5073
      %v5124 = vadd.f32 %v3593, %v5078
      %v5125 = vadd.f32 %v3594, %v5081
      %v5126 = vadd.f32 %v3595, %v5086
      %v5127 = vadd.f32 %v3596, %v5089
      %v5128 = vadd.f32 %v3597, %v5094
      %v5129 = vadd.f32 %v3598, %v5097
      %vm5130 = vcmp.ge.f32.partialorder %v5100, 0.0
      %vm5131 = vcmp.ge.f32.partialorder %v5101, 0.0
      %vm5132 = vcmp.ge.f32.partialorder %v5102, 0.0
      %vm5133 = vcmp.ge.f32.partialorder %v5103, 0.0
      %vm5134 = vcmp.ge.f32.partialorder %v5104, 0.0
      %vm5135 = vcmp.ge.f32.partialorder %v5105, 0.0
      %vm5136 = vcmp.ge.f32.partialorder %v5106, 0.0
      %vm5137 = vcmp.ge.f32.partialorder %v5107, 0.0
      %vm5138 = vcmp.ge.f32.partialorder %v5108, 0.0
      %vm5139 = vcmp.ge.f32.partialorder %v5109, 0.0
      %vm5140 = vcmp.ge.f32.partialorder %v5110, 0.0
      %vm5141 = vcmp.ge.f32.partialorder %v5111, 0.0
      %vm5142 = vcmp.ge.f32.partialorder %v5112, 0.0
      %vm5143 = vcmp.ge.f32.partialorder %v5113, 0.0
      %vm5144 = vcmp.ge.f32.partialorder %v5114, 0.0
      %vm5145 = vcmp.ge.f32.partialorder %v5115, 0.0
      %vm5146 = vcmp.ge.f32.partialorder %v5116, 0.0
      %vm5147 = vcmp.ge.f32.partialorder %v5117, 0.0
      %vm5148 = vcmp.ge.f32.partialorder %v5118, 0.0
      %vm5149 = vcmp.ge.f32.partialorder %v5119, 0.0
      %vm5150 = vcmp.ge.f32.partialorder %v5120, 0.0
      %vm5151 = vcmp.ge.f32.partialorder %v5121, 0.0
      %vm5152 = vcmp.ge.f32.partialorder %v5122, 0.0
      %vm5153 = vcmp.ge.f32.partialorder %v5123, 0.0
      %vm5154 = vcmp.ge.f32.partialorder %v5124, 0.0
      %vm5155 = vcmp.ge.f32.partialorder %v5125, 0.0
      %vm5156 = vcmp.ge.f32.partialorder %v5126, 0.0
      %vm5157 = vcmp.ge.f32.partialorder %v5127, 0.0
      %vm5158 = vcmp.ge.f32.partialorder %v5128, 0.0
      %vm5159 = vcmp.ge.f32.partialorder %v5129, 0.0
      %v5160 = vmul.f32 %v5100, 0.01
      %v5161 = vmul.f32 %v5101, 0.01
      %v5162 = vmul.f32 %v5102, 0.01
      %v5163 = vmul.f32 %v5103, 0.01
      %v5164 = vmul.f32 %v5104, 0.01
      %v5165 = vmul.f32 %v5105, 0.01
      %v5166 = vmul.f32 %v5106, 0.01
      %v5167 = vmul.f32 %v5107, 0.01
      %v5168 = vmul.f32 %v5108, 0.01
      %v5169 = vmul.f32 %v5109, 0.01
      %v5170 = vmul.f32 %v5110, 0.01
      %v5171 = vmul.f32 %v5111, 0.01
      %v5172 = vmul.f32 %v5112, 0.01
      %v5173 = vmul.f32 %v5113, 0.01
      %v5174 = vmul.f32 %v5114, 0.01
      %v5175 = vmul.f32 %v5115, 0.01
      %v5176 = vmul.f32 %v5116, 0.01
      %v5177 = vmul.f32 %v5117, 0.01
      %v5178 = vmul.f32 %v5118, 0.01
      %v5179 = vmul.f32 %v5119, 0.01
      %v5180 = vmul.f32 %v5120, 0.01
      %v5181 = vmul.f32 %v5121, 0.01
      %v5182 = vmul.f32 %v5122, 0.01
      %v5183 = vmul.f32 %v5123, 0.01
      %v5184 = vmul.f32 %v5124, 0.01
      %v5185 = vmul.f32 %v5125, 0.01
      %v5186 = vmul.f32 %v5126, 0.01
      %v5187 = vmul.f32 %v5127, 0.01
      %v5188 = vmul.f32 %v5128, 0.01
      %v5189 = vmul.f32 %v5129, 0.01
      %v5190 = vsel %vm5130, %v5100, %v5160
      %v5191 = vsel %vm5131, %v5101, %v5161
      %v5192 = vsel %vm5132, %v5102, %v5162
      %v5193 = vsel %vm5133, %v5103, %v5163
      %v5194 = vsel %vm5134, %v5104, %v5164
      %v5195 = vsel %vm5135, %v5105, %v5165
      %v5196 = vsel %vm5136, %v5106, %v5166
      %v5197 = vsel %vm5137, %v5107, %v5167
      %v5198 = vsel %vm5138, %v5108, %v5168
      %v5199 = vsel %vm5139, %v5109, %v5169
      %v5200 = vsel %vm5140, %v5110, %v5170
      %v5201 = vsel %vm5141, %v5111, %v5171
      %v5202 = vsel %vm5142, %v5112, %v5172
      %v5203 = vsel %vm5143, %v5113, %v5173
      %v5204 = vsel %vm5144, %v5114, %v5174
      %v5205 = vsel %vm5145, %v5115, %v5175
      %v5206 = vsel %vm5146, %v5116, %v5176
      %v5207 = vsel %vm5147, %v5117, %v5177
      %v5208 = vsel %vm5148, %v5118, %v5178
      %v5209 = vsel %vm5149, %v5119, %v5179
      %v5210 = vsel %vm5150, %v5120, %v5180
      %v5211 = vsel %vm5151, %v5121, %v5181
      %v5212 = vsel %vm5152, %v5122, %v5182
      %v5213 = vsel %vm5153, %v5123, %v5183
      %v5214 = vsel %vm5154, %v5124, %v5184
      %v5215 = vsel %vm5155, %v5125, %v5185
      %v5216 = vsel %vm5156, %v5126, %v5186
      %v5217 = vsel %vm5157, %v5127, %v5187
      %v5218 = vsel %vm5158, %v5128, %v5188
      %v5219 = vsel %vm5159, %v5129, %v5189
      %v5220 = vld [vmem:[%s4] sm:$0x1]
      %v5221 = vrot.slane %v5190, 7
      %v5222 = vrot.slane %v5191, 7
      %v5223 = vrot.slane %v5192, 7
      %v5224 = vrot.slane %v5193, 7
      %v5225 = vrot.slane %v5194, 7
      %v5226 = vrot.slane %v5195, 7
      %v5227 = vrot.slane %v5196, 7
      %v5228 = vrot.slane %v5197, 7
      %v5229 = vrot.slane %v5198, 7
      %v5230 = vrot.slane %v5199, 7
      %v5231 = vrot.slane %v5200, 7
      %v5232 = vrot.slane %v5201, 7
      %v5233 = vrot.slane %v5202, 7
      %v5234 = vrot.slane %v5203, 7
      %v5235 = vrot.slane %v5204, 7
      %v5236 = vrot.slane %v5205, 7
      %v5237 = vrot.slane %v5206, 7
      %v5238 = vrot.slane %v5207, 7
      %v5239 = vrot.slane %v5208, 7
      %v5240 = vrot.slane %v5209, 7
      %v5241 = vrot.slane %v5210, 7
      %v5242 = vrot.slane %v5211, 7
      %v5243 = vrot.slane %v5212, 7
      %v5244 = vrot.slane %v5213, 7
      %v5245 = vrot.slane %v5214, 7
      %v5246 = vrot.slane %v5215, 7
      %v5247 = vrot.slane %v5216, 7
      %v5248 = vrot.slane %v5217, 7
      %v5249 = vrot.slane %v5218, 7
      %v5250 = vrot.slane %v5219, 7
      %v5251 = vsel %vm1311, %v5249, %v5250
      %v5252 = vsel %vm1311, %v5248, %v5249
      %v5253 = vsel %vm1311, %v5247, %v5248
      %v5254 = vsel %vm1311, %v5246, %v5247
      %v5255 = vsel %vm1311, %v5245, %v5246
      %v5256 = vsel %vm1311, %v5244, %v5245
      %v5257 = vsel %vm1311, %v5243, %v5244
      %v5258 = vsel %vm1311, %v5242, %v5243
      %v5259 = vsel %vm1311, %v5241, %v5242
      %v5260 = vsel %vm1311, %v5240, %v5241
      %v5261 = vsel %vm1311, %v5239, %v5240
      %v5262 = vsel %vm1311, %v5238, %v5239
      %v5263 = vsel %vm1311, %v5237, %v5238
      %v5264 = vsel %vm1311, %v5236, %v5237
      %v5265 = vsel %vm1311, %v5235, %v5236
      %v5266 = vsel %vm1311, %v5234, %v5235
      %v5267 = vsel %vm1311, %v5233, %v5234
      %v5268 = vsel %vm1311, %v5232, %v5233
      %v5269 = vsel %vm1311, %v5231, %v5232
      %v5270 = vsel %vm1311, %v5230, %v5231
      %v5271 = vsel %vm1311, %v5229, %v5230
      %v5272 = vsel %vm1311, %v5228, %v5229
      %v5273 = vsel %vm1311, %v5227, %v5228
      %v5274 = vsel %vm1311, %v5226, %v5227
      %v5275 = vsel %vm1311, %v5225, %v5226
      %v5276 = vsel %vm1311, %v5224, %v5225
      %v5277 = vsel %vm1311, %v5223, %v5224
      %v5278 = vsel %vm1311, %v5222, %v5223
      %v5279 = vsel %vm1311, %v5221, %v5222
      %v5280 = vsel %vm1311, %v5250, %v5221
      %v5281 = vsel %vm1612, %v5280, 0.0
      %v5282 = vsel %vm1613, %v5279, 0.0
      %v5283 = vsel %vm1614, %v5278, 0.0
      %v5284 = vsel %vm1615, %v5277, 0.0
      %v5285 = vsel %vm1616, %v5276, 0.0
      %v5286 = vsel %vm1617, %v5275, 0.0
      %v5287 = vsel %vm1618, %v5274, 0.0
      %v5288 = vsel %vm1619, %v5273, 0.0
      %v5289 = vsel %vm1620, %v5272, 0.0
      %v5290 = vsel %vm1621, %v5271, 0.0
      %v5291 = vsel %vm1622, %v5270, 0.0
      %v5292 = vsel %vm1623, %v5269, 0.0
      %v5293 = vsel %vm1624, %v5268, 0.0
      %v5294 = vsel %vm1625, %v5267, 0.0
      %v5295 = vsel %vm1626, %v5266, 0.0
      %v5296 = vsel %vm1627, %v5265, 0.0
      %v5297 = vsel %vm1628, %v5264, 0.0
      %v5298 = vsel %vm1629, %v5263, 0.0
      %v5299 = vsel %vm1630, %v5262, 0.0
      %v5300 = vsel %vm1631, %v5261, 0.0
      %v5301 = vsel %vm1632, %v5260, 0.0
      %v5302 = vsel %vm1633, %v5259, 0.0
      %v5303 = vsel %vm1634, %v5258, 0.0
      %v5304 = vsel %vm1635, %v5257, 0.0
      %v5305 = vsel %vm1636, %v5256, 0.0
      %v5306 = vsel %vm1637, %v5255, 0.0
      %v5307 = vsel %vm1638, %v5254, 0.0
      %v5308 = vsel %vm1639, %v5253, 0.0
      %v5309 = vsel %vm1640, %v5252, 0.0
      %v5310 = vsel %vm1641, %v5251, 0.0
      %v5311 = vpack.c.bf16 %v5282, %v5281
      %v5312 = vpack.c.bf16 %v5284, %v5283
      %v5313 = vpack.c.bf16 %v5286, %v5285
      %v5314 = vpack.c.bf16 %v5288, %v5287
      %v5315 = vpack.c.bf16 %v5290, %v5289
      %v5316 = vpack.c.bf16 %v5292, %v5291
      %v5317 = vpack.c.bf16 %v5294, %v5293
      %v5318 = vpack.c.bf16 %v5296, %v5295
      %v5319 = vpack.c.bf16 %v5298, %v5297
      %v5320 = vpack.c.bf16 %v5300, %v5299
      %v5321 = vpack.c.bf16 %v5302, %v5301
      %v5322 = vpack.c.bf16 %v5304, %v5303
      %v5323 = vpack.c.bf16 %v5306, %v5305
      %v5324 = vpack.c.bf16 %v5308, %v5307
      %v5325 = vpack.c.bf16 %v5310, %v5309
      %v5326 = vld [vmem:[%s3] sm:$0xf]
      %v5327 = vld [vmem:[%s3 + $0x4] sm:$0xf]
      %v5328 = vld [vmem:[%s3 + $0x8] sm:$0xf]
      %v5329 = vld [vmem:[%s3 + $0xc] sm:$0xf]
      %v5330 = vld [vmem:[%s3 + $0x10] sm:$0xf]
      %v5331 = vld [vmem:[%s3 + $0x14] sm:$0xf]
      %v5332 = vld [vmem:[%s3 + $0x18] sm:$0xf]
      %v5333 = vld [vmem:[%s3 + $0x1c] sm:$0xf]
      %v5334 = vld [vmem:[%s3 + $0x20] sm:$0xf]
      %v5335 = vld [vmem:[%s3 + $0x24] sm:$0xf]
      %v5346 = vunpack.c.l.b16 %v5326
      %v5347 = vunpack.c.l.b16 %v5327
      %v5348 = vunpack.c.l.b16 %v5328
      %v5349 = vunpack.c.l.b16 %v5329
      %v5350 = vunpack.c.l.b16 %v5330
      %v5351 = vunpack.c.l.b16 %v5331
      %v5352 = vunpack.c.l.b16 %v5332
      %v5353 = vunpack.c.l.b16 %v5333
      %v5354 = vunpack.c.l.b16 %v5334
      %v5355 = vunpack.c.l.b16 %v5335
      %v5356 = vpack.c.b16 %v5347, %v5346
      %v5357 = vpack.c.b16 %v5349, %v5348
      %v5358 = vpack.c.b16 %v5351, %v5350
      %v5359 = vpack.c.b16 %v5353, %v5352
      %v5360 = vpack.c.b16 %v5355, %v5354
      %vm5366 = vcmask 654336
      %v5368 = vsel %vm5366, %v5311, 0
      %v5371 = vsel %vm5366, %v5312, 0
      %v5374 = vsel %vm5366, %v5313, 0
      %v5377 = vsel %vm5366, %v5314, 0
      %v5380 = vsel %vm5366, %v5315, 0
      %v5383 = vsel %vm5366, %v5316, 0
      %v5386 = vsel %vm5366, %v5317, 0
      %v5389 = vsel %vm5366, %v5318, 0
      %v5392 = vsel %vm5366, %v5319, 0
      %v5395 = vsel %vm5366, %v5320, 0
      %v5398 = vsel %vm5366, %v5321, 0
      %v5401 = vsel %vm5366, %v5322, 0
      %v5404 = vsel %vm5366, %v5323, 0
      %v5407 = vsel %vm5366, %v5324, 0
      %v5410 = vsel %vm5366, %v5325, 0
      %5412 = vmatprep.subr.bf16.mxu0 0
      %5413 = vmatpush1.bf16.msra.mxu0 %v5356
      %5414 = vmatprep.subr.bf16.mxu0 0
      %5415 = vmatpush1.bf16.msra.mxu0 %v5357
      %5416 = vmatprep.subr.bf16.mxu0 0
      %5417 = vmatpush1.bf16.msra.mxu0 %v5358
      %5418 = vmatprep.subr.bf16.mxu0 0
      %5419 = vmatpush1.bf16.msra.mxu0 %v5359
      %5420 = vmatprep.subr.bf16.mxu0 0
      %5421 = vmatpush1.bf16.msra.mxu0 %v5360
      %5422 = vmatprep.subr.bf16.mxu0 0
      %5423 = vmatpush1.bf16.msra.mxu0 0
      %5424 = vmatprep.subr.bf16.mxu0 0
      %5425 = vmatpush1.bf16.msra.mxu0 0
      %5426 = vmatprep.subr.bf16.mxu0 0
      %5427 = vmatpush1.bf16.msra.mxu0 0
      %5428 = vmatprep.subr.bf16.mxu0 0
      %5429 = vmatpush1.bf16.msra.mxu0 0
      %5430 = vmatprep.subr.bf16.mxu0 0
      %5431 = vmatpush1.bf16.msra.mxu0 0
      %5432 = vmatprep.subr.bf16.mxu0 0
      %5433 = vmatpush1.bf16.msra.mxu0 0
      %5434 = vmatprep.subr.bf16.mxu0 0
      %5435 = vmatpush1.bf16.msra.mxu0 0
      %5436 = vmatprep.subr.bf16.mxu0 0
      %5437 = vmatpush1.bf16.msra.mxu0 0
      %5438 = vmatprep.subr.bf16.mxu0 0
      %5439 = vmatpush1.bf16.msra.mxu0 0
      %5440 = vmatprep.subr.bf16.mxu0 0
      %5441 = vmatpush1.bf16.msra.mxu0 0
      %5442 = vmatprep.subr.bf16.mxu0 0
      %5443 = vmatpush1.bf16.msra.mxu0 0
      %5444 = vmatprep.mubr.bf16.mxu0 0
      %5445 = vmatmul.mubr.bf16.gmra.mrb[0].mxu0 %v5368
      %v5446 = vpop.f32.mrb[0].mxu0
      %v5447 = vadd.f32 0.0, %v5446
      %v5448 = vpop.f32.mrb[0].mxu0
      %v5449 = vpop.f32.mrb[0].mxu0
      %v5450 = vadd.f32 0.0, %v5449
      %v5451 = vpop.f32.mrb[0].mxu0
      %5452 = vmatprep.mubr.bf16.mxu0 0
      %5453 = vmatmul.mubr.bf16.gmra.mrb[0].mxu0 %v5371
      %v5454 = vpop.f32.mrb[0].mxu0
      %v5455 = vadd.f32 0.0, %v5454
      %v5456 = vpop.f32.mrb[0].mxu0
      %v5457 = vpop.f32.mrb[0].mxu0
      %v5458 = vadd.f32 0.0, %v5457
      %v5459 = vpop.f32.mrb[0].mxu0
      %5460 = vmatprep.mubr.bf16.mxu0 0
      %5461 = vmatmul.mubr.bf16.gmra.mrb[0].mxu0 %v5374
      %v5462 = vpop.f32.mrb[0].mxu0
      %v5463 = vadd.f32 0.0, %v5462
      %v5464 = vpop.f32.mrb[0].mxu0
      %v5465 = vpop.f32.mrb[0].mxu0
      %v5466 = vadd.f32 0.0, %v5465
      %v5467 = vpop.f32.mrb[0].mxu0
      %5468 = vmatprep.mubr.bf16.mxu0 0
      %5469 = vmatmul.mubr.bf16.gmra.mrb[0].mxu0 %v5377
      %v5470 = vpop.f32.mrb[0].mxu0
      %v5471 = vadd.f32 0.0, %v5470
      %v5472 = vpop.f32.mrb[0].mxu0
      %v5473 = vpop.f32.mrb[0].mxu0
      %v5474 = vadd.f32 0.0, %v5473
      %v5475 = vpop.f32.mrb[0].mxu0
      %5476 = vmatprep.mubr.bf16.mxu0 0
      %5477 = vmatmul.mubr.bf16.gmra.mrb[0].mxu0 %v5380
      %v5478 = vpop.f32.mrb[0].mxu0
      %v5479 = vadd.f32 0.0, %v5478
      %v5480 = vpop.f32.mrb[0].mxu0
      %v5481 = vpop.f32.mrb[0].mxu0
      %v5482 = vadd.f32 0.0, %v5481
      %v5483 = vpop.f32.mrb[0].mxu0
      %5484 = vmatprep.mubr.bf16.mxu0 0
      %5485 = vmatmul.mubr.bf16.gmra.mrb[0].mxu0 %v5383
      %v5486 = vpop.f32.mrb[0].mxu0
      %v5487 = vadd.f32 0.0, %v5486
      %v5488 = vpop.f32.mrb[0].mxu0
      %v5489 = vpop.f32.mrb[0].mxu0
      %v5490 = vadd.f32 0.0, %v5489
      %v5491 = vpop.f32.mrb[0].mxu0
      %5492 = vmatprep.mubr.bf16.mxu0 0
      %5493 = vmatmul.mubr.bf16.gmra.mrb[0].mxu0 %v5386
      %v5494 = vpop.f32.mrb[0].mxu0
      %v5495 = vadd.f32 0.0, %v5494
      %v5496 = vpop.f32.mrb[0].mxu0
      %v5497 = vpop.f32.mrb[0].mxu0
      %v5498 = vadd.f32 0.0, %v5497
      %v5499 = vpop.f32.mrb[0].mxu0
      %5500 = vmatprep.mubr.bf16.mxu0 0
      %5501 = vmatmul.mubr.bf16.gmra.mrb[0].mxu0 %v5389
      %v5502 = vpop.f32.mrb[0].mxu0
      %v5503 = vadd.f32 0.0, %v5502
      %v5504 = vpop.f32.mrb[0].mxu0
      %v5505 = vpop.f32.mrb[0].mxu0
      %v5506 = vadd.f32 0.0, %v5505
      %v5507 = vpop.f32.mrb[0].mxu0
      %5508 = vmatprep.mubr.bf16.mxu0 0
      %5509 = vmatmul.mubr.bf16.gmra.mrb[0].mxu0 %v5392
      %v5510 = vpop.f32.mrb[0].mxu0
      %v5511 = vadd.f32 0.0, %v5510
      %v5512 = vpop.f32.mrb[0].mxu0
      %v5513 = vpop.f32.mrb[0].mxu0
      %v5514 = vadd.f32 0.0, %v5513
      %v5515 = vpop.f32.mrb[0].mxu0
      %5516 = vmatprep.mubr.bf16.mxu0 0
      %5517 = vmatmul.mubr.bf16.gmra.mrb[0].mxu0 %v5395
      %v5518 = vpop.f32.mrb[0].mxu0
      %v5519 = vadd.f32 0.0, %v5518
      %v5520 = vpop.f32.mrb[0].mxu0
      %v5521 = vpop.f32.mrb[0].mxu0
      %v5522 = vadd.f32 0.0, %v5521
      %v5523 = vpop.f32.mrb[0].mxu0
      %5524 = vmatprep.mubr.bf16.mxu0 0
      %5525 = vmatmul.mubr.bf16.gmra.mrb[0].mxu0 %v5398
      %v5526 = vpop.f32.mrb[0].mxu0
      %v5527 = vadd.f32 0.0, %v5526
      %v5528 = vpop.f32.mrb[0].mxu0
      %v5529 = vpop.f32.mrb[0].mxu0
      %v5530 = vadd.f32 0.0, %v5529
      %v5531 = vpop.f32.mrb[0].mxu0
      %5532 = vmatprep.mubr.bf16.mxu0 0
      %5533 = vmatmul.mubr.bf16.gmra.mrb[0].mxu0 %v5401
      %v5534 = vpop.f32.mrb[0].mxu0
      %v5535 = vadd.f32 0.0, %v5534
      %v5536 = vpop.f32.mrb[0].mxu0
      %v5537 = vpop.f32.mrb[0].mxu0
      %v5538 = vadd.f32 0.0, %v5537
      %v5539 = vpop.f32.mrb[0].mxu0
      %5540 = vmatprep.mubr.bf16.mxu0 0
      %5541 = vmatmul.mubr.bf16.gmra.mrb[0].mxu0 %v5404
      %v5542 = vpop.f32.mrb[0].mxu0
      %v5543 = vadd.f32 0.0, %v5542
      %v5544 = vpop.f32.mrb[0].mxu0
      %v5545 = vpop.f32.mrb[0].mxu0
      %v5546 = vadd.f32 0.0, %v5545
      %v5547 = vpop.f32.mrb[0].mxu0
      %5548 = vmatprep.mubr.bf16.mxu0 0
      %5549 = vmatmul.mubr.bf16.gmra.mrb[0].mxu0 %v5407
      %v5550 = vpop.f32.mrb[0].mxu0
      %v5551 = vadd.f32 0.0, %v5550
      %v5552 = vpop.f32.mrb[0].mxu0
      %v5553 = vpop.f32.mrb[0].mxu0
      %v5554 = vadd.f32 0.0, %v5553
      %v5555 = vpop.f32.mrb[0].mxu0
      %5556 = vmatprep.mubr.bf16.mxu0 0
      %5557 = vmatmul.mubr.bf16.gmra.mrb[0].mxu0 %v5410
      %v5558 = vpop.f32.mrb[0].mxu0
      %v5559 = vadd.f32 0.0, %v5558
      %v5560 = vpop.f32.mrb[0].mxu0
      %v5561 = vpop.f32.mrb[0].mxu0
      %v5562 = vadd.f32 0.0, %v5561
      %v5563 = vpop.f32.mrb[0].mxu0
      %5564 = vdwg.mxu0
      %v5566 = vlaneseq
      %v5567 = vshrl.u32 %v5566, 7
      %v5568 = vsub.s32 0, %v5567
      %v5569 = vrot.slane %v5220, %v5568
      %v5571 = vadd.f32 %v5569, %v5447
      %v5572 = vadd.f32 %v5569, %v5450
      %v5573 = vadd.f32 %v5569, %v5455
      %v5574 = vadd.f32 %v5569, %v5458
      %v5575 = vadd.f32 %v5569, %v5463
      %v5576 = vadd.f32 %v5569, %v5466
      %v5577 = vadd.f32 %v5569, %v5471
      %v5578 = vadd.f32 %v5569, %v5474
      %v5579 = vadd.f32 %v5569, %v5479
      %v5580 = vadd.f32 %v5569, %v5482
      %v5581 = vadd.f32 %v5569, %v5487
      %v5582 = vadd.f32 %v5569, %v5490
      %v5583 = vadd.f32 %v5569, %v5495
      %v5584 = vadd.f32 %v5569, %v5498
      %v5585 = vadd.f32 %v5569, %v5503
      %v5586 = vadd.f32 %v5569, %v5506
      %v5587 = vadd.f32 %v5569, %v5511
      %v5588 = vadd.f32 %v5569, %v5514
      %v5589 = vadd.f32 %v5569, %v5519
      %v5590 = vadd.f32 %v5569, %v5522
      %v5591 = vadd.f32 %v5569, %v5527
      %v5592 = vadd.f32 %v5569, %v5530
      %v5593 = vadd.f32 %v5569, %v5535
      %v5594 = vadd.f32 %v5569, %v5538
      %v5595 = vadd.f32 %v5569, %v5543
      %v5596 = vadd.f32 %v5569, %v5546
      %v5597 = vadd.f32 %v5569, %v5551
      %v5598 = vadd.f32 %v5569, %v5554
      %v5599 = vadd.f32 %v5569, %v5559
      %v5600 = vadd.f32 %v5569, %v5562
      %v5601 = vpack.c.bf16 %v5191, %v5190
      %v5602 = vpack.c.bf16 %v5193, %v5192
      %v5603 = vpack.c.bf16 %v5195, %v5194
      %v5604 = vpack.c.bf16 %v5197, %v5196
      %v5605 = vpack.c.bf16 %v5199, %v5198
      %v5606 = vpack.c.bf16 %v5201, %v5200
      %v5607 = vpack.c.bf16 %v5203, %v5202
      %v5608 = vpack.c.bf16 %v5205, %v5204
      %v5609 = vpack.c.bf16 %v5207, %v5206
      %v5610 = vpack.c.bf16 %v5209, %v5208
      %v5611 = vpack.c.bf16 %v5211, %v5210
      %v5612 = vpack.c.bf16 %v5213, %v5212
      %v5613 = vpack.c.bf16 %v5215, %v5214
      %v5614 = vpack.c.bf16 %v5217, %v5216
      %v5615 = vpack.c.bf16 %v5219, %v5218
      %s5616 = scalar_lea.vmem %s3, 40
      %v5617 = vld [vmem:[%s5616] sm:$0xf]
      %v5618 = vld [vmem:[%s5616 + $0x4] sm:$0xf]
      %v5619 = vld [vmem:[%s5616 + $0x8] sm:$0xf]
      %v5620 = vld [vmem:[%s5616 + $0xc] sm:$0xf]
      %v5621 = vld [vmem:[%s5616 + $0x10] sm:$0xf]
      %v5622 = vld [vmem:[%s5616 + $0x14] sm:$0xf]
      %v5623 = vld [vmem:[%s5616 + $0x18] sm:$0xf]
      %v5624 = vld [vmem:[%s5616 + $0x1c] sm:$0xf]
      %v5625 = vld [vmem:[%s5616 + $0x20] sm:$0xf]
      %v5626 = vld [vmem:[%s5616 + $0x24] sm:$0xf]
      %v5637 = vunpack.c.l.b16 %v5617
      %v5638 = vunpack.c.l.b16 %v5618
      %v5639 = vunpack.c.l.b16 %v5619
      %v5640 = vunpack.c.l.b16 %v5620
      %v5641 = vunpack.c.l.b16 %v5621
      %v5642 = vunpack.c.l.b16 %v5622
      %v5643 = vunpack.c.l.b16 %v5623
      %v5644 = vunpack.c.l.b16 %v5624
      %v5645 = vunpack.c.l.b16 %v5625
      %v5646 = vunpack.c.l.b16 %v5626
      %v5647 = vpack.c.b16 %v5638, %v5637
      %v5648 = vpack.c.b16 %v5640, %v5639
      %v5649 = vpack.c.b16 %v5642, %v5641
      %v5650 = vpack.c.b16 %v5644, %v5643
      %v5651 = vpack.c.b16 %v5646, %v5645
      %v5658 = vsel %vm5366, %v5601, 0
      %v5661 = vsel %vm5366, %v5602, 0
      %v5664 = vsel %vm5366, %v5603, 0
      %v5667 = vsel %vm5366, %v5604, 0
      %v5670 = vsel %vm5366, %v5605, 0
      %v5673 = vsel %vm5366, %v5606, 0
      %v5676 = vsel %vm5366, %v5607, 0
      %v5679 = vsel %vm5366, %v5608, 0
      %v5682 = vsel %vm5366, %v5609, 0
      %v5685 = vsel %vm5366, %v5610, 0
      %v5688 = vsel %vm5366, %v5611, 0
      %v5691 = vsel %vm5366, %v5612, 0
      %v5694 = vsel %vm5366, %v5613, 0
      %v5697 = vsel %vm5366, %v5614, 0
      %v5700 = vsel %vm5366, %v5615, 0
      %5702 = vmatprep.subr.bf16.mxu0 0
      %5703 = vmatpush1.bf16.msra.mxu0 %v5647
      %5704 = vmatprep.subr.bf16.mxu0 0
      %5705 = vmatpush1.bf16.msra.mxu0 %v5648
      %5706 = vmatprep.subr.bf16.mxu0 0
      %5707 = vmatpush1.bf16.msra.mxu0 %v5649
      %5708 = vmatprep.subr.bf16.mxu0 0
      %5709 = vmatpush1.bf16.msra.mxu0 %v5650
      %5710 = vmatprep.subr.bf16.mxu0 0
      %5711 = vmatpush1.bf16.msra.mxu0 %v5651
      %5712 = vmatprep.subr.bf16.mxu0 0
      %5713 = vmatpush1.bf16.msra.mxu0 0
      %5714 = vmatprep.subr.bf16.mxu0 0
      %5715 = vmatpush1.bf16.msra.mxu0 0
      %5716 = vmatprep.subr.bf16.mxu0 0
      %5717 = vmatpush1.bf16.msra.mxu0 0
      %5718 = vmatprep.subr.bf16.mxu0 0
      %5719 = vmatpush1.bf16.msra.mxu0 0
      %5720 = vmatprep.subr.bf16.mxu0 0
      %5721 = vmatpush1.bf16.msra.mxu0 0
      %5722 = vmatprep.subr.bf16.mxu0 0
      %5723 = vmatpush1.bf16.msra.mxu0 0
      %5724 = vmatprep.subr.bf16.mxu0 0
      %5725 = vmatpush1.bf16.msra.mxu0 0
      %5726 = vmatprep.subr.bf16.mxu0 0
      %5727 = vmatpush1.bf16.msra.mxu0 0
      %5728 = vmatprep.subr.bf16.mxu0 0
      %5729 = vmatpush1.bf16.msra.mxu0 0
      %5730 = vmatprep.subr.bf16.mxu0 0
      %5731 = vmatpush1.bf16.msra.mxu0 0
      %5732 = vmatprep.subr.bf16.mxu0 0
      %5733 = vmatpush1.bf16.msra.mxu0 0
      %5734 = vmatprep.mubr.bf16.mxu0 0
      %5735 = vmatmul.mubr.bf16.gmra.mrb[0].mxu0 %v5658
      %v5736 = vpop.f32.mrb[0].mxu0
      %v5737 = vadd.f32 0.0, %v5736
      %v5738 = vpop.f32.mrb[0].mxu0
      %v5739 = vpop.f32.mrb[0].mxu0
      %v5740 = vadd.f32 0.0, %v5739
      %v5741 = vpop.f32.mrb[0].mxu0
      %5742 = vmatprep.mubr.bf16.mxu0 0
      %5743 = vmatmul.mubr.bf16.gmra.mrb[0].mxu0 %v5661
      %v5744 = vpop.f32.mrb[0].mxu0
      %v5745 = vadd.f32 0.0, %v5744
      %v5746 = vpop.f32.mrb[0].mxu0
      %v5747 = vpop.f32.mrb[0].mxu0
      %v5748 = vadd.f32 0.0, %v5747
      %v5749 = vpop.f32.mrb[0].mxu0
      %5750 = vmatprep.mubr.bf16.mxu0 0
      %5751 = vmatmul.mubr.bf16.gmra.mrb[0].mxu0 %v5664
      %v5752 = vpop.f32.mrb[0].mxu0
      %v5753 = vadd.f32 0.0, %v5752
      %v5754 = vpop.f32.mrb[0].mxu0
      %v5755 = vpop.f32.mrb[0].mxu0
      %v5756 = vadd.f32 0.0, %v5755
      %v5757 = vpop.f32.mrb[0].mxu0
      %5758 = vmatprep.mubr.bf16.mxu0 0
      %5759 = vmatmul.mubr.bf16.gmra.mrb[0].mxu0 %v5667
      %v5760 = vpop.f32.mrb[0].mxu0
      %v5761 = vadd.f32 0.0, %v5760
      %v5762 = vpop.f32.mrb[0].mxu0
      %v5763 = vpop.f32.mrb[0].mxu0
      %v5764 = vadd.f32 0.0, %v5763
      %v5765 = vpop.f32.mrb[0].mxu0
      %5766 = vmatprep.mubr.bf16.mxu0 0
      %5767 = vmatmul.mubr.bf16.gmra.mrb[0].mxu0 %v5670
      %v5768 = vpop.f32.mrb[0].mxu0
      %v5769 = vadd.f32 0.0, %v5768
      %v5770 = vpop.f32.mrb[0].mxu0
      %v5771 = vpop.f32.mrb[0].mxu0
      %v5772 = vadd.f32 0.0, %v5771
      %v5773 = vpop.f32.mrb[0].mxu0
      %5774 = vmatprep.mubr.bf16.mxu0 0
      %5775 = vmatmul.mubr.bf16.gmra.mrb[0].mxu0 %v5673
      %v5776 = vpop.f32.mrb[0].mxu0
      %v5777 = vadd.f32 0.0, %v5776
      %v5778 = vpop.f32.mrb[0].mxu0
      %v5779 = vpop.f32.mrb[0].mxu0
      %v5780 = vadd.f32 0.0, %v5779
      %v5781 = vpop.f32.mrb[0].mxu0
      %5782 = vmatprep.mubr.bf16.mxu0 0
      %5783 = vmatmul.mubr.bf16.gmra.mrb[0].mxu0 %v5676
      %v5784 = vpop.f32.mrb[0].mxu0
      %v5785 = vadd.f32 0.0, %v5784
      %v5786 = vpop.f32.mrb[0].mxu0
      %v5787 = vpop.f32.mrb[0].mxu0
      %v5788 = vadd.f32 0.0, %v5787
      %v5789 = vpop.f32.mrb[0].mxu0
      %5790 = vmatprep.mubr.bf16.mxu0 0
      %5791 = vmatmul.mubr.bf16.gmra.mrb[0].mxu0 %v5679
      %v5792 = vpop.f32.mrb[0].mxu0
      %v5793 = vadd.f32 0.0, %v5792
      %v5794 = vpop.f32.mrb[0].mxu0
      %v5795 = vpop.f32.mrb[0].mxu0
      %v5796 = vadd.f32 0.0, %v5795
      %v5797 = vpop.f32.mrb[0].mxu0
      %5798 = vmatprep.mubr.bf16.mxu0 0
      %5799 = vmatmul.mubr.bf16.gmra.mrb[0].mxu0 %v5682
      %v5800 = vpop.f32.mrb[0].mxu0
      %v5801 = vadd.f32 0.0, %v5800
      %v5802 = vpop.f32.mrb[0].mxu0
      %v5803 = vpop.f32.mrb[0].mxu0
      %v5804 = vadd.f32 0.0, %v5803
      %v5805 = vpop.f32.mrb[0].mxu0
      %5806 = vmatprep.mubr.bf16.mxu0 0
      %5807 = vmatmul.mubr.bf16.gmra.mrb[0].mxu0 %v5685
      %v5808 = vpop.f32.mrb[0].mxu0
      %v5809 = vadd.f32 0.0, %v5808
      %v5810 = vpop.f32.mrb[0].mxu0
      %v5811 = vpop.f32.mrb[0].mxu0
      %v5812 = vadd.f32 0.0, %v5811
      %v5813 = vpop.f32.mrb[0].mxu0
      %5814 = vmatprep.mubr.bf16.mxu0 0
      %5815 = vmatmul.mubr.bf16.gmra.mrb[0].mxu0 %v5688
      %v5816 = vpop.f32.mrb[0].mxu0
      %v5817 = vadd.f32 0.0, %v5816
      %v5818 = vpop.f32.mrb[0].mxu0
      %v5819 = vpop.f32.mrb[0].mxu0
      %v5820 = vadd.f32 0.0, %v5819
      %v5821 = vpop.f32.mrb[0].mxu0
      %5822 = vmatprep.mubr.bf16.mxu0 0
      %5823 = vmatmul.mubr.bf16.gmra.mrb[0].mxu0 %v5691
      %v5824 = vpop.f32.mrb[0].mxu0
      %v5825 = vadd.f32 0.0, %v5824
      %v5826 = vpop.f32.mrb[0].mxu0
      %v5827 = vpop.f32.mrb[0].mxu0
      %v5828 = vadd.f32 0.0, %v5827
      %v5829 = vpop.f32.mrb[0].mxu0
      %5830 = vmatprep.mubr.bf16.mxu0 0
      %5831 = vmatmul.mubr.bf16.gmra.mrb[0].mxu0 %v5694
      %v5832 = vpop.f32.mrb[0].mxu0
      %v5833 = vadd.f32 0.0, %v5832
      %v5834 = vpop.f32.mrb[0].mxu0
      %v5835 = vpop.f32.mrb[0].mxu0
      %v5836 = vadd.f32 0.0, %v5835
      %v5837 = vpop.f32.mrb[0].mxu0
      %5838 = vmatprep.mubr.bf16.mxu0 0
      %5839 = vmatmul.mubr.bf16.gmra.mrb[0].mxu0 %v5697
      %v5840 = vpop.f32.mrb[0].mxu0
      %v5841 = vadd.f32 0.0, %v5840
      %v5842 = vpop.f32.mrb[0].mxu0
      %v5843 = vpop.f32.mrb[0].mxu0
      %v5844 = vadd.f32 0.0, %v5843
      %v5845 = vpop.f32.mrb[0].mxu0
      %5846 = vmatprep.mubr.bf16.mxu0 0
      %5847 = vmatmul.mubr.bf16.gmra.mrb[0].mxu0 %v5700
      %v5848 = vpop.f32.mrb[0].mxu0
      %v5849 = vadd.f32 0.0, %v5848
      %v5850 = vpop.f32.mrb[0].mxu0
      %v5851 = vpop.f32.mrb[0].mxu0
      %v5852 = vadd.f32 0.0, %v5851
      %v5853 = vpop.f32.mrb[0].mxu0
      %5854 = vdwg.mxu0
      %v5855 = vadd.f32 %v5571, %v5737
      %v5856 = vadd.f32 %v5572, %v5740
      %v5857 = vadd.f32 %v5573, %v5745
      %v5858 = vadd.f32 %v5574, %v5748
      %v5859 = vadd.f32 %v5575, %v5753
      %v5860 = vadd.f32 %v5576, %v5756
      %v5861 = vadd.f32 %v5577, %v5761
      %v5862 = vadd.f32 %v5578, %v5764
      %v5863 = vadd.f32 %v5579, %v5769
      %v5864 = vadd.f32 %v5580, %v5772
      %v5865 = vadd.f32 %v5581, %v5777
      %v5866 = vadd.f32 %v5582, %v5780
      %v5867 = vadd.f32 %v5583, %v5785
      %v5868 = vadd.f32 %v5584, %v5788
      %v5869 = vadd.f32 %v5585, %v5793
      %v5870 = vadd.f32 %v5586, %v5796
      %v5871 = vadd.f32 %v5587, %v5801
      %v5872 = vadd.f32 %v5588, %v5804
      %v5873 = vadd.f32 %v5589, %v5809
      %v5874 = vadd.f32 %v5590, %v5812
      %v5875 = vadd.f32 %v5591, %v5817
      %v5876 = vadd.f32 %v5592, %v5820
      %v5877 = vadd.f32 %v5593, %v5825
      %v5878 = vadd.f32 %v5594, %v5828
      %v5879 = vadd.f32 %v5595, %v5833
      %v5880 = vadd.f32 %v5596, %v5836
      %v5881 = vadd.f32 %v5597, %v5841
      %v5882 = vadd.f32 %v5598, %v5844
      %v5883 = vadd.f32 %v5599, %v5849
      %v5884 = vadd.f32 %v5600, %v5852
      %v5885 = vrot.slane %v5190, 1
      %v5886 = vrot.slane %v5191, 1
      %v5887 = vrot.slane %v5192, 1
      %v5888 = vrot.slane %v5193, 1
      %v5889 = vrot.slane %v5194, 1
      %v5890 = vrot.slane %v5195, 1
      %v5891 = vrot.slane %v5196, 1
      %v5892 = vrot.slane %v5197, 1
      %v5893 = vrot.slane %v5198, 1
      %v5894 = vrot.slane %v5199, 1
      %v5895 = vrot.slane %v5200, 1
      %v5896 = vrot.slane %v5201, 1
      %v5897 = vrot.slane %v5202, 1
      %v5898 = vrot.slane %v5203, 1
      %v5899 = vrot.slane %v5204, 1
      %v5900 = vrot.slane %v5205, 1
      %v5901 = vrot.slane %v5206, 1
      %v5902 = vrot.slane %v5207, 1
      %v5903 = vrot.slane %v5208, 1
      %v5904 = vrot.slane %v5209, 1
      %v5905 = vrot.slane %v5210, 1
      %v5906 = vrot.slane %v5211, 1
      %v5907 = vrot.slane %v5212, 1
      %v5908 = vrot.slane %v5213, 1
      %v5909 = vrot.slane %v5214, 1
      %v5910 = vrot.slane %v5215, 1
      %v5911 = vrot.slane %v5216, 1
      %v5912 = vrot.slane %v5217, 1
      %v5913 = vrot.slane %v5218, 1
      %v5914 = vrot.slane %v5219, 1
      %v5915 = vsel %vm3749, %v5913, %v5914
      %v5916 = vsel %vm3749, %v5912, %v5913
      %v5917 = vsel %vm3749, %v5911, %v5912
      %v5918 = vsel %vm3749, %v5910, %v5911
      %v5919 = vsel %vm3749, %v5909, %v5910
      %v5920 = vsel %vm3749, %v5908, %v5909
      %v5921 = vsel %vm3749, %v5907, %v5908
      %v5922 = vsel %vm3749, %v5906, %v5907
      %v5923 = vsel %vm3749, %v5905, %v5906
      %v5924 = vsel %vm3749, %v5904, %v5905
      %v5925 = vsel %vm3749, %v5903, %v5904
      %v5926 = vsel %vm3749, %v5902, %v5903
      %v5927 = vsel %vm3749, %v5901, %v5902
      %v5928 = vsel %vm3749, %v5900, %v5901
      %v5929 = vsel %vm3749, %v5899, %v5900
      %v5930 = vsel %vm3749, %v5898, %v5899
      %v5931 = vsel %vm3749, %v5897, %v5898
      %v5932 = vsel %vm3749, %v5896, %v5897
      %v5933 = vsel %vm3749, %v5895, %v5896
      %v5934 = vsel %vm3749, %v5894, %v5895
      %v5935 = vsel %vm3749, %v5893, %v5894
      %v5936 = vsel %vm3749, %v5892, %v5893
      %v5937 = vsel %vm3749, %v5891, %v5892
      %v5938 = vsel %vm3749, %v5890, %v5891
      %v5939 = vsel %vm3749, %v5889, %v5890
      %v5940 = vsel %vm3749, %v5888, %v5889
      %v5941 = vsel %vm3749, %v5887, %v5888
      %v5942 = vsel %vm3749, %v5886, %v5887
      %v5943 = vsel %vm3749, %v5885, %v5886
      %v5944 = vsel %vm3749, %v5914, %v5885
      %v5945 = vsel %vm4050, %v5943, 0.0
      %v5946 = vsel %vm4051, %v5942, 0.0
      %v5947 = vsel %vm4052, %v5941, 0.0
      %v5948 = vsel %vm4053, %v5940, 0.0
      %v5949 = vsel %vm4054, %v5939, 0.0
      %v5950 = vsel %vm4055, %v5938, 0.0
      %v5951 = vsel %vm4056, %v5937, 0.0
      %v5952 = vsel %vm4057, %v5936, 0.0
      %v5953 = vsel %vm4058, %v5935, 0.0
      %v5954 = vsel %vm4059, %v5934, 0.0
      %v5955 = vsel %vm4060, %v5933, 0.0
      %v5956 = vsel %vm4061, %v5932, 0.0
      %v5957 = vsel %vm4062, %v5931, 0.0
      %v5958 = vsel %vm4063, %v5930, 0.0
      %v5959 = vsel %vm4064, %v5929, 0.0
      %v5960 = vsel %vm4065, %v5928, 0.0
      %v5961 = vsel %vm4066, %v5927, 0.0
      %v5962 = vsel %vm4067, %v5926, 0.0
      %v5963 = vsel %vm4068, %v5925, 0.0
      %v5964 = vsel %vm4069, %v5924, 0.0
      %v5965 = vsel %vm4070, %v5923, 0.0
      %v5966 = vsel %vm4071, %v5922, 0.0
      %v5967 = vsel %vm4072, %v5921, 0.0
      %v5968 = vsel %vm4073, %v5920, 0.0
      %v5969 = vsel %vm4074, %v5919, 0.0
      %v5970 = vsel %vm4075, %v5918, 0.0
      %v5971 = vsel %vm4076, %v5917, 0.0
      %v5972 = vsel %vm4077, %v5916, 0.0
      %v5973 = vsel %vm4078, %v5915, 0.0
      %v5974 = vsel %vm4079, %v5944, 0.0
      %v5975 = vpack.c.bf16 %v5946, %v5945
      %v5976 = vpack.c.bf16 %v5948, %v5947
      %v5977 = vpack.c.bf16 %v5950, %v5949
      %v5978 = vpack.c.bf16 %v5952, %v5951
      %v5979 = vpack.c.bf16 %v5954, %v5953
      %v5980 = vpack.c.bf16 %v5956, %v5955
      %v5981 = vpack.c.bf16 %v5958, %v5957
      %v5982 = vpack.c.bf16 %v5960, %v5959
      %v5983 = vpack.c.bf16 %v5962, %v5961
      %v5984 = vpack.c.bf16 %v5964, %v5963
      %v5985 = vpack.c.bf16 %v5966, %v5965
      %v5986 = vpack.c.bf16 %v5968, %v5967
      %v5987 = vpack.c.bf16 %v5970, %v5969
      %v5988 = vpack.c.bf16 %v5972, %v5971
      %v5989 = vpack.c.bf16 %v5974, %v5973
      %s5990 = scalar_lea.vmem %s3, 80
      %v5991 = vld [vmem:[%s5990] sm:$0xf]
      %v5992 = vld [vmem:[%s5990 + $0x4] sm:$0xf]
      %v5993 = vld [vmem:[%s5990 + $0x8] sm:$0xf]
      %v5994 = vld [vmem:[%s5990 + $0xc] sm:$0xf]
      %v5995 = vld [vmem:[%s5990 + $0x10] sm:$0xf]
      %v5996 = vld [vmem:[%s5990 + $0x14] sm:$0xf]
      %v5997 = vld [vmem:[%s5990 + $0x18] sm:$0xf]
      %v5998 = vld [vmem:[%s5990 + $0x1c] sm:$0xf]
      %v5999 = vld [vmem:[%s5990 + $0x20] sm:$0xf]
      %v6000 = vld [vmem:[%s5990 + $0x24] sm:$0xf]
      %v6011 = vunpack.c.l.b16 %v5991
      %v6012 = vunpack.c.l.b16 %v5992
      %v6013 = vunpack.c.l.b16 %v5993
      %v6014 = vunpack.c.l.b16 %v5994
      %v6015 = vunpack.c.l.b16 %v5995
      %v6016 = vunpack.c.l.b16 %v5996
      %v6017 = vunpack.c.l.b16 %v5997
      %v6018 = vunpack.c.l.b16 %v5998
      %v6019 = vunpack.c.l.b16 %v5999
      %v6020 = vunpack.c.l.b16 %v6000
      %v6021 = vpack.c.b16 %v6012, %v6011
      %v6022 = vpack.c.b16 %v6014, %v6013
      %v6023 = vpack.c.b16 %v6016, %v6015
      %v6024 = vpack.c.b16 %v6018, %v6017
      %v6025 = vpack.c.b16 %v6020, %v6019
      %v6032 = vsel %vm5366, %v5975, 0
      %v6035 = vsel %vm5366, %v5976, 0
      %v6038 = vsel %vm5366, %v5977, 0
      %v6041 = vsel %vm5366, %v5978, 0
      %v6044 = vsel %vm5366, %v5979, 0
      %v6047 = vsel %vm5366, %v5980, 0
      %v6050 = vsel %vm5366, %v5981, 0
      %v6053 = vsel %vm5366, %v5982, 0
      %v6056 = vsel %vm5366, %v5983, 0
      %v6059 = vsel %vm5366, %v5984, 0
      %v6062 = vsel %vm5366, %v5985, 0
      %v6065 = vsel %vm5366, %v5986, 0
      %v6068 = vsel %vm5366, %v5987, 0
      %v6071 = vsel %vm5366, %v5988, 0
      %v6074 = vsel %vm5366, %v5989, 0
      %6076 = vmatprep.subr.bf16.mxu0 0
      %6077 = vmatpush1.bf16.msra.mxu0 %v6021
      %6078 = vmatprep.subr.bf16.mxu0 0
      %6079 = vmatpush1.bf16.msra.mxu0 %v6022
      %6080 = vmatprep.subr.bf16.mxu0 0
      %6081 = vmatpush1.bf16.msra.mxu0 %v6023
      %6082 = vmatprep.subr.bf16.mxu0 0
      %6083 = vmatpush1.bf16.msra.mxu0 %v6024
      %6084 = vmatprep.subr.bf16.mxu0 0
      %6085 = vmatpush1.bf16.msra.mxu0 %v6025
      %6086 = vmatprep.subr.bf16.mxu0 0
      %6087 = vmatpush1.bf16.msra.mxu0 0
      %6088 = vmatprep.subr.bf16.mxu0 0
      %6089 = vmatpush1.bf16.msra.mxu0 0
      %6090 = vmatprep.subr.bf16.mxu0 0
      %6091 = vmatpush1.bf16.msra.mxu0 0
      %6092 = vmatprep.subr.bf16.mxu0 0
      %6093 = vmatpush1.bf16.msra.mxu0 0
      %6094 = vmatprep.subr.bf16.mxu0 0
      %6095 = vmatpush1.bf16.msra.mxu0 0
      %6096 = vmatprep.subr.bf16.mxu0 0
      %6097 = vmatpush1.bf16.msra.mxu0 0
      %6098 = vmatprep.subr.bf16.mxu0 0
      %6099 = vmatpush1.bf16.msra.mxu0 0
      %6100 = vmatprep.subr.bf16.mxu0 0
      %6101 = vmatpush1.bf16.msra.mxu0 0
      %6102 = vmatprep.subr.bf16.mxu0 0
      %6103 = vmatpush1.bf16.msra.mxu0 0
      %6104 = vmatprep.subr.bf16.mxu0 0
      %6105 = vmatpush1.bf16.msra.mxu0 0
      %6106 = vmatprep.subr.bf16.mxu0 0
      %6107 = vmatpush1.bf16.msra.mxu0 0
      %6108 = vmatprep.mubr.bf16.mxu0 0
      %6109 = vmatmul.mubr.bf16.gmra.mrb[0].mxu0 %v6032
      %v6110 = vpop.f32.mrb[0].mxu0
      %v6111 = vadd.f32 0.0, %v6110
      %v6112 = vpop.f32.mrb[0].mxu0
      %v6113 = vpop.f32.mrb[0].mxu0
      %v6114 = vadd.f32 0.0, %v6113
      %v6115 = vpop.f32.mrb[0].mxu0
      %6116 = vmatprep.mubr.bf16.mxu0 0
      %6117 = vmatmul.mubr.bf16.gmra.mrb[0].mxu0 %v6035
      %v6118 = vpop.f32.mrb[0].mxu0
      %v6119 = vadd.f32 0.0, %v6118
      %v6120 = vpop.f32.mrb[0].mxu0
      %v6121 = vpop.f32.mrb[0].mxu0
      %v6122 = vadd.f32 0.0, %v6121
      %v6123 = vpop.f32.mrb[0].mxu0
      %6124 = vmatprep.mubr.bf16.mxu0 0
      %6125 = vmatmul.mubr.bf16.gmra.mrb[0].mxu0 %v6038
      %v6126 = vpop.f32.mrb[0].mxu0
      %v6127 = vadd.f32 0.0, %v6126
      %v6128 = vpop.f32.mrb[0].mxu0
      %v6129 = vpop.f32.mrb[0].mxu0
      %v6130 = vadd.f32 0.0, %v6129
      %v6131 = vpop.f32.mrb[0].mxu0
      %6132 = vmatprep.mubr.bf16.mxu0 0
      %6133 = vmatmul.mubr.bf16.gmra.mrb[0].mxu0 %v6041
      %v6134 = vpop.f32.mrb[0].mxu0
      %v6135 = vadd.f32 0.0, %v6134
      %v6136 = vpop.f32.mrb[0].mxu0
      %v6137 = vpop.f32.mrb[0].mxu0
      %v6138 = vadd.f32 0.0, %v6137
      %v6139 = vpop.f32.mrb[0].mxu0
      %6140 = vmatprep.mubr.bf16.mxu0 0
      %6141 = vmatmul.mubr.bf16.gmra.mrb[0].mxu0 %v6044
      %v6142 = vpop.f32.mrb[0].mxu0
      %v6143 = vadd.f32 0.0, %v6142
      %v6144 = vpop.f32.mrb[0].mxu0
      %v6145 = vpop.f32.mrb[0].mxu0
      %v6146 = vadd.f32 0.0, %v6145
      %v6147 = vpop.f32.mrb[0].mxu0
      %6148 = vmatprep.mubr.bf16.mxu0 0
      %6149 = vmatmul.mubr.bf16.gmra.mrb[0].mxu0 %v6047
      %v6150 = vpop.f32.mrb[0].mxu0
      %v6151 = vadd.f32 0.0, %v6150
      %v6152 = vpop.f32.mrb[0].mxu0
      %v6153 = vpop.f32.mrb[0].mxu0
      %v6154 = vadd.f32 0.0, %v6153
      %v6155 = vpop.f32.mrb[0].mxu0
      %6156 = vmatprep.mubr.bf16.mxu0 0
      %6157 = vmatmul.mubr.bf16.gmra.mrb[0].mxu0 %v6050
      %v6158 = vpop.f32.mrb[0].mxu0
      %v6159 = vadd.f32 0.0, %v6158
      %v6160 = vpop.f32.mrb[0].mxu0
      %v6161 = vpop.f32.mrb[0].mxu0
      %v6162 = vadd.f32 0.0, %v6161
      %v6163 = vpop.f32.mrb[0].mxu0
      %6164 = vmatprep.mubr.bf16.mxu0 0
      %6165 = vmatmul.mubr.bf16.gmra.mrb[0].mxu0 %v6053
      %v6166 = vpop.f32.mrb[0].mxu0
      %v6167 = vadd.f32 0.0, %v6166
      %v6168 = vpop.f32.mrb[0].mxu0
      %v6169 = vpop.f32.mrb[0].mxu0
      %v6170 = vadd.f32 0.0, %v6169
      %v6171 = vpop.f32.mrb[0].mxu0
      %6172 = vmatprep.mubr.bf16.mxu0 0
      %6173 = vmatmul.mubr.bf16.gmra.mrb[0].mxu0 %v6056
      %v6174 = vpop.f32.mrb[0].mxu0
      %v6175 = vadd.f32 0.0, %v6174
      %v6176 = vpop.f32.mrb[0].mxu0
      %v6177 = vpop.f32.mrb[0].mxu0
      %v6178 = vadd.f32 0.0, %v6177
      %v6179 = vpop.f32.mrb[0].mxu0
      %6180 = vmatprep.mubr.bf16.mxu0 0
      %6181 = vmatmul.mubr.bf16.gmra.mrb[0].mxu0 %v6059
      %v6182 = vpop.f32.mrb[0].mxu0
      %v6183 = vadd.f32 0.0, %v6182
      %v6184 = vpop.f32.mrb[0].mxu0
      %v6185 = vpop.f32.mrb[0].mxu0
      %v6186 = vadd.f32 0.0, %v6185
      %v6187 = vpop.f32.mrb[0].mxu0
      %6188 = vmatprep.mubr.bf16.mxu0 0
      %6189 = vmatmul.mubr.bf16.gmra.mrb[0].mxu0 %v6062
      %v6190 = vpop.f32.mrb[0].mxu0
      %v6191 = vadd.f32 0.0, %v6190
      %v6192 = vpop.f32.mrb[0].mxu0
      %v6193 = vpop.f32.mrb[0].mxu0
      %v6194 = vadd.f32 0.0, %v6193
      %v6195 = vpop.f32.mrb[0].mxu0
      %6196 = vmatprep.mubr.bf16.mxu0 0
      %6197 = vmatmul.mubr.bf16.gmra.mrb[0].mxu0 %v6065
      %v6198 = vpop.f32.mrb[0].mxu0
      %v6199 = vadd.f32 0.0, %v6198
      %v6200 = vpop.f32.mrb[0].mxu0
      %v6201 = vpop.f32.mrb[0].mxu0
      %v6202 = vadd.f32 0.0, %v6201
      %v6203 = vpop.f32.mrb[0].mxu0
      %6204 = vmatprep.mubr.bf16.mxu0 0
      %6205 = vmatmul.mubr.bf16.gmra.mrb[0].mxu0 %v6068
      %v6206 = vpop.f32.mrb[0].mxu0
      %v6207 = vadd.f32 0.0, %v6206
      %v6208 = vpop.f32.mrb[0].mxu0
      %v6209 = vpop.f32.mrb[0].mxu0
      %v6210 = vadd.f32 0.0, %v6209
      %v6211 = vpop.f32.mrb[0].mxu0
      %6212 = vmatprep.mubr.bf16.mxu0 0
      %6213 = vmatmul.mubr.bf16.gmra.mrb[0].mxu0 %v6071
      %v6214 = vpop.f32.mrb[0].mxu0
      %v6215 = vadd.f32 0.0, %v6214
      %v6216 = vpop.f32.mrb[0].mxu0
      %v6217 = vpop.f32.mrb[0].mxu0
      %v6218 = vadd.f32 0.0, %v6217
      %v6219 = vpop.f32.mrb[0].mxu0
      %6220 = vmatprep.mubr.bf16.mxu0 0
      %6221 = vmatmul.mubr.bf16.gmra.mrb[0].mxu0 %v6074
      %v6222 = vpop.f32.mrb[0].mxu0
      %v6223 = vadd.f32 0.0, %v6222
      %v6224 = vpop.f32.mrb[0].mxu0
      %v6225 = vpop.f32.mrb[0].mxu0
      %v6226 = vadd.f32 0.0, %v6225
      %v6227 = vpop.f32.mrb[0].mxu0
      %6228 = vdwg.mxu0
      %v6229 = vadd.f32 %v5855, %v6111
      %v6230 = vadd.f32 %v5856, %v6114
      %v6231 = vadd.f32 %v5857, %v6119
      %v6232 = vadd.f32 %v5858, %v6122
      %v6233 = vadd.f32 %v5859, %v6127
      %v6234 = vadd.f32 %v5860, %v6130
      %v6235 = vadd.f32 %v5861, %v6135
      %v6236 = vadd.f32 %v5862, %v6138
      %v6237 = vadd.f32 %v5863, %v6143
      %v6238 = vadd.f32 %v5864, %v6146
      %v6239 = vadd.f32 %v5865, %v6151
      %v6240 = vadd.f32 %v5866, %v6154
      %v6241 = vadd.f32 %v5867, %v6159
      %v6242 = vadd.f32 %v5868, %v6162
      %v6243 = vadd.f32 %v5869, %v6167
      %v6244 = vadd.f32 %v5870, %v6170
      %v6245 = vadd.f32 %v5871, %v6175
      %v6246 = vadd.f32 %v5872, %v6178
      %v6247 = vadd.f32 %v5873, %v6183
      %v6248 = vadd.f32 %v5874, %v6186
      %v6249 = vadd.f32 %v5875, %v6191
      %v6250 = vadd.f32 %v5876, %v6194
      %v6251 = vadd.f32 %v5877, %v6199
      %v6252 = vadd.f32 %v5878, %v6202
      %v6253 = vadd.f32 %v5879, %v6207
      %v6254 = vadd.f32 %v5880, %v6210
      %v6255 = vadd.f32 %v5881, %v6215
      %v6256 = vadd.f32 %v5882, %v6218
      %v6257 = vadd.f32 %v5883, %v6223
      %v6258 = vadd.f32 %v5884, %v6226
      %vm6259 = vcmp.ge.f32.partialorder %v6229, 0.0
      %vm6260 = vcmp.ge.f32.partialorder %v6230, 0.0
      %vm6261 = vcmp.ge.f32.partialorder %v6231, 0.0
      %vm6262 = vcmp.ge.f32.partialorder %v6232, 0.0
      %vm6263 = vcmp.ge.f32.partialorder %v6233, 0.0
      %vm6264 = vcmp.ge.f32.partialorder %v6234, 0.0
      %vm6265 = vcmp.ge.f32.partialorder %v6235, 0.0
      %vm6266 = vcmp.ge.f32.partialorder %v6236, 0.0
      %vm6267 = vcmp.ge.f32.partialorder %v6237, 0.0
      %vm6268 = vcmp.ge.f32.partialorder %v6238, 0.0
      %vm6269 = vcmp.ge.f32.partialorder %v6239, 0.0
      %vm6270 = vcmp.ge.f32.partialorder %v6240, 0.0
      %vm6271 = vcmp.ge.f32.partialorder %v6241, 0.0
      %vm6272 = vcmp.ge.f32.partialorder %v6242, 0.0
      %vm6273 = vcmp.ge.f32.partialorder %v6243, 0.0
      %vm6274 = vcmp.ge.f32.partialorder %v6244, 0.0
      %vm6275 = vcmp.ge.f32.partialorder %v6245, 0.0
      %vm6276 = vcmp.ge.f32.partialorder %v6246, 0.0
      %vm6277 = vcmp.ge.f32.partialorder %v6247, 0.0
      %vm6278 = vcmp.ge.f32.partialorder %v6248, 0.0
      %vm6279 = vcmp.ge.f32.partialorder %v6249, 0.0
      %vm6280 = vcmp.ge.f32.partialorder %v6250, 0.0
      %vm6281 = vcmp.ge.f32.partialorder %v6251, 0.0
      %vm6282 = vcmp.ge.f32.partialorder %v6252, 0.0
      %vm6283 = vcmp.ge.f32.partialorder %v6253, 0.0
      %vm6284 = vcmp.ge.f32.partialorder %v6254, 0.0
      %vm6285 = vcmp.ge.f32.partialorder %v6255, 0.0
      %vm6286 = vcmp.ge.f32.partialorder %v6256, 0.0
      %vm6287 = vcmp.ge.f32.partialorder %v6257, 0.0
      %vm6288 = vcmp.ge.f32.partialorder %v6258, 0.0
      %v6289 = vmul.f32 %v6229, 0.01
      %v6290 = vmul.f32 %v6230, 0.01
      %v6291 = vmul.f32 %v6231, 0.01
      %v6292 = vmul.f32 %v6232, 0.01
      %v6293 = vmul.f32 %v6233, 0.01
      %v6294 = vmul.f32 %v6234, 0.01
      %v6295 = vmul.f32 %v6235, 0.01
      %v6296 = vmul.f32 %v6236, 0.01
      %v6297 = vmul.f32 %v6237, 0.01
      %v6298 = vmul.f32 %v6238, 0.01
      %v6299 = vmul.f32 %v6239, 0.01
      %v6300 = vmul.f32 %v6240, 0.01
      %v6301 = vmul.f32 %v6241, 0.01
      %v6302 = vmul.f32 %v6242, 0.01
      %v6303 = vmul.f32 %v6243, 0.01
      %v6304 = vmul.f32 %v6244, 0.01
      %v6305 = vmul.f32 %v6245, 0.01
      %v6306 = vmul.f32 %v6246, 0.01
      %v6307 = vmul.f32 %v6247, 0.01
      %v6308 = vmul.f32 %v6248, 0.01
      %v6309 = vmul.f32 %v6249, 0.01
      %v6310 = vmul.f32 %v6250, 0.01
      %v6311 = vmul.f32 %v6251, 0.01
      %v6312 = vmul.f32 %v6252, 0.01
      %v6313 = vmul.f32 %v6253, 0.01
      %v6314 = vmul.f32 %v6254, 0.01
      %v6315 = vmul.f32 %v6255, 0.01
      %v6316 = vmul.f32 %v6256, 0.01
      %v6317 = vmul.f32 %v6257, 0.01
      %v6318 = vmul.f32 %v6258, 0.01
      %v6319 = vsel %vm6259, %v6229, %v6289
      %v6320 = vsel %vm6260, %v6230, %v6290
      %v6321 = vsel %vm6261, %v6231, %v6291
      %v6322 = vsel %vm6262, %v6232, %v6292
      %v6323 = vsel %vm6263, %v6233, %v6293
      %v6324 = vsel %vm6264, %v6234, %v6294
      %v6325 = vsel %vm6265, %v6235, %v6295
      %v6326 = vsel %vm6266, %v6236, %v6296
      %v6327 = vsel %vm6267, %v6237, %v6297
      %v6328 = vsel %vm6268, %v6238, %v6298
      %v6329 = vsel %vm6269, %v6239, %v6299
      %v6330 = vsel %vm6270, %v6240, %v6300
      %v6331 = vsel %vm6271, %v6241, %v6301
      %v6332 = vsel %vm6272, %v6242, %v6302
      %v6333 = vsel %vm6273, %v6243, %v6303
      %v6334 = vsel %vm6274, %v6244, %v6304
      %v6335 = vsel %vm6275, %v6245, %v6305
      %v6336 = vsel %vm6276, %v6246, %v6306
      %v6337 = vsel %vm6277, %v6247, %v6307
      %v6338 = vsel %vm6278, %v6248, %v6308
      %v6339 = vsel %vm6279, %v6249, %v6309
      %v6340 = vsel %vm6280, %v6250, %v6310
      %v6341 = vsel %vm6281, %v6251, %v6311
      %v6342 = vsel %vm6282, %v6252, %v6312
      %v6343 = vsel %vm6283, %v6253, %v6313
      %v6344 = vsel %vm6284, %v6254, %v6314
      %v6345 = vsel %vm6285, %v6255, %v6315
      %v6346 = vsel %vm6286, %v6256, %v6316
      %v6347 = vsel %vm6287, %v6257, %v6317
      %v6348 = vsel %vm6288, %v6258, %v6318
      %v6349 = vrot.slane %v6319, 1
      %v6350 = vrot.slane %v6320, 1
      %v6351 = vrot.slane %v6321, 1
      %v6352 = vrot.slane %v6322, 1
      %v6353 = vrot.slane %v6323, 1
      %v6354 = vrot.slane %v6324, 1
      %v6355 = vrot.slane %v6325, 1
      %v6356 = vrot.slane %v6326, 1
      %v6357 = vrot.slane %v6327, 1
      %v6358 = vrot.slane %v6328, 1
      %v6359 = vrot.slane %v6329, 1
      %v6360 = vrot.slane %v6330, 1
      %v6361 = vrot.slane %v6331, 1
      %v6362 = vrot.slane %v6332, 1
      %v6363 = vrot.slane %v6333, 1
      %v6364 = vrot.slane %v6334, 1
      %v6365 = vrot.slane %v6335, 1
      %v6366 = vrot.slane %v6336, 1
      %v6367 = vrot.slane %v6337, 1
      %v6368 = vrot.slane %v6338, 1
      %v6369 = vrot.slane %v6339, 1
      %v6370 = vrot.slane %v6340, 1
      %v6371 = vrot.slane %v6341, 1
      %v6372 = vrot.slane %v6342, 1
      %v6373 = vrot.slane %v6343, 1
      %v6374 = vrot.slane %v6344, 1
      %v6375 = vrot.slane %v6345, 1
      %v6376 = vrot.slane %v6346, 1
      %v6377 = vrot.slane %v6347, 1
      %v6378 = vrot.slane %v6348, 1
      %v6379 = vsel %vm3749, %v6377, %v6378
      %v6380 = vsel %vm3749, %v6376, %v6377
      %v6381 = vsel %vm3749, %v6375, %v6376
      %v6382 = vsel %vm3749, %v6374, %v6375
      %v6383 = vsel %vm3749, %v6373, %v6374
      %v6384 = vsel %vm3749, %v6372, %v6373
      %v6385 = vsel %vm3749, %v6371, %v6372
      %v6386 = vsel %vm3749, %v6370, %v6371
      %v6387 = vsel %vm3749, %v6369, %v6370
      %v6388 = vsel %vm3749, %v6368, %v6369
      %v6389 = vsel %vm3749, %v6367, %v6368
      %v6390 = vsel %vm3749, %v6366, %v6367
      %v6391 = vsel %vm3749, %v6365, %v6366
      %v6392 = vsel %vm3749, %v6364, %v6365
      %v6393 = vsel %vm3749, %v6363, %v6364
      %v6394 = vsel %vm3749, %v6362, %v6363
      %v6395 = vsel %vm3749, %v6361, %v6362
      %v6396 = vsel %vm3749, %v6360, %v6361
      %v6397 = vsel %vm3749, %v6359, %v6360
      %v6398 = vsel %vm3749, %v6358, %v6359
      %v6399 = vsel %vm3749, %v6357, %v6358
      %v6400 = vsel %vm3749, %v6356, %v6357
      %v6401 = vsel %vm3749, %v6355, %v6356
      %v6402 = vsel %vm3749, %v6354, %v6355
      %v6403 = vsel %vm3749, %v6353, %v6354
      %v6404 = vsel %vm3749, %v6352, %v6353
      %v6405 = vsel %vm3749, %v6351, %v6352
      %v6406 = vsel %vm3749, %v6350, %v6351
      %v6407 = vsel %vm3749, %v6349, %v6350
      %v6408 = vsel %vm3749, %v6378, %v6349
      %v6409 = vmax.f32 %v6319, %v6407
      %v6410 = vmax.f32 %v6320, %v6406
      %v6411 = vmax.f32 %v6321, %v6405
      %v6412 = vmax.f32 %v6322, %v6404
      %v6413 = vmax.f32 %v6323, %v6403
      %v6414 = vmax.f32 %v6324, %v6402
      %v6415 = vmax.f32 %v6325, %v6401
      %v6416 = vmax.f32 %v6326, %v6400
      %v6417 = vmax.f32 %v6327, %v6399
      %v6418 = vmax.f32 %v6328, %v6398
      %v6419 = vmax.f32 %v6329, %v6397
      %v6420 = vmax.f32 %v6330, %v6396
      %v6421 = vmax.f32 %v6331, %v6395
      %v6422 = vmax.f32 %v6332, %v6394
      %v6423 = vmax.f32 %v6333, %v6393
      %v6424 = vmax.f32 %v6334, %v6392
      %v6425 = vmax.f32 %v6335, %v6391
      %v6426 = vmax.f32 %v6336, %v6390
      %v6427 = vmax.f32 %v6337, %v6389
      %v6428 = vmax.f32 %v6338, %v6388
      %v6429 = vmax.f32 %v6339, %v6387
      %v6430 = vmax.f32 %v6340, %v6386
      %v6431 = vmax.f32 %v6341, %v6385
      %v6432 = vmax.f32 %v6342, %v6384
      %v6433 = vmax.f32 %v6343, %v6383
      %v6434 = vmax.f32 %v6344, %v6382
      %v6435 = vmax.f32 %v6345, %v6381
      %v6436 = vmax.f32 %v6346, %v6380
      %v6437 = vmax.f32 %v6347, %v6379
      %v6438 = vmax.f32 %v6348, %v6408
      %6439 = vst.msk [vmem:[#allocation2] sm:$0xff] %vm5366, %v6409
      %6440 = vst.msk [vmem:[#allocation2 + $0x8] sm:$0xff] %vm5366, %v6410
      %6441 = vst.msk [vmem:[#allocation2 + $0x10] sm:$0xff] %vm5366, %v6411
      %6442 = vst.msk [vmem:[#allocation2 + $0x18] sm:$0xff] %vm5366, %v6412
      %6443 = vst.msk [vmem:[#allocation2 + $0x20] sm:$0xff] %vm5366, %v6413
      %6444 = vst.msk [vmem:[#allocation2 + $0x28] sm:$0xff] %vm5366, %v6414
      %6445 = vst.msk [vmem:[#allocation2 + $0x30] sm:$0xff] %vm5366, %v6415
      %6446 = vst.msk [vmem:[#allocation2 + $0x38] sm:$0xff] %vm5366, %v6416
      %6447 = vst.msk [vmem:[#allocation2 + $0x40] sm:$0xff] %vm5366, %v6417
      %6448 = vst.msk [vmem:[#allocation2 + $0x48] sm:$0xff] %vm5366, %v6418
      %6449 = vst.msk [vmem:[#allocation2 + $0x50] sm:$0xff] %vm5366, %v6419
      %6450 = vst.msk [vmem:[#allocation2 + $0x58] sm:$0xff] %vm5366, %v6420
      %6451 = vst.msk [vmem:[#allocation2 + $0x60] sm:$0xff] %vm5366, %v6421
      %6452 = vst.msk [vmem:[#allocation2 + $0x68] sm:$0xff] %vm5366, %v6422
      %6453 = vst.msk [vmem:[#allocation2 + $0x70] sm:$0xff] %vm5366, %v6423
      %6454 = vst.msk [vmem:[#allocation2 + $0x78] sm:$0xff] %vm5366, %v6424
      %6455 = vst.msk [vmem:[#allocation2 + $0x80] sm:$0xff] %vm5366, %v6425
      %6456 = vst.msk [vmem:[#allocation2 + $0x88] sm:$0xff] %vm5366, %v6426
      %6457 = vst.msk [vmem:[#allocation2 + $0x90] sm:$0xff] %vm5366, %v6427
      %6458 = vst.msk [vmem:[#allocation2 + $0x98] sm:$0xff] %vm5366, %v6428
      %6459 = vst.msk [vmem:[#allocation2 + $0xa0] sm:$0xff] %vm5366, %v6429
      %6460 = vst.msk [vmem:[#allocation2 + $0xa8] sm:$0xff] %vm5366, %v6430
      %6461 = vst.msk [vmem:[#allocation2 + $0xb0] sm:$0xff] %vm5366, %v6431
      %6462 = vst.msk [vmem:[#allocation2 + $0xb8] sm:$0xff] %vm5366, %v6432
      %6463 = vst.msk [vmem:[#allocation2 + $0xc0] sm:$0xff] %vm5366, %v6433
      %6464 = vst.msk [vmem:[#allocation2 + $0xc8] sm:$0xff] %vm5366, %v6434
      %6465 = vst.msk [vmem:[#allocation2 + $0xd0] sm:$0xff] %vm5366, %v6435
      %6466 = vst.msk [vmem:[#allocation2 + $0xd8] sm:$0xff] %vm5366, %v6436
      %6467 = vst.msk [vmem:[#allocation2 + $0xe0] sm:$0xff] %vm5366, %v6437
      %6468 = vst.msk [vmem:[#allocation2 + $0xe8] sm:$0xff] %vm5366, %v6438
      %v6469 = vld [vmem:[#allocation2] ss:$2 sm:$0xff]
      %s6470 = scalar_lea.vmem [#allocation2], 16
      %v6471 = vld [vmem:[%s6470] ss:$2 sm:$0xff]
      %s6472 = scalar_lea.vmem [#allocation2], 32
      %v6473 = vld [vmem:[%s6472] ss:$2 sm:$0xff]
      %s6474 = scalar_lea.vmem [#allocation2], 48
      %v6475 = vld [vmem:[%s6474] ss:$2 sm:$0xff]
      %s6476 = scalar_lea.vmem [#allocation2], 64
      %v6477 = vld [vmem:[%s6476] ss:$2 sm:$0xff]
      %s6478 = scalar_lea.vmem [#allocation2], 80
      %v6479 = vld [vmem:[%s6478] ss:$2 sm:$0xff]
      %s6480 = scalar_lea.vmem [#allocation2], 96
      %v6481 = vld [vmem:[%s6480] ss:$2 sm:$0xff]
      %s6482 = scalar_lea.vmem [#allocation2], 112
      %v6483 = vld [vmem:[%s6482] ss:$2 sm:$0xff]
      %s6484 = scalar_lea.vmem [#allocation2], 128
      %v6485 = vld [vmem:[%s6484] ss:$2 sm:$0xff]
      %s6486 = scalar_lea.vmem [#allocation2], 144
      %v6487 = vld [vmem:[%s6486] ss:$2 sm:$0xff]
      %s6488 = scalar_lea.vmem [#allocation2], 160
      %v6489 = vld [vmem:[%s6488] ss:$2 sm:$0xff]
      %s6490 = scalar_lea.vmem [#allocation2], 176
      %v6491 = vld [vmem:[%s6490] ss:$2 sm:$0xff]
      %s6492 = scalar_lea.vmem [#allocation2], 192
      %v6493 = vld [vmem:[%s6492] ss:$2 sm:$0xff]
      %s6494 = scalar_lea.vmem [#allocation2], 208
      %v6495 = vld [vmem:[%s6494] ss:$2 sm:$0xff]
      %s6496 = scalar_lea.vmem [#allocation2], 224
      %v6497 = vld [vmem:[%s6496] ss:$2 sm:$0xff]
      %v6498 = vpack.c.bf16 %v6471, %v6469
      %v6499 = vpack.c.bf16 %v6475, %v6473
      %v6500 = vpack.c.bf16 %v6479, %v6477
      %v6501 = vpack.c.bf16 %v6483, %v6481
      %v6502 = vpack.c.bf16 %v6487, %v6485
      %v6503 = vpack.c.bf16 %v6491, %v6489
      %v6504 = vpack.c.bf16 %v6495, %v6493
      %v6505 = vpack.c.bf16 %v6497, %v6497
      %v6506 = vld [vmem:[%s5] sm:$0xf]
      %v6507 = vld [vmem:[%s5 + $0x4] sm:$0xf]
      %v6508 = vld [vmem:[%s5 + $0x8] sm:$0xf]
      %v6509 = vld [vmem:[%s5 + $0xc] sm:$0xf]
      %v6510 = vld [vmem:[%s5 + $0x10] sm:$0xf]
      %v6511 = vld [vmem:[%s5 + $0x14] sm:$0xf]
      %v6512 = vld [vmem:[%s5 + $0x18] sm:$0xf]
      %v6513 = vld [vmem:[%s5 + $0x1c] sm:$0xf]
      %v6514 = vld [vmem:[%s5 + $0x20] sm:$0xf]
      %v6515 = vld [vmem:[%s5 + $0x24] sm:$0xf]
      %v6526 = vunpack.c.l.b16 %v6506
      %v6527 = vunpack.c.l.b16 %v6507
      %v6528 = vunpack.c.l.b16 %v6508
      %v6529 = vunpack.c.l.b16 %v6509
      %v6530 = vunpack.c.l.b16 %v6510
      %v6531 = vunpack.c.l.b16 %v6511
      %v6532 = vunpack.c.l.b16 %v6512
      %v6533 = vunpack.c.l.b16 %v6513
      %v6534 = vunpack.c.l.b16 %v6514
      %v6535 = vunpack.c.l.b16 %v6515
      %v6536 = vpack.c.b16 %v6527, %v6526
      %v6537 = vpack.c.b16 %v6529, %v6528
      %v6538 = vpack.c.b16 %v6531, %v6530
      %v6539 = vpack.c.b16 %v6533, %v6532
      %v6540 = vpack.c.b16 %v6535, %v6534
      %v6547 = vsel %vm5366, %v6498, 0
      %v6550 = vsel %vm5366, %v6499, 0
      %v6553 = vsel %vm5366, %v6500, 0
      %v6556 = vsel %vm5366, %v6501, 0
      %v6559 = vsel %vm5366, %v6502, 0
      %v6562 = vsel %vm5366, %v6503, 0
      %v6565 = vsel %vm5366, %v6504, 0
      %v6568 = vsel %vm5366, %v6505, 0
      %6570 = vmatprep.subr.bf16.mxu0 0
      %6571 = vmatpush1.bf16.msra.mxu0 %v6536
      %6572 = vmatprep.subr.bf16.mxu0 0
      %6573 = vmatpush1.bf16.msra.mxu0 %v6537
      %6574 = vmatprep.subr.bf16.mxu0 0
      %6575 = vmatpush1.bf16.msra.mxu0 %v6538
      %6576 = vmatprep.subr.bf16.mxu0 0
      %6577 = vmatpush1.bf16.msra.mxu0 %v6539
      %6578 = vmatprep.subr.bf16.mxu0 0
      %6579 = vmatpush1.bf16.msra.mxu0 %v6540
      %6580 = vmatprep.subr.bf16.mxu0 0
      %6581 = vmatpush1.bf16.msra.mxu0 0
      %6582 = vmatprep.subr.bf16.mxu0 0
      %6583 = vmatpush1.bf16.msra.mxu0 0
      %6584 = vmatprep.subr.bf16.mxu0 0
      %6585 = vmatpush1.bf16.msra.mxu0 0
      %6586 = vmatprep.subr.bf16.mxu0 0
      %6587 = vmatpush1.bf16.msra.mxu0 0
      %6588 = vmatprep.subr.bf16.mxu0 0
      %6589 = vmatpush1.bf16.msra.mxu0 0
      %6590 = vmatprep.subr.bf16.mxu0 0
      %6591 = vmatpush1.bf16.msra.mxu0 0
      %6592 = vmatprep.subr.bf16.mxu0 0
      %6593 = vmatpush1.bf16.msra.mxu0 0
      %6594 = vmatprep.subr.bf16.mxu0 0
      %6595 = vmatpush1.bf16.msra.mxu0 0
      %6596 = vmatprep.subr.bf16.mxu0 0
      %6597 = vmatpush1.bf16.msra.mxu0 0
      %6598 = vmatprep.subr.bf16.mxu0 0
      %6599 = vmatpush1.bf16.msra.mxu0 0
      %6600 = vmatprep.subr.bf16.mxu0 0
      %6601 = vmatpush1.bf16.msra.mxu0 0
      %6602 = vmatprep.mubr.bf16.mxu0 0
      %6603 = vmatmul.mubr.bf16.gmra.mrb[0].mxu0 %v6547
      %v6604 = vpop.f32.mrb[0].mxu0
      %v6605 = vadd.f32 0.0, %v6604
      %v6606 = vpop.f32.mrb[0].mxu0
      %v6607 = vpop.f32.mrb[0].mxu0
      %v6608 = vadd.f32 0.0, %v6607
      %v6609 = vpop.f32.mrb[0].mxu0
      %6610 = vmatprep.mubr.bf16.mxu0 0
      %6611 = vmatmul.mubr.bf16.gmra.mrb[0].mxu0 %v6550
      %v6612 = vpop.f32.mrb[0].mxu0
      %v6613 = vadd.f32 0.0, %v6612
      %v6614 = vpop.f32.mrb[0].mxu0
      %v6615 = vpop.f32.mrb[0].mxu0
      %v6616 = vadd.f32 0.0, %v6615
      %v6617 = vpop.f32.mrb[0].mxu0
      %6618 = vmatprep.mubr.bf16.mxu0 0
      %6619 = vmatmul.mubr.bf16.gmra.mrb[0].mxu0 %v6553
      %v6620 = vpop.f32.mrb[0].mxu0
      %v6621 = vadd.f32 0.0, %v6620
      %v6622 = vpop.f32.mrb[0].mxu0
      %v6623 = vpop.f32.mrb[0].mxu0
      %v6624 = vadd.f32 0.0, %v6623
      %v6625 = vpop.f32.mrb[0].mxu0
      %6626 = vmatprep.mubr.bf16.mxu0 0
      %6627 = vmatmul.mubr.bf16.gmra.mrb[0].mxu0 %v6556
      %v6628 = vpop.f32.mrb[0].mxu0
      %v6629 = vadd.f32 0.0, %v6628
      %v6630 = vpop.f32.mrb[0].mxu0
      %v6631 = vpop.f32.mrb[0].mxu0
      %v6632 = vadd.f32 0.0, %v6631
      %v6633 = vpop.f32.mrb[0].mxu0
      %6634 = vmatprep.mubr.bf16.mxu0 0
      %6635 = vmatmul.mubr.bf16.gmra.mrb[0].mxu0 %v6559
      %v6636 = vpop.f32.mrb[0].mxu0
      %v6637 = vadd.f32 0.0, %v6636
      %v6638 = vpop.f32.mrb[0].mxu0
      %v6639 = vpop.f32.mrb[0].mxu0
      %v6640 = vadd.f32 0.0, %v6639
      %v6641 = vpop.f32.mrb[0].mxu0
      %6642 = vmatprep.mubr.bf16.mxu0 0
      %6643 = vmatmul.mubr.bf16.gmra.mrb[0].mxu0 %v6562
      %v6644 = vpop.f32.mrb[0].mxu0
      %v6645 = vadd.f32 0.0, %v6644
      %v6646 = vpop.f32.mrb[0].mxu0
      %v6647 = vpop.f32.mrb[0].mxu0
      %v6648 = vadd.f32 0.0, %v6647
      %v6649 = vpop.f32.mrb[0].mxu0
      %6650 = vmatprep.mubr.bf16.mxu0 0
      %6651 = vmatmul.mubr.bf16.gmra.mrb[0].mxu0 %v6565
      %v6652 = vpop.f32.mrb[0].mxu0
      %v6653 = vadd.f32 0.0, %v6652
      %v6654 = vpop.f32.mrb[0].mxu0
      %v6655 = vpop.f32.mrb[0].mxu0
      %v6656 = vadd.f32 0.0, %v6655
      %v6657 = vpop.f32.mrb[0].mxu0
      %6658 = vmatprep.mubr.bf16.mxu0 0
      %6659 = vmatmul.mubr.bf16.gmra.mrb[0].mxu0 %v6568
      %v6660 = vpop.f32.mrb[0].mxu0
      %v6661 = vadd.f32 0.0, %v6660
      %v6662 = vpop.f32.mrb[0].mxu0
      %v6663 = vpop.f32.mrb[0].mxu0
      %v6664 = vpop.f32.mrb[0].mxu0
      %6665 = vdwg.mxu0
      %s6666 = scalar_lea.vmem %s5, 40
      %v6667 = vld [vmem:[%s6666] sm:$0xf]
      %v6668 = vld [vmem:[%s6666 + $0x4] sm:$0xf]
      %v6669 = vld [vmem:[%s6666 + $0x8] sm:$0xf]
      %v6670 = vld [vmem:[%s6666 + $0xc] sm:$0xf]
      %v6671 = vld [vmem:[%s6666 + $0x10] sm:$0xf]
      %v6672 = vld [vmem:[%s6666 + $0x14] sm:$0xf]
      %v6673 = vld [vmem:[%s6666 + $0x18] sm:$0xf]
      %v6674 = vld [vmem:[%s6666 + $0x1c] sm:$0xf]
      %v6675 = vld [vmem:[%s6666 + $0x20] sm:$0xf]
      %v6676 = vld [vmem:[%s6666 + $0x24] sm:$0xf]
      %v6687 = vunpack.c.l.b16 %v6667
      %v6688 = vunpack.c.l.b16 %v6668
      %v6689 = vunpack.c.l.b16 %v6669
      %v6690 = vunpack.c.l.b16 %v6670
      %v6691 = vunpack.c.l.b16 %v6671
      %v6692 = vunpack.c.l.b16 %v6672
      %v6693 = vunpack.c.l.b16 %v6673
      %v6694 = vunpack.c.l.b16 %v6674
      %v6695 = vunpack.c.l.b16 %v6675
      %v6696 = vunpack.c.l.b16 %v6676
      %v6697 = vpack.c.b16 %v6688, %v6687
      %v6698 = vpack.c.b16 %v6690, %v6689
      %v6699 = vpack.c.b16 %v6692, %v6691
      %v6700 = vpack.c.b16 %v6694, %v6693
      %v6701 = vpack.c.b16 %v6696, %v6695
      %6707 = vmatprep.subr.bf16.mxu0 0
      %6708 = vmatpush1.bf16.msra.mxu0 %v6697
      %6709 = vmatprep.subr.bf16.mxu0 0
      %6710 = vmatpush1.bf16.msra.mxu0 %v6698
      %6711 = vmatprep.subr.bf16.mxu0 0
      %6712 = vmatpush1.bf16.msra.mxu0 %v6699
      %6713 = vmatprep.subr.bf16.mxu0 0
      %6714 = vmatpush1.bf16.msra.mxu0 %v6700
      %6715 = vmatprep.subr.bf16.mxu0 0
      %6716 = vmatpush1.bf16.msra.mxu0 %v6701
      %6717 = vmatprep.subr.bf16.mxu0 0
      %6718 = vmatpush1.bf16.msra.mxu0 0
      %6719 = vmatprep.subr.bf16.mxu0 0
      %6720 = vmatpush1.bf16.msra.mxu0 0
      %6721 = vmatprep.subr.bf16.mxu0 0
      %6722 = vmatpush1.bf16.msra.mxu0 0
      %6723 = vmatprep.subr.bf16.mxu0 0
      %6724 = vmatpush1.bf16.msra.mxu0 0
      %6725 = vmatprep.subr.bf16.mxu0 0
      %6726 = vmatpush1.bf16.msra.mxu0 0
      %6727 = vmatprep.subr.bf16.mxu0 0
      %6728 = vmatpush1.bf16.msra.mxu0 0
      %6729 = vmatprep.subr.bf16.mxu0 0
      %6730 = vmatpush1.bf16.msra.mxu0 0
      %6731 = vmatprep.subr.bf16.mxu0 0
      %6732 = vmatpush1.bf16.msra.mxu0 0
      %6733 = vmatprep.subr.bf16.mxu0 0
      %6734 = vmatpush1.bf16.msra.mxu0 0
      %6735 = vmatprep.subr.bf16.mxu0 0
      %6736 = vmatpush1.bf16.msra.mxu0 0
      %6737 = vmatprep.subr.bf16.mxu0 0
      %6738 = vmatpush1.bf16.msra.mxu0 0
      %6739 = vmatprep.mubr.bf16.mxu0 0
      %6740 = vmatmul.mubr.bf16.gmra.mrb[0].mxu0 %v6547
      %v6741 = vpop.f32.mrb[0].mxu0
      %v6742 = vadd.f32 0.0, %v6741
      %v6743 = vpop.f32.mrb[0].mxu0
      %v6744 = vpop.f32.mrb[0].mxu0
      %v6745 = vadd.f32 0.0, %v6744
      %v6746 = vpop.f32.mrb[0].mxu0
      %6747 = vmatprep.mubr.bf16.mxu0 0
      %6748 = vmatmul.mubr.bf16.gmra.mrb[0].mxu0 %v6550
      %v6749 = vpop.f32.mrb[0].mxu0
      %v6750 = vadd.f32 0.0, %v6749
      %v6751 = vpop.f32.mrb[0].mxu0
      %v6752 = vpop.f32.mrb[0].mxu0
      %v6753 = vadd.f32 0.0, %v6752
      %v6754 = vpop.f32.mrb[0].mxu0
      %6755 = vmatprep.mubr.bf16.mxu0 0
      %6756 = vmatmul.mubr.bf16.gmra.mrb[0].mxu0 %v6553
      %v6757 = vpop.f32.mrb[0].mxu0
      %v6758 = vadd.f32 0.0, %v6757
      %v6759 = vpop.f32.mrb[0].mxu0
      %v6760 = vpop.f32.mrb[0].mxu0
      %v6761 = vadd.f32 0.0, %v6760
      %v6762 = vpop.f32.mrb[0].mxu0
      %6763 = vmatprep.mubr.bf16.mxu0 0
      %6764 = vmatmul.mubr.bf16.gmra.mrb[0].mxu0 %v6556
      %v6765 = vpop.f32.mrb[0].mxu0
      %v6766 = vadd.f32 0.0, %v6765
      %v6767 = vpop.f32.mrb[0].mxu0
      %v6768 = vpop.f32.mrb[0].mxu0
      %v6769 = vadd.f32 0.0, %v6768
      %v6770 = vpop.f32.mrb[0].mxu0
      %6771 = vmatprep.mubr.bf16.mxu0 0
      %6772 = vmatmul.mubr.bf16.gmra.mrb[0].mxu0 %v6559
      %v6773 = vpop.f32.mrb[0].mxu0
      %v6774 = vadd.f32 0.0, %v6773
      %v6775 = vpop.f32.mrb[0].mxu0
      %v6776 = vpop.f32.mrb[0].mxu0
      %v6777 = vadd.f32 0.0, %v6776
      %v6778 = vpop.f32.mrb[0].mxu0
      %6779 = vmatprep.mubr.bf16.mxu0 0
      %6780 = vmatmul.mubr.bf16.gmra.mrb[0].mxu0 %v6562
      %v6781 = vpop.f32.mrb[0].mxu0
      %v6782 = vadd.f32 0.0, %v6781
      %v6783 = vpop.f32.mrb[0].mxu0
      %v6784 = vpop.f32.mrb[0].mxu0
      %v6785 = vadd.f32 0.0, %v6784
      %v6786 = vpop.f32.mrb[0].mxu0
      %6787 = vmatprep.mubr.bf16.mxu0 0
      %6788 = vmatmul.mubr.bf16.gmra.mrb[0].mxu0 %v6565
      %v6789 = vpop.f32.mrb[0].mxu0
      %v6790 = vadd.f32 0.0, %v6789
      %v6791 = vpop.f32.mrb[0].mxu0
      %v6792 = vpop.f32.mrb[0].mxu0
      %v6793 = vadd.f32 0.0, %v6792
      %v6794 = vpop.f32.mrb[0].mxu0
      %6795 = vmatprep.mubr.bf16.mxu0 0
      %6796 = vmatmul.mubr.bf16.gmra.mrb[0].mxu0 %v6568
      %v6797 = vpop.f32.mrb[0].mxu0
      %v6798 = vadd.f32 0.0, %v6797
      %v6799 = vpop.f32.mrb[0].mxu0
      %v6800 = vpop.f32.mrb[0].mxu0
      %v6801 = vpop.f32.mrb[0].mxu0
      %6802 = vdwg.mxu0
      %v6803 = vmax.f32 %v6605, %v6742
      %v6804 = vmax.f32 %v6608, %v6745
      %v6805 = vmax.f32 %v6613, %v6750
      %v6806 = vmax.f32 %v6616, %v6753
      %v6807 = vmax.f32 %v6621, %v6758
      %v6808 = vmax.f32 %v6624, %v6761
      %v6809 = vmax.f32 %v6629, %v6766
      %v6810 = vmax.f32 %v6632, %v6769
      %v6811 = vmax.f32 %v6637, %v6774
      %v6812 = vmax.f32 %v6640, %v6777
      %v6813 = vmax.f32 %v6645, %v6782
      %v6814 = vmax.f32 %v6648, %v6785
      %v6815 = vmax.f32 %v6653, %v6790
      %v6816 = vmax.f32 %v6656, %v6793
      %v6817 = vmax.f32 %v6661, %v6798
      %vm6818 = vcmp.lt.s32.totalorder %v650, 0
      %v6819 = vsub.s32 0, %v650
      %v6820 = vsel %vm6818, %v6819, %v650
      %v6821 = vmul.u32.u64.compose %v6820, 3435973837
      %v6822 = vextract.low.u32 %v6821
      %v6823 = vextract.high.u32 %v6821
      %v6824 = vshrl.u32 %v6823, 2
      %v6825 = vmul.u32 %v6824, 5
      %v6826 = vsub.s32 %v6820, %v6825
      %v6827 = vsub.s32 0, %v6826
      %v6828 = vsel %vm6818, %v6827, %v6826
      %vm6829 = vcmp.lt.s32.totalorder %v651, 0
      %v6830 = vsub.s32 0, %v651
      %v6831 = vsel %vm6829, %v6830, %v651
      %v6832 = vmul.u32.u64.compose %v6831, 3435973837
      %v6833 = vextract.low.u32 %v6832
      %v6834 = vextract.high.u32 %v6832
      %v6835 = vshrl.u32 %v6834, 2
      %v6836 = vmul.u32 %v6835, 5
      %v6837 = vsub.s32 %v6831, %v6836
      %v6838 = vsub.s32 0, %v6837
      %v6839 = vsel %vm6829, %v6838, %v6837
      %vm6840 = vcmp.lt.s32.totalorder %v652, 0
      %v6841 = vsub.s32 0, %v652
      %v6842 = vsel %vm6840, %v6841, %v652
      %v6843 = vmul.u32.u64.compose %v6842, 3435973837
      %v6844 = vextract.low.u32 %v6843
      %v6845 = vextract.high.u32 %v6843
      %v6846 = vshrl.u32 %v6845, 2
      %v6847 = vmul.u32 %v6846, 5
      %v6848 = vsub.s32 %v6842, %v6847
      %v6849 = vsub.s32 0, %v6848
      %v6850 = vsel %vm6840, %v6849, %v6848
      %vm6851 = vcmp.lt.s32.totalorder %v653, 0
      %v6852 = vsub.s32 0, %v653
      %v6853 = vsel %vm6851, %v6852, %v653
      %v6854 = vmul.u32.u64.compose %v6853, 3435973837
      %v6855 = vextract.low.u32 %v6854
      %v6856 = vextract.high.u32 %v6854
      %v6857 = vshrl.u32 %v6856, 2
      %v6858 = vmul.u32 %v6857, 5
      %v6859 = vsub.s32 %v6853, %v6858
      %v6860 = vsub.s32 0, %v6859
      %v6861 = vsel %vm6851, %v6860, %v6859
      %vm6862 = vcmp.lt.s32.totalorder %v654, 0
      %v6863 = vsub.s32 0, %v654
      %v6864 = vsel %vm6862, %v6863, %v654
      %v6865 = vmul.u32.u64.compose %v6864, 3435973837
      %v6866 = vextract.low.u32 %v6865
      %v6867 = vextract.high.u32 %v6865
      %v6868 = vshrl.u32 %v6867, 2
      %v6869 = vmul.u32 %v6868, 5
      %v6870 = vsub.s32 %v6864, %v6869
      %v6871 = vsub.s32 0, %v6870
      %v6872 = vsel %vm6862, %v6871, %v6870
      %vm6873 = vcmp.lt.s32.totalorder %v655, 0
      %v6874 = vsub.s32 0, %v655
      %v6875 = vsel %vm6873, %v6874, %v655
      %v6876 = vmul.u32.u64.compose %v6875, 3435973837
      %v6877 = vextract.low.u32 %v6876
      %v6878 = vextract.high.u32 %v6876
      %v6879 = vshrl.u32 %v6878, 2
      %v6880 = vmul.u32 %v6879, 5
      %v6881 = vsub.s32 %v6875, %v6880
      %v6882 = vsub.s32 0, %v6881
      %v6883 = vsel %vm6873, %v6882, %v6881
      %vm6884 = vcmp.lt.s32.totalorder %v656, 0
      %v6885 = vsub.s32 0, %v656
      %v6886 = vsel %vm6884, %v6885, %v656
      %v6887 = vmul.u32.u64.compose %v6886, 3435973837
      %v6888 = vextract.low.u32 %v6887
      %v6889 = vextract.high.u32 %v6887
      %v6890 = vshrl.u32 %v6889, 2
      %v6891 = vmul.u32 %v6890, 5
      %v6892 = vsub.s32 %v6886, %v6891
      %v6893 = vsub.s32 0, %v6892
      %v6894 = vsel %vm6884, %v6893, %v6892
      %vm6895 = vcmp.lt.s32.totalorder %v657, 0
      %v6896 = vsub.s32 0, %v657
      %v6897 = vsel %vm6895, %v6896, %v657
      %v6898 = vmul.u32.u64.compose %v6897, 3435973837
      %v6899 = vextract.low.u32 %v6898
      %v6900 = vextract.high.u32 %v6898
      %v6901 = vshrl.u32 %v6900, 2
      %v6902 = vmul.u32 %v6901, 5
      %v6903 = vsub.s32 %v6897, %v6902
      %v6904 = vsub.s32 0, %v6903
      %v6905 = vsel %vm6895, %v6904, %v6903
      %vm6906 = vcmp.lt.s32.totalorder %v658, 0
      %v6907 = vsub.s32 0, %v658
      %v6908 = vsel %vm6906, %v6907, %v658
      %v6909 = vmul.u32.u64.compose %v6908, 3435973837
      %v6910 = vextract.low.u32 %v6909
      %v6911 = vextract.high.u32 %v6909
      %v6912 = vshrl.u32 %v6911, 2
      %v6913 = vmul.u32 %v6912, 5
      %v6914 = vsub.s32 %v6908, %v6913
      %v6915 = vsub.s32 0, %v6914
      %v6916 = vsel %vm6906, %v6915, %v6914
      %vm6917 = vcmp.lt.s32.totalorder %v659, 0
      %v6918 = vsub.s32 0, %v659
      %v6919 = vsel %vm6917, %v6918, %v659
      %v6920 = vmul.u32.u64.compose %v6919, 3435973837
      %v6921 = vextract.low.u32 %v6920
      %v6922 = vextract.high.u32 %v6920
      %v6923 = vshrl.u32 %v6922, 2
      %v6924 = vmul.u32 %v6923, 5
      %v6925 = vsub.s32 %v6919, %v6924
      %v6926 = vsub.s32 0, %v6925
      %v6927 = vsel %vm6917, %v6926, %v6925
      %vm6928 = vcmp.lt.s32.totalorder %v660, 0
      %v6929 = vsub.s32 0, %v660
      %v6930 = vsel %vm6928, %v6929, %v660
      %v6931 = vmul.u32.u64.compose %v6930, 3435973837
      %v6932 = vextract.low.u32 %v6931
      %v6933 = vextract.high.u32 %v6931
      %v6934 = vshrl.u32 %v6933, 2
      %v6935 = vmul.u32 %v6934, 5
      %v6936 = vsub.s32 %v6930, %v6935
      %v6937 = vsub.s32 0, %v6936
      %v6938 = vsel %vm6928, %v6937, %v6936
      %vm6939 = vcmp.lt.s32.totalorder %v661, 0
      %v6940 = vsub.s32 0, %v661
      %v6941 = vsel %vm6939, %v6940, %v661
      %v6942 = vmul.u32.u64.compose %v6941, 3435973837
      %v6943 = vextract.low.u32 %v6942
      %v6944 = vextract.high.u32 %v6942
      %v6945 = vshrl.u32 %v6944, 2
      %v6946 = vmul.u32 %v6945, 5
      %v6947 = vsub.s32 %v6941, %v6946
      %v6948 = vsub.s32 0, %v6947
      %v6949 = vsel %vm6939, %v6948, %v6947
      %vm6950 = vcmp.lt.s32.totalorder %v662, 0
      %v6951 = vsub.s32 0, %v662
      %v6952 = vsel %vm6950, %v6951, %v662
      %v6953 = vmul.u32.u64.compose %v6952, 3435973837
      %v6954 = vextract.low.u32 %v6953
      %v6955 = vextract.high.u32 %v6953
      %v6956 = vshrl.u32 %v6955, 2
      %v6957 = vmul.u32 %v6956, 5
      %v6958 = vsub.s32 %v6952, %v6957
      %v6959 = vsub.s32 0, %v6958
      %v6960 = vsel %vm6950, %v6959, %v6958
      %vm6961 = vcmp.lt.s32.totalorder %v663, 0
      %v6962 = vsub.s32 0, %v663
      %v6963 = vsel %vm6961, %v6962, %v663
      %v6964 = vmul.u32.u64.compose %v6963, 3435973837
      %v6965 = vextract.low.u32 %v6964
      %v6966 = vextract.high.u32 %v6964
      %v6967 = vshrl.u32 %v6966, 2
      %v6968 = vmul.u32 %v6967, 5
      %v6969 = vsub.s32 %v6963, %v6968
      %v6970 = vsub.s32 0, %v6969
      %v6971 = vsel %vm6961, %v6970, %v6969
      %vm6972 = vcmp.lt.s32.totalorder %v664, 0
      %v6973 = vsub.s32 0, %v664
      %v6974 = vsel %vm6972, %v6973, %v664
      %v6975 = vmul.u32.u64.compose %v6974, 3435973837
      %v6976 = vextract.low.u32 %v6975
      %v6977 = vextract.high.u32 %v6975
      %v6978 = vshrl.u32 %v6977, 2
      %v6979 = vmul.u32 %v6978, 5
      %v6980 = vsub.s32 %v6974, %v6979
      %v6981 = vsub.s32 0, %v6980
      %v6982 = vsel %vm6972, %v6981, %v6980
      %vm6983 = vcmp.ne.s32.totalorder %v6828, 0
      %vm6984 = vcmp.ne.s32.totalorder %v6839, 0
      %vm6985 = vcmp.ne.s32.totalorder %v6850, 0
      %vm6986 = vcmp.ne.s32.totalorder %v6861, 0
      %vm6987 = vcmp.ne.s32.totalorder %v6872, 0
      %vm6988 = vcmp.ne.s32.totalorder %v6883, 0
      %vm6989 = vcmp.ne.s32.totalorder %v6894, 0
      %vm6990 = vcmp.ne.s32.totalorder %v6905, 0
      %vm6991 = vcmp.ne.s32.totalorder %v6916, 0
      %vm6992 = vcmp.ne.s32.totalorder %v6927, 0
      %vm6993 = vcmp.ne.s32.totalorder %v6938, 0
      %vm6994 = vcmp.ne.s32.totalorder %v6949, 0
      %vm6995 = vcmp.ne.s32.totalorder %v6960, 0
      %vm6996 = vcmp.ne.s32.totalorder %v6971, 0
      %vm6997 = vcmp.ne.s32.totalorder %v6982, 0
      %vm6998 = vcmp.lt.s32.totalorder %v6828, 0
      %vm6999 = vcmp.lt.s32.totalorder %v6839, 0
      %vm7000 = vcmp.lt.s32.totalorder %v6850, 0
      %vm7001 = vcmp.lt.s32.totalorder %v6861, 0
      %vm7002 = vcmp.lt.s32.totalorder %v6872, 0
      %vm7003 = vcmp.lt.s32.totalorder %v6883, 0
      %vm7004 = vcmp.lt.s32.totalorder %v6894, 0
      %vm7005 = vcmp.lt.s32.totalorder %v6905, 0
      %vm7006 = vcmp.lt.s32.totalorder %v6916, 0
      %vm7007 = vcmp.lt.s32.totalorder %v6927, 0
      %vm7008 = vcmp.lt.s32.totalorder %v6938, 0
      %vm7009 = vcmp.lt.s32.totalorder %v6949, 0
      %vm7010 = vcmp.lt.s32.totalorder %v6960, 0
      %vm7011 = vcmp.lt.s32.totalorder %v6971, 0
      %vm7012 = vcmp.lt.s32.totalorder %v6982, 0
      %vm7013 = vmand %vm6998, %vm6983
      %vm7014 = vmand %vm6999, %vm6984
      %vm7015 = vmand %vm7000, %vm6985
      %vm7016 = vmand %vm7001, %vm6986
      %vm7017 = vmand %vm7002, %vm6987
      %vm7018 = vmand %vm7003, %vm6988
      %vm7019 = vmand %vm7004, %vm6989
      %vm7020 = vmand %vm7005, %vm6990
      %vm7021 = vmand %vm7006, %vm6991
      %vm7022 = vmand %vm7007, %vm6992
      %vm7023 = vmand %vm7008, %vm6993
      %vm7024 = vmand %vm7009, %vm6994
      %vm7025 = vmand %vm7010, %vm6995
      %vm7026 = vmand %vm7011, %vm6996
      %vm7027 = vmand %vm7012, %vm6997
      %v7028 = vadd.s32 %v6828, 5
      %v7029 = vadd.s32 %v6839, 5
      %v7030 = vadd.s32 %v6850, 5
      %v7031 = vadd.s32 %v6861, 5
      %v7032 = vadd.s32 %v6872, 5
      %v7033 = vadd.s32 %v6883, 5
      %v7034 = vadd.s32 %v6894, 5
      %v7035 = vadd.s32 %v6905, 5
      %v7036 = vadd.s32 %v6916, 5
      %v7037 = vadd.s32 %v6927, 5
      %v7038 = vadd.s32 %v6938, 5
      %v7039 = vadd.s32 %v6949, 5
      %v7040 = vadd.s32 %v6960, 5
      %v7041 = vadd.s32 %v6971, 5
      %v7042 = vadd.s32 %v6982, 5
      %v7043 = vsel %vm7013, %v7028, %v6828
      %v7044 = vsel %vm7014, %v7029, %v6839
      %v7045 = vsel %vm7015, %v7030, %v6850
      %v7046 = vsel %vm7016, %v7031, %v6861
      %v7047 = vsel %vm7017, %v7032, %v6872
      %v7048 = vsel %vm7018, %v7033, %v6883
      %v7049 = vsel %vm7019, %v7034, %v6894
      %v7050 = vsel %vm7020, %v7035, %v6905
      %v7051 = vsel %vm7021, %v7036, %v6916
      %v7052 = vsel %vm7022, %v7037, %v6927
      %v7053 = vsel %vm7023, %v7038, %v6938
      %v7054 = vsel %vm7024, %v7039, %v6949
      %v7055 = vsel %vm7025, %v7040, %v6960
      %v7056 = vsel %vm7026, %v7041, %v6971
      %v7057 = vsel %vm7027, %v7042, %v6982
      %v7058 = vld [vmem:[%s7] sm:$0x1]
      %v7059 = vrot.slane %v6803, 7
      %v7060 = vrot.slane %v6804, 7
      %v7061 = vrot.slane %v6805, 7
      %v7062 = vrot.slane %v6806, 7
      %v7063 = vrot.slane %v6807, 7
      %v7064 = vrot.slane %v6808, 7
      %v7065 = vrot.slane %v6809, 7
      %v7066 = vrot.slane %v6810, 7
      %v7067 = vrot.slane %v6811, 7
      %v7068 = vrot.slane %v6812, 7
      %v7069 = vrot.slane %v6813, 7
      %v7070 = vrot.slane %v6814, 7
      %v7071 = vrot.slane %v6815, 7
      %v7072 = vrot.slane %v6816, 7
      %v7073 = vrot.slane %v6817, 7
      %v7074 = vsel %vm1311, %v7072, %v7073
      %v7075 = vsel %vm1311, %v7071, %v7072
      %v7076 = vsel %vm1311, %v7070, %v7071
      %v7077 = vsel %vm1311, %v7069, %v7070
      %v7078 = vsel %vm1311, %v7068, %v7069
      %v7079 = vsel %vm1311, %v7067, %v7068
      %v7080 = vsel %vm1311, %v7066, %v7067
      %v7081 = vsel %vm1311, %v7065, %v7066
      %v7082 = vsel %vm1311, %v7064, %v7065
      %v7083 = vsel %vm1311, %v7063, %v7064
      %v7084 = vsel %vm1311, %v7062, %v7063
      %v7085 = vsel %vm1311, %v7061, %v7062
      %v7086 = vsel %vm1311, %v7060, %v7061
      %v7087 = vsel %vm1311, %v7059, %v7060
      %v7088 = vsel %vm1311, %v7073, %v7059
      %v7089 = vadd.s32 %v7043, 4294967295
      %v7090 = vadd.s32 %v7044, 4294967295
      %v7091 = vadd.s32 %v7045, 4294967295
      %v7092 = vadd.s32 %v7046, 4294967295
      %v7093 = vadd.s32 %v7047, 4294967295
      %v7094 = vadd.s32 %v7048, 4294967295
      %v7095 = vadd.s32 %v7049, 4294967295
      %v7096 = vadd.s32 %v7050, 4294967295
      %v7097 = vadd.s32 %v7051, 4294967295
      %v7098 = vadd.s32 %v7052, 4294967295
      %v7099 = vadd.s32 %v7053, 4294967295
      %v7100 = vadd.s32 %v7054, 4294967295
      %v7101 = vadd.s32 %v7055, 4294967295
      %v7102 = vadd.s32 %v7056, 4294967295
      %v7103 = vadd.s32 %v7057, 4294967295
      %vm7104 = vcmp.ge.s32.totalorder %v7089, 0
      %vm7105 = vcmp.ge.s32.totalorder %v7090, 0
      %vm7106 = vcmp.ge.s32.totalorder %v7091, 0
      %vm7107 = vcmp.ge.s32.totalorder %v7092, 0
      %vm7108 = vcmp.ge.s32.totalorder %v7093, 0
      %vm7109 = vcmp.ge.s32.totalorder %v7094, 0
      %vm7110 = vcmp.ge.s32.totalorder %v7095, 0
      %vm7111 = vcmp.ge.s32.totalorder %v7096, 0
      %vm7112 = vcmp.ge.s32.totalorder %v7097, 0
      %vm7113 = vcmp.ge.s32.totalorder %v7098, 0
      %vm7114 = vcmp.ge.s32.totalorder %v7099, 0
      %vm7115 = vcmp.ge.s32.totalorder %v7100, 0
      %vm7116 = vcmp.ge.s32.totalorder %v7101, 0
      %vm7117 = vcmp.ge.s32.totalorder %v7102, 0
      %vm7118 = vcmp.ge.s32.totalorder %v7103, 0
      %vm7119 = vcmp.lt.s32.totalorder %v7089, 5
      %vm7120 = vcmp.lt.s32.totalorder %v7090, 5
      %vm7121 = vcmp.lt.s32.totalorder %v7091, 5
      %vm7122 = vcmp.lt.s32.totalorder %v7092, 5
      %vm7123 = vcmp.lt.s32.totalorder %v7093, 5
      %vm7124 = vcmp.lt.s32.totalorder %v7094, 5
      %vm7125 = vcmp.lt.s32.totalorder %v7095, 5
      %vm7126 = vcmp.lt.s32.totalorder %v7096, 5
      %vm7127 = vcmp.lt.s32.totalorder %v7097, 5
      %vm7128 = vcmp.lt.s32.totalorder %v7098, 5
      %vm7129 = vcmp.lt.s32.totalorder %v7099, 5
      %vm7130 = vcmp.lt.s32.totalorder %v7100, 5
      %vm7131 = vcmp.lt.s32.totalorder %v7101, 5
      %vm7132 = vcmp.lt.s32.totalorder %v7102, 5
      %vm7133 = vcmp.lt.s32.totalorder %v7103, 5
      %vm7134 = vmand %vm7104, %vm7119
      %vm7135 = vmand %vm7105, %vm7120
      %vm7136 = vmand %vm7106, %vm7121
      %vm7137 = vmand %vm7107, %vm7122
      %vm7138 = vmand %vm7108, %vm7123
      %vm7139 = vmand %vm7109, %vm7124
      %vm7140 = vmand %vm7110, %vm7125
      %vm7141 = vmand %vm7111, %vm7126
      %vm7142 = vmand %vm7112, %vm7127
      %vm7143 = vmand %vm7113, %vm7128
      %vm7144 = vmand %vm7114, %vm7129
      %vm7145 = vmand %vm7115, %vm7130
      %vm7146 = vmand %vm7116, %vm7131
      %vm7147 = vmand %vm7117, %vm7132
      %vm7148 = vmand %vm7118, %vm7133
      %v7149 = vsel %vm7134, 1, 0
      %v7150 = vsel %vm7135, 1, 0
      %v7151 = vsel %vm7136, 1, 0
      %v7152 = vsel %vm7137, 1, 0
      %v7153 = vsel %vm7138, 1, 0
      %v7154 = vsel %vm7139, 1, 0
      %v7155 = vsel %vm7140, 1, 0
      %v7156 = vsel %vm7141, 1, 0
      %v7157 = vsel %vm7142, 1, 0
      %v7158 = vsel %vm7143, 1, 0
      %v7159 = vsel %vm7144, 1, 0
      %v7160 = vsel %vm7145, 1, 0
      %v7161 = vsel %vm7146, 1, 0
      %v7162 = vsel %vm7147, 1, 0
      %v7163 = vsel %vm7148, 1, 0
      %vm7164 = vcmp.eq.s32.totalorder %v7149, 1
      %vm7165 = vcmp.eq.s32.totalorder %v7150, 1
      %vm7166 = vcmp.eq.s32.totalorder %v7151, 1
      %vm7167 = vcmp.eq.s32.totalorder %v7152, 1
      %vm7168 = vcmp.eq.s32.totalorder %v7153, 1
      %vm7169 = vcmp.eq.s32.totalorder %v7154, 1
      %vm7170 = vcmp.eq.s32.totalorder %v7155, 1
      %vm7171 = vcmp.eq.s32.totalorder %v7156, 1
      %vm7172 = vcmp.eq.s32.totalorder %v7157, 1
      %vm7173 = vcmp.eq.s32.totalorder %v7158, 1
      %vm7174 = vcmp.eq.s32.totalorder %v7159, 1
      %vm7175 = vcmp.eq.s32.totalorder %v7160, 1
      %vm7176 = vcmp.eq.s32.totalorder %v7161, 1
      %vm7177 = vcmp.eq.s32.totalorder %v7162, 1
      %vm7178 = vcmp.eq.s32.totalorder %v7163, 1
      %v7179 = vsel %vm7164, %v7088, 0.0
      %v7180 = vsel %vm7165, %v7087, 0.0
      %v7181 = vsel %vm7166, %v7086, 0.0
      %v7182 = vsel %vm7167, %v7085, 0.0
      %v7183 = vsel %vm7168, %v7084, 0.0
      %v7184 = vsel %vm7169, %v7083, 0.0
      %v7185 = vsel %vm7170, %v7082, 0.0
      %v7186 = vsel %vm7171, %v7081, 0.0
      %v7187 = vsel %vm7172, %v7080, 0.0
      %v7188 = vsel %vm7173, %v7079, 0.0
      %v7189 = vsel %vm7174, %v7078, 0.0
      %v7190 = vsel %vm7175, %v7077, 0.0
      %v7191 = vsel %vm7176, %v7076, 0.0
      %v7192 = vsel %vm7177, %v7075, 0.0
      %v7193 = vsel %vm7178, %v7074, 0.0
      %v7194 = vpack.c.bf16 %v7180, %v7179
      %v7195 = vpack.c.bf16 %v7182, %v7181
      %v7196 = vpack.c.bf16 %v7184, %v7183
      %v7197 = vpack.c.bf16 %v7186, %v7185
      %v7198 = vpack.c.bf16 %v7188, %v7187
      %v7199 = vpack.c.bf16 %v7190, %v7189
      %v7200 = vpack.c.bf16 %v7192, %v7191
      %v7201 = vpack.c.bf16 %v7193, %v7193
      %v7202 = vld [vmem:[%s6] sm:$0xf]
      %v7203 = vld [vmem:[%s6 + $0x4] sm:$0xf]
      %v7204 = vld [vmem:[%s6 + $0x8] sm:$0xf]
      %v7205 = vld [vmem:[%s6 + $0xc] sm:$0xf]
      %v7206 = vld [vmem:[%s6 + $0x10] sm:$0xf]
      %v7212 = vunpack.c.l.b16 %v7202
      %v7213 = vunpack.c.l.b16 %v7203
      %v7214 = vunpack.c.l.b16 %v7204
      %v7215 = vunpack.c.l.b16 %v7205
      %v7216 = vunpack.c.l.b16 %v7206
      %v7217 = vpack.c.b16 %v7213, %v7212
      %v7218 = vpack.c.b16 %v7215, %v7214
      %v7219 = vpack.c.b16 %v7216, %v7216
      %vm7222 = vcmask 326656
      %v7224 = vsel %vm7222, %v7194, 0
      %v7227 = vsel %vm7222, %v7195, 0
      %v7230 = vsel %vm7222, %v7196, 0
      %v7233 = vsel %vm7222, %v7197, 0
      %v7236 = vsel %vm7222, %v7198, 0
      %v7239 = vsel %vm7222, %v7199, 0
      %v7242 = vsel %vm7222, %v7200, 0
      %v7245 = vsel %vm7222, %v7201, 0
      %vm7247 = vcmask 1043456
      %v7249 = vsel %vm7247, %v7219, 0
      %7251 = vmatprep.subr.bf16.mxu0 0
      %7252 = vmatpush1.bf16.msra.mxu0 %v7217
      %7253 = vmatprep.subr.bf16.mxu0 0
      %7254 = vmatpush1.bf16.msra.mxu0 %v7218
      %7255 = vmatprep.subr.bf16.mxu0 0
      %7256 = vmatpush1.bf16.msra.mxu0 %v7249
      %7257 = vmatprep.subr.bf16.mxu0 0
      %7258 = vmatpush1.bf16.msra.mxu0 0
      %7259 = vmatprep.subr.bf16.mxu0 0
      %7260 = vmatpush1.bf16.msra.mxu0 0
      %7261 = vmatprep.subr.bf16.mxu0 0
      %7262 = vmatpush1.bf16.msra.mxu0 0
      %7263 = vmatprep.subr.bf16.mxu0 0
      %7264 = vmatpush1.bf16.msra.mxu0 0
      %7265 = vmatprep.subr.bf16.mxu0 0
      %7266 = vmatpush1.bf16.msra.mxu0 0
      %7267 = vmatprep.subr.bf16.mxu0 0
      %7268 = vmatpush1.bf16.msra.mxu0 0
      %7269 = vmatprep.subr.bf16.mxu0 0
      %7270 = vmatpush1.bf16.msra.mxu0 0
      %7271 = vmatprep.subr.bf16.mxu0 0
      %7272 = vmatpush1.bf16.msra.mxu0 0
      %7273 = vmatprep.subr.bf16.mxu0 0
      %7274 = vmatpush1.bf16.msra.mxu0 0
      %7275 = vmatprep.subr.bf16.mxu0 0
      %7276 = vmatpush1.bf16.msra.mxu0 0
      %7277 = vmatprep.subr.bf16.mxu0 0
      %7278 = vmatpush1.bf16.msra.mxu0 0
      %7279 = vmatprep.subr.bf16.mxu0 0
      %7280 = vmatpush1.bf16.msra.mxu0 0
      %7281 = vmatprep.subr.bf16.mxu0 0
      %7282 = vmatpush1.bf16.msra.mxu0 0
      %7283 = vmatprep.mubr.bf16.mxu0 0
      %7284 = vmatmul.mubr.bf16.gmra.mrb[0].mxu0 %v7224
      %v7285 = vpop.f32.mrb[0].mxu0
      %v7286 = vadd.f32 0.0, %v7285
      %v7287 = vpop.f32.mrb[0].mxu0
      %v7288 = vpop.f32.mrb[0].mxu0
      %v7289 = vadd.f32 0.0, %v7288
      %v7290 = vpop.f32.mrb[0].mxu0
      %7291 = vmatprep.mubr.bf16.mxu0 0
      %7292 = vmatmul.mubr.bf16.gmra.mrb[0].mxu0 %v7227
      %v7293 = vpop.f32.mrb[0].mxu0
      %v7294 = vadd.f32 0.0, %v7293
      %v7295 = vpop.f32.mrb[0].mxu0
      %v7296 = vpop.f32.mrb[0].mxu0
      %v7297 = vadd.f32 0.0, %v7296
      %v7298 = vpop.f32.mrb[0].mxu0
      %7299 = vmatprep.mubr.bf16.mxu0 0
      %7300 = vmatmul.mubr.bf16.gmra.mrb[0].mxu0 %v7230
      %v7301 = vpop.f32.mrb[0].mxu0
      %v7302 = vadd.f32 0.0, %v7301
      %v7303 = vpop.f32.mrb[0].mxu0
      %v7304 = vpop.f32.mrb[0].mxu0
      %v7305 = vadd.f32 0.0, %v7304
      %v7306 = vpop.f32.mrb[0].mxu0
      %7307 = vmatprep.mubr.bf16.mxu0 0
      %7308 = vmatmul.mubr.bf16.gmra.mrb[0].mxu0 %v7233
      %v7309 = vpop.f32.mrb[0].mxu0
      %v7310 = vadd.f32 0.0, %v7309
      %v7311 = vpop.f32.mrb[0].mxu0
      %v7312 = vpop.f32.mrb[0].mxu0
      %v7313 = vadd.f32 0.0, %v7312
      %v7314 = vpop.f32.mrb[0].mxu0
      %7315 = vmatprep.mubr.bf16.mxu0 0
      %7316 = vmatmul.mubr.bf16.gmra.mrb[0].mxu0 %v7236
      %v7317 = vpop.f32.mrb[0].mxu0
      %v7318 = vadd.f32 0.0, %v7317
      %v7319 = vpop.f32.mrb[0].mxu0
      %v7320 = vpop.f32.mrb[0].mxu0
      %v7321 = vadd.f32 0.0, %v7320
      %v7322 = vpop.f32.mrb[0].mxu0
      %7323 = vmatprep.mubr.bf16.mxu0 0
      %7324 = vmatmul.mubr.bf16.gmra.mrb[0].mxu0 %v7239
      %v7325 = vpop.f32.mrb[0].mxu0
      %v7326 = vadd.f32 0.0, %v7325
      %v7327 = vpop.f32.mrb[0].mxu0
      %v7328 = vpop.f32.mrb[0].mxu0
      %v7329 = vadd.f32 0.0, %v7328
      %v7330 = vpop.f32.mrb[0].mxu0
      %7331 = vmatprep.mubr.bf16.mxu0 0
      %7332 = vmatmul.mubr.bf16.gmra.mrb[0].mxu0 %v7242
      %v7333 = vpop.f32.mrb[0].mxu0
      %v7334 = vadd.f32 0.0, %v7333
      %v7335 = vpop.f32.mrb[0].mxu0
      %v7336 = vpop.f32.mrb[0].mxu0
      %v7337 = vadd.f32 0.0, %v7336
      %v7338 = vpop.f32.mrb[0].mxu0
      %7339 = vmatprep.mubr.bf16.mxu0 0
      %7340 = vmatmul.mubr.bf16.gmra.mrb[0].mxu0 %v7245
      %v7341 = vpop.f32.mrb[0].mxu0
      %v7342 = vadd.f32 0.0, %v7341
      %v7343 = vpop.f32.mrb[0].mxu0
      %v7344 = vpop.f32.mrb[0].mxu0
      %v7345 = vpop.f32.mrb[0].mxu0
      %7346 = vdwg.mxu0
      %v7348 = vlaneseq
      %v7349 = vshrl.u32 %v7348, 7
      %v7350 = vsub.s32 0, %v7349
      %v7351 = vrot.slane %v7058, %v7350
      %v7353 = vadd.f32 %v7351, %v7286
      %v7354 = vadd.f32 %v7351, %v7289
      %v7355 = vadd.f32 %v7351, %v7294
      %v7356 = vadd.f32 %v7351, %v7297
      %v7357 = vadd.f32 %v7351, %v7302
      %v7358 = vadd.f32 %v7351, %v7305
      %v7359 = vadd.f32 %v7351, %v7310
      %v7360 = vadd.f32 %v7351, %v7313
      %v7361 = vadd.f32 %v7351, %v7318
      %v7362 = vadd.f32 %v7351, %v7321
      %v7363 = vadd.f32 %v7351, %v7326
      %v7364 = vadd.f32 %v7351, %v7329
      %v7365 = vadd.f32 %v7351, %v7334
      %v7366 = vadd.f32 %v7351, %v7337
      %v7367 = vadd.f32 %v7351, %v7342
      %v7368 = vpack.c.bf16 %v6804, %v6803
      %v7369 = vpack.c.bf16 %v6806, %v6805
      %v7370 = vpack.c.bf16 %v6808, %v6807
      %v7371 = vpack.c.bf16 %v6810, %v6809
      %v7372 = vpack.c.bf16 %v6812, %v6811
      %v7373 = vpack.c.bf16 %v6814, %v6813
      %v7374 = vpack.c.bf16 %v6816, %v6815
      %v7375 = vpack.c.bf16 %v6817, %v6817
      %s7376 = scalar_lea.vmem %s6, 20
      %v7377 = vld [vmem:[%s7376] sm:$0xf]
      %v7378 = vld [vmem:[%s7376 + $0x4] sm:$0xf]
      %v7379 = vld [vmem:[%s7376 + $0x8] sm:$0xf]
      %v7380 = vld [vmem:[%s7376 + $0xc] sm:$0xf]
      %v7381 = vld [vmem:[%s7376 + $0x10] sm:$0xf]
      %v7387 = vunpack.c.l.b16 %v7377
      %v7388 = vunpack.c.l.b16 %v7378
      %v7389 = vunpack.c.l.b16 %v7379
      %v7390 = vunpack.c.l.b16 %v7380
      %v7391 = vunpack.c.l.b16 %v7381
      %v7392 = vpack.c.b16 %v7388, %v7387
      %v7393 = vpack.c.b16 %v7390, %v7389
      %v7394 = vpack.c.b16 %v7391, %v7391
      %v7398 = vsel %vm7222, %v7368, 0
      %v7401 = vsel %vm7222, %v7369, 0
      %v7404 = vsel %vm7222, %v7370, 0
      %v7407 = vsel %vm7222, %v7371, 0
      %v7410 = vsel %vm7222, %v7372, 0
      %v7413 = vsel %vm7222, %v7373, 0
      %v7416 = vsel %vm7222, %v7374, 0
      %v7419 = vsel %vm7222, %v7375, 0
      %v7422 = vsel %vm7247, %v7394, 0
      %7424 = vmatprep.subr.bf16.mxu0 0
      %7425 = vmatpush1.bf16.msra.mxu0 %v7392
      %7426 = vmatprep.subr.bf16.mxu0 0
      %7427 = vmatpush1.bf16.msra.mxu0 %v7393
      %7428 = vmatprep.subr.bf16.mxu0 0
      %7429 = vmatpush1.bf16.msra.mxu0 %v7422
      %7430 = vmatprep.subr.bf16.mxu0 0
      %7431 = vmatpush1.bf16.msra.mxu0 0
      %7432 = vmatprep.subr.bf16.mxu0 0
      %7433 = vmatpush1.bf16.msra.mxu0 0
      %7434 = vmatprep.subr.bf16.mxu0 0
      %7435 = vmatpush1.bf16.msra.mxu0 0
      %7436 = vmatprep.subr.bf16.mxu0 0
      %7437 = vmatpush1.bf16.msra.mxu0 0
      %7438 = vmatprep.subr.bf16.mxu0 0
      %7439 = vmatpush1.bf16.msra.mxu0 0
      %7440 = vmatprep.subr.bf16.mxu0 0
      %7441 = vmatpush1.bf16.msra.mxu0 0
      %7442 = vmatprep.subr.bf16.mxu0 0
      %7443 = vmatpush1.bf16.msra.mxu0 0
      %7444 = vmatprep.subr.bf16.mxu0 0
      %7445 = vmatpush1.bf16.msra.mxu0 0
      %7446 = vmatprep.subr.bf16.mxu0 0
      %7447 = vmatpush1.bf16.msra.mxu0 0
      %7448 = vmatprep.subr.bf16.mxu0 0
      %7449 = vmatpush1.bf16.msra.mxu0 0
      %7450 = vmatprep.subr.bf16.mxu0 0
      %7451 = vmatpush1.bf16.msra.mxu0 0
      %7452 = vmatprep.subr.bf16.mxu0 0
      %7453 = vmatpush1.bf16.msra.mxu0 0
      %7454 = vmatprep.subr.bf16.mxu0 0
      %7455 = vmatpush1.bf16.msra.mxu0 0
      %7456 = vmatprep.mubr.bf16.mxu0 0
      %7457 = vmatmul.mubr.bf16.gmra.mrb[0].mxu0 %v7398
      %v7458 = vpop.f32.mrb[0].mxu0
      %v7459 = vadd.f32 0.0, %v7458
      %v7460 = vpop.f32.mrb[0].mxu0
      %v7461 = vpop.f32.mrb[0].mxu0
      %v7462 = vadd.f32 0.0, %v7461
      %v7463 = vpop.f32.mrb[0].mxu0
      %7464 = vmatprep.mubr.bf16.mxu0 0
      %7465 = vmatmul.mubr.bf16.gmra.mrb[0].mxu0 %v7401
      %v7466 = vpop.f32.mrb[0].mxu0
      %v7467 = vadd.f32 0.0, %v7466
      %v7468 = vpop.f32.mrb[0].mxu0
      %v7469 = vpop.f32.mrb[0].mxu0
      %v7470 = vadd.f32 0.0, %v7469
      %v7471 = vpop.f32.mrb[0].mxu0
      %7472 = vmatprep.mubr.bf16.mxu0 0
      %7473 = vmatmul.mubr.bf16.gmra.mrb[0].mxu0 %v7404
      %v7474 = vpop.f32.mrb[0].mxu0
      %v7475 = vadd.f32 0.0, %v7474
      %v7476 = vpop.f32.mrb[0].mxu0
      %v7477 = vpop.f32.mrb[0].mxu0
      %v7478 = vadd.f32 0.0, %v7477
      %v7479 = vpop.f32.mrb[0].mxu0
      %7480 = vmatprep.mubr.bf16.mxu0 0
      %7481 = vmatmul.mubr.bf16.gmra.mrb[0].mxu0 %v7407
      %v7482 = vpop.f32.mrb[0].mxu0
      %v7483 = vadd.f32 0.0, %v7482
      %v7484 = vpop.f32.mrb[0].mxu0
      %v7485 = vpop.f32.mrb[0].mxu0
      %v7486 = vadd.f32 0.0, %v7485
      %v7487 = vpop.f32.mrb[0].mxu0
      %7488 = vmatprep.mubr.bf16.mxu0 0
      %7489 = vmatmul.mubr.bf16.gmra.mrb[0].mxu0 %v7410
      %v7490 = vpop.f32.mrb[0].mxu0
      %v7491 = vadd.f32 0.0, %v7490
      %v7492 = vpop.f32.mrb[0].mxu0
      %v7493 = vpop.f32.mrb[0].mxu0
      %v7494 = vadd.f32 0.0, %v7493
      %v7495 = vpop.f32.mrb[0].mxu0
      %7496 = vmatprep.mubr.bf16.mxu0 0
      %7497 = vmatmul.mubr.bf16.gmra.mrb[0].mxu0 %v7413
      %v7498 = vpop.f32.mrb[0].mxu0
      %v7499 = vadd.f32 0.0, %v7498
      %v7500 = vpop.f32.mrb[0].mxu0
      %v7501 = vpop.f32.mrb[0].mxu0
      %v7502 = vadd.f32 0.0, %v7501
      %v7503 = vpop.f32.mrb[0].mxu0
      %7504 = vmatprep.mubr.bf16.mxu0 0
      %7505 = vmatmul.mubr.bf16.gmra.mrb[0].mxu0 %v7416
      %v7506 = vpop.f32.mrb[0].mxu0
      %v7507 = vadd.f32 0.0, %v7506
      %v7508 = vpop.f32.mrb[0].mxu0
      %v7509 = vpop.f32.mrb[0].mxu0
      %v7510 = vadd.f32 0.0, %v7509
      %v7511 = vpop.f32.mrb[0].mxu0
      %7512 = vmatprep.mubr.bf16.mxu0 0
      %7513 = vmatmul.mubr.bf16.gmra.mrb[0].mxu0 %v7419
      %v7514 = vpop.f32.mrb[0].mxu0
      %v7515 = vadd.f32 0.0, %v7514
      %v7516 = vpop.f32.mrb[0].mxu0
      %v7517 = vpop.f32.mrb[0].mxu0
      %v7518 = vpop.f32.mrb[0].mxu0
      %7519 = vdwg.mxu0
      %v7520 = vadd.f32 %v7353, %v7459
      %v7521 = vadd.f32 %v7354, %v7462
      %v7522 = vadd.f32 %v7355, %v7467
      %v7523 = vadd.f32 %v7356, %v7470
      %v7524 = vadd.f32 %v7357, %v7475
      %v7525 = vadd.f32 %v7358, %v7478
      %v7526 = vadd.f32 %v7359, %v7483
      %v7527 = vadd.f32 %v7360, %v7486
      %v7528 = vadd.f32 %v7361, %v7491
      %v7529 = vadd.f32 %v7362, %v7494
      %v7530 = vadd.f32 %v7363, %v7499
      %v7531 = vadd.f32 %v7364, %v7502
      %v7532 = vadd.f32 %v7365, %v7507
      %v7533 = vadd.f32 %v7366, %v7510
      %v7534 = vadd.f32 %v7367, %v7515
      %v7535 = vrot.slane %v6803, 1
      %v7536 = vrot.slane %v6804, 1
      %v7537 = vrot.slane %v6805, 1
      %v7538 = vrot.slane %v6806, 1
      %v7539 = vrot.slane %v6807, 1
      %v7540 = vrot.slane %v6808, 1
      %v7541 = vrot.slane %v6809, 1
      %v7542 = vrot.slane %v6810, 1
      %v7543 = vrot.slane %v6811, 1
      %v7544 = vrot.slane %v6812, 1
      %v7545 = vrot.slane %v6813, 1
      %v7546 = vrot.slane %v6814, 1
      %v7547 = vrot.slane %v6815, 1
      %v7548 = vrot.slane %v6816, 1
      %v7549 = vrot.slane %v6817, 1
      %v7550 = vsel %vm3749, %v7548, %v7549
      %v7551 = vsel %vm3749, %v7547, %v7548
      %v7552 = vsel %vm3749, %v7546, %v7547
      %v7553 = vsel %vm3749, %v7545, %v7546
      %v7554 = vsel %vm3749, %v7544, %v7545
      %v7555 = vsel %vm3749, %v7543, %v7544
      %v7556 = vsel %vm3749, %v7542, %v7543
      %v7557 = vsel %vm3749, %v7541, %v7542
      %v7558 = vsel %vm3749, %v7540, %v7541
      %v7559 = vsel %vm3749, %v7539, %v7540
      %v7560 = vsel %vm3749, %v7538, %v7539
      %v7561 = vsel %vm3749, %v7537, %v7538
      %v7562 = vsel %vm3749, %v7536, %v7537
      %v7563 = vsel %vm3749, %v7535, %v7536
      %v7564 = vsel %vm3749, %v7549, %v7535
      %v7565 = vadd.s32 %v7043, 1
      %v7566 = vadd.s32 %v7044, 1
      %v7567 = vadd.s32 %v7045, 1
      %v7568 = vadd.s32 %v7046, 1
      %v7569 = vadd.s32 %v7047, 1
      %v7570 = vadd.s32 %v7048, 1
      %v7571 = vadd.s32 %v7049, 1
      %v7572 = vadd.s32 %v7050, 1
      %v7573 = vadd.s32 %v7051, 1
      %v7574 = vadd.s32 %v7052, 1
      %v7575 = vadd.s32 %v7053, 1
      %v7576 = vadd.s32 %v7054, 1
      %v7577 = vadd.s32 %v7055, 1
      %v7578 = vadd.s32 %v7056, 1
      %v7579 = vadd.s32 %v7057, 1
      %vm7580 = vcmp.ge.s32.totalorder %v7565, 0
      %vm7581 = vcmp.ge.s32.totalorder %v7566, 0
      %vm7582 = vcmp.ge.s32.totalorder %v7567, 0
      %vm7583 = vcmp.ge.s32.totalorder %v7568, 0
      %vm7584 = vcmp.ge.s32.totalorder %v7569, 0
      %vm7585 = vcmp.ge.s32.totalorder %v7570, 0
      %vm7586 = vcmp.ge.s32.totalorder %v7571, 0
      %vm7587 = vcmp.ge.s32.totalorder %v7572, 0
      %vm7588 = vcmp.ge.s32.totalorder %v7573, 0
      %vm7589 = vcmp.ge.s32.totalorder %v7574, 0
      %vm7590 = vcmp.ge.s32.totalorder %v7575, 0
      %vm7591 = vcmp.ge.s32.totalorder %v7576, 0
      %vm7592 = vcmp.ge.s32.totalorder %v7577, 0
      %vm7593 = vcmp.ge.s32.totalorder %v7578, 0
      %vm7594 = vcmp.ge.s32.totalorder %v7579, 0
      %vm7595 = vcmp.lt.s32.totalorder %v7565, 5
      %vm7596 = vcmp.lt.s32.totalorder %v7566, 5
      %vm7597 = vcmp.lt.s32.totalorder %v7567, 5
      %vm7598 = vcmp.lt.s32.totalorder %v7568, 5
      %vm7599 = vcmp.lt.s32.totalorder %v7569, 5
      %vm7600 = vcmp.lt.s32.totalorder %v7570, 5
      %vm7601 = vcmp.lt.s32.totalorder %v7571, 5
      %vm7602 = vcmp.lt.s32.totalorder %v7572, 5
      %vm7603 = vcmp.lt.s32.totalorder %v7573, 5
      %vm7604 = vcmp.lt.s32.totalorder %v7574, 5
      %vm7605 = vcmp.lt.s32.totalorder %v7575, 5
      %vm7606 = vcmp.lt.s32.totalorder %v7576, 5
      %vm7607 = vcmp.lt.s32.totalorder %v7577, 5
      %vm7608 = vcmp.lt.s32.totalorder %v7578, 5
      %vm7609 = vcmp.lt.s32.totalorder %v7579, 5
      %vm7610 = vmand %vm7580, %vm7595
      %vm7611 = vmand %vm7581, %vm7596
      %vm7612 = vmand %vm7582, %vm7597
      %vm7613 = vmand %vm7583, %vm7598
      %vm7614 = vmand %vm7584, %vm7599
      %vm7615 = vmand %vm7585, %vm7600
      %vm7616 = vmand %vm7586, %vm7601
      %vm7617 = vmand %vm7587, %vm7602
      %vm7618 = vmand %vm7588, %vm7603
      %vm7619 = vmand %vm7589, %vm7604
      %vm7620 = vmand %vm7590, %vm7605
      %vm7621 = vmand %vm7591, %vm7606
      %vm7622 = vmand %vm7592, %vm7607
      %vm7623 = vmand %vm7593, %vm7608
      %vm7624 = vmand %vm7594, %vm7609
      %v7625 = vsel %vm7610, 1, 0
      %v7626 = vsel %vm7611, 1, 0
      %v7627 = vsel %vm7612, 1, 0
      %v7628 = vsel %vm7613, 1, 0
      %v7629 = vsel %vm7614, 1, 0
      %v7630 = vsel %vm7615, 1, 0
      %v7631 = vsel %vm7616, 1, 0
      %v7632 = vsel %vm7617, 1, 0
      %v7633 = vsel %vm7618, 1, 0
      %v7634 = vsel %vm7619, 1, 0
      %v7635 = vsel %vm7620, 1, 0
      %v7636 = vsel %vm7621, 1, 0
      %v7637 = vsel %vm7622, 1, 0
      %v7638 = vsel %vm7623, 1, 0
      %v7639 = vsel %vm7624, 1, 0
      %vm7640 = vcmp.eq.s32.totalorder %v7625, 1
      %vm7641 = vcmp.eq.s32.totalorder %v7626, 1
      %vm7642 = vcmp.eq.s32.totalorder %v7627, 1
      %vm7643 = vcmp.eq.s32.totalorder %v7628, 1
      %vm7644 = vcmp.eq.s32.totalorder %v7629, 1
      %vm7645 = vcmp.eq.s32.totalorder %v7630, 1
      %vm7646 = vcmp.eq.s32.totalorder %v7631, 1
      %vm7647 = vcmp.eq.s32.totalorder %v7632, 1
      %vm7648 = vcmp.eq.s32.totalorder %v7633, 1
      %vm7649 = vcmp.eq.s32.totalorder %v7634, 1
      %vm7650 = vcmp.eq.s32.totalorder %v7635, 1
      %vm7651 = vcmp.eq.s32.totalorder %v7636, 1
      %vm7652 = vcmp.eq.s32.totalorder %v7637, 1
      %vm7653 = vcmp.eq.s32.totalorder %v7638, 1
      %vm7654 = vcmp.eq.s32.totalorder %v7639, 1
      %v7655 = vsel %vm7640, %v7563, 0.0
      %v7656 = vsel %vm7641, %v7562, 0.0
      %v7657 = vsel %vm7642, %v7561, 0.0
      %v7658 = vsel %vm7643, %v7560, 0.0
      %v7659 = vsel %vm7644, %v7559, 0.0
      %v7660 = vsel %vm7645, %v7558, 0.0
      %v7661 = vsel %vm7646, %v7557, 0.0
      %v7662 = vsel %vm7647, %v7556, 0.0
      %v7663 = vsel %vm7648, %v7555, 0.0
      %v7664 = vsel %vm7649, %v7554, 0.0
      %v7665 = vsel %vm7650, %v7553, 0.0
      %v7666 = vsel %vm7651, %v7552, 0.0
      %v7667 = vsel %vm7652, %v7551, 0.0
      %v7668 = vsel %vm7653, %v7550, 0.0
      %v7669 = vsel %vm7654, %v7564, 0.0
      %v7670 = vpack.c.bf16 %v7656, %v7655
      %v7671 = vpack.c.bf16 %v7658, %v7657
      %v7672 = vpack.c.bf16 %v7660, %v7659
      %v7673 = vpack.c.bf16 %v7662, %v7661
      %v7674 = vpack.c.bf16 %v7664, %v7663
      %v7675 = vpack.c.bf16 %v7666, %v7665
      %v7676 = vpack.c.bf16 %v7668, %v7667
      %v7677 = vpack.c.bf16 %v7669, %v7669
      %s7678 = scalar_lea.vmem %s6, 40
      %v7679 = vld [vmem:[%s7678] sm:$0xf]
      %v7680 = vld [vmem:[%s7678 + $0x4] sm:$0xf]
      %v7681 = vld [vmem:[%s7678 + $0x8] sm:$0xf]
      %v7682 = vld [vmem:[%s7678 + $0xc] sm:$0xf]
      %v7683 = vld [vmem:[%s7678 + $0x10] sm:$0xf]
      %v7689 = vunpack.c.l.b16 %v7679
      %v7690 = vunpack.c.l.b16 %v7680
      %v7691 = vunpack.c.l.b16 %v7681
      %v7692 = vunpack.c.l.b16 %v7682
      %v7693 = vunpack.c.l.b16 %v7683
      %v7694 = vpack.c.b16 %v7690, %v7689
      %v7695 = vpack.c.b16 %v7692, %v7691
      %v7696 = vpack.c.b16 %v7693, %v7693
      %v7700 = vsel %vm7222, %v7670, 0
      %v7703 = vsel %vm7222, %v7671, 0
      %v7706 = vsel %vm7222, %v7672, 0
      %v7709 = vsel %vm7222, %v7673, 0
      %v7712 = vsel %vm7222, %v7674, 0
      %v7715 = vsel %vm7222, %v7675, 0
      %v7718 = vsel %vm7222, %v7676, 0
      %v7721 = vsel %vm7222, %v7677, 0
      %v7724 = vsel %vm7247, %v7696, 0
      %7726 = vmatprep.subr.bf16.mxu0 0
      %7727 = vmatpush1.bf16.msra.mxu0 %v7694
      %7728 = vmatprep.subr.bf16.mxu0 0
      %7729 = vmatpush1.bf16.msra.mxu0 %v7695
      %7730 = vmatprep.subr.bf16.mxu0 0
      %7731 = vmatpush1.bf16.msra.mxu0 %v7724
      %7732 = vmatprep.subr.bf16.mxu0 0
      %7733 = vmatpush1.bf16.msra.mxu0 0
      %7734 = vmatprep.subr.bf16.mxu0 0
      %7735 = vmatpush1.bf16.msra.mxu0 0
      %7736 = vmatprep.subr.bf16.mxu0 0
      %7737 = vmatpush1.bf16.msra.mxu0 0
      %7738 = vmatprep.subr.bf16.mxu0 0
      %7739 = vmatpush1.bf16.msra.mxu0 0
      %7740 = vmatprep.subr.bf16.mxu0 0
      %7741 = vmatpush1.bf16.msra.mxu0 0
      %7742 = vmatprep.subr.bf16.mxu0 0
      %7743 = vmatpush1.bf16.msra.mxu0 0
      %7744 = vmatprep.subr.bf16.mxu0 0
      %7745 = vmatpush1.bf16.msra.mxu0 0
      %7746 = vmatprep.subr.bf16.mxu0 0
      %7747 = vmatpush1.bf16.msra.mxu0 0
      %7748 = vmatprep.subr.bf16.mxu0 0
      %7749 = vmatpush1.bf16.msra.mxu0 0
      %7750 = vmatprep.subr.bf16.mxu0 0
      %7751 = vmatpush1.bf16.msra.mxu0 0
      %7752 = vmatprep.subr.bf16.mxu0 0
      %7753 = vmatpush1.bf16.msra.mxu0 0
      %7754 = vmatprep.subr.bf16.mxu0 0
      %7755 = vmatpush1.bf16.msra.mxu0 0
      %7756 = vmatprep.subr.bf16.mxu0 0
      %7757 = vmatpush1.bf16.msra.mxu0 0
      %7758 = vmatprep.mubr.bf16.mxu0 0
      %7759 = vmatmul.mubr.bf16.gmra.mrb[0].mxu0 %v7700
      %v7760 = vpop.f32.mrb[0].mxu0
      %v7761 = vadd.f32 0.0, %v7760
      %v7762 = vpop.f32.mrb[0].mxu0
      %v7763 = vpop.f32.mrb[0].mxu0
      %v7764 = vadd.f32 0.0, %v7763
      %v7765 = vpop.f32.mrb[0].mxu0
      %7766 = vmatprep.mubr.bf16.mxu0 0
      %7767 = vmatmul.mubr.bf16.gmra.mrb[0].mxu0 %v7703
      %v7768 = vpop.f32.mrb[0].mxu0
      %v7769 = vadd.f32 0.0, %v7768
      %v7770 = vpop.f32.mrb[0].mxu0
      %v7771 = vpop.f32.mrb[0].mxu0
      %v7772 = vadd.f32 0.0, %v7771
      %v7773 = vpop.f32.mrb[0].mxu0
      %7774 = vmatprep.mubr.bf16.mxu0 0
      %7775 = vmatmul.mubr.bf16.gmra.mrb[0].mxu0 %v7706
      %v7776 = vpop.f32.mrb[0].mxu0
      %v7777 = vadd.f32 0.0, %v7776
      %v7778 = vpop.f32.mrb[0].mxu0
      %v7779 = vpop.f32.mrb[0].mxu0
      %v7780 = vadd.f32 0.0, %v7779
      %v7781 = vpop.f32.mrb[0].mxu0
      %7782 = vmatprep.mubr.bf16.mxu0 0
      %7783 = vmatmul.mubr.bf16.gmra.mrb[0].mxu0 %v7709
      %v7784 = vpop.f32.mrb[0].mxu0
      %v7785 = vadd.f32 0.0, %v7784
      %v7786 = vpop.f32.mrb[0].mxu0
      %v7787 = vpop.f32.mrb[0].mxu0
      %v7788 = vadd.f32 0.0, %v7787
      %v7789 = vpop.f32.mrb[0].mxu0
      %7790 = vmatprep.mubr.bf16.mxu0 0
      %7791 = vmatmul.mubr.bf16.gmra.mrb[0].mxu0 %v7712
      %v7792 = vpop.f32.mrb[0].mxu0
      %v7793 = vadd.f32 0.0, %v7792
      %v7794 = vpop.f32.mrb[0].mxu0
      %v7795 = vpop.f32.mrb[0].mxu0
      %v7796 = vadd.f32 0.0, %v7795
      %v7797 = vpop.f32.mrb[0].mxu0
      %7798 = vmatprep.mubr.bf16.mxu0 0
      %7799 = vmatmul.mubr.bf16.gmra.mrb[0].mxu0 %v7715
      %v7800 = vpop.f32.mrb[0].mxu0
      %v7801 = vadd.f32 0.0, %v7800
      %v7802 = vpop.f32.mrb[0].mxu0
      %v7803 = vpop.f32.mrb[0].mxu0
      %v7804 = vadd.f32 0.0, %v7803
      %v7805 = vpop.f32.mrb[0].mxu0
      %7806 = vmatprep.mubr.bf16.mxu0 0
      %7807 = vmatmul.mubr.bf16.gmra.mrb[0].mxu0 %v7718
      %v7808 = vpop.f32.mrb[0].mxu0
      %v7809 = vadd.f32 0.0, %v7808
      %v7810 = vpop.f32.mrb[0].mxu0
      %v7811 = vpop.f32.mrb[0].mxu0
      %v7812 = vadd.f32 0.0, %v7811
      %v7813 = vpop.f32.mrb[0].mxu0
      %7814 = vmatprep.mubr.bf16.mxu0 0
      %7815 = vmatmul.mubr.bf16.gmra.mrb[0].mxu0 %v7721
      %v7816 = vpop.f32.mrb[0].mxu0
      %v7817 = vadd.f32 0.0, %v7816
      %v7818 = vpop.f32.mrb[0].mxu0
      %v7819 = vpop.f32.mrb[0].mxu0
      %v7820 = vpop.f32.mrb[0].mxu0
      %7821 = vdwg.mxu0
      %v7822 = vadd.f32 %v7520, %v7761
      %v7823 = vadd.f32 %v7521, %v7764
      %v7824 = vadd.f32 %v7522, %v7769
      %v7825 = vadd.f32 %v7523, %v7772
      %v7826 = vadd.f32 %v7524, %v7777
      %v7827 = vadd.f32 %v7525, %v7780
      %v7828 = vadd.f32 %v7526, %v7785
      %v7829 = vadd.f32 %v7527, %v7788
      %v7830 = vadd.f32 %v7528, %v7793
      %v7831 = vadd.f32 %v7529, %v7796
      %v7832 = vadd.f32 %v7530, %v7801
      %v7833 = vadd.f32 %v7531, %v7804
      %v7834 = vadd.f32 %v7532, %v7809
      %v7835 = vadd.f32 %v7533, %v7812
      %v7836 = vadd.f32 %v7534, %v7817
      %vm7837 = vcmp.ge.f32.partialorder %v7822, 0.0
      %vm7838 = vcmp.ge.f32.partialorder %v7823, 0.0
      %vm7839 = vcmp.ge.f32.partialorder %v7824, 0.0
      %vm7840 = vcmp.ge.f32.partialorder %v7825, 0.0
      %vm7841 = vcmp.ge.f32.partialorder %v7826, 0.0
      %vm7842 = vcmp.ge.f32.partialorder %v7827, 0.0
      %vm7843 = vcmp.ge.f32.partialorder %v7828, 0.0
      %vm7844 = vcmp.ge.f32.partialorder %v7829, 0.0
      %vm7845 = vcmp.ge.f32.partialorder %v7830, 0.0
      %vm7846 = vcmp.ge.f32.partialorder %v7831, 0.0
      %vm7847 = vcmp.ge.f32.partialorder %v7832, 0.0
      %vm7848 = vcmp.ge.f32.partialorder %v7833, 0.0
      %vm7849 = vcmp.ge.f32.partialorder %v7834, 0.0
      %vm7850 = vcmp.ge.f32.partialorder %v7835, 0.0
      %vm7851 = vcmp.ge.f32.partialorder %v7836, 0.0
      %v7852 = vmul.f32 %v7822, 0.01
      %v7853 = vmul.f32 %v7823, 0.01
      %v7854 = vmul.f32 %v7824, 0.01
      %v7855 = vmul.f32 %v7825, 0.01
      %v7856 = vmul.f32 %v7826, 0.01
      %v7857 = vmul.f32 %v7827, 0.01
      %v7858 = vmul.f32 %v7828, 0.01
      %v7859 = vmul.f32 %v7829, 0.01
      %v7860 = vmul.f32 %v7830, 0.01
      %v7861 = vmul.f32 %v7831, 0.01
      %v7862 = vmul.f32 %v7832, 0.01
      %v7863 = vmul.f32 %v7833, 0.01
      %v7864 = vmul.f32 %v7834, 0.01
      %v7865 = vmul.f32 %v7835, 0.01
      %v7866 = vmul.f32 %v7836, 0.01
      %v7867 = vsel %vm7837, %v7822, %v7852
      %v7868 = vsel %vm7838, %v7823, %v7853
      %v7869 = vsel %vm7839, %v7824, %v7854
      %v7870 = vsel %vm7840, %v7825, %v7855
      %v7871 = vsel %vm7841, %v7826, %v7856
      %v7872 = vsel %vm7842, %v7827, %v7857
      %v7873 = vsel %vm7843, %v7828, %v7858
      %v7874 = vsel %vm7844, %v7829, %v7859
      %v7875 = vsel %vm7845, %v7830, %v7860
      %v7876 = vsel %vm7846, %v7831, %v7861
      %v7877 = vsel %vm7847, %v7832, %v7862
      %v7878 = vsel %vm7848, %v7833, %v7863
      %v7879 = vsel %vm7849, %v7834, %v7864
      %v7880 = vsel %vm7850, %v7835, %v7865
      %v7881 = vsel %vm7851, %v7836, %v7866
      %v7882 = vld [vmem:[%s9] sm:$0x1]
      %v7883 = vrot.slane %v7867, 7
      %v7884 = vrot.slane %v7868, 7
      %v7885 = vrot.slane %v7869, 7
      %v7886 = vrot.slane %v7870, 7
      %v7887 = vrot.slane %v7871, 7
      %v7888 = vrot.slane %v7872, 7
      %v7889 = vrot.slane %v7873, 7
      %v7890 = vrot.slane %v7874, 7
      %v7891 = vrot.slane %v7875, 7
      %v7892 = vrot.slane %v7876, 7
      %v7893 = vrot.slane %v7877, 7
      %v7894 = vrot.slane %v7878, 7
      %v7895 = vrot.slane %v7879, 7
      %v7896 = vrot.slane %v7880, 7
      %v7897 = vrot.slane %v7881, 7
      %v7898 = vsel %vm1311, %v7896, %v7897
      %v7899 = vsel %vm1311, %v7895, %v7896
      %v7900 = vsel %vm1311, %v7894, %v7895
      %v7901 = vsel %vm1311, %v7893, %v7894
      %v7902 = vsel %vm1311, %v7892, %v7893
      %v7903 = vsel %vm1311, %v7891, %v7892
      %v7904 = vsel %vm1311, %v7890, %v7891
      %v7905 = vsel %vm1311, %v7889, %v7890
      %v7906 = vsel %vm1311, %v7888, %v7889
      %v7907 = vsel %vm1311, %v7887, %v7888
      %v7908 = vsel %vm1311, %v7886, %v7887
      %v7909 = vsel %vm1311, %v7885, %v7886
      %v7910 = vsel %vm1311, %v7884, %v7885
      %v7911 = vsel %vm1311, %v7883, %v7884
      %v7912 = vsel %vm1311, %v7897, %v7883
      %v7913 = vsel %vm7164, %v7912, 0.0
      %v7914 = vsel %vm7165, %v7911, 0.0
      %v7915 = vsel %vm7166, %v7910, 0.0
      %v7916 = vsel %vm7167, %v7909, 0.0
      %v7917 = vsel %vm7168, %v7908, 0.0
      %v7918 = vsel %vm7169, %v7907, 0.0
      %v7919 = vsel %vm7170, %v7906, 0.0
      %v7920 = vsel %vm7171, %v7905, 0.0
      %v7921 = vsel %vm7172, %v7904, 0.0
      %v7922 = vsel %vm7173, %v7903, 0.0
      %v7923 = vsel %vm7174, %v7902, 0.0
      %v7924 = vsel %vm7175, %v7901, 0.0
      %v7925 = vsel %vm7176, %v7900, 0.0
      %v7926 = vsel %vm7177, %v7899, 0.0
      %v7927 = vsel %vm7178, %v7898, 0.0
      %v7928 = vpack.c.bf16 %v7914, %v7913
      %v7929 = vpack.c.bf16 %v7916, %v7915
      %v7930 = vpack.c.bf16 %v7918, %v7917
      %v7931 = vpack.c.bf16 %v7920, %v7919
      %v7932 = vpack.c.bf16 %v7922, %v7921
      %v7933 = vpack.c.bf16 %v7924, %v7923
      %v7934 = vpack.c.bf16 %v7926, %v7925
      %v7935 = vpack.c.bf16 %v7927, %v7927
      %v7936 = vld [vmem:[%s8] sm:$0xf]
      %v7937 = vld [vmem:[%s8 + $0x4] sm:$0xf]
      %v7938 = vld [vmem:[%s8 + $0x8] sm:$0xf]
      %v7939 = vld [vmem:[%s8 + $0xc] sm:$0xf]
      %v7940 = vld [vmem:[%s8 + $0x10] sm:$0xf]
      %v7941 = vld [vmem:[%s8 + $0x14] sm:$0xf]
      %v7942 = vld [vmem:[%s8 + $0x18] sm:$0xf]
      %v7943 = vld [vmem:[%s8 + $0x1c] sm:$0xf]
      %v7944 = vld [vmem:[%s8 + $0x20] sm:$0xf]
      %v7945 = vld [vmem:[%s8 + $0x24] sm:$0xf]
      %v7956 = vunpack.c.l.b16 %v7936
      %v7957 = vunpack.c.l.b16 %v7937
      %v7958 = vunpack.c.l.b16 %v7938
      %v7959 = vunpack.c.l.b16 %v7939
      %v7960 = vunpack.c.l.b16 %v7940
      %v7961 = vunpack.c.l.b16 %v7941
      %v7962 = vunpack.c.l.b16 %v7942
      %v7963 = vunpack.c.l.b16 %v7943
      %v7964 = vunpack.c.l.b16 %v7944
      %v7965 = vunpack.c.l.b16 %v7945
      %v7966 = vpack.c.b16 %v7957, %v7956
      %v7967 = vpack.c.b16 %v7959, %v7958
      %v7968 = vpack.c.b16 %v7961, %v7960
      %v7969 = vpack.c.b16 %v7963, %v7962
      %v7970 = vpack.c.b16 %v7965, %v7964
      %v7977 = vsel %vm5366, %v7928, 0
      %v7980 = vsel %vm5366, %v7929, 0
      %v7983 = vsel %vm5366, %v7930, 0
      %v7986 = vsel %vm5366, %v7931, 0
      %v7989 = vsel %vm5366, %v7932, 0
      %v7992 = vsel %vm5366, %v7933, 0
      %v7995 = vsel %vm5366, %v7934, 0
      %v7998 = vsel %vm5366, %v7935, 0
      %8000 = vmatprep.subr.bf16.mxu0 0
      %8001 = vmatpush1.bf16.msra.mxu0 %v7966
      %8002 = vmatprep.subr.bf16.mxu0 0
      %8003 = vmatpush1.bf16.msra.mxu0 %v7967
      %8004 = vmatprep.subr.bf16.mxu0 0
      %8005 = vmatpush1.bf16.msra.mxu0 %v7968
      %8006 = vmatprep.subr.bf16.mxu0 0
      %8007 = vmatpush1.bf16.msra.mxu0 %v7969
      %8008 = vmatprep.subr.bf16.mxu0 0
      %8009 = vmatpush1.bf16.msra.mxu0 %v7970
      %8010 = vmatprep.subr.bf16.mxu0 0
      %8011 = vmatpush1.bf16.msra.mxu0 0
      %8012 = vmatprep.subr.bf16.mxu0 0
      %8013 = vmatpush1.bf16.msra.mxu0 0
      %8014 = vmatprep.subr.bf16.mxu0 0
      %8015 = vmatpush1.bf16.msra.mxu0 0
      %8016 = vmatprep.subr.bf16.mxu0 0
      %8017 = vmatpush1.bf16.msra.mxu0 0
      %8018 = vmatprep.subr.bf16.mxu0 0
      %8019 = vmatpush1.bf16.msra.mxu0 0
      %8020 = vmatprep.subr.bf16.mxu0 0
      %8021 = vmatpush1.bf16.msra.mxu0 0
      %8022 = vmatprep.subr.bf16.mxu0 0
      %8023 = vmatpush1.bf16.msra.mxu0 0
      %8024 = vmatprep.subr.bf16.mxu0 0
      %8025 = vmatpush1.bf16.msra.mxu0 0
      %8026 = vmatprep.subr.bf16.mxu0 0
      %8027 = vmatpush1.bf16.msra.mxu0 0
      %8028 = vmatprep.subr.bf16.mxu0 0
      %8029 = vmatpush1.bf16.msra.mxu0 0
      %8030 = vmatprep.subr.bf16.mxu0 0
      %8031 = vmatpush1.bf16.msra.mxu0 0
      %8032 = vmatprep.mubr.bf16.mxu0 0
      %8033 = vmatmul.mubr.bf16.gmra.mrb[0].mxu0 %v7977
      %v8034 = vpop.f32.mrb[0].mxu0
      %v8035 = vadd.f32 0.0, %v8034
      %v8036 = vpop.f32.mrb[0].mxu0
      %v8037 = vpop.f32.mrb[0].mxu0
      %v8038 = vadd.f32 0.0, %v8037
      %v8039 = vpop.f32.mrb[0].mxu0
      %8040 = vmatprep.mubr.bf16.mxu0 0
      %8041 = vmatmul.mubr.bf16.gmra.mrb[0].mxu0 %v7980
      %v8042 = vpop.f32.mrb[0].mxu0
      %v8043 = vadd.f32 0.0, %v8042
      %v8044 = vpop.f32.mrb[0].mxu0
      %v8045 = vpop.f32.mrb[0].mxu0
      %v8046 = vadd.f32 0.0, %v8045
      %v8047 = vpop.f32.mrb[0].mxu0
      %8048 = vmatprep.mubr.bf16.mxu0 0
      %8049 = vmatmul.mubr.bf16.gmra.mrb[0].mxu0 %v7983
      %v8050 = vpop.f32.mrb[0].mxu0
      %v8051 = vadd.f32 0.0, %v8050
      %v8052 = vpop.f32.mrb[0].mxu0
      %v8053 = vpop.f32.mrb[0].mxu0
      %v8054 = vadd.f32 0.0, %v8053
      %v8055 = vpop.f32.mrb[0].mxu0
      %8056 = vmatprep.mubr.bf16.mxu0 0
      %8057 = vmatmul.mubr.bf16.gmra.mrb[0].mxu0 %v7986
      %v8058 = vpop.f32.mrb[0].mxu0
      %v8059 = vadd.f32 0.0, %v8058
      %v8060 = vpop.f32.mrb[0].mxu0
      %v8061 = vpop.f32.mrb[0].mxu0
      %v8062 = vadd.f32 0.0, %v8061
      %v8063 = vpop.f32.mrb[0].mxu0
      %8064 = vmatprep.mubr.bf16.mxu0 0
      %8065 = vmatmul.mubr.bf16.gmra.mrb[0].mxu0 %v7989
      %v8066 = vpop.f32.mrb[0].mxu0
      %v8067 = vadd.f32 0.0, %v8066
      %v8068 = vpop.f32.mrb[0].mxu0
      %v8069 = vpop.f32.mrb[0].mxu0
      %v8070 = vadd.f32 0.0, %v8069
      %v8071 = vpop.f32.mrb[0].mxu0
      %8072 = vmatprep.mubr.bf16.mxu0 0
      %8073 = vmatmul.mubr.bf16.gmra.mrb[0].mxu0 %v7992
      %v8074 = vpop.f32.mrb[0].mxu0
      %v8075 = vadd.f32 0.0, %v8074
      %v8076 = vpop.f32.mrb[0].mxu0
      %v8077 = vpop.f32.mrb[0].mxu0
      %v8078 = vadd.f32 0.0, %v8077
      %v8079 = vpop.f32.mrb[0].mxu0
      %8080 = vmatprep.mubr.bf16.mxu0 0
      %8081 = vmatmul.mubr.bf16.gmra.mrb[0].mxu0 %v7995
      %v8082 = vpop.f32.mrb[0].mxu0
      %v8083 = vadd.f32 0.0, %v8082
      %v8084 = vpop.f32.mrb[0].mxu0
      %v8085 = vpop.f32.mrb[0].mxu0
      %v8086 = vadd.f32 0.0, %v8085
      %v8087 = vpop.f32.mrb[0].mxu0
      %8088 = vmatprep.mubr.bf16.mxu0 0
      %8089 = vmatmul.mubr.bf16.gmra.mrb[0].mxu0 %v7998
      %v8090 = vpop.f32.mrb[0].mxu0
      %v8091 = vadd.f32 0.0, %v8090
      %v8092 = vpop.f32.mrb[0].mxu0
      %v8093 = vpop.f32.mrb[0].mxu0
      %v8094 = vpop.f32.mrb[0].mxu0
      %8095 = vdwg.mxu0
      %v8097 = vlaneseq
      %v8098 = vshrl.u32 %v8097, 7
      %v8099 = vsub.s32 0, %v8098
      %v8100 = vrot.slane %v7882, %v8099
      %v8102 = vadd.f32 %v8100, %v8035
      %v8103 = vadd.f32 %v8100, %v8038
      %v8104 = vadd.f32 %v8100, %v8043
      %v8105 = vadd.f32 %v8100, %v8046
      %v8106 = vadd.f32 %v8100, %v8051
      %v8107 = vadd.f32 %v8100, %v8054
      %v8108 = vadd.f32 %v8100, %v8059
      %v8109 = vadd.f32 %v8100, %v8062
      %v8110 = vadd.f32 %v8100, %v8067
      %v8111 = vadd.f32 %v8100, %v8070
      %v8112 = vadd.f32 %v8100, %v8075
      %v8113 = vadd.f32 %v8100, %v8078
      %v8114 = vadd.f32 %v8100, %v8083
      %v8115 = vadd.f32 %v8100, %v8086
      %v8116 = vadd.f32 %v8100, %v8091
      %v8117 = vpack.c.bf16 %v7868, %v7867
      %v8118 = vpack.c.bf16 %v7870, %v7869
      %v8119 = vpack.c.bf16 %v7872, %v7871
      %v8120 = vpack.c.bf16 %v7874, %v7873
      %v8121 = vpack.c.bf16 %v7876, %v7875
      %v8122 = vpack.c.bf16 %v7878, %v7877
      %v8123 = vpack.c.bf16 %v7880, %v7879
      %v8124 = vpack.c.bf16 %v7881, %v7881
      %s8125 = scalar_lea.vmem %s8, 40
      %v8126 = vld [vmem:[%s8125] sm:$0xf]
      %v8127 = vld [vmem:[%s8125 + $0x4] sm:$0xf]
      %v8128 = vld [vmem:[%s8125 + $0x8] sm:$0xf]
      %v8129 = vld [vmem:[%s8125 + $0xc] sm:$0xf]
      %v8130 = vld [vmem:[%s8125 + $0x10] sm:$0xf]
      %v8131 = vld [vmem:[%s8125 + $0x14] sm:$0xf]
      %v8132 = vld [vmem:[%s8125 + $0x18] sm:$0xf]
      %v8133 = vld [vmem:[%s8125 + $0x1c] sm:$0xf]
      %v8134 = vld [vmem:[%s8125 + $0x20] sm:$0xf]
      %v8135 = vld [vmem:[%s8125 + $0x24] sm:$0xf]
      %v8146 = vunpack.c.l.b16 %v8126
      %v8147 = vunpack.c.l.b16 %v8127
      %v8148 = vunpack.c.l.b16 %v8128
      %v8149 = vunpack.c.l.b16 %v8129
      %v8150 = vunpack.c.l.b16 %v8130
      %v8151 = vunpack.c.l.b16 %v8131
      %v8152 = vunpack.c.l.b16 %v8132
      %v8153 = vunpack.c.l.b16 %v8133
      %v8154 = vunpack.c.l.b16 %v8134
      %v8155 = vunpack.c.l.b16 %v8135
      %v8156 = vpack.c.b16 %v8147, %v8146
      %v8157 = vpack.c.b16 %v8149, %v8148
      %v8158 = vpack.c.b16 %v8151, %v8150
      %v8159 = vpack.c.b16 %v8153, %v8152
      %v8160 = vpack.c.b16 %v8155, %v8154
      %v8167 = vsel %vm5366, %v8117, 0
      %v8170 = vsel %vm5366, %v8118, 0
      %v8173 = vsel %vm5366, %v8119, 0
      %v8176 = vsel %vm5366, %v8120, 0
      %v8179 = vsel %vm5366, %v8121, 0
      %v8182 = vsel %vm5366, %v8122, 0
      %v8185 = vsel %vm5366, %v8123, 0
      %v8188 = vsel %vm5366, %v8124, 0
      %8190 = vmatprep.subr.bf16.mxu0 0
      %8191 = vmatpush1.bf16.msra.mxu0 %v8156
      %8192 = vmatprep.subr.bf16.mxu0 0
      %8193 = vmatpush1.bf16.msra.mxu0 %v8157
      %8194 = vmatprep.subr.bf16.mxu0 0
      %8195 = vmatpush1.bf16.msra.mxu0 %v8158
      %8196 = vmatprep.subr.bf16.mxu0 0
      %8197 = vmatpush1.bf16.msra.mxu0 %v8159
      %8198 = vmatprep.subr.bf16.mxu0 0
      %8199 = vmatpush1.bf16.msra.mxu0 %v8160
      %8200 = vmatprep.subr.bf16.mxu0 0
      %8201 = vmatpush1.bf16.msra.mxu0 0
      %8202 = vmatprep.subr.bf16.mxu0 0
      %8203 = vmatpush1.bf16.msra.mxu0 0
      %8204 = vmatprep.subr.bf16.mxu0 0
      %8205 = vmatpush1.bf16.msra.mxu0 0
      %8206 = vmatprep.subr.bf16.mxu0 0
      %8207 = vmatpush1.bf16.msra.mxu0 0
      %8208 = vmatprep.subr.bf16.mxu0 0
      %8209 = vmatpush1.bf16.msra.mxu0 0
      %8210 = vmatprep.subr.bf16.mxu0 0
      %8211 = vmatpush1.bf16.msra.mxu0 0
      %8212 = vmatprep.subr.bf16.mxu0 0
      %8213 = vmatpush1.bf16.msra.mxu0 0
      %8214 = vmatprep.subr.bf16.mxu0 0
      %8215 = vmatpush1.bf16.msra.mxu0 0
      %8216 = vmatprep.subr.bf16.mxu0 0
      %8217 = vmatpush1.bf16.msra.mxu0 0
      %8218 = vmatprep.subr.bf16.mxu0 0
      %8219 = vmatpush1.bf16.msra.mxu0 0
      %8220 = vmatprep.subr.bf16.mxu0 0
      %8221 = vmatpush1.bf16.msra.mxu0 0
      %8222 = vmatprep.mubr.bf16.mxu0 0
      %8223 = vmatmul.mubr.bf16.gmra.mrb[0].mxu0 %v8167
      %v8224 = vpop.f32.mrb[0].mxu0
      %v8225 = vadd.f32 0.0, %v8224
      %v8226 = vpop.f32.mrb[0].mxu0
      %v8227 = vpop.f32.mrb[0].mxu0
      %v8228 = vadd.f32 0.0, %v8227
      %v8229 = vpop.f32.mrb[0].mxu0
      %8230 = vmatprep.mubr.bf16.mxu0 0
      %8231 = vmatmul.mubr.bf16.gmra.mrb[0].mxu0 %v8170
      %v8232 = vpop.f32.mrb[0].mxu0
      %v8233 = vadd.f32 0.0, %v8232
      %v8234 = vpop.f32.mrb[0].mxu0
      %v8235 = vpop.f32.mrb[0].mxu0
      %v8236 = vadd.f32 0.0, %v8235
      %v8237 = vpop.f32.mrb[0].mxu0
      %8238 = vmatprep.mubr.bf16.mxu0 0
      %8239 = vmatmul.mubr.bf16.gmra.mrb[0].mxu0 %v8173
      %v8240 = vpop.f32.mrb[0].mxu0
      %v8241 = vadd.f32 0.0, %v8240
      %v8242 = vpop.f32.mrb[0].mxu0
      %v8243 = vpop.f32.mrb[0].mxu0
      %v8244 = vadd.f32 0.0, %v8243
      %v8245 = vpop.f32.mrb[0].mxu0
      %8246 = vmatprep.mubr.bf16.mxu0 0
      %8247 = vmatmul.mubr.bf16.gmra.mrb[0].mxu0 %v8176
      %v8248 = vpop.f32.mrb[0].mxu0
      %v8249 = vadd.f32 0.0, %v8248
      %v8250 = vpop.f32.mrb[0].mxu0
      %v8251 = vpop.f32.mrb[0].mxu0
      %v8252 = vadd.f32 0.0, %v8251
      %v8253 = vpop.f32.mrb[0].mxu0
      %8254 = vmatprep.mubr.bf16.mxu0 0
      %8255 = vmatmul.mubr.bf16.gmra.mrb[0].mxu0 %v8179
      %v8256 = vpop.f32.mrb[0].mxu0
      %v8257 = vadd.f32 0.0, %v8256
      %v8258 = vpop.f32.mrb[0].mxu0
      %v8259 = vpop.f32.mrb[0].mxu0
      %v8260 = vadd.f32 0.0, %v8259
      %v8261 = vpop.f32.mrb[0].mxu0
      %8262 = vmatprep.mubr.bf16.mxu0 0
      %8263 = vmatmul.mubr.bf16.gmra.mrb[0].mxu0 %v8182
      %v8264 = vpop.f32.mrb[0].mxu0
      %v8265 = vadd.f32 0.0, %v8264
      %v8266 = vpop.f32.mrb[0].mxu0
      %v8267 = vpop.f32.mrb[0].mxu0
      %v8268 = vadd.f32 0.0, %v8267
      %v8269 = vpop.f32.mrb[0].mxu0
      %8270 = vmatprep.mubr.bf16.mxu0 0
      %8271 = vmatmul.mubr.bf16.gmra.mrb[0].mxu0 %v8185
      %v8272 = vpop.f32.mrb[0].mxu0
      %v8273 = vadd.f32 0.0, %v8272
      %v8274 = vpop.f32.mrb[0].mxu0
      %v8275 = vpop.f32.mrb[0].mxu0
      %v8276 = vadd.f32 0.0, %v8275
      %v8277 = vpop.f32.mrb[0].mxu0
      %8278 = vmatprep.mubr.bf16.mxu0 0
      %8279 = vmatmul.mubr.bf16.gmra.mrb[0].mxu0 %v8188
      %v8280 = vpop.f32.mrb[0].mxu0
      %v8281 = vadd.f32 0.0, %v8280
      %v8282 = vpop.f32.mrb[0].mxu0
      %v8283 = vpop.f32.mrb[0].mxu0
      %v8284 = vpop.f32.mrb[0].mxu0
      %8285 = vdwg.mxu0
      %v8286 = vadd.f32 %v8102, %v8225
      %v8287 = vadd.f32 %v8103, %v8228
      %v8288 = vadd.f32 %v8104, %v8233
      %v8289 = vadd.f32 %v8105, %v8236
      %v8290 = vadd.f32 %v8106, %v8241
      %v8291 = vadd.f32 %v8107, %v8244
      %v8292 = vadd.f32 %v8108, %v8249
      %v8293 = vadd.f32 %v8109, %v8252
      %v8294 = vadd.f32 %v8110, %v8257
      %v8295 = vadd.f32 %v8111, %v8260
      %v8296 = vadd.f32 %v8112, %v8265
      %v8297 = vadd.f32 %v8113, %v8268
      %v8298 = vadd.f32 %v8114, %v8273
      %v8299 = vadd.f32 %v8115, %v8276
      %v8300 = vadd.f32 %v8116, %v8281
      %v8301 = vrot.slane %v7867, 1
      %v8302 = vrot.slane %v7868, 1
      %v8303 = vrot.slane %v7869, 1
      %v8304 = vrot.slane %v7870, 1
      %v8305 = vrot.slane %v7871, 1
      %v8306 = vrot.slane %v7872, 1
      %v8307 = vrot.slane %v7873, 1
      %v8308 = vrot.slane %v7874, 1
      %v8309 = vrot.slane %v7875, 1
      %v8310 = vrot.slane %v7876, 1
      %v8311 = vrot.slane %v7877, 1
      %v8312 = vrot.slane %v7878, 1
      %v8313 = vrot.slane %v7879, 1
      %v8314 = vrot.slane %v7880, 1
      %v8315 = vrot.slane %v7881, 1
      %v8316 = vsel %vm3749, %v8314, %v8315
      %v8317 = vsel %vm3749, %v8313, %v8314
      %v8318 = vsel %vm3749, %v8312, %v8313
      %v8319 = vsel %vm3749, %v8311, %v8312
      %v8320 = vsel %vm3749, %v8310, %v8311
      %v8321 = vsel %vm3749, %v8309, %v8310
      %v8322 = vsel %vm3749, %v8308, %v8309
      %v8323 = vsel %vm3749, %v8307, %v8308
      %v8324 = vsel %vm3749, %v8306, %v8307
      %v8325 = vsel %vm3749, %v8305, %v8306
      %v8326 = vsel %vm3749, %v8304, %v8305
      %v8327 = vsel %vm3749, %v8303, %v8304
      %v8328 = vsel %vm3749, %v8302, %v8303
      %v8329 = vsel %vm3749, %v8301, %v8302
      %v8330 = vsel %vm3749, %v8315, %v8301
      %v8331 = vsel %vm7640, %v8329, 0.0
      %v8332 = vsel %vm7641, %v8328, 0.0
      %v8333 = vsel %vm7642, %v8327, 0.0
      %v8334 = vsel %vm7643, %v8326, 0.0
      %v8335 = vsel %vm7644, %v8325, 0.0
      %v8336 = vsel %vm7645, %v8324, 0.0
      %v8337 = vsel %vm7646, %v8323, 0.0
      %v8338 = vsel %vm7647, %v8322, 0.0
      %v8339 = vsel %vm7648, %v8321, 0.0
      %v8340 = vsel %vm7649, %v8320, 0.0
      %v8341 = vsel %vm7650, %v8319, 0.0
      %v8342 = vsel %vm7651, %v8318, 0.0
      %v8343 = vsel %vm7652, %v8317, 0.0
      %v8344 = vsel %vm7653, %v8316, 0.0
      %v8345 = vsel %vm7654, %v8330, 0.0
      %v8346 = vpack.c.bf16 %v8332, %v8331
      %v8347 = vpack.c.bf16 %v8334, %v8333
      %v8348 = vpack.c.bf16 %v8336, %v8335
      %v8349 = vpack.c.bf16 %v8338, %v8337
      %v8350 = vpack.c.bf16 %v8340, %v8339
      %v8351 = vpack.c.bf16 %v8342, %v8341
      %v8352 = vpack.c.bf16 %v8344, %v8343
      %v8353 = vpack.c.bf16 %v8345, %v8345
      %s8354 = scalar_lea.vmem %s8, 80
      %v8355 = vld [vmem:[%s8354] sm:$0xf]
      %v8356 = vld [vmem:[%s8354 + $0x4] sm:$0xf]
      %v8357 = vld [vmem:[%s8354 + $0x8] sm:$0xf]
      %v8358 = vld [vmem:[%s8354 + $0xc] sm:$0xf]
      %v8359 = vld [vmem:[%s8354 + $0x10] sm:$0xf]
      %v8360 = vld [vmem:[%s8354 + $0x14] sm:$0xf]
      %v8361 = vld [vmem:[%s8354 + $0x18] sm:$0xf]
      %v8362 = vld [vmem:[%s8354 + $0x1c] sm:$0xf]
      %v8363 = vld [vmem:[%s8354 + $0x20] sm:$0xf]
      %v8364 = vld [vmem:[%s8354 + $0x24] sm:$0xf]
      %v8375 = vunpack.c.l.b16 %v8355
      %v8376 = vunpack.c.l.b16 %v8356
      %v8377 = vunpack.c.l.b16 %v8357
      %v8378 = vunpack.c.l.b16 %v8358
      %v8379 = vunpack.c.l.b16 %v8359
      %v8380 = vunpack.c.l.b16 %v8360
      %v8381 = vunpack.c.l.b16 %v8361
      %v8382 = vunpack.c.l.b16 %v8362
      %v8383 = vunpack.c.l.b16 %v8363
      %v8384 = vunpack.c.l.b16 %v8364
      %v8385 = vpack.c.b16 %v8376, %v8375
      %v8386 = vpack.c.b16 %v8378, %v8377
      %v8387 = vpack.c.b16 %v8380, %v8379
      %v8388 = vpack.c.b16 %v8382, %v8381
      %v8389 = vpack.c.b16 %v8384, %v8383
      %v8396 = vsel %vm5366, %v8346, 0
      %v8399 = vsel %vm5366, %v8347, 0
      %v8402 = vsel %vm5366, %v8348, 0
      %v8405 = vsel %vm5366, %v8349, 0
      %v8408 = vsel %vm5366, %v8350, 0
      %v8411 = vsel %vm5366, %v8351, 0
      %v8414 = vsel %vm5366, %v8352, 0
      %v8417 = vsel %vm5366, %v8353, 0
      %8419 = vmatprep.subr.bf16.mxu0 0
      %8420 = vmatpush1.bf16.msra.mxu0 %v8385
      %8421 = vmatprep.subr.bf16.mxu0 0
      %8422 = vmatpush1.bf16.msra.mxu0 %v8386
      %8423 = vmatprep.subr.bf16.mxu0 0
      %8424 = vmatpush1.bf16.msra.mxu0 %v8387
      %8425 = vmatprep.subr.bf16.mxu0 0
      %8426 = vmatpush1.bf16.msra.mxu0 %v8388
      %8427 = vmatprep.subr.bf16.mxu0 0
      %8428 = vmatpush1.bf16.msra.mxu0 %v8389
      %8429 = vmatprep.subr.bf16.mxu0 0
      %8430 = vmatpush1.bf16.msra.mxu0 0
      %8431 = vmatprep.subr.bf16.mxu0 0
      %8432 = vmatpush1.bf16.msra.mxu0 0
      %8433 = vmatprep.subr.bf16.mxu0 0
      %8434 = vmatpush1.bf16.msra.mxu0 0
      %8435 = vmatprep.subr.bf16.mxu0 0
      %8436 = vmatpush1.bf16.msra.mxu0 0
      %8437 = vmatprep.subr.bf16.mxu0 0
      %8438 = vmatpush1.bf16.msra.mxu0 0
      %8439 = vmatprep.subr.bf16.mxu0 0
      %8440 = vmatpush1.bf16.msra.mxu0 0
      %8441 = vmatprep.subr.bf16.mxu0 0
      %8442 = vmatpush1.bf16.msra.mxu0 0
      %8443 = vmatprep.subr.bf16.mxu0 0
      %8444 = vmatpush1.bf16.msra.mxu0 0
      %8445 = vmatprep.subr.bf16.mxu0 0
      %8446 = vmatpush1.bf16.msra.mxu0 0
      %8447 = vmatprep.subr.bf16.mxu0 0
      %8448 = vmatpush1.bf16.msra.mxu0 0
      %8449 = vmatprep.subr.bf16.mxu0 0
      %8450 = vmatpush1.bf16.msra.mxu0 0
      %8451 = vmatprep.mubr.bf16.mxu0 0
      %8452 = vmatmul.mubr.bf16.gmra.mrb[0].mxu0 %v8396
      %v8453 = vpop.f32.mrb[0].mxu0
      %v8454 = vadd.f32 0.0, %v8453
      %v8455 = vpop.f32.mrb[0].mxu0
      %v8456 = vpop.f32.mrb[0].mxu0
      %v8457 = vadd.f32 0.0, %v8456
      %v8458 = vpop.f32.mrb[0].mxu0
      %8459 = vmatprep.mubr.bf16.mxu0 0
      %8460 = vmatmul.mubr.bf16.gmra.mrb[0].mxu0 %v8399
      %v8461 = vpop.f32.mrb[0].mxu0
      %v8462 = vadd.f32 0.0, %v8461
      %v8463 = vpop.f32.mrb[0].mxu0
      %v8464 = vpop.f32.mrb[0].mxu0
      %v8465 = vadd.f32 0.0, %v8464
      %v8466 = vpop.f32.mrb[0].mxu0
      %8467 = vmatprep.mubr.bf16.mxu0 0
      %8468 = vmatmul.mubr.bf16.gmra.mrb[0].mxu0 %v8402
      %v8469 = vpop.f32.mrb[0].mxu0
      %v8470 = vadd.f32 0.0, %v8469
      %v8471 = vpop.f32.mrb[0].mxu0
      %v8472 = vpop.f32.mrb[0].mxu0
      %v8473 = vadd.f32 0.0, %v8472
      %v8474 = vpop.f32.mrb[0].mxu0
      %8475 = vmatprep.mubr.bf16.mxu0 0
      %8476 = vmatmul.mubr.bf16.gmra.mrb[0].mxu0 %v8405
      %v8477 = vpop.f32.mrb[0].mxu0
      %v8478 = vadd.f32 0.0, %v8477
      %v8479 = vpop.f32.mrb[0].mxu0
      %v8480 = vpop.f32.mrb[0].mxu0
      %v8481 = vadd.f32 0.0, %v8480
      %v8482 = vpop.f32.mrb[0].mxu0
      %8483 = vmatprep.mubr.bf16.mxu0 0
      %8484 = vmatmul.mubr.bf16.gmra.mrb[0].mxu0 %v8408
      %v8485 = vpop.f32.mrb[0].mxu0
      %v8486 = vadd.f32 0.0, %v8485
      %v8487 = vpop.f32.mrb[0].mxu0
      %v8488 = vpop.f32.mrb[0].mxu0
      %v8489 = vadd.f32 0.0, %v8488
      %v8490 = vpop.f32.mrb[0].mxu0
      %8491 = vmatprep.mubr.bf16.mxu0 0
      %8492 = vmatmul.mubr.bf16.gmra.mrb[0].mxu0 %v8411
      %v8493 = vpop.f32.mrb[0].mxu0
      %v8494 = vadd.f32 0.0, %v8493
      %v8495 = vpop.f32.mrb[0].mxu0
      %v8496 = vpop.f32.mrb[0].mxu0
      %v8497 = vadd.f32 0.0, %v8496
      %v8498 = vpop.f32.mrb[0].mxu0
      %8499 = vmatprep.mubr.bf16.mxu0 0
      %8500 = vmatmul.mubr.bf16.gmra.mrb[0].mxu0 %v8414
      %v8501 = vpop.f32.mrb[0].mxu0
      %v8502 = vadd.f32 0.0, %v8501
      %v8503 = vpop.f32.mrb[0].mxu0
      %v8504 = vpop.f32.mrb[0].mxu0
      %v8505 = vadd.f32 0.0, %v8504
      %v8506 = vpop.f32.mrb[0].mxu0
      %8507 = vmatprep.mubr.bf16.mxu0 0
      %8508 = vmatmul.mubr.bf16.gmra.mrb[0].mxu0 %v8417
      %v8509 = vpop.f32.mrb[0].mxu0
      %v8510 = vadd.f32 0.0, %v8509
      %v8511 = vpop.f32.mrb[0].mxu0
      %v8512 = vpop.f32.mrb[0].mxu0
      %v8513 = vpop.f32.mrb[0].mxu0
      %8514 = vdwg.mxu0
      %v8515 = vadd.f32 %v8286, %v8454
      %v8516 = vadd.f32 %v8287, %v8457
      %v8517 = vadd.f32 %v8288, %v8462
      %v8518 = vadd.f32 %v8289, %v8465
      %v8519 = vadd.f32 %v8290, %v8470
      %v8520 = vadd.f32 %v8291, %v8473
      %v8521 = vadd.f32 %v8292, %v8478
      %v8522 = vadd.f32 %v8293, %v8481
      %v8523 = vadd.f32 %v8294, %v8486
      %v8524 = vadd.f32 %v8295, %v8489
      %v8525 = vadd.f32 %v8296, %v8494
      %v8526 = vadd.f32 %v8297, %v8497
      %v8527 = vadd.f32 %v8298, %v8502
      %v8528 = vadd.f32 %v8299, %v8505
      %v8529 = vadd.f32 %v8300, %v8510
      %vm8530 = vcmp.ge.f32.partialorder %v8515, 0.0
      %vm8531 = vcmp.ge.f32.partialorder %v8516, 0.0
      %vm8532 = vcmp.ge.f32.partialorder %v8517, 0.0
      %vm8533 = vcmp.ge.f32.partialorder %v8518, 0.0
      %vm8534 = vcmp.ge.f32.partialorder %v8519, 0.0
      %vm8535 = vcmp.ge.f32.partialorder %v8520, 0.0
      %vm8536 = vcmp.ge.f32.partialorder %v8521, 0.0
      %vm8537 = vcmp.ge.f32.partialorder %v8522, 0.0
      %vm8538 = vcmp.ge.f32.partialorder %v8523, 0.0
      %vm8539 = vcmp.ge.f32.partialorder %v8524, 0.0
      %vm8540 = vcmp.ge.f32.partialorder %v8525, 0.0
      %vm8541 = vcmp.ge.f32.partialorder %v8526, 0.0
      %vm8542 = vcmp.ge.f32.partialorder %v8527, 0.0
      %vm8543 = vcmp.ge.f32.partialorder %v8528, 0.0
      %vm8544 = vcmp.ge.f32.partialorder %v8529, 0.0
      %v8545 = vmul.f32 %v8515, 0.01
      %v8546 = vmul.f32 %v8516, 0.01
      %v8547 = vmul.f32 %v8517, 0.01
      %v8548 = vmul.f32 %v8518, 0.01
      %v8549 = vmul.f32 %v8519, 0.01
      %v8550 = vmul.f32 %v8520, 0.01
      %v8551 = vmul.f32 %v8521, 0.01
      %v8552 = vmul.f32 %v8522, 0.01
      %v8553 = vmul.f32 %v8523, 0.01
      %v8554 = vmul.f32 %v8524, 0.01
      %v8555 = vmul.f32 %v8525, 0.01
      %v8556 = vmul.f32 %v8526, 0.01
      %v8557 = vmul.f32 %v8527, 0.01
      %v8558 = vmul.f32 %v8528, 0.01
      %v8559 = vmul.f32 %v8529, 0.01
      %v8560 = vsel %vm8530, %v8515, %v8545
      %v8561 = vsel %vm8531, %v8516, %v8546
      %v8562 = vsel %vm8532, %v8517, %v8547
      %v8563 = vsel %vm8533, %v8518, %v8548
      %v8564 = vsel %vm8534, %v8519, %v8549
      %v8565 = vsel %vm8535, %v8520, %v8550
      %v8566 = vsel %vm8536, %v8521, %v8551
      %v8567 = vsel %vm8537, %v8522, %v8552
      %v8568 = vsel %vm8538, %v8523, %v8553
      %v8569 = vsel %vm8539, %v8524, %v8554
      %v8570 = vsel %vm8540, %v8525, %v8555
      %v8571 = vsel %vm8541, %v8526, %v8556
      %v8572 = vsel %vm8542, %v8527, %v8557
      %v8573 = vsel %vm8543, %v8528, %v8558
      %v8574 = vsel %vm8544, %v8529, %v8559
      %v8575 = vrot.slane %v8560, 1
      %v8576 = vrot.slane %v8561, 1
      %v8577 = vrot.slane %v8562, 1
      %v8578 = vrot.slane %v8563, 1
      %v8579 = vrot.slane %v8564, 1
      %v8580 = vrot.slane %v8565, 1
      %v8581 = vrot.slane %v8566, 1
      %v8582 = vrot.slane %v8567, 1
      %v8583 = vrot.slane %v8568, 1
      %v8584 = vrot.slane %v8569, 1
      %v8585 = vrot.slane %v8570, 1
      %v8586 = vrot.slane %v8571, 1
      %v8587 = vrot.slane %v8572, 1
      %v8588 = vrot.slane %v8573, 1
      %v8589 = vrot.slane %v8574, 1
      %v8590 = vsel %vm3749, %v8588, %v8589
      %v8591 = vsel %vm3749, %v8587, %v8588
      %v8592 = vsel %vm3749, %v8586, %v8587
      %v8593 = vsel %vm3749, %v8585, %v8586
      %v8594 = vsel %vm3749, %v8584, %v8585
      %v8595 = vsel %vm3749, %v8583, %v8584
      %v8596 = vsel %vm3749, %v8582, %v8583
      %v8597 = vsel %vm3749, %v8581, %v8582
      %v8598 = vsel %vm3749, %v8580, %v8581
      %v8599 = vsel %vm3749, %v8579, %v8580
      %v8600 = vsel %vm3749, %v8578, %v8579
      %v8601 = vsel %vm3749, %v8577, %v8578
      %v8602 = vsel %vm3749, %v8576, %v8577
      %v8603 = vsel %vm3749, %v8575, %v8576
      %v8604 = vsel %vm3749, %v8589, %v8575
      %v8605 = vmax.f32 %v8560, %v8603
      %v8606 = vmax.f32 %v8561, %v8602
      %v8607 = vmax.f32 %v8562, %v8601
      %v8608 = vmax.f32 %v8563, %v8600
      %v8609 = vmax.f32 %v8564, %v8599
      %v8610 = vmax.f32 %v8565, %v8598
      %v8611 = vmax.f32 %v8566, %v8597
      %v8612 = vmax.f32 %v8567, %v8596
      %v8613 = vmax.f32 %v8568, %v8595
      %v8614 = vmax.f32 %v8569, %v8594
      %v8615 = vmax.f32 %v8570, %v8593
      %v8616 = vmax.f32 %v8571, %v8592
      %v8617 = vmax.f32 %v8572, %v8591
      %v8618 = vmax.f32 %v8573, %v8590
      %v8619 = vmax.f32 %v8574, %v8604
      %v8620 = vpack.c.bf16 %v8606, %v8605
      %v8621 = vpack.c.bf16 %v8608, %v8607
      %v8622 = vpack.c.bf16 %v8610, %v8609
      %v8623 = vpack.c.bf16 %v8612, %v8611
      %v8624 = vpack.c.bf16 %v8614, %v8613
      %v8625 = vpack.c.bf16 %v8616, %v8615
      %v8626 = vpack.c.bf16 %v8618, %v8617
      %v8627 = vpack.c.bf16 %v8619, %v8619
      %v8628 = vld [vmem:[%s10] sm:$0xf]
      %v8629 = vld [vmem:[%s10 + $0x4] sm:$0xf]
      %v8630 = vld [vmem:[%s10 + $0x8] sm:$0xf]
      %v8631 = vld [vmem:[%s10 + $0xc] sm:$0xf]
      %v8632 = vld [vmem:[%s10 + $0x10] sm:$0xf]
      %v8633 = vld [vmem:[%s10 + $0x14] sm:$0xf]
      %v8634 = vld [vmem:[%s10 + $0x18] sm:$0xf]
      %v8635 = vld [vmem:[%s10 + $0x1c] sm:$0xf]
      %v8636 = vld [vmem:[%s10 + $0x20] sm:$0xf]
      %v8637 = vld [vmem:[%s10 + $0x24] sm:$0xf]
      %v8648 = vunpack.c.l.b16 %v8628
      %v8649 = vunpack.c.l.b16 %v8629
      %v8650 = vunpack.c.l.b16 %v8630
      %v8651 = vunpack.c.l.b16 %v8631
      %v8652 = vunpack.c.l.b16 %v8632
      %v8653 = vunpack.c.l.b16 %v8633
      %v8654 = vunpack.c.l.b16 %v8634
      %v8655 = vunpack.c.l.b16 %v8635
      %v8656 = vunpack.c.l.b16 %v8636
      %v8657 = vunpack.c.l.b16 %v8637
      %v8658 = vpack.c.b16 %v8649, %v8648
      %v8659 = vpack.c.b16 %v8651, %v8650
      %v8660 = vpack.c.b16 %v8653, %v8652
      %v8661 = vpack.c.b16 %v8655, %v8654
      %v8662 = vpack.c.b16 %v8657, %v8656
      %v8669 = vsel %vm5366, %v8620, 0
      %v8672 = vsel %vm5366, %v8621, 0
      %v8675 = vsel %vm5366, %v8622, 0
      %v8678 = vsel %vm5366, %v8623, 0
      %v8681 = vsel %vm5366, %v8624, 0
      %v8684 = vsel %vm5366, %v8625, 0
      %v8687 = vsel %vm5366, %v8626, 0
      %v8690 = vsel %vm5366, %v8627, 0
      %8692 = vmatprep.subr.bf16.mxu0 0
      %8693 = vmatpush1.bf16.msra.mxu0 %v8658
      %8694 = vmatprep.subr.bf16.mxu0 0
      %8695 = vmatpush1.bf16.msra.mxu0 %v8659
      %8696 = vmatprep.subr.bf16.mxu0 0
      %8697 = vmatpush1.bf16.msra.mxu0 %v8660
      %8698 = vmatprep.subr.bf16.mxu0 0
      %8699 = vmatpush1.bf16.msra.mxu0 %v8661
      %8700 = vmatprep.subr.bf16.mxu0 0
      %8701 = vmatpush1.bf16.msra.mxu0 %v8662
      %8702 = vmatprep.subr.bf16.mxu0 0
      %8703 = vmatpush1.bf16.msra.mxu0 0
      %8704 = vmatprep.subr.bf16.mxu0 0
      %8705 = vmatpush1.bf16.msra.mxu0 0
      %8706 = vmatprep.subr.bf16.mxu0 0
      %8707 = vmatpush1.bf16.msra.mxu0 0
      %8708 = vmatprep.subr.bf16.mxu0 0
      %8709 = vmatpush1.bf16.msra.mxu0 0
      %8710 = vmatprep.subr.bf16.mxu0 0
      %8711 = vmatpush1.bf16.msra.mxu0 0
      %8712 = vmatprep.subr.bf16.mxu0 0
      %8713 = vmatpush1.bf16.msra.mxu0 0
      %8714 = vmatprep.subr.bf16.mxu0 0
      %8715 = vmatpush1.bf16.msra.mxu0 0
      %8716 = vmatprep.subr.bf16.mxu0 0
      %8717 = vmatpush1.bf16.msra.mxu0 0
      %8718 = vmatprep.subr.bf16.mxu0 0
      %8719 = vmatpush1.bf16.msra.mxu0 0
      %8720 = vmatprep.subr.bf16.mxu0 0
      %8721 = vmatpush1.bf16.msra.mxu0 0
      %8722 = vmatprep.subr.bf16.mxu0 0
      %8723 = vmatpush1.bf16.msra.mxu0 0
      %8724 = vmatprep.mubr.bf16.mxu0 0
      %8725 = vmatmul.mubr.bf16.gmra.mrb[0].mxu0 %v8669
      %v8726 = vpop.f32.mrb[0].mxu0
      %v8727 = vadd.f32 0.0, %v8726
      %v8728 = vpop.f32.mrb[0].mxu0
      %v8729 = vpop.f32.mrb[0].mxu0
      %v8730 = vadd.f32 0.0, %v8729
      %v8731 = vpop.f32.mrb[0].mxu0
      %8732 = vmatprep.mubr.bf16.mxu0 0
      %8733 = vmatmul.mubr.bf16.gmra.mrb[0].mxu0 %v8672
      %v8734 = vpop.f32.mrb[0].mxu0
      %v8735 = vadd.f32 0.0, %v8734
      %v8736 = vpop.f32.mrb[0].mxu0
      %v8737 = vpop.f32.mrb[0].mxu0
      %v8738 = vadd.f32 0.0, %v8737
      %v8739 = vpop.f32.mrb[0].mxu0
      %8740 = vmatprep.mubr.bf16.mxu0 0
      %8741 = vmatmul.mubr.bf16.gmra.mrb[0].mxu0 %v8675
      %v8742 = vpop.f32.mrb[0].mxu0
      %v8743 = vadd.f32 0.0, %v8742
      %v8744 = vpop.f32.mrb[0].mxu0
      %v8745 = vpop.f32.mrb[0].mxu0
      %v8746 = vadd.f32 0.0, %v8745
      %v8747 = vpop.f32.mrb[0].mxu0
      %8748 = vmatprep.mubr.bf16.mxu0 0
      %8749 = vmatmul.mubr.bf16.gmra.mrb[0].mxu0 %v8678
      %v8750 = vpop.f32.mrb[0].mxu0
      %v8751 = vadd.f32 0.0, %v8750
      %v8752 = vpop.f32.mrb[0].mxu0
      %v8753 = vpop.f32.mrb[0].mxu0
      %v8754 = vadd.f32 0.0, %v8753
      %v8755 = vpop.f32.mrb[0].mxu0
      %8756 = vmatprep.mubr.bf16.mxu0 0
      %8757 = vmatmul.mubr.bf16.gmra.mrb[0].mxu0 %v8681
      %v8758 = vpop.f32.mrb[0].mxu0
      %v8759 = vadd.f32 0.0, %v8758
      %v8760 = vpop.f32.mrb[0].mxu0
      %v8761 = vpop.f32.mrb[0].mxu0
      %v8762 = vadd.f32 0.0, %v8761
      %v8763 = vpop.f32.mrb[0].mxu0
      %8764 = vmatprep.mubr.bf16.mxu0 0
      %8765 = vmatmul.mubr.bf16.gmra.mrb[0].mxu0 %v8684
      %v8766 = vpop.f32.mrb[0].mxu0
      %v8767 = vadd.f32 0.0, %v8766
      %v8768 = vpop.f32.mrb[0].mxu0
      %v8769 = vpop.f32.mrb[0].mxu0
      %v8770 = vadd.f32 0.0, %v8769
      %v8771 = vpop.f32.mrb[0].mxu0
      %8772 = vmatprep.mubr.bf16.mxu0 0
      %8773 = vmatmul.mubr.bf16.gmra.mrb[0].mxu0 %v8687
      %v8774 = vpop.f32.mrb[0].mxu0
      %v8775 = vadd.f32 0.0, %v8774
      %v8776 = vpop.f32.mrb[0].mxu0
      %v8777 = vpop.f32.mrb[0].mxu0
      %v8778 = vadd.f32 0.0, %v8777
      %v8779 = vpop.f32.mrb[0].mxu0
      %8780 = vmatprep.mubr.bf16.mxu0 0
      %8781 = vmatmul.mubr.bf16.gmra.mrb[0].mxu0 %v8690
      %v8782 = vpop.f32.mrb[0].mxu0
      %v8783 = vadd.f32 0.0, %v8782
      %v8784 = vpop.f32.mrb[0].mxu0
      %v8785 = vpop.f32.mrb[0].mxu0
      %v8786 = vpop.f32.mrb[0].mxu0
      %8787 = vdwg.mxu0
      %s8788 = scalar_lea.vmem %s10, 40
      %v8789 = vld [vmem:[%s8788] sm:$0xf]
      %v8790 = vld [vmem:[%s8788 + $0x4] sm:$0xf]
      %v8791 = vld [vmem:[%s8788 + $0x8] sm:$0xf]
      %v8792 = vld [vmem:[%s8788 + $0xc] sm:$0xf]
      %v8793 = vld [vmem:[%s8788 + $0x10] sm:$0xf]
      %v8794 = vld [vmem:[%s8788 + $0x14] sm:$0xf]
      %v8795 = vld [vmem:[%s8788 + $0x18] sm:$0xf]
      %v8796 = vld [vmem:[%s8788 + $0x1c] sm:$0xf]
      %v8797 = vld [vmem:[%s8788 + $0x20] sm:$0xf]
      %v8798 = vld [vmem:[%s8788 + $0x24] sm:$0xf]
      %v8809 = vunpack.c.l.b16 %v8789
      %v8810 = vunpack.c.l.b16 %v8790
      %v8811 = vunpack.c.l.b16 %v8791
      %v8812 = vunpack.c.l.b16 %v8792
      %v8813 = vunpack.c.l.b16 %v8793
      %v8814 = vunpack.c.l.b16 %v8794
      %v8815 = vunpack.c.l.b16 %v8795
      %v8816 = vunpack.c.l.b16 %v8796
      %v8817 = vunpack.c.l.b16 %v8797
      %v8818 = vunpack.c.l.b16 %v8798
      %v8819 = vpack.c.b16 %v8810, %v8809
      %v8820 = vpack.c.b16 %v8812, %v8811
      %v8821 = vpack.c.b16 %v8814, %v8813
      %v8822 = vpack.c.b16 %v8816, %v8815
      %v8823 = vpack.c.b16 %v8818, %v8817
      %8829 = vmatprep.subr.bf16.mxu0 0
      %8830 = vmatpush1.bf16.msra.mxu0 %v8819
      %8831 = vmatprep.subr.bf16.mxu0 0
      %8832 = vmatpush1.bf16.msra.mxu0 %v8820
      %8833 = vmatprep.subr.bf16.mxu0 0
      %8834 = vmatpush1.bf16.msra.mxu0 %v8821
      %8835 = vmatprep.subr.bf16.mxu0 0
      %8836 = vmatpush1.bf16.msra.mxu0 %v8822
      %8837 = vmatprep.subr.bf16.mxu0 0
      %8838 = vmatpush1.bf16.msra.mxu0 %v8823
      %8839 = vmatprep.subr.bf16.mxu0 0
      %8840 = vmatpush1.bf16.msra.mxu0 0
      %8841 = vmatprep.subr.bf16.mxu0 0
      %8842 = vmatpush1.bf16.msra.mxu0 0
      %8843 = vmatprep.subr.bf16.mxu0 0
      %8844 = vmatpush1.bf16.msra.mxu0 0
      %8845 = vmatprep.subr.bf16.mxu0 0
      %8846 = vmatpush1.bf16.msra.mxu0 0
      %8847 = vmatprep.subr.bf16.mxu0 0
      %8848 = vmatpush1.bf16.msra.mxu0 0
      %8849 = vmatprep.subr.bf16.mxu0 0
      %8850 = vmatpush1.bf16.msra.mxu0 0
      %8851 = vmatprep.subr.bf16.mxu0 0
      %8852 = vmatpush1.bf16.msra.mxu0 0
      %8853 = vmatprep.subr.bf16.mxu0 0
      %8854 = vmatpush1.bf16.msra.mxu0 0
      %8855 = vmatprep.subr.bf16.mxu0 0
      %8856 = vmatpush1.bf16.msra.mxu0 0
      %8857 = vmatprep.subr.bf16.mxu0 0
      %8858 = vmatpush1.bf16.msra.mxu0 0
      %8859 = vmatprep.subr.bf16.mxu0 0
      %8860 = vmatpush1.bf16.msra.mxu0 0
      %8861 = vmatprep.mubr.bf16.mxu0 0
      %8862 = vmatmul.mubr.bf16.gmra.mrb[0].mxu0 %v8669
      %v8863 = vpop.f32.mrb[0].mxu0
      %v8864 = vadd.f32 0.0, %v8863
      %v8865 = vpop.f32.mrb[0].mxu0
      %v8866 = vpop.f32.mrb[0].mxu0
      %v8867 = vadd.f32 0.0, %v8866
      %v8868 = vpop.f32.mrb[0].mxu0
      %8869 = vmatprep.mubr.bf16.mxu0 0
      %8870 = vmatmul.mubr.bf16.gmra.mrb[0].mxu0 %v8672
      %v8871 = vpop.f32.mrb[0].mxu0
      %v8872 = vadd.f32 0.0, %v8871
      %v8873 = vpop.f32.mrb[0].mxu0
      %v8874 = vpop.f32.mrb[0].mxu0
      %v8875 = vadd.f32 0.0, %v8874
      %v8876 = vpop.f32.mrb[0].mxu0
      %8877 = vmatprep.mubr.bf16.mxu0 0
      %8878 = vmatmul.mubr.bf16.gmra.mrb[0].mxu0 %v8675
      %v8879 = vpop.f32.mrb[0].mxu0
      %v8880 = vadd.f32 0.0, %v8879
      %v8881 = vpop.f32.mrb[0].mxu0
      %v8882 = vpop.f32.mrb[0].mxu0
      %v8883 = vadd.f32 0.0, %v8882
      %v8884 = vpop.f32.mrb[0].mxu0
      %8885 = vmatprep.mubr.bf16.mxu0 0
      %8886 = vmatmul.mubr.bf16.gmra.mrb[0].mxu0 %v8678
      %v8887 = vpop.f32.mrb[0].mxu0
      %v8888 = vadd.f32 0.0, %v8887
      %v8889 = vpop.f32.mrb[0].mxu0
      %v8890 = vpop.f32.mrb[0].mxu0
      %v8891 = vadd.f32 0.0, %v8890
      %v8892 = vpop.f32.mrb[0].mxu0
      %8893 = vmatprep.mubr.bf16.mxu0 0
      %8894 = vmatmul.mubr.bf16.gmra.mrb[0].mxu0 %v8681
      %v8895 = vpop.f32.mrb[0].mxu0
      %v8896 = vadd.f32 0.0, %v8895
      %v8897 = vpop.f32.mrb[0].mxu0
      %v8898 = vpop.f32.mrb[0].mxu0
      %v8899 = vadd.f32 0.0, %v8898
      %v8900 = vpop.f32.mrb[0].mxu0
      %8901 = vmatprep.mubr.bf16.mxu0 0
      %8902 = vmatmul.mubr.bf16.gmra.mrb[0].mxu0 %v8684
      %v8903 = vpop.f32.mrb[0].mxu0
      %v8904 = vadd.f32 0.0, %v8903
      %v8905 = vpop.f32.mrb[0].mxu0
      %v8906 = vpop.f32.mrb[0].mxu0
      %v8907 = vadd.f32 0.0, %v8906
      %v8908 = vpop.f32.mrb[0].mxu0
      %8909 = vmatprep.mubr.bf16.mxu0 0
      %8910 = vmatmul.mubr.bf16.gmra.mrb[0].mxu0 %v8687
      %v8911 = vpop.f32.mrb[0].mxu0
      %v8912 = vadd.f32 0.0, %v8911
      %v8913 = vpop.f32.mrb[0].mxu0
      %v8914 = vpop.f32.mrb[0].mxu0
      %v8915 = vadd.f32 0.0, %v8914
      %v8916 = vpop.f32.mrb[0].mxu0
      %8917 = vmatprep.mubr.bf16.mxu0 0
      %8918 = vmatmul.mubr.bf16.gmra.mrb[0].mxu0 %v8690
      %v8919 = vpop.f32.mrb[0].mxu0
      %v8920 = vadd.f32 0.0, %v8919
      %v8921 = vpop.f32.mrb[0].mxu0
      %v8922 = vpop.f32.mrb[0].mxu0
      %v8923 = vpop.f32.mrb[0].mxu0
      %8924 = vdwg.mxu0
      %v8925 = vmax.f32 %v8727, %v8864
      %v8926 = vmax.f32 %v8730, %v8867
      %v8927 = vmax.f32 %v8735, %v8872
      %v8928 = vmax.f32 %v8738, %v8875
      %v8929 = vmax.f32 %v8743, %v8880
      %v8930 = vmax.f32 %v8746, %v8883
      %v8931 = vmax.f32 %v8751, %v8888
      %v8932 = vmax.f32 %v8754, %v8891
      %v8933 = vmax.f32 %v8759, %v8896
      %v8934 = vmax.f32 %v8762, %v8899
      %v8935 = vmax.f32 %v8767, %v8904
      %v8936 = vmax.f32 %v8770, %v8907
      %v8937 = vmax.f32 %v8775, %v8912
      %v8938 = vmax.f32 %v8778, %v8915
      %v8939 = vmax.f32 %v8783, %v8920
      %vm8940 = vcmask 261120
      %8941 = vst.msk [vmem:[#allocation3] sm:$0xff] %vm8940, %v8925
      %8942 = vst.msk [vmem:[#allocation3 + $0x8] sm:$0xff] %vm8940, %v8926
      %8943 = vst.msk [vmem:[#allocation3 + $0x10] sm:$0xff] %vm8940, %v8927
      %8944 = vst.msk [vmem:[#allocation3 + $0x18] sm:$0xff] %vm8940, %v8928
      %8945 = vst.msk [vmem:[#allocation3 + $0x20] sm:$0xff] %vm8940, %v8929
      %8946 = vst.msk [vmem:[#allocation3 + $0x28] sm:$0xff] %vm8940, %v8930
      %8947 = vst.msk [vmem:[#allocation3 + $0x30] sm:$0xff] %vm8940, %v8931
      %8948 = vst.msk [vmem:[#allocation3 + $0x38] sm:$0xff] %vm8940, %v8932
      %8949 = vst.msk [vmem:[#allocation3 + $0x40] sm:$0xff] %vm8940, %v8933
      %8950 = vst.msk [vmem:[#allocation3 + $0x48] sm:$0xff] %vm8940, %v8934
      %8951 = vst.msk [vmem:[#allocation3 + $0x50] sm:$0xff] %vm8940, %v8935
      %8952 = vst.msk [vmem:[#allocation3 + $0x58] sm:$0xff] %vm8940, %v8936
      %8953 = vst.msk [vmem:[#allocation3 + $0x60] sm:$0xff] %vm8940, %v8937
      %8954 = vst.msk [vmem:[#allocation3 + $0x68] sm:$0xff] %vm8940, %v8938
      %8955 = vst.msk [vmem:[#allocation3 + $0x70] sm:$0xff] %vm8940, %v8939
      %v8956 = vld [vmem:[%s12] sm:$0x1]
      %v8957 = vld [vmem:[#allocation3] ss:$5 sm:$0xff]
      %s8958 = scalar_lea.vmem [#allocation3], 40
      %v8959 = vld [vmem:[%s8958] ss:$5 sm:$0xff]
      %s8960 = scalar_lea.vmem [#allocation3], 80
      %v8961 = vld [vmem:[%s8960] ss:$5 sm:$0xff]
      %v8962 = vpack.c.bf16 %v8959, %v8957
      %v8963 = vpack.c.bf16 %v8961, %v8961
      %v8964 = vld [vmem:[%s11] sm:$0xf]
      %v8965 = vld [vmem:[%s11 + $0x4] sm:$0xf]
      %v8966 = vld [vmem:[%s11 + $0x8] sm:$0xf]
      %v8967 = vld [vmem:[%s11 + $0xc] sm:$0xf]
      %v8972 = vunpack.c.l.b16 %v8964
      %v8973 = vunpack.c.l.b16 %v8965
      %v8974 = vunpack.c.l.b16 %v8966
      %v8975 = vunpack.c.l.b16 %v8967
      %v8976 = vpack.c.b16 %v8973, %v8972
      %v8977 = vpack.c.b16 %v8975, %v8974
      %v8981 = vsel %vm8940, %v8962, 0
      %v8984 = vsel %vm8940, %v8963, 0
      %8986 = vmatprep.subr.bf16.mxu0 0
      %8987 = vmatpush1.bf16.msra.mxu0 %v8976
      %8988 = vmatprep.subr.bf16.mxu0 0
      %8989 = vmatpush1.bf16.msra.mxu0 %v8977
      %8990 = vmatprep.subr.bf16.mxu0 0
      %8991 = vmatpush1.bf16.msra.mxu0 0
      %8992 = vmatprep.subr.bf16.mxu0 0
      %8993 = vmatpush1.bf16.msra.mxu0 0
      %8994 = vmatprep.subr.bf16.mxu0 0
      %8995 = vmatpush1.bf16.msra.mxu0 0
      %8996 = vmatprep.subr.bf16.mxu0 0
      %8997 = vmatpush1.bf16.msra.mxu0 0
      %8998 = vmatprep.subr.bf16.mxu0 0
      %8999 = vmatpush1.bf16.msra.mxu0 0
      %9000 = vmatprep.subr.bf16.mxu0 0
      %9001 = vmatpush1.bf16.msra.mxu0 0
      %9002 = vmatprep.subr.bf16.mxu0 0
      %9003 = vmatpush1.bf16.msra.mxu0 0
      %9004 = vmatprep.subr.bf16.mxu0 0
      %9005 = vmatpush1.bf16.msra.mxu0 0
      %9006 = vmatprep.subr.bf16.mxu0 0
      %9007 = vmatpush1.bf16.msra.mxu0 0
      %9008 = vmatprep.subr.bf16.mxu0 0
      %9009 = vmatpush1.bf16.msra.mxu0 0
      %9010 = vmatprep.subr.bf16.mxu0 0
      %9011 = vmatpush1.bf16.msra.mxu0 0
      %9012 = vmatprep.subr.bf16.mxu0 0
      %9013 = vmatpush1.bf16.msra.mxu0 0
      %9014 = vmatprep.subr.bf16.mxu0 0
      %9015 = vmatpush1.bf16.msra.mxu0 0
      %9016 = vmatprep.subr.bf16.mxu0 0
      %9017 = vmatpush1.bf16.msra.mxu0 0
      %9018 = vmatprep.mubr.bf16.mxu0 0
      %9019 = vmatmul.mubr.bf16.gmra.mrb[0].mxu0 %v8981
      %v9020 = vpop.f32.mrb[0].mxu0
      %v9021 = vadd.f32 0.0, %v9020
      %v9022 = vpop.f32.mrb[0].mxu0
      %v9023 = vpop.f32.mrb[0].mxu0
      %v9024 = vadd.f32 0.0, %v9023
      %v9025 = vpop.f32.mrb[0].mxu0
      %9026 = vmatprep.mubr.bf16.mxu0 0
      %9027 = vmatmul.mubr.bf16.gmra.mrb[0].mxu0 %v8984
      %v9028 = vpop.f32.mrb[0].mxu0
      %v9029 = vadd.f32 0.0, %v9028
      %v9030 = vpop.f32.mrb[0].mxu0
      %v9031 = vpop.f32.mrb[0].mxu0
      %v9032 = vpop.f32.mrb[0].mxu0
      %9033 = vdwg.mxu0
      %v9035 = vlaneseq
      %v9036 = vshrl.u32 %v9035, 7
      %v9037 = vsub.s32 0, %v9036
      %v9038 = vrot.slane %v8956, %v9037
      %v9040 = vadd.f32 %v9038, %v9021
      %v9041 = vadd.f32 %v9038, %v9024
      %v9042 = vadd.f32 %v9038, %v9029
      %s9043 = scalar_lea.vmem [#allocation3], 2
      %v9044 = vld [vmem:[%s9043] ss:$5 sm:$0xff]
      %s9045 = scalar_lea.vmem [#allocation3], 42
      %v9046 = vld [vmem:[%s9045] ss:$5 sm:$0xff]
      %s9047 = scalar_lea.vmem [#allocation3], 82
      %v9048 = vld [vmem:[%s9047] ss:$5 sm:$0xff]
      %v9049 = vpack.c.bf16 %v9046, %v9044
      %v9050 = vpack.c.bf16 %v9048, %v9048
      %s9051 = scalar_lea.vmem %s11, 16
      %v9052 = vld [vmem:[%s9051] sm:$0xf]
      %v9053 = vld [vmem:[%s9051 + $0x4] sm:$0xf]
      %v9054 = vld [vmem:[%s9051 + $0x8] sm:$0xf]
      %v9055 = vld [vmem:[%s9051 + $0xc] sm:$0xf]
      %v9060 = vunpack.c.l.b16 %v9052
      %v9061 = vunpack.c.l.b16 %v9053
      %v9062 = vunpack.c.l.b16 %v9054
      %v9063 = vunpack.c.l.b16 %v9055
      %v9064 = vpack.c.b16 %v9061, %v9060
      %v9065 = vpack.c.b16 %v9063, %v9062
      %v9069 = vsel %vm8940, %v9049, 0
      %v9072 = vsel %vm8940, %v9050, 0
      %9074 = vmatprep.subr.bf16.mxu0 0
      %9075 = vmatpush1.bf16.msra.mxu0 %v9064
      %9076 = vmatprep.subr.bf16.mxu0 0
      %9077 = vmatpush1.bf16.msra.mxu0 %v9065
      %9078 = vmatprep.subr.bf16.mxu0 0
      %9079 = vmatpush1.bf16.msra.mxu0 0
      %9080 = vmatprep.subr.bf16.mxu0 0
      %9081 = vmatpush1.bf16.msra.mxu0 0
      %9082 = vmatprep.subr.bf16.mxu0 0
      %9083 = vmatpush1.bf16.msra.mxu0 0
      %9084 = vmatprep.subr.bf16.mxu0 0
      %9085 = vmatpush1.bf16.msra.mxu0 0
      %9086 = vmatprep.subr.bf16.mxu0 0
      %9087 = vmatpush1.bf16.msra.mxu0 0
      %9088 = vmatprep.subr.bf16.mxu0 0
      %9089 = vmatpush1.bf16.msra.mxu0 0
      %9090 = vmatprep.subr.bf16.mxu0 0
      %9091 = vmatpush1.bf16.msra.mxu0 0
      %9092 = vmatprep.subr.bf16.mxu0 0
      %9093 = vmatpush1.bf16.msra.mxu0 0
      %9094 = vmatprep.subr.bf16.mxu0 0
      %9095 = vmatpush1.bf16.msra.mxu0 0
      %9096 = vmatprep.subr.bf16.mxu0 0
      %9097 = vmatpush1.bf16.msra.mxu0 0
      %9098 = vmatprep.subr.bf16.mxu0 0
      %9099 = vmatpush1.bf16.msra.mxu0 0
      %9100 = vmatprep.subr.bf16.mxu0 0
      %9101 = vmatpush1.bf16.msra.mxu0 0
      %9102 = vmatprep.subr.bf16.mxu0 0
      %9103 = vmatpush1.bf16.msra.mxu0 0
      %9104 = vmatprep.subr.bf16.mxu0 0
      %9105 = vmatpush1.bf16.msra.mxu0 0
      %9106 = vmatprep.mubr.bf16.mxu0 0
      %9107 = vmatmul.mubr.bf16.gmra.mrb[0].mxu0 %v9069
      %v9108 = vpop.f32.mrb[0].mxu0
      %v9109 = vadd.f32 0.0, %v9108
      %v9110 = vpop.f32.mrb[0].mxu0
      %v9111 = vpop.f32.mrb[0].mxu0
      %v9112 = vadd.f32 0.0, %v9111
      %v9113 = vpop.f32.mrb[0].mxu0
      %9114 = vmatprep.mubr.bf16.mxu0 0
      %9115 = vmatmul.mubr.bf16.gmra.mrb[0].mxu0 %v9072
      %v9116 = vpop.f32.mrb[0].mxu0
      %v9117 = vadd.f32 0.0, %v9116
      %v9118 = vpop.f32.mrb[0].mxu0
      %v9119 = vpop.f32.mrb[0].mxu0
      %v9120 = vpop.f32.mrb[0].mxu0
      %9121 = vdwg.mxu0
      %v9122 = vadd.f32 %v9040, %v9109
      %v9123 = vadd.f32 %v9041, %v9112
      %v9124 = vadd.f32 %v9042, %v9117
      %vm9125 = vcmp.ge.f32.partialorder %v9122, 0.0
      %vm9126 = vcmp.ge.f32.partialorder %v9123, 0.0
      %vm9127 = vcmp.ge.f32.partialorder %v9124, 0.0
      %v9128 = vmul.f32 %v9122, 0.01
      %v9129 = vmul.f32 %v9123, 0.01
      %v9130 = vmul.f32 %v9124, 0.01
      %v9131 = vsel %vm9125, %v9122, %v9128
      %v9132 = vsel %vm9126, %v9123, %v9129
      %v9133 = vsel %vm9127, %v9124, %v9130
      %v9134 = vld [vmem:[%s13] sm:$0x1]
      %v9135 = vld [vmem:[#allocation4] sm:$0x1]
      %9137 = vset.pattern.permute.xlu0 0
      %9138 = vperm.xlu0 %9137, %v9135
      %v9139 = vpop.permute.xlu0 %9138
      %v9141 = vlaneseq
      %v9142 = vshrl.u32 %v9141, 7
      %v9143 = vsub.s32 0, %v9142
      %v9144 = vrot.slane %v9139, %v9143
      %vm9145 = vcmask 130048
      %v9147 = vsel %vm9145, %v9134, 0
      %v9150 = vsel %vm9145, %v9131, 0
      %v9153 = vsel %vm9145, %v9132, 0
      %v9156 = vsel %vm9145, %v9133, 0
      %9158 = vmatprep.subr.mxu0 0.0
      %9159 = vmatpush1.xpose.msra.mxu0 %v9150
      %9160 = vmatprep.subr.mxu0 0.0
      %9161 = vmatpush1.xpose.msra.mxu0 %v9153
      %9162 = vmatprep.subr.mxu0 0.0
      %9163 = vmatpush1.xpose.msra.mxu0 %v9156
      %9164 = vmatprep.subr.mxu0 0.0
      %9165 = vmatpush1.xpose.msra.mxu0 0.0
      %9166 = vmatprep.subr.mxu0 0.0
      %9167 = vmatpush1.xpose.msra.mxu0 0.0
      %9168 = vmatprep.subr.mxu0 0.0
      %9169 = vmatpush1.xpose.msra.mxu0 0.0
      %9170 = vmatprep.subr.mxu0 0.0
      %9171 = vmatpush1.xpose.msra.mxu0 0.0
      %9172 = vmatprep.subr.mxu0 0.0
      %9173 = vmatpush1.xpose.msra.mxu0 0.0
      %9174 = vmatprep.subr.mxu0 0.0
      %9175 = vmatpush1.xpose.msra.mxu0 0.0
      %9176 = vmatprep.subr.mxu0 0.0
      %9177 = vmatpush1.xpose.msra.mxu0 0.0
      %9178 = vmatprep.subr.mxu0 0.0
      %9179 = vmatpush1.xpose.msra.mxu0 0.0
      %9180 = vmatprep.subr.mxu0 0.0
      %9181 = vmatpush1.xpose.msra.mxu0 0.0
      %9182 = vmatprep.subr.mxu0 0.0
      %9183 = vmatpush1.xpose.msra.mxu0 0.0
      %9184 = vmatprep.subr.mxu0 0.0
      %9185 = vmatpush1.xpose.msra.mxu0 0.0
      %9186 = vmatprep.subr.mxu0 0.0
      %9187 = vmatpush1.xpose.msra.mxu0 0.0
      %9188 = vmatprep.subr.mxu0 0.0
      %9189 = vmatpush1.xpose.msra.mxu0 0.0
      %9190 = vmatprep.subr.mxu0 0.0
      %9191 = vmatpush1.xpose.msra.mxu0 0.0
      %9192 = vmatprep.subr.mxu0 0.0
      %9193 = vmatpush1.xpose.msra.mxu0 0.0
      %9194 = vmatprep.subr.mxu0 0.0
      %9195 = vmatpush1.xpose.msra.mxu0 0.0
      %9196 = vmatprep.subr.mxu0 0.0
      %9197 = vmatpush1.xpose.msra.mxu0 0.0
      %9198 = vmatprep.subr.mxu0 0.0
      %9199 = vmatpush1.xpose.msra.mxu0 0.0
      %9200 = vmatprep.subr.mxu0 0.0
      %9201 = vmatpush1.xpose.msra.mxu0 0.0
      %9202 = vmatprep.subr.mxu0 0.0
      %9203 = vmatpush1.xpose.msra.mxu0 0.0
      %9204 = vmatprep.subr.mxu0 0.0
      %9205 = vmatpush1.xpose.msra.mxu0 0.0
      %9206 = vmatprep.subr.mxu0 0.0
      %9207 = vmatpush1.xpose.msra.mxu0 0.0
      %9208 = vmatprep.subr.mxu0 0.0
      %9209 = vmatpush1.xpose.msra.mxu0 0.0
      %9210 = vmatprep.subr.mxu0 0.0
      %9211 = vmatpush1.xpose.msra.mxu0 0.0
      %9212 = vmatprep.subr.mxu0 0.0
      %9213 = vmatpush1.xpose.msra.mxu0 0.0
      %9214 = vmatprep.subr.mxu0 0.0
      %9215 = vmatpush1.xpose.msra.mxu0 0.0
      %9216 = vmatprep.subr.mxu0 0.0
      %9217 = vmatpush1.xpose.msra.mxu0 0.0
      %9218 = vmatprep.subr.mxu0 0.0
      %9219 = vmatpush1.xpose.msra.mxu0 0.0
      %9220 = vmatprep.subr.mxu0 0.0
      %9221 = vmatpush1.xpose.msra.mxu0 0.0
      %9222 = vmatprep.mubr.f32.mxu0 0.0
      %9223 = vmatmul.mubr.f32.gmra.mrb[0].mxu0 %v9147
      %v9224 = vpop.f32.mrb[0].mxu0
      %v9225 = vadd.f32 %v9144, %v9224
      %v9226 = vpop.f32.mrb[0].mxu0
      %9227 = vdwg.mxu0
      %vm9228 = vcmask 188416
      %9229 = vst.msk [vmem:[%s497] sm:$0x1] %vm9228, %v9225
      %p9230 = scmp.lt.s32.totalorder %s28, 1
      %s9231 = scalar_select %p9230, %s28, 1
      %s9232 = scalar_lea.vmem %s15, %s9231
      // Predicated region
      $region81: #{fused_forward.1} parent=79 // pred_check
        %p9233 = pneg %p366
      $region82: #{fused_forward.1} parent=79 // pred_check_branch
        %9235 = sbr.rel (%p9233) target = $region84
      $region83: #{fused_forward.1} parent=79 // pred_region
        _
      $region84: #{fused_forward.1} parent=79 // pred_fallthru
        _
    $region80: #{fused_forward.1} parent=5 // pred_fallthru
      _
    %p9236 = scmp.le.s32.totalorder 2, %s23
    // Predicated region
    $region85: #{fused_forward.1} parent=5 // pred_check
      %p9237 = pneg %p9236
    $region86: #{fused_forward.1} parent=5 // pred_check_branch
      %9239 = sbr.rel (%p9237) target = $region88
    $region87: #{fused_forward.1} parent=5 // pred_region
      %s9240 = ssub.s32 %s23, 2
      // Predicated region
      $region89: #{fused_forward.1} parent=87 // pred_check
        %p9241 = pneg %p372
      $region90: #{fused_forward.1} parent=87 // pred_check_branch
        %9243 = sbr.rel (%p9241) target = $region92
      $region91: #{fused_forward.1} parent=87 // pred_region
        %p9244 = scmp.lt.s32.totalorder %s29, 1
        %s9245 = scalar_select %p9244, %s29, 1
        %s9246 = scalar_lea.vmem %s15, %s9245
      $region92: #{fused_forward.1} parent=87 // pred_fallthru
        _
    $region88: #{fused_forward.1} parent=5 // pred_fallthru
      _
  $region6: #{fused_forward.1} parent=0 // loop_footer
    %s27 = sadd.s32 1, %s23
  $region7: #{fused_forward.1} parent=0 // loop_footer_branch
    %22 = sbr.rel target = $region3
  $region8: #{fused_forward.1} parent=0 // loop_exit
    _

</llo_original>
